<compile_context>
chip_gen: v7x
topology: tpu7x:2x2x1
jax: 0.10.0
libtpu: 0.0.40
codegen_flags: <defaults>
</compile_context>

<pallas_src>
import numpy as np
import jax
import jax.numpy as jnp
from jax import lax
from jax.experimental import pallas as pl
from jax.experimental.pallas import tpu as pltpu

LANE = 128      # lane width (last dim)
SUBLANE = 8     # f32 sublane count (second-to-last dim)


def _round_up(n, m):
    return ((n + m - 1) // m) * m


# ----------------------------------------------------------------------------
# Fused Pallas kernel: all layers, both directions, FC head
# ----------------------------------------------------------------------------
def _make_birnn_kernel(num_layers):
    """Kernel args:
        x_ref                               (T, Bp, Din0p)   time-major input
        per layer: wf, bf, wr, br           fused padded weights / biases
        fc_w, fc_b                          (2Hp, Cp), (1, Cp)
        out_ref                             (Bp, Cp)         sigmoid(fc(...))
        buf0, buf1                          (T, Bp, 2Hp)     VMEM scratch
    """

    def kernel(x_ref, *args):
        nw = 4 * num_layers
        layer_refs = args[:nw]
        fc_w_ref = args[nw]
        fc_b_ref = args[nw + 1]
        out_ref = args[nw + 2]
        bufs = (args[nw + 3], args[nw + 4])

        T, B, _ = x_ref.shape

        def run_dir(in_ref, w_cat, bias_b, out_buf, col_off, reverse):
            """One LSTM direction over the full sequence.

            w_cat  : (Din_p + Hp, 4*Hp)  fused [W_ih; W_hh] (already in vregs)
            bias_b : (B, 4*Hp)           bias broadcast hoisted out of the loop
            Writes h_t into out_buf[t, :, col_off:col_off+Hp].
            """
            Hp = w_cat.shape[1] // 4

            def step(t, carry):
                h, c = carry
                ti = (T - 1 - t) if reverse else t          # static py-bool branch
                x_t = in_ref[ti]                            # (B, Din_p)
                # Single fused MXU op per step: concat([x_t, h]) @ [W_ih; W_hh]
                gates = jnp.dot(jnp.concatenate([x_t, h], axis=-1), w_cat,
                                preferred_element_type=jnp.float32) + bias_b
                i = jax.nn.sigmoid(gates[:, 0 * Hp:1 * Hp])  # lane-aligned slices
                f = jax.nn.sigmoid(gates[:, 1 * Hp:2 * Hp])
                g = jnp.tanh(gates[:, 2 * Hp:3 * Hp])
                o = jax.nn.sigmoid(gates[:, 3 * Hp:4 * Hp])
                c_new = f * c + i * g
                h_new = o * jnp.tanh(c_new)
                out_buf[ti, :, col_off:col_off + Hp] = h_new.astype(out_buf.dtype)
                return h_new, c_new

            zeros = jnp.zeros((B, Hp), jnp.float32)
            lax.fori_loop(0, T, step, (zeros, zeros), unroll=True)

        in_ref = x_ref
        for layer in range(num_layers):
            wf_ref, bf_ref, wr_ref, br_ref = layer_refs[4 * layer:4 * layer + 4]
            Hp = wf_ref.shape[1] // 4
            out_buf = bufs[layer % 2]
            # Hoist weight loads and bias broadcasts out of the time loop
            # (JAX does not CSE broadcast_in_dim).
            wf = wf_ref[...]
            wr = wr_ref[...]
            bbf = jnp.broadcast_to(bf_ref[...], (B, 4 * Hp))
            bbr = jnp.broadcast_to(br_ref[...], (B, 4 * Hp))
            run_dir(in_ref, wf, bbf, out_buf, 0, reverse=False)
            run_dir(in_ref, wr, bbr, out_buf, Hp, reverse=True)
            in_ref = out_buf

        # FC + sigmoid on out[:, -1, :]  (forward final h  ||  reverse h at t=T-1)
        last = in_ref[T - 1]                                 # (B, 2*Hp)
        y = jnp.dot(last, fc_w_ref[...],
                    preferred_element_type=jnp.float32) + fc_b_ref[...]
        out_ref[...] = jax.nn.sigmoid(y).astype(out_ref.dtype)

    return kernel


# ----------------------------------------------------------------------------
# Parameter packing: fuse [W_ih; W_hh], pad H/Din/C to lane multiples
# ----------------------------------------------------------------------------
def _pack_direction(w_ih, w_hh, b_ih, b_hh, in_map, din_pad, h_pad):
    """Returns fused weight (din_pad + h_pad, 4*h_pad) and bias (1, 4*h_pad).

    Gate order (i, f, g, o) is preserved; each gate block is placed at a
    128-aligned column offset.  Padded columns / rows / biases are zero, so
    padded hidden units remain exactly 0 through the recurrence.
    """
    w_ih = np.asarray(w_ih, np.float32)
    w_hh = np.asarray(w_hh, np.float32)
    b = np.asarray(b_ih, np.float32) + np.asarray(b_hh, np.float32)
    H = w_hh.shape[1]

    w_cat = np.zeros((din_pad + h_pad, 4 * h_pad), np.float32)
    b_cat = np.zeros((1, 4 * h_pad), np.float32)
    for g in range(4):
        cols = np.arange(g * h_pad, g * h_pad + H)
        w_cat[np.ix_(in_map, cols)] = w_ih[g * H:(g + 1) * H, :].T       # input part
        w_cat[din_pad:din_pad + H, g * h_pad:g * h_pad + H] = \
            w_hh[g * H:(g + 1) * H, :].T                                 # hidden part
        b_cat[0, g * h_pad:g * h_pad + H] = b[g * H:(g + 1) * H]
    return jnp.asarray(w_cat), jnp.asarray(b_cat)


def pack_params(raw_params, input_size, hidden_size):
    lstm_layers, (fc_w, fc_b) = raw_params
    H = hidden_size
    h_pad = _round_up(H, LANE)
    din0_pad = _round_up(input_size, LANE)
    # Real feature positions inside a padded (..., 2*h_pad) fwd||rev buffer.
    hid_map = np.concatenate([np.arange(H), h_pad + np.arange(H)])

    packed = []
    for layer, (fwd, rev) in enumerate(lstm_layers):
        if layer == 0:
            din_pad, in_map = din0_pad, np.arange(input_size)
        else:
            din_pad, in_map = 2 * h_pad, hid_map
        for d in (fwd, rev):
            w, b = _pack_direction(*d, in_map=in_map, din_pad=din_pad, h_pad=h_pad)
            packed.extend([w, b])

    C = np.asarray(fc_w).shape[0]
    c_pad = _round_up(C, LANE)
    wfc = np.zeros((2 * h_pad, c_pad), np.float32)
    bfc = np.zeros((1, c_pad), np.float32)
    wfc[np.ix_(hid_map, np.arange(C))] = np.asarray(fc_w, np.float32).T
    bfc[0, :C] = np.asarray(fc_b, np.float32)
    packed.extend([jnp.asarray(wfc), jnp.asarray(bfc)])

    meta = dict(num_layers=len(lstm_layers), h_pad=h_pad, din0_pad=din0_pad,
                c_pad=c_pad, num_classes=C, input_size=input_size,
                hidden_size=H)
    return packed, meta


# ----------------------------------------------------------------------------
# Wrapper (public interface: batch-first, like nn.LSTM(batch_first=True))
# ----------------------------------------------------------------------------
def birnn_forward(x, packed, meta):
    """x: (B, T, input_size) -> (B, num_classes)  (matches BiRNN.forward)."""
    B, T, Din = x.shape
    h_pad, din0_pad, c_pad = meta["h_pad"], meta["din0_pad"], meta["c_pad"]
    num_layers = meta["num_layers"]
    B_pad = _round_up(max(B, SUBLANE), SUBLANE)

    # Time-major, zero-padded batch (sublane) and features (lane).
    x_tbd = jnp.transpose(x, (1, 0, 2)).astype(jnp.float32)
    x_p = jnp.pad(x_tbd, ((0, 0), (0, B_pad - B), (0, din0_pad - Din)))

    kernel = _make_birnn_kernel(num_layers)
    n_in = 1 + len(packed)
    out = pl.pallas_call(
        kernel,
        out_shape=jax.ShapeDtypeStruct((B_pad, c_pad), jnp.float32),
        in_specs=[pl.BlockSpec(memory_space=pltpu.MemorySpace.VMEM)] * n_in,
        out_specs=pl.BlockSpec(memory_space=pltpu.MemorySpace.VMEM),
        scratch_shapes=[pltpu.VMEM((T, B_pad, 2 * h_pad), jnp.float32)] * 2,
    )(x_p, *packed)
    return out[:B, :meta["num_classes"]]


# ----------------------------------------------------------------------------
# Pure-JAX reference (PyTorch LSTM semantics) for correctness checking
# ----------------------------------------------------------------------------
def _lstm_dir_ref(x_tbd, w_ih, w_hh, b_ih, b_hh, reverse=False):
    T, B, _ = x_tbd.shape
    H = w_hh.shape[1]
    wih_t, whh_t = w_ih.T, w_hh.T
    b = (b_ih + b_hh)[None, :]

    def step(carry, x_t):
        h, c = carry
        g = x_t @ wih_t + h @ whh_t + b
        i = jax.nn.sigmoid(g[:, :H])
        f = jax.nn.sigmoid(g[:, H:2 * H])
        gg = jnp.tanh(g[:, 2 * H:3 * H])
        o = jax.nn.sigmoid(g[:, 3 * H:])
        c = f * c + i * gg
        h = o * jnp.tanh(c)
        return (h, c), h

    xs = x_tbd[::-1] if reverse else x_tbd
    h0 = jnp.zeros((B, H), jnp.float32)
    _, hs = lax.scan(step, (h0, h0), xs)
    return hs[::-1] if reverse else hs


def birnn_forward_ref(x, raw_params):
    lstm_layers, (fc_w, fc_b) = raw_params
    h = jnp.transpose(x, (1, 0, 2))
    for (fwd, rev) in lstm_layers:
        out_f = _lstm_dir_ref(h, *fwd, reverse=False)
        out_r = _lstm_dir_ref(h, *rev, reverse=True)
        h = jnp.concatenate([out_f, out_r], axis=-1)
    return jax.nn.sigmoid(h[-1] @ fc_w.T + fc_b)


# ----------------------------------------------------------------------------
# Deterministic parameter init (torch layout: nn.LSTM / nn.Linear shapes)
# ----------------------------------------------------------------------------
def init_params(key, input_size, hidden_size, num_layers, num_classes):
    k = 1.0 / np.sqrt(hidden_size)
    layers = []
    for layer in range(num_layers):
        in_size = input_size if layer == 0 else 2 * hidden_size
        dirs = []
        for _ in range(2):  # forward, reverse
            key, k1, k2, k3, k4 = jax.random.split(key, 5)
            w_ih = jax.random.uniform(k1, (4 * hidden_size, in_size),
                                      minval=-k, maxval=k, dtype=jnp.float32)
            w_hh = jax.random.uniform(k2, (4 * hidden_size, hidden_size),
                                      minval=-k, maxval=k, dtype=jnp.float32)
            b_ih = jax.random.uniform(k3, (4 * hidden_size,),
                                      minval=-k, maxval=k, dtype=jnp.float32)
            b_hh = jax.random.uniform(k4, (4 * hidden_size,),
                                      minval=-k, maxval=k, dtype=jnp.float32)
            dirs.append((w_ih, w_hh, b_ih, b_hh))
        layers.append(tuple(dirs))

    kfc = 1.0 / np.sqrt(2 * hidden_size)
    key, k5, k6 = jax.random.split(key, 3)
    fc_w = jax.random.uniform(k5, (num_classes, 2 * hidden_size),
                              minval=-kfc, maxval=kfc, dtype=jnp.float32)
    fc_b = jax.random.uniform(k6, (num_classes,),
                              minval=-kfc, maxval=kfc, dtype=jnp.float32)
    return layers, (fc_w, fc_b)


# ----------------------------------------------------------------------------
if __name__ == "__main__":
    # Small shapes consistent with the module's forward.  batch=8 keeps the
    # f32 sublanes fully occupied (review: B>=8 per call).
    batch, seq_len = 8, 8
    input_size, hidden_size, num_layers, num_classes = 16, 32, 2, 4

    key = jax.random.PRNGKey(0)
    key, xk, pk = jax.random.split(key, 3)
    x = jax.random.normal(xk, (batch, seq_len, input_size), dtype=jnp.float32)

    raw_params = init_params(pk, input_size, hidden_size, num_layers, num_classes)
    packed, meta = pack_params(raw_params, input_size, hidden_size)

    out = birnn_forward(x, packed, meta)
    out = jax.block_until_ready(out)

    ref = birnn_forward_ref(x, raw_params)
    np.testing.assert_allclose(np.asarray(out), np.asarray(ref),
                               rtol=1e-4, atol=1e-5)
    assert out.shape == (batch, num_classes)

    print("KERNEL_OK")
</pallas_src>

<mosaic_0001>
module attributes {stable_mosaic.version = 11 : i64} {
  func.func @kernel(%arg0: memref<8x8x128xf32, #tpu.memory_space<vmem>>, %arg1: memref<256x512xf32, #tpu.memory_space<vmem>>, %arg2: memref<1x512xf32, #tpu.memory_space<vmem>>, %arg3: memref<256x512xf32, #tpu.memory_space<vmem>>, %arg4: memref<1x512xf32, #tpu.memory_space<vmem>>, %arg5: memref<384x512xf32, #tpu.memory_space<vmem>>, %arg6: memref<1x512xf32, #tpu.memory_space<vmem>>, %arg7: memref<384x512xf32, #tpu.memory_space<vmem>>, %arg8: memref<1x512xf32, #tpu.memory_space<vmem>>, %arg9: memref<256x128xf32, #tpu.memory_space<vmem>>, %arg10: memref<1x128xf32, #tpu.memory_space<vmem>>, %arg11: memref<8x128xf32, #tpu.memory_space<vmem>>, %arg12: memref<8x8x256xf32, #tpu.memory_space<vmem>>, %arg13: memref<8x8x256xf32, #tpu.memory_space<vmem>>) attributes {dimension_semantics = [], scalar_prefetch = 0 : i64, scratch_operands = 2 : i64, tpu.core_type = #tpu.core_type<tc>} {
    %c0 = arith.constant 0 : index
    %c0_0 = arith.constant 0 : index
    %0 = vector.load %arg1[%c0, %c0_0] : memref<256x512xf32, #tpu.memory_space<vmem>>, vector<256x512xf32>
    %c0_1 = arith.constant 0 : index
    %c0_2 = arith.constant 0 : index
    %1 = vector.load %arg3[%c0_1, %c0_2] : memref<256x512xf32, #tpu.memory_space<vmem>>, vector<256x512xf32>
    %c0_3 = arith.constant 0 : index
    %c0_4 = arith.constant 0 : index
    %2 = vector.load %arg2[%c0_3, %c0_4] : memref<1x512xf32, #tpu.memory_space<vmem>>, vector<1x512xf32>
    %3 = vector.shape_cast %2 : vector<1x512xf32> to vector<1x512xf32>
    %4 = vector.broadcast %3 : vector<1x512xf32> to vector<8x512xf32>
    %c0_5 = arith.constant 0 : index
    %c0_6 = arith.constant 0 : index
    %5 = vector.load %arg4[%c0_5, %c0_6] : memref<1x512xf32, #tpu.memory_space<vmem>>, vector<1x512xf32>
    %6 = vector.shape_cast %5 : vector<1x512xf32> to vector<1x512xf32>
    %7 = vector.broadcast %6 : vector<1x512xf32> to vector<8x512xf32>
    %cst = arith.constant 0.000000e+00 : f32
    %8 = vector.broadcast %cst : f32 to vector<8x128xf32>
    %c0_i32 = arith.constant 0 : i32
    %9 = arith.index_cast %c0_i32 : i32 to index
    %c0_7 = arith.constant 0 : index
    %c0_8 = arith.constant 0 : index
    %10 = vector.load %arg0[%9, %c0_7, %c0_8] : memref<8x8x128xf32, #tpu.memory_space<vmem>>, vector<1x8x128xf32>
    %11 = vector.shape_cast %10 : vector<1x8x128xf32> to vector<8x128xf32>
    %12 = tpu.concatenate %11, %8 in 1 : vector<8x128xf32>, vector<8x128xf32> -> vector<8x256xf32>
    %cst_9 = arith.constant dense<0.000000e+00> : vector<8x512xf32>
    %13 = tpu.matmul %12, %0, %cst_9 {dimension_numbers = #tpu.dot_dimension_numbers<[1], [0], [0], [1], [0, 0, 1, 1], [], []>} : vector<8x256xf32>, vector<256x512xf32>, vector<8x512xf32> -> vector<8x512xf32>
    %14 = arith.addf %13, %4 : vector<8x512xf32>
    %15 = vector.extract_strided_slice %14 {offsets = [0, 0], sizes = [8, 128], strides = [1, 1]} : vector<8x512xf32> to vector<8x128xf32>
    %16 = arith.negf %15 : vector<8x128xf32>
    %17 = math.exp %16 : vector<8x128xf32>
    %cst_10 = arith.constant 1.000000e+00 : f32
    %18 = vector.broadcast %cst_10 : f32 to vector<8x128xf32>
    %19 = arith.addf %18, %17 : vector<8x128xf32>
    %20 = arith.divf %18, %19 : vector<8x128xf32>
    %21 = vector.extract_strided_slice %14 {offsets = [0, 128], sizes = [8, 128], strides = [1, 1]} : vector<8x512xf32> to vector<8x128xf32>
    %22 = arith.negf %21 : vector<8x128xf32>
    %23 = math.exp %22 : vector<8x128xf32>
    %cst_11 = arith.constant 1.000000e+00 : f32
    %24 = vector.broadcast %cst_11 : f32 to vector<8x128xf32>
    %25 = arith.addf %24, %23 : vector<8x128xf32>
    %26 = arith.divf %24, %25 : vector<8x128xf32>
    %27 = vector.extract_strided_slice %14 {offsets = [0, 256], sizes = [8, 128], strides = [1, 1]} : vector<8x512xf32> to vector<8x128xf32>
    %28 = math.tanh %27 : vector<8x128xf32>
    %29 = vector.extract_strided_slice %14 {offsets = [0, 384], sizes = [8, 128], strides = [1, 1]} : vector<8x512xf32> to vector<8x128xf32>
    %30 = arith.negf %29 : vector<8x128xf32>
    %31 = math.exp %30 : vector<8x128xf32>
    %cst_12 = arith.constant 1.000000e+00 : f32
    %32 = vector.broadcast %cst_12 : f32 to vector<8x128xf32>
    %33 = arith.addf %32, %31 : vector<8x128xf32>
    %34 = arith.divf %32, %33 : vector<8x128xf32>
    %35 = arith.mulf %26, %8 : vector<8x128xf32>
    %36 = arith.mulf %20, %28 : vector<8x128xf32>
    %37 = arith.addf %35, %36 : vector<8x128xf32>
    %38 = math.tanh %37 : vector<8x128xf32>
    %39 = arith.mulf %34, %38 : vector<8x128xf32>
    %40 = arith.index_cast %c0_i32 : i32 to index
    %c0_13 = arith.constant 0 : index
    %c0_14 = arith.constant 0 : index
    %41 = vector.load %arg12[%40, %c0_13, %c0_14] : memref<8x8x256xf32, #tpu.memory_space<vmem>>, vector<1x8x128xf32>
    %42 = vector.shape_cast %41 : vector<1x8x128xf32> to vector<8x128xf32>
    %43 = vector.shape_cast %39 : vector<8x128xf32> to vector<1x8x128xf32>
    tpu.vector_store %arg12[%40, %c0_13, %c0_14], %43 {strides = array<i32>} : memref<8x8x256xf32, #tpu.memory_space<vmem>>, vector<1x8x128xf32>,
    %c1_i32 = arith.constant 1 : i32
    %44 = arith.index_cast %c1_i32 : i32 to index
    %c0_15 = arith.constant 0 : index
    %c0_16 = arith.constant 0 : index
    %45 = vector.load %arg0[%44, %c0_15, %c0_16] : memref<8x8x128xf32, #tpu.memory_space<vmem>>, vector<1x8x128xf32>
    %46 = vector.shape_cast %45 : vector<1x8x128xf32> to vector<8x128xf32>
    %47 = tpu.concatenate %46, %39 in 1 : vector<8x128xf32>, vector<8x128xf32> -> vector<8x256xf32>
    %cst_17 = arith.constant dense<0.000000e+00> : vector<8x512xf32>
    %48 = tpu.matmul %47, %0, %cst_17 {dimension_numbers = #tpu.dot_dimension_numbers<[1], [0], [0], [1], [0, 0, 1, 1], [], []>} : vector<8x256xf32>, vector<256x512xf32>, vector<8x512xf32> -> vector<8x512xf32>
    %49 = arith.addf %48, %4 : vector<8x512xf32>
    %50 = vector.extract_strided_slice %49 {offsets = [0, 0], sizes = [8, 128], strides = [1, 1]} : vector<8x512xf32> to vector<8x128xf32>
    %51 = arith.negf %50 : vector<8x128xf32>
    %52 = math.exp %51 : vector<8x128xf32>
    %cst_18 = arith.constant 1.000000e+00 : f32
    %53 = vector.broadcast %cst_18 : f32 to vector<8x128xf32>
    %54 = arith.addf %53, %52 : vector<8x128xf32>
    %55 = arith.divf %53, %54 : vector<8x128xf32>
    %56 = vector.extract_strided_slice %49 {offsets = [0, 128], sizes = [8, 128], strides = [1, 1]} : vector<8x512xf32> to vector<8x128xf32>
    %57 = arith.negf %56 : vector<8x128xf32>
    %58 = math.exp %57 : vector<8x128xf32>
    %cst_19 = arith.constant 1.000000e+00 : f32
    %59 = vector.broadcast %cst_19 : f32 to vector<8x128xf32>
    %60 = arith.addf %59, %58 : vector<8x128xf32>
    %61 = arith.divf %59, %60 : vector<8x128xf32>
    %62 = vector.extract_strided_slice %49 {offsets = [0, 256], sizes = [8, 128], strides = [1, 1]} : vector<8x512xf32> to vector<8x128xf32>
    %63 = math.tanh %62 : vector<8x128xf32>
    %64 = vector.extract_strided_slice %49 {offsets = [0, 384], sizes = [8, 128], strides = [1, 1]} : vector<8x512xf32> to vector<8x128xf32>
    %65 = arith.negf %64 : vector<8x128xf32>
    %66 = math.exp %65 : vector<8x128xf32>
    %cst_20 = arith.constant 1.000000e+00 : f32
    %67 = vector.broadcast %cst_20 : f32 to vector<8x128xf32>
    %68 = arith.addf %67, %66 : vector<8x128xf32>
    %69 = arith.divf %67, %68 : vector<8x128xf32>
    %70 = arith.mulf %61, %37 : vector<8x128xf32>
    %71 = arith.mulf %55, %63 : vector<8x128xf32>
    %72 = arith.addf %70, %71 : vector<8x128xf32>
    %73 = math.tanh %72 : vector<8x128xf32>
    %74 = arith.mulf %69, %73 : vector<8x128xf32>
    %75 = arith.index_cast %c1_i32 : i32 to index
    %c0_21 = arith.constant 0 : index
    %c0_22 = arith.constant 0 : index
    %76 = vector.load %arg12[%75, %c0_21, %c0_22] : memref<8x8x256xf32, #tpu.memory_space<vmem>>, vector<1x8x128xf32>
    %77 = vector.shape_cast %76 : vector<1x8x128xf32> to vector<8x128xf32>
    %78 = vector.shape_cast %74 : vector<8x128xf32> to vector<1x8x128xf32>
    tpu.vector_store %arg12[%75, %c0_21, %c0_22], %78 {strides = array<i32>} : memref<8x8x256xf32, #tpu.memory_space<vmem>>, vector<1x8x128xf32>,
    %c2_i32 = arith.constant 2 : i32
    %79 = arith.index_cast %c2_i32 : i32 to index
    %c0_23 = arith.constant 0 : index
    %c0_24 = arith.constant 0 : index
    %80 = vector.load %arg0[%79, %c0_23, %c0_24] : memref<8x8x128xf32, #tpu.memory_space<vmem>>, vector<1x8x128xf32>
    %81 = vector.shape_cast %80 : vector<1x8x128xf32> to vector<8x128xf32>
    %82 = tpu.concatenate %81, %74 in 1 : vector<8x128xf32>, vector<8x128xf32> -> vector<8x256xf32>
    %cst_25 = arith.constant dense<0.000000e+00> : vector<8x512xf32>
    %83 = tpu.matmul %82, %0, %cst_25 {dimension_numbers = #tpu.dot_dimension_numbers<[1], [0], [0], [1], [0, 0, 1, 1], [], []>} : vector<8x256xf32>, vector<256x512xf32>, vector<8x512xf32> -> vector<8x512xf32>
    %84 = arith.addf %83, %4 : vector<8x512xf32>
    %85 = vector.extract_strided_slice %84 {offsets = [0, 0], sizes = [8, 128], strides = [1, 1]} : vector<8x512xf32> to vector<8x128xf32>
    %86 = arith.negf %85 : vector<8x128xf32>
    %87 = math.exp %86 : vector<8x128xf32>
    %cst_26 = arith.constant 1.000000e+00 : f32
    %88 = vector.broadcast %cst_26 : f32 to vector<8x128xf32>
    %89 = arith.addf %88, %87 : vector<8x128xf32>
    %90 = arith.divf %88, %89 : vector<8x128xf32>
    %91 = vector.extract_strided_slice %84 {offsets = [0, 128], sizes = [8, 128], strides = [1, 1]} : vector<8x512xf32> to vector<8x128xf32>
    %92 = arith.negf %91 : vector<8x128xf32>
    %93 = math.exp %92 : vector<8x128xf32>
    %cst_27 = arith.constant 1.000000e+00 : f32
    %94 = vector.broadcast %cst_27 : f32 to vector<8x128xf32>
    %95 = arith.addf %94, %93 : vector<8x128xf32>
    %96 = arith.divf %94, %95 : vector<8x128xf32>
    %97 = vector.extract_strided_slice %84 {offsets = [0, 256], sizes = [8, 128], strides = [1, 1]} : vector<8x512xf32> to vector<8x128xf32>
    %98 = math.tanh %97 : vector<8x128xf32>
    %99 = vector.extract_strided_slice %84 {offsets = [0, 384], sizes = [8, 128], strides = [1, 1]} : vector<8x512xf32> to vector<8x128xf32>
    %100 = arith.negf %99 : vector<8x128xf32>
    %101 = math.exp %100 : vector<8x128xf32>
    %cst_28 = arith.constant 1.000000e+00 : f32
    %102 = vector.broadcast %cst_28 : f32 to vector<8x128xf32>
    %103 = arith.addf %102, %101 : vector<8x128xf32>
    %104 = arith.divf %102, %103 : vector<8x128xf32>
    %105 = arith.mulf %96, %72 : vector<8x128xf32>
    %106 = arith.mulf %90, %98 : vector<8x128xf32>
    %107 = arith.addf %105, %106 : vector<8x128xf32>
    %108 = math.tanh %107 : vector<8x128xf32>
    %109 = arith.mulf %104, %108 : vector<8x128xf32>
    %110 = arith.index_cast %c2_i32 : i32 to index
    %c0_29 = arith.constant 0 : index
    %c0_30 = arith.constant 0 : index
    %111 = vector.load %arg12[%110, %c0_29, %c0_30] : memref<8x8x256xf32, #tpu.memory_space<vmem>>, vector<1x8x128xf32>
    %112 = vector.shape_cast %111 : vector<1x8x128xf32> to vector<8x128xf32>
    %113 = vector.shape_cast %109 : vector<8x128xf32> to vector<1x8x128xf32>
    tpu.vector_store %arg12[%110, %c0_29, %c0_30], %113 {strides = array<i32>} : memref<8x8x256xf32, #tpu.memory_space<vmem>>, vector<1x8x128xf32>,
    %c3_i32 = arith.constant 3 : i32
    %114 = arith.index_cast %c3_i32 : i32 to index
    %c0_31 = arith.constant 0 : index
    %c0_32 = arith.constant 0 : index
    %115 = vector.load %arg0[%114, %c0_31, %c0_32] : memref<8x8x128xf32, #tpu.memory_space<vmem>>, vector<1x8x128xf32>
    %116 = vector.shape_cast %115 : vector<1x8x128xf32> to vector<8x128xf32>
    %117 = tpu.concatenate %116, %109 in 1 : vector<8x128xf32>, vector<8x128xf32> -> vector<8x256xf32>
    %cst_33 = arith.constant dense<0.000000e+00> : vector<8x512xf32>
    %118 = tpu.matmul %117, %0, %cst_33 {dimension_numbers = #tpu.dot_dimension_numbers<[1], [0], [0], [1], [0, 0, 1, 1], [], []>} : vector<8x256xf32>, vector<256x512xf32>, vector<8x512xf32> -> vector<8x512xf32>
    %119 = arith.addf %118, %4 : vector<8x512xf32>
    %120 = vector.extract_strided_slice %119 {offsets = [0, 0], sizes = [8, 128], strides = [1, 1]} : vector<8x512xf32> to vector<8x128xf32>
    %121 = arith.negf %120 : vector<8x128xf32>
    %122 = math.exp %121 : vector<8x128xf32>
    %cst_34 = arith.constant 1.000000e+00 : f32
    %123 = vector.broadcast %cst_34 : f32 to vector<8x128xf32>
    %124 = arith.addf %123, %122 : vector<8x128xf32>
    %125 = arith.divf %123, %124 : vector<8x128xf32>
    %126 = vector.extract_strided_slice %119 {offsets = [0, 128], sizes = [8, 128], strides = [1, 1]} : vector<8x512xf32> to vector<8x128xf32>
    %127 = arith.negf %126 : vector<8x128xf32>
    %128 = math.exp %127 : vector<8x128xf32>
    %cst_35 = arith.constant 1.000000e+00 : f32
    %129 = vector.broadcast %cst_35 : f32 to vector<8x128xf32>
    %130 = arith.addf %129, %128 : vector<8x128xf32>
    %131 = arith.divf %129, %130 : vector<8x128xf32>
    %132 = vector.extract_strided_slice %119 {offsets = [0, 256], sizes = [8, 128], strides = [1, 1]} : vector<8x512xf32> to vector<8x128xf32>
    %133 = math.tanh %132 : vector<8x128xf32>
    %134 = vector.extract_strided_slice %119 {offsets = [0, 384], sizes = [8, 128], strides = [1, 1]} : vector<8x512xf32> to vector<8x128xf32>
    %135 = arith.negf %134 : vector<8x128xf32>
    %136 = math.exp %135 : vector<8x128xf32>
    %cst_36 = arith.constant 1.000000e+00 : f32
    %137 = vector.broadcast %cst_36 : f32 to vector<8x128xf32>
    %138 = arith.addf %137, %136 : vector<8x128xf32>
    %139 = arith.divf %137, %138 : vector<8x128xf32>
    %140 = arith.mulf %131, %107 : vector<8x128xf32>
    %141 = arith.mulf %125, %133 : vector<8x128xf32>
    %142 = arith.addf %140, %141 : vector<8x128xf32>
    %143 = math.tanh %142 : vector<8x128xf32>
    %144 = arith.mulf %139, %143 : vector<8x128xf32>
    %145 = arith.index_cast %c3_i32 : i32 to index
    %c0_37 = arith.constant 0 : index
    %c0_38 = arith.constant 0 : index
    %146 = vector.load %arg12[%145, %c0_37, %c0_38] : memref<8x8x256xf32, #tpu.memory_space<vmem>>, vector<1x8x128xf32>
    %147 = vector.shape_cast %146 : vector<1x8x128xf32> to vector<8x128xf32>
    %148 = vector.shape_cast %144 : vector<8x128xf32> to vector<1x8x128xf32>
    tpu.vector_store %arg12[%145, %c0_37, %c0_38], %148 {strides = array<i32>} : memref<8x8x256xf32, #tpu.memory_space<vmem>>, vector<1x8x128xf32>,
    %c4_i32 = arith.constant 4 : i32
    %149 = arith.index_cast %c4_i32 : i32 to index
    %c0_39 = arith.constant 0 : index
    %c0_40 = arith.constant 0 : index
    %150 = vector.load %arg0[%149, %c0_39, %c0_40] : memref<8x8x128xf32, #tpu.memory_space<vmem>>, vector<1x8x128xf32>
    %151 = vector.shape_cast %150 : vector<1x8x128xf32> to vector<8x128xf32>
    %152 = tpu.concatenate %151, %144 in 1 : vector<8x128xf32>, vector<8x128xf32> -> vector<8x256xf32>
    %cst_41 = arith.constant dense<0.000000e+00> : vector<8x512xf32>
    %153 = tpu.matmul %152, %0, %cst_41 {dimension_numbers = #tpu.dot_dimension_numbers<[1], [0], [0], [1], [0, 0, 1, 1], [], []>} : vector<8x256xf32>, vector<256x512xf32>, vector<8x512xf32> -> vector<8x512xf32>
    %154 = arith.addf %153, %4 : vector<8x512xf32>
    %155 = vector.extract_strided_slice %154 {offsets = [0, 0], sizes = [8, 128], strides = [1, 1]} : vector<8x512xf32> to vector<8x128xf32>
    %156 = arith.negf %155 : vector<8x128xf32>
    %157 = math.exp %156 : vector<8x128xf32>
    %cst_42 = arith.constant 1.000000e+00 : f32
    %158 = vector.broadcast %cst_42 : f32 to vector<8x128xf32>
    %159 = arith.addf %158, %157 : vector<8x128xf32>
    %160 = arith.divf %158, %159 : vector<8x128xf32>
    %161 = vector.extract_strided_slice %154 {offsets = [0, 128], sizes = [8, 128], strides = [1, 1]} : vector<8x512xf32> to vector<8x128xf32>
    %162 = arith.negf %161 : vector<8x128xf32>
    %163 = math.exp %162 : vector<8x128xf32>
    %cst_43 = arith.constant 1.000000e+00 : f32
    %164 = vector.broadcast %cst_43 : f32 to vector<8x128xf32>
    %165 = arith.addf %164, %163 : vector<8x128xf32>
    %166 = arith.divf %164, %165 : vector<8x128xf32>
    %167 = vector.extract_strided_slice %154 {offsets = [0, 256], sizes = [8, 128], strides = [1, 1]} : vector<8x512xf32> to vector<8x128xf32>
    %168 = math.tanh %167 : vector<8x128xf32>
    %169 = vector.extract_strided_slice %154 {offsets = [0, 384], sizes = [8, 128], strides = [1, 1]} : vector<8x512xf32> to vector<8x128xf32>
    %170 = arith.negf %169 : vector<8x128xf32>
    %171 = math.exp %170 : vector<8x128xf32>
    %cst_44 = arith.constant 1.000000e+00 : f32
    %172 = vector.broadcast %cst_44 : f32 to vector<8x128xf32>
    %173 = arith.addf %172, %171 : vector<8x128xf32>
    %174 = arith.divf %172, %173 : vector<8x128xf32>
    %175 = arith.mulf %166, %142 : vector<8x128xf32>
    %176 = arith.mulf %160, %168 : vector<8x128xf32>
    %177 = arith.addf %175, %176 : vector<8x128xf32>
    %178 = math.tanh %177 : vector<8x128xf32>
    %179 = arith.mulf %174, %178 : vector<8x128xf32>
    %180 = arith.index_cast %c4_i32 : i32 to index
    %c0_45 = arith.constant 0 : index
    %c0_46 = arith.constant 0 : index
    %181 = vector.load %arg12[%180, %c0_45, %c0_46] : memref<8x8x256xf32, #tpu.memory_space<vmem>>, vector<1x8x128xf32>
    %182 = vector.shape_cast %181 : vector<1x8x128xf32> to vector<8x128xf32>
    %183 = vector.shape_cast %179 : vector<8x128xf32> to vector<1x8x128xf32>
    tpu.vector_store %arg12[%180, %c0_45, %c0_46], %183 {strides = array<i32>} : memref<8x8x256xf32, #tpu.memory_space<vmem>>, vector<1x8x128xf32>,
    %c5_i32 = arith.constant 5 : i32
    %184 = arith.index_cast %c5_i32 : i32 to index
    %c0_47 = arith.constant 0 : index
    %c0_48 = arith.constant 0 : index
    %185 = vector.load %arg0[%184, %c0_47, %c0_48] : memref<8x8x128xf32, #tpu.memory_space<vmem>>, vector<1x8x128xf32>
    %186 = vector.shape_cast %185 : vector<1x8x128xf32> to vector<8x128xf32>
    %187 = tpu.concatenate %186, %179 in 1 : vector<8x128xf32>, vector<8x128xf32> -> vector<8x256xf32>
    %cst_49 = arith.constant dense<0.000000e+00> : vector<8x512xf32>
    %188 = tpu.matmul %187, %0, %cst_49 {dimension_numbers = #tpu.dot_dimension_numbers<[1], [0], [0], [1], [0, 0, 1, 1], [], []>} : vector<8x256xf32>, vector<256x512xf32>, vector<8x512xf32> -> vector<8x512xf32>
    %189 = arith.addf %188, %4 : vector<8x512xf32>
    %190 = vector.extract_strided_slice %189 {offsets = [0, 0], sizes = [8, 128], strides = [1, 1]} : vector<8x512xf32> to vector<8x128xf32>
    %191 = arith.negf %190 : vector<8x128xf32>
    %192 = math.exp %191 : vector<8x128xf32>
    %cst_50 = arith.constant 1.000000e+00 : f32
    %193 = vector.broadcast %cst_50 : f32 to vector<8x128xf32>
    %194 = arith.addf %193, %192 : vector<8x128xf32>
    %195 = arith.divf %193, %194 : vector<8x128xf32>
    %196 = vector.extract_strided_slice %189 {offsets = [0, 128], sizes = [8, 128], strides = [1, 1]} : vector<8x512xf32> to vector<8x128xf32>
    %197 = arith.negf %196 : vector<8x128xf32>
    %198 = math.exp %197 : vector<8x128xf32>
    %cst_51 = arith.constant 1.000000e+00 : f32
    %199 = vector.broadcast %cst_51 : f32 to vector<8x128xf32>
    %200 = arith.addf %199, %198 : vector<8x128xf32>
    %201 = arith.divf %199, %200 : vector<8x128xf32>
    %202 = vector.extract_strided_slice %189 {offsets = [0, 256], sizes = [8, 128], strides = [1, 1]} : vector<8x512xf32> to vector<8x128xf32>
    %203 = math.tanh %202 : vector<8x128xf32>
    %204 = vector.extract_strided_slice %189 {offsets = [0, 384], sizes = [8, 128], strides = [1, 1]} : vector<8x512xf32> to vector<8x128xf32>
    %205 = arith.negf %204 : vector<8x128xf32>
    %206 = math.exp %205 : vector<8x128xf32>
    %cst_52 = arith.constant 1.000000e+00 : f32
    %207 = vector.broadcast %cst_52 : f32 to vector<8x128xf32>
    %208 = arith.addf %207, %206 : vector<8x128xf32>
    %209 = arith.divf %207, %208 : vector<8x128xf32>
    %210 = arith.mulf %201, %177 : vector<8x128xf32>
    %211 = arith.mulf %195, %203 : vector<8x128xf32>
    %212 = arith.addf %210, %211 : vector<8x128xf32>
    %213 = math.tanh %212 : vector<8x128xf32>
    %214 = arith.mulf %209, %213 : vector<8x128xf32>
    %215 = arith.index_cast %c5_i32 : i32 to index
    %c0_53 = arith.constant 0 : index
    %c0_54 = arith.constant 0 : index
    %216 = vector.load %arg12[%215, %c0_53, %c0_54] : memref<8x8x256xf32, #tpu.memory_space<vmem>>, vector<1x8x128xf32>
    %217 = vector.shape_cast %216 : vector<1x8x128xf32> to vector<8x128xf32>
    %218 = vector.shape_cast %214 : vector<8x128xf32> to vector<1x8x128xf32>
    tpu.vector_store %arg12[%215, %c0_53, %c0_54], %218 {strides = array<i32>} : memref<8x8x256xf32, #tpu.memory_space<vmem>>, vector<1x8x128xf32>,
    %c6_i32 = arith.constant 6 : i32
    %219 = arith.index_cast %c6_i32 : i32 to index
    %c0_55 = arith.constant 0 : index
    %c0_56 = arith.constant 0 : index
    %220 = vector.load %arg0[%219, %c0_55, %c0_56] : memref<8x8x128xf32, #tpu.memory_space<vmem>>, vector<1x8x128xf32>
    %221 = vector.shape_cast %220 : vector<1x8x128xf32> to vector<8x128xf32>
    %222 = tpu.concatenate %221, %214 in 1 : vector<8x128xf32>, vector<8x128xf32> -> vector<8x256xf32>
    %cst_57 = arith.constant dense<0.000000e+00> : vector<8x512xf32>
    %223 = tpu.matmul %222, %0, %cst_57 {dimension_numbers = #tpu.dot_dimension_numbers<[1], [0], [0], [1], [0, 0, 1, 1], [], []>} : vector<8x256xf32>, vector<256x512xf32>, vector<8x512xf32> -> vector<8x512xf32>
    %224 = arith.addf %223, %4 : vector<8x512xf32>
    %225 = vector.extract_strided_slice %224 {offsets = [0, 0], sizes = [8, 128], strides = [1, 1]} : vector<8x512xf32> to vector<8x128xf32>
    %226 = arith.negf %225 : vector<8x128xf32>
    %227 = math.exp %226 : vector<8x128xf32>
    %cst_58 = arith.constant 1.000000e+00 : f32
    %228 = vector.broadcast %cst_58 : f32 to vector<8x128xf32>
    %229 = arith.addf %228, %227 : vector<8x128xf32>
    %230 = arith.divf %228, %229 : vector<8x128xf32>
    %231 = vector.extract_strided_slice %224 {offsets = [0, 128], sizes = [8, 128], strides = [1, 1]} : vector<8x512xf32> to vector<8x128xf32>
    %232 = arith.negf %231 : vector<8x128xf32>
    %233 = math.exp %232 : vector<8x128xf32>
    %cst_59 = arith.constant 1.000000e+00 : f32
    %234 = vector.broadcast %cst_59 : f32 to vector<8x128xf32>
    %235 = arith.addf %234, %233 : vector<8x128xf32>
    %236 = arith.divf %234, %235 : vector<8x128xf32>
    %237 = vector.extract_strided_slice %224 {offsets = [0, 256], sizes = [8, 128], strides = [1, 1]} : vector<8x512xf32> to vector<8x128xf32>
    %238 = math.tanh %237 : vector<8x128xf32>
    %239 = vector.extract_strided_slice %224 {offsets = [0, 384], sizes = [8, 128], strides = [1, 1]} : vector<8x512xf32> to vector<8x128xf32>
    %240 = arith.negf %239 : vector<8x128xf32>
    %241 = math.exp %240 : vector<8x128xf32>
    %cst_60 = arith.constant 1.000000e+00 : f32
    %242 = vector.broadcast %cst_60 : f32 to vector<8x128xf32>
    %243 = arith.addf %242, %241 : vector<8x128xf32>
    %244 = arith.divf %242, %243 : vector<8x128xf32>
    %245 = arith.mulf %236, %212 : vector<8x128xf32>
    %246 = arith.mulf %230, %238 : vector<8x128xf32>
    %247 = arith.addf %245, %246 : vector<8x128xf32>
    %248 = math.tanh %247 : vector<8x128xf32>
    %249 = arith.mulf %244, %248 : vector<8x128xf32>
    %250 = arith.index_cast %c6_i32 : i32 to index
    %c0_61 = arith.constant 0 : index
    %c0_62 = arith.constant 0 : index
    %251 = vector.load %arg12[%250, %c0_61, %c0_62] : memref<8x8x256xf32, #tpu.memory_space<vmem>>, vector<1x8x128xf32>
    %252 = vector.shape_cast %251 : vector<1x8x128xf32> to vector<8x128xf32>
    %253 = vector.shape_cast %249 : vector<8x128xf32> to vector<1x8x128xf32>
    tpu.vector_store %arg12[%250, %c0_61, %c0_62], %253 {strides = array<i32>} : memref<8x8x256xf32, #tpu.memory_space<vmem>>, vector<1x8x128xf32>,
    %c7_i32 = arith.constant 7 : i32
    %254 = arith.index_cast %c7_i32 : i32 to index
    %c0_63 = arith.constant 0 : index
    %c0_64 = arith.constant 0 : index
    %255 = vector.load %arg0[%254, %c0_63, %c0_64] : memref<8x8x128xf32, #tpu.memory_space<vmem>>, vector<1x8x128xf32>
    %256 = vector.shape_cast %255 : vector<1x8x128xf32> to vector<8x128xf32>
    %257 = tpu.concatenate %256, %249 in 1 : vector<8x128xf32>, vector<8x128xf32> -> vector<8x256xf32>
    %cst_65 = arith.constant dense<0.000000e+00> : vector<8x512xf32>
    %258 = tpu.matmul %257, %0, %cst_65 {dimension_numbers = #tpu.dot_dimension_numbers<[1], [0], [0], [1], [0, 0, 1, 1], [], []>} : vector<8x256xf32>, vector<256x512xf32>, vector<8x512xf32> -> vector<8x512xf32>
    %259 = arith.addf %258, %4 : vector<8x512xf32>
    %260 = vector.extract_strided_slice %259 {offsets = [0, 0], sizes = [8, 128], strides = [1, 1]} : vector<8x512xf32> to vector<8x128xf32>
    %261 = arith.negf %260 : vector<8x128xf32>
    %262 = math.exp %261 : vector<8x128xf32>
    %cst_66 = arith.constant 1.000000e+00 : f32
    %263 = vector.broadcast %cst_66 : f32 to vector<8x128xf32>
    %264 = arith.addf %263, %262 : vector<8x128xf32>
    %265 = arith.divf %263, %264 : vector<8x128xf32>
    %266 = vector.extract_strided_slice %259 {offsets = [0, 128], sizes = [8, 128], strides = [1, 1]} : vector<8x512xf32> to vector<8x128xf32>
    %267 = arith.negf %266 : vector<8x128xf32>
    %268 = math.exp %267 : vector<8x128xf32>
    %cst_67 = arith.constant 1.000000e+00 : f32
    %269 = vector.broadcast %cst_67 : f32 to vector<8x128xf32>
    %270 = arith.addf %269, %268 : vector<8x128xf32>
    %271 = arith.divf %269, %270 : vector<8x128xf32>
    %272 = vector.extract_strided_slice %259 {offsets = [0, 256], sizes = [8, 128], strides = [1, 1]} : vector<8x512xf32> to vector<8x128xf32>
    %273 = math.tanh %272 : vector<8x128xf32>
    %274 = vector.extract_strided_slice %259 {offsets = [0, 384], sizes = [8, 128], strides = [1, 1]} : vector<8x512xf32> to vector<8x128xf32>
    %275 = arith.negf %274 : vector<8x128xf32>
    %276 = math.exp %275 : vector<8x128xf32>
    %cst_68 = arith.constant 1.000000e+00 : f32
    %277 = vector.broadcast %cst_68 : f32 to vector<8x128xf32>
    %278 = arith.addf %277, %276 : vector<8x128xf32>
    %279 = arith.divf %277, %278 : vector<8x128xf32>
    %280 = arith.mulf %271, %247 : vector<8x128xf32>
    %281 = arith.mulf %265, %273 : vector<8x128xf32>
    %282 = arith.addf %280, %281 : vector<8x128xf32>
    %283 = math.tanh %282 : vector<8x128xf32>
    %284 = arith.mulf %279, %283 : vector<8x128xf32>
    %285 = arith.index_cast %c7_i32 : i32 to index
    %c0_69 = arith.constant 0 : index
    %c0_70 = arith.constant 0 : index
    %286 = vector.load %arg12[%285, %c0_69, %c0_70] : memref<8x8x256xf32, #tpu.memory_space<vmem>>, vector<1x8x128xf32>
    %287 = vector.shape_cast %286 : vector<1x8x128xf32> to vector<8x128xf32>
    %288 = vector.shape_cast %284 : vector<8x128xf32> to vector<1x8x128xf32>
    tpu.vector_store %arg12[%285, %c0_69, %c0_70], %288 {strides = array<i32>} : memref<8x8x256xf32, #tpu.memory_space<vmem>>, vector<1x8x128xf32>,
    %c8_i32 = arith.constant 8 : i32
    %cst_71 = arith.constant 0.000000e+00 : f32
    %289 = vector.broadcast %cst_71 : f32 to vector<8x128xf32>
    %c0_i32_72 = arith.constant 0 : i32
    %c7_i32_73 = arith.constant 7 : i32
    %290 = arith.subi %c7_i32_73, %c0_i32_72 : i32
    %291 = arith.index_cast %290 : i32 to index
    %c0_74 = arith.constant 0 : index
    %c0_75 = arith.constant 0 : index
    %292 = vector.load %arg0[%291, %c0_74, %c0_75] : memref<8x8x128xf32, #tpu.memory_space<vmem>>, vector<1x8x128xf32>
    %293 = vector.shape_cast %292 : vector<1x8x128xf32> to vector<8x128xf32>
    %294 = tpu.concatenate %293, %289 in 1 : vector<8x128xf32>, vector<8x128xf32> -> vector<8x256xf32>
    %cst_76 = arith.constant dense<0.000000e+00> : vector<8x512xf32>
    %295 = tpu.matmul %294, %1, %cst_76 {dimension_numbers = #tpu.dot_dimension_numbers<[1], [0], [0], [1], [0, 0, 1, 1], [], []>} : vector<8x256xf32>, vector<256x512xf32>, vector<8x512xf32> -> vector<8x512xf32>
    %296 = arith.addf %295, %7 : vector<8x512xf32>
    %297 = vector.extract_strided_slice %296 {offsets = [0, 0], sizes = [8, 128], strides = [1, 1]} : vector<8x512xf32> to vector<8x128xf32>
    %298 = arith.negf %297 : vector<8x128xf32>
    %299 = math.exp %298 : vector<8x128xf32>
    %cst_77 = arith.constant 1.000000e+00 : f32
    %300 = vector.broadcast %cst_77 : f32 to vector<8x128xf32>
    %301 = arith.addf %300, %299 : vector<8x128xf32>
    %302 = arith.divf %300, %301 : vector<8x128xf32>
    %303 = vector.extract_strided_slice %296 {offsets = [0, 128], sizes = [8, 128], strides = [1, 1]} : vector<8x512xf32> to vector<8x128xf32>
    %304 = arith.negf %303 : vector<8x128xf32>
    %305 = math.exp %304 : vector<8x128xf32>
    %cst_78 = arith.constant 1.000000e+00 : f32
    %306 = vector.broadcast %cst_78 : f32 to vector<8x128xf32>
    %307 = arith.addf %306, %305 : vector<8x128xf32>
    %308 = arith.divf %306, %307 : vector<8x128xf32>
    %309 = vector.extract_strided_slice %296 {offsets = [0, 256], sizes = [8, 128], strides = [1, 1]} : vector<8x512xf32> to vector<8x128xf32>
    %310 = math.tanh %309 : vector<8x128xf32>
    %311 = vector.extract_strided_slice %296 {offsets = [0, 384], sizes = [8, 128], strides = [1, 1]} : vector<8x512xf32> to vector<8x128xf32>
    %312 = arith.negf %311 : vector<8x128xf32>
    %313 = math.exp %312 : vector<8x128xf32>
    %cst_79 = arith.constant 1.000000e+00 : f32
    %314 = vector.broadcast %cst_79 : f32 to vector<8x128xf32>
    %315 = arith.addf %314, %313 : vector<8x128xf32>
    %316 = arith.divf %314, %315 : vector<8x128xf32>
    %317 = arith.mulf %308, %289 : vector<8x128xf32>
    %318 = arith.mulf %302, %310 : vector<8x128xf32>
    %319 = arith.addf %317, %318 : vector<8x128xf32>
    %320 = math.tanh %319 : vector<8x128xf32>
    %321 = arith.mulf %316, %320 : vector<8x128xf32>
    %322 = arith.index_cast %290 : i32 to index
    %c0_80 = arith.constant 0 : index
    %c128 = arith.constant 128 : index
    %323 = vector.load %arg12[%322, %c0_80, %c128] : memref<8x8x256xf32, #tpu.memory_space<vmem>>, vector<1x8x128xf32>
    %324 = vector.shape_cast %323 : vector<1x8x128xf32> to vector<8x128xf32>
    %325 = vector.shape_cast %321 : vector<8x128xf32> to vector<1x8x128xf32>
    tpu.vector_store %arg12[%322, %c0_80, %c128], %325 {strides = array<i32>} : memref<8x8x256xf32, #tpu.memory_space<vmem>>, vector<1x8x128xf32>,
    %c1_i32_81 = arith.constant 1 : i32
    %c7_i32_82 = arith.constant 7 : i32
    %326 = arith.subi %c7_i32_82, %c1_i32_81 : i32
    %327 = arith.index_cast %326 : i32 to index
    %c0_83 = arith.constant 0 : index
    %c0_84 = arith.constant 0 : index
    %328 = vector.load %arg0[%327, %c0_83, %c0_84] : memref<8x8x128xf32, #tpu.memory_space<vmem>>, vector<1x8x128xf32>
    %329 = vector.shape_cast %328 : vector<1x8x128xf32> to vector<8x128xf32>
    %330 = tpu.concatenate %329, %321 in 1 : vector<8x128xf32>, vector<8x128xf32> -> vector<8x256xf32>
    %cst_85 = arith.constant dense<0.000000e+00> : vector<8x512xf32>
    %331 = tpu.matmul %330, %1, %cst_85 {dimension_numbers = #tpu.dot_dimension_numbers<[1], [0], [0], [1], [0, 0, 1, 1], [], []>} : vector<8x256xf32>, vector<256x512xf32>, vector<8x512xf32> -> vector<8x512xf32>
    %332 = arith.addf %331, %7 : vector<8x512xf32>
    %333 = vector.extract_strided_slice %332 {offsets = [0, 0], sizes = [8, 128], strides = [1, 1]} : vector<8x512xf32> to vector<8x128xf32>
    %334 = arith.negf %333 : vector<8x128xf32>
    %335 = math.exp %334 : vector<8x128xf32>
    %cst_86 = arith.constant 1.000000e+00 : f32
    %336 = vector.broadcast %cst_86 : f32 to vector<8x128xf32>
    %337 = arith.addf %336, %335 : vector<8x128xf32>
    %338 = arith.divf %336, %337 : vector<8x128xf32>
    %339 = vector.extract_strided_slice %332 {offsets = [0, 128], sizes = [8, 128], strides = [1, 1]} : vector<8x512xf32> to vector<8x128xf32>
    %340 = arith.negf %339 : vector<8x128xf32>
    %341 = math.exp %340 : vector<8x128xf32>
    %cst_87 = arith.constant 1.000000e+00 : f32
    %342 = vector.broadcast %cst_87 : f32 to vector<8x128xf32>
    %343 = arith.addf %342, %341 : vector<8x128xf32>
    %344 = arith.divf %342, %343 : vector<8x128xf32>
    %345 = vector.extract_strided_slice %332 {offsets = [0, 256], sizes = [8, 128], strides = [1, 1]} : vector<8x512xf32> to vector<8x128xf32>
    %346 = math.tanh %345 : vector<8x128xf32>
    %347 = vector.extract_strided_slice %332 {offsets = [0, 384], sizes = [8, 128], strides = [1, 1]} : vector<8x512xf32> to vector<8x128xf32>
    %348 = arith.negf %347 : vector<8x128xf32>
    %349 = math.exp %348 : vector<8x128xf32>
    %cst_88 = arith.constant 1.000000e+00 : f32
    %350 = vector.broadcast %cst_88 : f32 to vector<8x128xf32>
    %351 = arith.addf %350, %349 : vector<8x128xf32>
    %352 = arith.divf %350, %351 : vector<8x128xf32>
    %353 = arith.mulf %344, %319 : vector<8x128xf32>
    %354 = arith.mulf %338, %346 : vector<8x128xf32>
    %355 = arith.addf %353, %354 : vector<8x128xf32>
    %356 = math.tanh %355 : vector<8x128xf32>
    %357 = arith.mulf %352, %356 : vector<8x128xf32>
    %358 = arith.index_cast %326 : i32 to index
    %c0_89 = arith.constant 0 : index
    %c128_90 = arith.constant 128 : index
    %359 = vector.load %arg12[%358, %c0_89, %c128_90] : memref<8x8x256xf32, #tpu.memory_space<vmem>>, vector<1x8x128xf32>
    %360 = vector.shape_cast %359 : vector<1x8x128xf32> to vector<8x128xf32>
    %361 = vector.shape_cast %357 : vector<8x128xf32> to vector<1x8x128xf32>
    tpu.vector_store %arg12[%358, %c0_89, %c128_90], %361 {strides = array<i32>} : memref<8x8x256xf32, #tpu.memory_space<vmem>>, vector<1x8x128xf32>,
    %c2_i32_91 = arith.constant 2 : i32
    %c7_i32_92 = arith.constant 7 : i32
    %362 = arith.subi %c7_i32_92, %c2_i32_91 : i32
    %363 = arith.index_cast %362 : i32 to index
    %c0_93 = arith.constant 0 : index
    %c0_94 = arith.constant 0 : index
    %364 = vector.load %arg0[%363, %c0_93, %c0_94] : memref<8x8x128xf32, #tpu.memory_space<vmem>>, vector<1x8x128xf32>
    %365 = vector.shape_cast %364 : vector<1x8x128xf32> to vector<8x128xf32>
    %366 = tpu.concatenate %365, %357 in 1 : vector<8x128xf32>, vector<8x128xf32> -> vector<8x256xf32>
    %cst_95 = arith.constant dense<0.000000e+00> : vector<8x512xf32>
    %367 = tpu.matmul %366, %1, %cst_95 {dimension_numbers = #tpu.dot_dimension_numbers<[1], [0], [0], [1], [0, 0, 1, 1], [], []>} : vector<8x256xf32>, vector<256x512xf32>, vector<8x512xf32> -> vector<8x512xf32>
    %368 = arith.addf %367, %7 : vector<8x512xf32>
    %369 = vector.extract_strided_slice %368 {offsets = [0, 0], sizes = [8, 128], strides = [1, 1]} : vector<8x512xf32> to vector<8x128xf32>
    %370 = arith.negf %369 : vector<8x128xf32>
    %371 = math.exp %370 : vector<8x128xf32>
    %cst_96 = arith.constant 1.000000e+00 : f32
    %372 = vector.broadcast %cst_96 : f32 to vector<8x128xf32>
    %373 = arith.addf %372, %371 : vector<8x128xf32>
    %374 = arith.divf %372, %373 : vector<8x128xf32>
    %375 = vector.extract_strided_slice %368 {offsets = [0, 128], sizes = [8, 128], strides = [1, 1]} : vector<8x512xf32> to vector<8x128xf32>
    %376 = arith.negf %375 : vector<8x128xf32>
    %377 = math.exp %376 : vector<8x128xf32>
    %cst_97 = arith.constant 1.000000e+00 : f32
    %378 = vector.broadcast %cst_97 : f32 to vector<8x128xf32>
    %379 = arith.addf %378, %377 : vector<8x128xf32>
    %380 = arith.divf %378, %379 : vector<8x128xf32>
    %381 = vector.extract_strided_slice %368 {offsets = [0, 256], sizes = [8, 128], strides = [1, 1]} : vector<8x512xf32> to vector<8x128xf32>
    %382 = math.tanh %381 : vector<8x128xf32>
    %383 = vector.extract_strided_slice %368 {offsets = [0, 384], sizes = [8, 128], strides = [1, 1]} : vector<8x512xf32> to vector<8x128xf32>
    %384 = arith.negf %383 : vector<8x128xf32>
    %385 = math.exp %384 : vector<8x128xf32>
    %cst_98 = arith.constant 1.000000e+00 : f32
    %386 = vector.broadcast %cst_98 : f32 to vector<8x128xf32>
    %387 = arith.addf %386, %385 : vector<8x128xf32>
    %388 = arith.divf %386, %387 : vector<8x128xf32>
    %389 = arith.mulf %380, %355 : vector<8x128xf32>
    %390 = arith.mulf %374, %382 : vector<8x128xf32>
    %391 = arith.addf %389, %390 : vector<8x128xf32>
    %392 = math.tanh %391 : vector<8x128xf32>
    %393 = arith.mulf %388, %392 : vector<8x128xf32>
    %394 = arith.index_cast %362 : i32 to index
    %c0_99 = arith.constant 0 : index
    %c128_100 = arith.constant 128 : index
    %395 = vector.load %arg12[%394, %c0_99, %c128_100] : memref<8x8x256xf32, #tpu.memory_space<vmem>>, vector<1x8x128xf32>
    %396 = vector.shape_cast %395 : vector<1x8x128xf32> to vector<8x128xf32>
    %397 = vector.shape_cast %393 : vector<8x128xf32> to vector<1x8x128xf32>
    tpu.vector_store %arg12[%394, %c0_99, %c128_100], %397 {strides = array<i32>} : memref<8x8x256xf32, #tpu.memory_space<vmem>>, vector<1x8x128xf32>,
    %c3_i32_101 = arith.constant 3 : i32
    %c7_i32_102 = arith.constant 7 : i32
    %398 = arith.subi %c7_i32_102, %c3_i32_101 : i32
    %399 = arith.index_cast %398 : i32 to index
    %c0_103 = arith.constant 0 : index
    %c0_104 = arith.constant 0 : index
    %400 = vector.load %arg0[%399, %c0_103, %c0_104] : memref<8x8x128xf32, #tpu.memory_space<vmem>>, vector<1x8x128xf32>
    %401 = vector.shape_cast %400 : vector<1x8x128xf32> to vector<8x128xf32>
    %402 = tpu.concatenate %401, %393 in 1 : vector<8x128xf32>, vector<8x128xf32> -> vector<8x256xf32>
    %cst_105 = arith.constant dense<0.000000e+00> : vector<8x512xf32>
    %403 = tpu.matmul %402, %1, %cst_105 {dimension_numbers = #tpu.dot_dimension_numbers<[1], [0], [0], [1], [0, 0, 1, 1], [], []>} : vector<8x256xf32>, vector<256x512xf32>, vector<8x512xf32> -> vector<8x512xf32>
    %404 = arith.addf %403, %7 : vector<8x512xf32>
    %405 = vector.extract_strided_slice %404 {offsets = [0, 0], sizes = [8, 128], strides = [1, 1]} : vector<8x512xf32> to vector<8x128xf32>
    %406 = arith.negf %405 : vector<8x128xf32>
    %407 = math.exp %406 : vector<8x128xf32>
    %cst_106 = arith.constant 1.000000e+00 : f32
    %408 = vector.broadcast %cst_106 : f32 to vector<8x128xf32>
    %409 = arith.addf %408, %407 : vector<8x128xf32>
    %410 = arith.divf %408, %409 : vector<8x128xf32>
    %411 = vector.extract_strided_slice %404 {offsets = [0, 128], sizes = [8, 128], strides = [1, 1]} : vector<8x512xf32> to vector<8x128xf32>
    %412 = arith.negf %411 : vector<8x128xf32>
    %413 = math.exp %412 : vector<8x128xf32>
    %cst_107 = arith.constant 1.000000e+00 : f32
    %414 = vector.broadcast %cst_107 : f32 to vector<8x128xf32>
    %415 = arith.addf %414, %413 : vector<8x128xf32>
    %416 = arith.divf %414, %415 : vector<8x128xf32>
    %417 = vector.extract_strided_slice %404 {offsets = [0, 256], sizes = [8, 128], strides = [1, 1]} : vector<8x512xf32> to vector<8x128xf32>
    %418 = math.tanh %417 : vector<8x128xf32>
    %419 = vector.extract_strided_slice %404 {offsets = [0, 384], sizes = [8, 128], strides = [1, 1]} : vector<8x512xf32> to vector<8x128xf32>
    %420 = arith.negf %419 : vector<8x128xf32>
    %421 = math.exp %420 : vector<8x128xf32>
    %cst_108 = arith.constant 1.000000e+00 : f32
    %422 = vector.broadcast %cst_108 : f32 to vector<8x128xf32>
    %423 = arith.addf %422, %421 : vector<8x128xf32>
    %424 = arith.divf %422, %423 : vector<8x128xf32>
    %425 = arith.mulf %416, %391 : vector<8x128xf32>
    %426 = arith.mulf %410, %418 : vector<8x128xf32>
    %427 = arith.addf %425, %426 : vector<8x128xf32>
    %428 = math.tanh %427 : vector<8x128xf32>
    %429 = arith.mulf %424, %428 : vector<8x128xf32>
    %430 = arith.index_cast %398 : i32 to index
    %c0_109 = arith.constant 0 : index
    %c128_110 = arith.constant 128 : index
    %431 = vector.load %arg12[%430, %c0_109, %c128_110] : memref<8x8x256xf32, #tpu.memory_space<vmem>>, vector<1x8x128xf32>
    %432 = vector.shape_cast %431 : vector<1x8x128xf32> to vector<8x128xf32>
    %433 = vector.shape_cast %429 : vector<8x128xf32> to vector<1x8x128xf32>
    tpu.vector_store %arg12[%430, %c0_109, %c128_110], %433 {strides = array<i32>} : memref<8x8x256xf32, #tpu.memory_space<vmem>>, vector<1x8x128xf32>,
    %c4_i32_111 = arith.constant 4 : i32
    %c7_i32_112 = arith.constant 7 : i32
    %434 = arith.subi %c7_i32_112, %c4_i32_111 : i32
    %435 = arith.index_cast %434 : i32 to index
    %c0_113 = arith.constant 0 : index
    %c0_114 = arith.constant 0 : index
    %436 = vector.load %arg0[%435, %c0_113, %c0_114] : memref<8x8x128xf32, #tpu.memory_space<vmem>>, vector<1x8x128xf32>
    %437 = vector.shape_cast %436 : vector<1x8x128xf32> to vector<8x128xf32>
    %438 = tpu.concatenate %437, %429 in 1 : vector<8x128xf32>, vector<8x128xf32> -> vector<8x256xf32>
    %cst_115 = arith.constant dense<0.000000e+00> : vector<8x512xf32>
    %439 = tpu.matmul %438, %1, %cst_115 {dimension_numbers = #tpu.dot_dimension_numbers<[1], [0], [0], [1], [0, 0, 1, 1], [], []>} : vector<8x256xf32>, vector<256x512xf32>, vector<8x512xf32> -> vector<8x512xf32>
    %440 = arith.addf %439, %7 : vector<8x512xf32>
    %441 = vector.extract_strided_slice %440 {offsets = [0, 0], sizes = [8, 128], strides = [1, 1]} : vector<8x512xf32> to vector<8x128xf32>
    %442 = arith.negf %441 : vector<8x128xf32>
    %443 = math.exp %442 : vector<8x128xf32>
    %cst_116 = arith.constant 1.000000e+00 : f32
    %444 = vector.broadcast %cst_116 : f32 to vector<8x128xf32>
    %445 = arith.addf %444, %443 : vector<8x128xf32>
    %446 = arith.divf %444, %445 : vector<8x128xf32>
    %447 = vector.extract_strided_slice %440 {offsets = [0, 128], sizes = [8, 128], strides = [1, 1]} : vector<8x512xf32> to vector<8x128xf32>
    %448 = arith.negf %447 : vector<8x128xf32>
    %449 = math.exp %448 : vector<8x128xf32>
    %cst_117 = arith.constant 1.000000e+00 : f32
    %450 = vector.broadcast %cst_117 : f32 to vector<8x128xf32>
    %451 = arith.addf %450, %449 : vector<8x128xf32>
    %452 = arith.divf %450, %451 : vector<8x128xf32>
    %453 = vector.extract_strided_slice %440 {offsets = [0, 256], sizes = [8, 128], strides = [1, 1]} : vector<8x512xf32> to vector<8x128xf32>
    %454 = math.tanh %453 : vector<8x128xf32>
    %455 = vector.extract_strided_slice %440 {offsets = [0, 384], sizes = [8, 128], strides = [1, 1]} : vector<8x512xf32> to vector<8x128xf32>
    %456 = arith.negf %455 : vector<8x128xf32>
    %457 = math.exp %456 : vector<8x128xf32>
    %cst_118 = arith.constant 1.000000e+00 : f32
    %458 = vector.broadcast %cst_118 : f32 to vector<8x128xf32>
    %459 = arith.addf %458, %457 : vector<8x128xf32>
    %460 = arith.divf %458, %459 : vector<8x128xf32>
    %461 = arith.mulf %452, %427 : vector<8x128xf32>
    %462 = arith.mulf %446, %454 : vector<8x128xf32>
    %463 = arith.addf %461, %462 : vector<8x128xf32>
    %464 = math.tanh %463 : vector<8x128xf32>
    %465 = arith.mulf %460, %464 : vector<8x128xf32>
    %466 = arith.index_cast %434 : i32 to index
    %c0_119 = arith.constant 0 : index
    %c128_120 = arith.constant 128 : index
    %467 = vector.load %arg12[%466, %c0_119, %c128_120] : memref<8x8x256xf32, #tpu.memory_space<vmem>>, vector<1x8x128xf32>
    %468 = vector.shape_cast %467 : vector<1x8x128xf32> to vector<8x128xf32>
    %469 = vector.shape_cast %465 : vector<8x128xf32> to vector<1x8x128xf32>
    tpu.vector_store %arg12[%466, %c0_119, %c128_120], %469 {strides = array<i32>} : memref<8x8x256xf32, #tpu.memory_space<vmem>>, vector<1x8x128xf32>,
    %c5_i32_121 = arith.constant 5 : i32
    %c7_i32_122 = arith.constant 7 : i32
    %470 = arith.subi %c7_i32_122, %c5_i32_121 : i32
    %471 = arith.index_cast %470 : i32 to index
    %c0_123 = arith.constant 0 : index
    %c0_124 = arith.constant 0 : index
    %472 = vector.load %arg0[%471, %c0_123, %c0_124] : memref<8x8x128xf32, #tpu.memory_space<vmem>>, vector<1x8x128xf32>
    %473 = vector.shape_cast %472 : vector<1x8x128xf32> to vector<8x128xf32>
    %474 = tpu.concatenate %473, %465 in 1 : vector<8x128xf32>, vector<8x128xf32> -> vector<8x256xf32>
    %cst_125 = arith.constant dense<0.000000e+00> : vector<8x512xf32>
    %475 = tpu.matmul %474, %1, %cst_125 {dimension_numbers = #tpu.dot_dimension_numbers<[1], [0], [0], [1], [0, 0, 1, 1], [], []>} : vector<8x256xf32>, vector<256x512xf32>, vector<8x512xf32> -> vector<8x512xf32>
    %476 = arith.addf %475, %7 : vector<8x512xf32>
    %477 = vector.extract_strided_slice %476 {offsets = [0, 0], sizes = [8, 128], strides = [1, 1]} : vector<8x512xf32> to vector<8x128xf32>
    %478 = arith.negf %477 : vector<8x128xf32>
    %479 = math.exp %478 : vector<8x128xf32>
    %cst_126 = arith.constant 1.000000e+00 : f32
    %480 = vector.broadcast %cst_126 : f32 to vector<8x128xf32>
    %481 = arith.addf %480, %479 : vector<8x128xf32>
    %482 = arith.divf %480, %481 : vector<8x128xf32>
    %483 = vector.extract_strided_slice %476 {offsets = [0, 128], sizes = [8, 128], strides = [1, 1]} : vector<8x512xf32> to vector<8x128xf32>
    %484 = arith.negf %483 : vector<8x128xf32>
    %485 = math.exp %484 : vector<8x128xf32>
    %cst_127 = arith.constant 1.000000e+00 : f32
    %486 = vector.broadcast %cst_127 : f32 to vector<8x128xf32>
    %487 = arith.addf %486, %485 : vector<8x128xf32>
    %488 = arith.divf %486, %487 : vector<8x128xf32>
    %489 = vector.extract_strided_slice %476 {offsets = [0, 256], sizes = [8, 128], strides = [1, 1]} : vector<8x512xf32> to vector<8x128xf32>
    %490 = math.tanh %489 : vector<8x128xf32>
    %491 = vector.extract_strided_slice %476 {offsets = [0, 384], sizes = [8, 128], strides = [1, 1]} : vector<8x512xf32> to vector<8x128xf32>
    %492 = arith.negf %491 : vector<8x128xf32>
    %493 = math.exp %492 : vector<8x128xf32>
    %cst_128 = arith.constant 1.000000e+00 : f32
    %494 = vector.broadcast %cst_128 : f32 to vector<8x128xf32>
    %495 = arith.addf %494, %493 : vector<8x128xf32>
    %496 = arith.divf %494, %495 : vector<8x128xf32>
    %497 = arith.mulf %488, %463 : vector<8x128xf32>
    %498 = arith.mulf %482, %490 : vector<8x128xf32>
    %499 = arith.addf %497, %498 : vector<8x128xf32>
    %500 = math.tanh %499 : vector<8x128xf32>
    %501 = arith.mulf %496, %500 : vector<8x128xf32>
    %502 = arith.index_cast %470 : i32 to index
    %c0_129 = arith.constant 0 : index
    %c128_130 = arith.constant 128 : index
    %503 = vector.load %arg12[%502, %c0_129, %c128_130] : memref<8x8x256xf32, #tpu.memory_space<vmem>>, vector<1x8x128xf32>
    %504 = vector.shape_cast %503 : vector<1x8x128xf32> to vector<8x128xf32>
    %505 = vector.shape_cast %501 : vector<8x128xf32> to vector<1x8x128xf32>
    tpu.vector_store %arg12[%502, %c0_129, %c128_130], %505 {strides = array<i32>} : memref<8x8x256xf32, #tpu.memory_space<vmem>>, vector<1x8x128xf32>,
    %c6_i32_131 = arith.constant 6 : i32
    %c7_i32_132 = arith.constant 7 : i32
    %506 = arith.subi %c7_i32_132, %c6_i32_131 : i32
    %507 = arith.index_cast %506 : i32 to index
    %c0_133 = arith.constant 0 : index
    %c0_134 = arith.constant 0 : index
    %508 = vector.load %arg0[%507, %c0_133, %c0_134] : memref<8x8x128xf32, #tpu.memory_space<vmem>>, vector<1x8x128xf32>
    %509 = vector.shape_cast %508 : vector<1x8x128xf32> to vector<8x128xf32>
    %510 = tpu.concatenate %509, %501 in 1 : vector<8x128xf32>, vector<8x128xf32> -> vector<8x256xf32>
    %cst_135 = arith.constant dense<0.000000e+00> : vector<8x512xf32>
    %511 = tpu.matmul %510, %1, %cst_135 {dimension_numbers = #tpu.dot_dimension_numbers<[1], [0], [0], [1], [0, 0, 1, 1], [], []>} : vector<8x256xf32>, vector<256x512xf32>, vector<8x512xf32> -> vector<8x512xf32>
    %512 = arith.addf %511, %7 : vector<8x512xf32>
    %513 = vector.extract_strided_slice %512 {offsets = [0, 0], sizes = [8, 128], strides = [1, 1]} : vector<8x512xf32> to vector<8x128xf32>
    %514 = arith.negf %513 : vector<8x128xf32>
    %515 = math.exp %514 : vector<8x128xf32>
    %cst_136 = arith.constant 1.000000e+00 : f32
    %516 = vector.broadcast %cst_136 : f32 to vector<8x128xf32>
    %517 = arith.addf %516, %515 : vector<8x128xf32>
    %518 = arith.divf %516, %517 : vector<8x128xf32>
    %519 = vector.extract_strided_slice %512 {offsets = [0, 128], sizes = [8, 128], strides = [1, 1]} : vector<8x512xf32> to vector<8x128xf32>
    %520 = arith.negf %519 : vector<8x128xf32>
    %521 = math.exp %520 : vector<8x128xf32>
    %cst_137 = arith.constant 1.000000e+00 : f32
    %522 = vector.broadcast %cst_137 : f32 to vector<8x128xf32>
    %523 = arith.addf %522, %521 : vector<8x128xf32>
    %524 = arith.divf %522, %523 : vector<8x128xf32>
    %525 = vector.extract_strided_slice %512 {offsets = [0, 256], sizes = [8, 128], strides = [1, 1]} : vector<8x512xf32> to vector<8x128xf32>
    %526 = math.tanh %525 : vector<8x128xf32>
    %527 = vector.extract_strided_slice %512 {offsets = [0, 384], sizes = [8, 128], strides = [1, 1]} : vector<8x512xf32> to vector<8x128xf32>
    %528 = arith.negf %527 : vector<8x128xf32>
    %529 = math.exp %528 : vector<8x128xf32>
    %cst_138 = arith.constant 1.000000e+00 : f32
    %530 = vector.broadcast %cst_138 : f32 to vector<8x128xf32>
    %531 = arith.addf %530, %529 : vector<8x128xf32>
    %532 = arith.divf %530, %531 : vector<8x128xf32>
    %533 = arith.mulf %524, %499 : vector<8x128xf32>
    %534 = arith.mulf %518, %526 : vector<8x128xf32>
    %535 = arith.addf %533, %534 : vector<8x128xf32>
    %536 = math.tanh %535 : vector<8x128xf32>
    %537 = arith.mulf %532, %536 : vector<8x128xf32>
    %538 = arith.index_cast %506 : i32 to index
    %c0_139 = arith.constant 0 : index
    %c128_140 = arith.constant 128 : index
    %539 = vector.load %arg12[%538, %c0_139, %c128_140] : memref<8x8x256xf32, #tpu.memory_space<vmem>>, vector<1x8x128xf32>
    %540 = vector.shape_cast %539 : vector<1x8x128xf32> to vector<8x128xf32>
    %541 = vector.shape_cast %537 : vector<8x128xf32> to vector<1x8x128xf32>
    tpu.vector_store %arg12[%538, %c0_139, %c128_140], %541 {strides = array<i32>} : memref<8x8x256xf32, #tpu.memory_space<vmem>>, vector<1x8x128xf32>,
    %c7_i32_141 = arith.constant 7 : i32
    %c7_i32_142 = arith.constant 7 : i32
    %542 = arith.subi %c7_i32_142, %c7_i32_141 : i32
    %543 = arith.index_cast %542 : i32 to index
    %c0_143 = arith.constant 0 : index
    %c0_144 = arith.constant 0 : index
    %544 = vector.load %arg0[%543, %c0_143, %c0_144] : memref<8x8x128xf32, #tpu.memory_space<vmem>>, vector<1x8x128xf32>
    %545 = vector.shape_cast %544 : vector<1x8x128xf32> to vector<8x128xf32>
    %546 = tpu.concatenate %545, %537 in 1 : vector<8x128xf32>, vector<8x128xf32> -> vector<8x256xf32>
    %cst_145 = arith.constant dense<0.000000e+00> : vector<8x512xf32>
    %547 = tpu.matmul %546, %1, %cst_145 {dimension_numbers = #tpu.dot_dimension_numbers<[1], [0], [0], [1], [0, 0, 1, 1], [], []>} : vector<8x256xf32>, vector<256x512xf32>, vector<8x512xf32> -> vector<8x512xf32>
    %548 = arith.addf %547, %7 : vector<8x512xf32>
    %549 = vector.extract_strided_slice %548 {offsets = [0, 0], sizes = [8, 128], strides = [1, 1]} : vector<8x512xf32> to vector<8x128xf32>
    %550 = arith.negf %549 : vector<8x128xf32>
    %551 = math.exp %550 : vector<8x128xf32>
    %cst_146 = arith.constant 1.000000e+00 : f32
    %552 = vector.broadcast %cst_146 : f32 to vector<8x128xf32>
    %553 = arith.addf %552, %551 : vector<8x128xf32>
    %554 = arith.divf %552, %553 : vector<8x128xf32>
    %555 = vector.extract_strided_slice %548 {offsets = [0, 128], sizes = [8, 128], strides = [1, 1]} : vector<8x512xf32> to vector<8x128xf32>
    %556 = arith.negf %555 : vector<8x128xf32>
    %557 = math.exp %556 : vector<8x128xf32>
    %cst_147 = arith.constant 1.000000e+00 : f32
    %558 = vector.broadcast %cst_147 : f32 to vector<8x128xf32>
    %559 = arith.addf %558, %557 : vector<8x128xf32>
    %560 = arith.divf %558, %559 : vector<8x128xf32>
    %561 = vector.extract_strided_slice %548 {offsets = [0, 256], sizes = [8, 128], strides = [1, 1]} : vector<8x512xf32> to vector<8x128xf32>
    %562 = math.tanh %561 : vector<8x128xf32>
    %563 = vector.extract_strided_slice %548 {offsets = [0, 384], sizes = [8, 128], strides = [1, 1]} : vector<8x512xf32> to vector<8x128xf32>
    %564 = arith.negf %563 : vector<8x128xf32>
    %565 = math.exp %564 : vector<8x128xf32>
    %cst_148 = arith.constant 1.000000e+00 : f32
    %566 = vector.broadcast %cst_148 : f32 to vector<8x128xf32>
    %567 = arith.addf %566, %565 : vector<8x128xf32>
    %568 = arith.divf %566, %567 : vector<8x128xf32>
    %569 = arith.mulf %560, %535 : vector<8x128xf32>
    %570 = arith.mulf %554, %562 : vector<8x128xf32>
    %571 = arith.addf %569, %570 : vector<8x128xf32>
    %572 = math.tanh %571 : vector<8x128xf32>
    %573 = arith.mulf %568, %572 : vector<8x128xf32>
    %574 = arith.index_cast %542 : i32 to index
    %c0_149 = arith.constant 0 : index
    %c128_150 = arith.constant 128 : index
    %575 = vector.load %arg12[%574, %c0_149, %c128_150] : memref<8x8x256xf32, #tpu.memory_space<vmem>>, vector<1x8x128xf32>
    %576 = vector.shape_cast %575 : vector<1x8x128xf32> to vector<8x128xf32>
    %577 = vector.shape_cast %573 : vector<8x128xf32> to vector<1x8x128xf32>
    tpu.vector_store %arg12[%574, %c0_149, %c128_150], %577 {strides = array<i32>} : memref<8x8x256xf32, #tpu.memory_space<vmem>>, vector<1x8x128xf32>,
    %c8_i32_151 = arith.constant 8 : i32
    %c0_152 = arith.constant 0 : index
    %c0_153 = arith.constant 0 : index
    %578 = vector.load %arg5[%c0_152, %c0_153] : memref<384x512xf32, #tpu.memory_space<vmem>>, vector<384x512xf32>
    %c0_154 = arith.constant 0 : index
    %c0_155 = arith.constant 0 : index
    %579 = vector.load %arg7[%c0_154, %c0_155] : memref<384x512xf32, #tpu.memory_space<vmem>>, vector<384x512xf32>
    %c0_156 = arith.constant 0 : index
    %c0_157 = arith.constant 0 : index
    %580 = vector.load %arg6[%c0_156, %c0_157] : memref<1x512xf32, #tpu.memory_space<vmem>>, vector<1x512xf32>
    %581 = vector.shape_cast %580 : vector<1x512xf32> to vector<1x512xf32>
    %582 = vector.broadcast %581 : vector<1x512xf32> to vector<8x512xf32>
    %c0_158 = arith.constant 0 : index
    %c0_159 = arith.constant 0 : index
    %583 = vector.load %arg8[%c0_158, %c0_159] : memref<1x512xf32, #tpu.memory_space<vmem>>, vector<1x512xf32>
    %584 = vector.shape_cast %583 : vector<1x512xf32> to vector<1x512xf32>
    %585 = vector.broadcast %584 : vector<1x512xf32> to vector<8x512xf32>
    %cst_160 = arith.constant 0.000000e+00 : f32
    %586 = vector.broadcast %cst_160 : f32 to vector<8x128xf32>
    %c0_i32_161 = arith.constant 0 : i32
    %587 = arith.index_cast %c0_i32_161 : i32 to index
    %c0_162 = arith.constant 0 : index
    %c0_163 = arith.constant 0 : index
    %588 = vector.load %arg12[%587, %c0_162, %c0_163] : memref<8x8x256xf32, #tpu.memory_space<vmem>>, vector<1x8x256xf32>
    %589 = vector.shape_cast %588 : vector<1x8x256xf32> to vector<8x256xf32>
    %590 = tpu.concatenate %589, %586 in 1 : vector<8x256xf32>, vector<8x128xf32> -> vector<8x384xf32>
    %cst_164 = arith.constant dense<0.000000e+00> : vector<8x512xf32>
    %591 = tpu.matmul %590, %578, %cst_164 {dimension_numbers = #tpu.dot_dimension_numbers<[1], [0], [0], [1], [0, 0, 1, 1], [], []>} : vector<8x384xf32>, vector<384x512xf32>, vector<8x512xf32> -> vector<8x512xf32>
    %592 = arith.addf %591, %582 : vector<8x512xf32>
    %593 = vector.extract_strided_slice %592 {offsets = [0, 0], sizes = [8, 128], strides = [1, 1]} : vector<8x512xf32> to vector<8x128xf32>
    %594 = arith.negf %593 : vector<8x128xf32>
    %595 = math.exp %594 : vector<8x128xf32>
    %cst_165 = arith.constant 1.000000e+00 : f32
    %596 = vector.broadcast %cst_165 : f32 to vector<8x128xf32>
    %597 = arith.addf %596, %595 : vector<8x128xf32>
    %598 = arith.divf %596, %597 : vector<8x128xf32>
    %599 = vector.extract_strided_slice %592 {offsets = [0, 128], sizes = [8, 128], strides = [1, 1]} : vector<8x512xf32> to vector<8x128xf32>
    %600 = arith.negf %599 : vector<8x128xf32>
    %601 = math.exp %600 : vector<8x128xf32>
    %cst_166 = arith.constant 1.000000e+00 : f32
    %602 = vector.broadcast %cst_166 : f32 to vector<8x128xf32>
    %603 = arith.addf %602, %601 : vector<8x128xf32>
    %604 = arith.divf %602, %603 : vector<8x128xf32>
    %605 = vector.extract_strided_slice %592 {offsets = [0, 256], sizes = [8, 128], strides = [1, 1]} : vector<8x512xf32> to vector<8x128xf32>
    %606 = math.tanh %605 : vector<8x128xf32>
    %607 = vector.extract_strided_slice %592 {offsets = [0, 384], sizes = [8, 128], strides = [1, 1]} : vector<8x512xf32> to vector<8x128xf32>
    %608 = arith.negf %607 : vector<8x128xf32>
    %609 = math.exp %608 : vector<8x128xf32>
    %cst_167 = arith.constant 1.000000e+00 : f32
    %610 = vector.broadcast %cst_167 : f32 to vector<8x128xf32>
    %611 = arith.addf %610, %609 : vector<8x128xf32>
    %612 = arith.divf %610, %611 : vector<8x128xf32>
    %613 = arith.mulf %604, %586 : vector<8x128xf32>
    %614 = arith.mulf %598, %606 : vector<8x128xf32>
    %615 = arith.addf %613, %614 : vector<8x128xf32>
    %616 = math.tanh %615 : vector<8x128xf32>
    %617 = arith.mulf %612, %616 : vector<8x128xf32>
    %618 = arith.index_cast %c0_i32_161 : i32 to index
    %c0_168 = arith.constant 0 : index
    %c0_169 = arith.constant 0 : index
    %619 = vector.load %arg13[%618, %c0_168, %c0_169] : memref<8x8x256xf32, #tpu.memory_space<vmem>>, vector<1x8x128xf32>
    %620 = vector.shape_cast %619 : vector<1x8x128xf32> to vector<8x128xf32>
    %621 = vector.shape_cast %617 : vector<8x128xf32> to vector<1x8x128xf32>
    tpu.vector_store %arg13[%618, %c0_168, %c0_169], %621 {strides = array<i32>} : memref<8x8x256xf32, #tpu.memory_space<vmem>>, vector<1x8x128xf32>,
    %c1_i32_170 = arith.constant 1 : i32
    %622 = arith.index_cast %c1_i32_170 : i32 to index
    %c0_171 = arith.constant 0 : index
    %c0_172 = arith.constant 0 : index
    %623 = vector.load %arg12[%622, %c0_171, %c0_172] : memref<8x8x256xf32, #tpu.memory_space<vmem>>, vector<1x8x256xf32>
    %624 = vector.shape_cast %623 : vector<1x8x256xf32> to vector<8x256xf32>
    %625 = tpu.concatenate %624, %617 in 1 : vector<8x256xf32>, vector<8x128xf32> -> vector<8x384xf32>
    %cst_173 = arith.constant dense<0.000000e+00> : vector<8x512xf32>
    %626 = tpu.matmul %625, %578, %cst_173 {dimension_numbers = #tpu.dot_dimension_numbers<[1], [0], [0], [1], [0, 0, 1, 1], [], []>} : vector<8x384xf32>, vector<384x512xf32>, vector<8x512xf32> -> vector<8x512xf32>
    %627 = arith.addf %626, %582 : vector<8x512xf32>
    %628 = vector.extract_strided_slice %627 {offsets = [0, 0], sizes = [8, 128], strides = [1, 1]} : vector<8x512xf32> to vector<8x128xf32>
    %629 = arith.negf %628 : vector<8x128xf32>
    %630 = math.exp %629 : vector<8x128xf32>
    %cst_174 = arith.constant 1.000000e+00 : f32
    %631 = vector.broadcast %cst_174 : f32 to vector<8x128xf32>
    %632 = arith.addf %631, %630 : vector<8x128xf32>
    %633 = arith.divf %631, %632 : vector<8x128xf32>
    %634 = vector.extract_strided_slice %627 {offsets = [0, 128], sizes = [8, 128], strides = [1, 1]} : vector<8x512xf32> to vector<8x128xf32>
    %635 = arith.negf %634 : vector<8x128xf32>
    %636 = math.exp %635 : vector<8x128xf32>
    %cst_175 = arith.constant 1.000000e+00 : f32
    %637 = vector.broadcast %cst_175 : f32 to vector<8x128xf32>
    %638 = arith.addf %637, %636 : vector<8x128xf32>
    %639 = arith.divf %637, %638 : vector<8x128xf32>
    %640 = vector.extract_strided_slice %627 {offsets = [0, 256], sizes = [8, 128], strides = [1, 1]} : vector<8x512xf32> to vector<8x128xf32>
    %641 = math.tanh %640 : vector<8x128xf32>
    %642 = vector.extract_strided_slice %627 {offsets = [0, 384], sizes = [8, 128], strides = [1, 1]} : vector<8x512xf32> to vector<8x128xf32>
    %643 = arith.negf %642 : vector<8x128xf32>
    %644 = math.exp %643 : vector<8x128xf32>
    %cst_176 = arith.constant 1.000000e+00 : f32
    %645 = vector.broadcast %cst_176 : f32 to vector<8x128xf32>
    %646 = arith.addf %645, %644 : vector<8x128xf32>
    %647 = arith.divf %645, %646 : vector<8x128xf32>
    %648 = arith.mulf %639, %615 : vector<8x128xf32>
    %649 = arith.mulf %633, %641 : vector<8x128xf32>
    %650 = arith.addf %648, %649 : vector<8x128xf32>
    %651 = math.tanh %650 : vector<8x128xf32>
    %652 = arith.mulf %647, %651 : vector<8x128xf32>
    %653 = arith.index_cast %c1_i32_170 : i32 to index
    %c0_177 = arith.constant 0 : index
    %c0_178 = arith.constant 0 : index
    %654 = vector.load %arg13[%653, %c0_177, %c0_178] : memref<8x8x256xf32, #tpu.memory_space<vmem>>, vector<1x8x128xf32>
    %655 = vector.shape_cast %654 : vector<1x8x128xf32> to vector<8x128xf32>
    %656 = vector.shape_cast %652 : vector<8x128xf32> to vector<1x8x128xf32>
    tpu.vector_store %arg13[%653, %c0_177, %c0_178], %656 {strides = array<i32>} : memref<8x8x256xf32, #tpu.memory_space<vmem>>, vector<1x8x128xf32>,
    %c2_i32_179 = arith.constant 2 : i32
    %657 = arith.index_cast %c2_i32_179 : i32 to index
    %c0_180 = arith.constant 0 : index
    %c0_181 = arith.constant 0 : index
    %658 = vector.load %arg12[%657, %c0_180, %c0_181] : memref<8x8x256xf32, #tpu.memory_space<vmem>>, vector<1x8x256xf32>
    %659 = vector.shape_cast %658 : vector<1x8x256xf32> to vector<8x256xf32>
    %660 = tpu.concatenate %659, %652 in 1 : vector<8x256xf32>, vector<8x128xf32> -> vector<8x384xf32>
    %cst_182 = arith.constant dense<0.000000e+00> : vector<8x512xf32>
    %661 = tpu.matmul %660, %578, %cst_182 {dimension_numbers = #tpu.dot_dimension_numbers<[1], [0], [0], [1], [0, 0, 1, 1], [], []>} : vector<8x384xf32>, vector<384x512xf32>, vector<8x512xf32> -> vector<8x512xf32>
    %662 = arith.addf %661, %582 : vector<8x512xf32>
    %663 = vector.extract_strided_slice %662 {offsets = [0, 0], sizes = [8, 128], strides = [1, 1]} : vector<8x512xf32> to vector<8x128xf32>
    %664 = arith.negf %663 : vector<8x128xf32>
    %665 = math.exp %664 : vector<8x128xf32>
    %cst_183 = arith.constant 1.000000e+00 : f32
    %666 = vector.broadcast %cst_183 : f32 to vector<8x128xf32>
    %667 = arith.addf %666, %665 : vector<8x128xf32>
    %668 = arith.divf %666, %667 : vector<8x128xf32>
    %669 = vector.extract_strided_slice %662 {offsets = [0, 128], sizes = [8, 128], strides = [1, 1]} : vector<8x512xf32> to vector<8x128xf32>
    %670 = arith.negf %669 : vector<8x128xf32>
    %671 = math.exp %670 : vector<8x128xf32>
    %cst_184 = arith.constant 1.000000e+00 : f32
    %672 = vector.broadcast %cst_184 : f32 to vector<8x128xf32>
    %673 = arith.addf %672, %671 : vector<8x128xf32>
    %674 = arith.divf %672, %673 : vector<8x128xf32>
    %675 = vector.extract_strided_slice %662 {offsets = [0, 256], sizes = [8, 128], strides = [1, 1]} : vector<8x512xf32> to vector<8x128xf32>
    %676 = math.tanh %675 : vector<8x128xf32>
    %677 = vector.extract_strided_slice %662 {offsets = [0, 384], sizes = [8, 128], strides = [1, 1]} : vector<8x512xf32> to vector<8x128xf32>
    %678 = arith.negf %677 : vector<8x128xf32>
    %679 = math.exp %678 : vector<8x128xf32>
    %cst_185 = arith.constant 1.000000e+00 : f32
    %680 = vector.broadcast %cst_185 : f32 to vector<8x128xf32>
    %681 = arith.addf %680, %679 : vector<8x128xf32>
    %682 = arith.divf %680, %681 : vector<8x128xf32>
    %683 = arith.mulf %674, %650 : vector<8x128xf32>
    %684 = arith.mulf %668, %676 : vector<8x128xf32>
    %685 = arith.addf %683, %684 : vector<8x128xf32>
    %686 = math.tanh %685 : vector<8x128xf32>
    %687 = arith.mulf %682, %686 : vector<8x128xf32>
    %688 = arith.index_cast %c2_i32_179 : i32 to index
    %c0_186 = arith.constant 0 : index
    %c0_187 = arith.constant 0 : index
    %689 = vector.load %arg13[%688, %c0_186, %c0_187] : memref<8x8x256xf32, #tpu.memory_space<vmem>>, vector<1x8x128xf32>
    %690 = vector.shape_cast %689 : vector<1x8x128xf32> to vector<8x128xf32>
    %691 = vector.shape_cast %687 : vector<8x128xf32> to vector<1x8x128xf32>
    tpu.vector_store %arg13[%688, %c0_186, %c0_187], %691 {strides = array<i32>} : memref<8x8x256xf32, #tpu.memory_space<vmem>>, vector<1x8x128xf32>,
    %c3_i32_188 = arith.constant 3 : i32
    %692 = arith.index_cast %c3_i32_188 : i32 to index
    %c0_189 = arith.constant 0 : index
    %c0_190 = arith.constant 0 : index
    %693 = vector.load %arg12[%692, %c0_189, %c0_190] : memref<8x8x256xf32, #tpu.memory_space<vmem>>, vector<1x8x256xf32>
    %694 = vector.shape_cast %693 : vector<1x8x256xf32> to vector<8x256xf32>
    %695 = tpu.concatenate %694, %687 in 1 : vector<8x256xf32>, vector<8x128xf32> -> vector<8x384xf32>
    %cst_191 = arith.constant dense<0.000000e+00> : vector<8x512xf32>
    %696 = tpu.matmul %695, %578, %cst_191 {dimension_numbers = #tpu.dot_dimension_numbers<[1], [0], [0], [1], [0, 0, 1, 1], [], []>} : vector<8x384xf32>, vector<384x512xf32>, vector<8x512xf32> -> vector<8x512xf32>
    %697 = arith.addf %696, %582 : vector<8x512xf32>
    %698 = vector.extract_strided_slice %697 {offsets = [0, 0], sizes = [8, 128], strides = [1, 1]} : vector<8x512xf32> to vector<8x128xf32>
    %699 = arith.negf %698 : vector<8x128xf32>
    %700 = math.exp %699 : vector<8x128xf32>
    %cst_192 = arith.constant 1.000000e+00 : f32
    %701 = vector.broadcast %cst_192 : f32 to vector<8x128xf32>
    %702 = arith.addf %701, %700 : vector<8x128xf32>
    %703 = arith.divf %701, %702 : vector<8x128xf32>
    %704 = vector.extract_strided_slice %697 {offsets = [0, 128], sizes = [8, 128], strides = [1, 1]} : vector<8x512xf32> to vector<8x128xf32>
    %705 = arith.negf %704 : vector<8x128xf32>
    %706 = math.exp %705 : vector<8x128xf32>
    %cst_193 = arith.constant 1.000000e+00 : f32
    %707 = vector.broadcast %cst_193 : f32 to vector<8x128xf32>
    %708 = arith.addf %707, %706 : vector<8x128xf32>
    %709 = arith.divf %707, %708 : vector<8x128xf32>
    %710 = vector.extract_strided_slice %697 {offsets = [0, 256], sizes = [8, 128], strides = [1, 1]} : vector<8x512xf32> to vector<8x128xf32>
    %711 = math.tanh %710 : vector<8x128xf32>
    %712 = vector.extract_strided_slice %697 {offsets = [0, 384], sizes = [8, 128], strides = [1, 1]} : vector<8x512xf32> to vector<8x128xf32>
    %713 = arith.negf %712 : vector<8x128xf32>
    %714 = math.exp %713 : vector<8x128xf32>
    %cst_194 = arith.constant 1.000000e+00 : f32
    %715 = vector.broadcast %cst_194 : f32 to vector<8x128xf32>
    %716 = arith.addf %715, %714 : vector<8x128xf32>
    %717 = arith.divf %715, %716 : vector<8x128xf32>
    %718 = arith.mulf %709, %685 : vector<8x128xf32>
    %719 = arith.mulf %703, %711 : vector<8x128xf32>
    %720 = arith.addf %718, %719 : vector<8x128xf32>
    %721 = math.tanh %720 : vector<8x128xf32>
    %722 = arith.mulf %717, %721 : vector<8x128xf32>
    %723 = arith.index_cast %c3_i32_188 : i32 to index
    %c0_195 = arith.constant 0 : index
    %c0_196 = arith.constant 0 : index
    %724 = vector.load %arg13[%723, %c0_195, %c0_196] : memref<8x8x256xf32, #tpu.memory_space<vmem>>, vector<1x8x128xf32>
    %725 = vector.shape_cast %724 : vector<1x8x128xf32> to vector<8x128xf32>
    %726 = vector.shape_cast %722 : vector<8x128xf32> to vector<1x8x128xf32>
    tpu.vector_store %arg13[%723, %c0_195, %c0_196], %726 {strides = array<i32>} : memref<8x8x256xf32, #tpu.memory_space<vmem>>, vector<1x8x128xf32>,
    %c4_i32_197 = arith.constant 4 : i32
    %727 = arith.index_cast %c4_i32_197 : i32 to index
    %c0_198 = arith.constant 0 : index
    %c0_199 = arith.constant 0 : index
    %728 = vector.load %arg12[%727, %c0_198, %c0_199] : memref<8x8x256xf32, #tpu.memory_space<vmem>>, vector<1x8x256xf32>
    %729 = vector.shape_cast %728 : vector<1x8x256xf32> to vector<8x256xf32>
    %730 = tpu.concatenate %729, %722 in 1 : vector<8x256xf32>, vector<8x128xf32> -> vector<8x384xf32>
    %cst_200 = arith.constant dense<0.000000e+00> : vector<8x512xf32>
    %731 = tpu.matmul %730, %578, %cst_200 {dimension_numbers = #tpu.dot_dimension_numbers<[1], [0], [0], [1], [0, 0, 1, 1], [], []>} : vector<8x384xf32>, vector<384x512xf32>, vector<8x512xf32> -> vector<8x512xf32>
    %732 = arith.addf %731, %582 : vector<8x512xf32>
    %733 = vector.extract_strided_slice %732 {offsets = [0, 0], sizes = [8, 128], strides = [1, 1]} : vector<8x512xf32> to vector<8x128xf32>
    %734 = arith.negf %733 : vector<8x128xf32>
    %735 = math.exp %734 : vector<8x128xf32>
    %cst_201 = arith.constant 1.000000e+00 : f32
    %736 = vector.broadcast %cst_201 : f32 to vector<8x128xf32>
    %737 = arith.addf %736, %735 : vector<8x128xf32>
    %738 = arith.divf %736, %737 : vector<8x128xf32>
    %739 = vector.extract_strided_slice %732 {offsets = [0, 128], sizes = [8, 128], strides = [1, 1]} : vector<8x512xf32> to vector<8x128xf32>
    %740 = arith.negf %739 : vector<8x128xf32>
    %741 = math.exp %740 : vector<8x128xf32>
    %cst_202 = arith.constant 1.000000e+00 : f32
    %742 = vector.broadcast %cst_202 : f32 to vector<8x128xf32>
    %743 = arith.addf %742, %741 : vector<8x128xf32>
    %744 = arith.divf %742, %743 : vector<8x128xf32>
    %745 = vector.extract_strided_slice %732 {offsets = [0, 256], sizes = [8, 128], strides = [1, 1]} : vector<8x512xf32> to vector<8x128xf32>
    %746 = math.tanh %745 : vector<8x128xf32>
    %747 = vector.extract_strided_slice %732 {offsets = [0, 384], sizes = [8, 128], strides = [1, 1]} : vector<8x512xf32> to vector<8x128xf32>
    %748 = arith.negf %747 : vector<8x128xf32>
    %749 = math.exp %748 : vector<8x128xf32>
    %cst_203 = arith.constant 1.000000e+00 : f32
    %750 = vector.broadcast %cst_203 : f32 to vector<8x128xf32>
    %751 = arith.addf %750, %749 : vector<8x128xf32>
    %752 = arith.divf %750, %751 : vector<8x128xf32>
    %753 = arith.mulf %744, %720 : vector<8x128xf32>
    %754 = arith.mulf %738, %746 : vector<8x128xf32>
    %755 = arith.addf %753, %754 : vector<8x128xf32>
    %756 = math.tanh %755 : vector<8x128xf32>
    %757 = arith.mulf %752, %756 : vector<8x128xf32>
    %758 = arith.index_cast %c4_i32_197 : i32 to index
    %c0_204 = arith.constant 0 : index
    %c0_205 = arith.constant 0 : index
    %759 = vector.load %arg13[%758, %c0_204, %c0_205] : memref<8x8x256xf32, #tpu.memory_space<vmem>>, vector<1x8x128xf32>
    %760 = vector.shape_cast %759 : vector<1x8x128xf32> to vector<8x128xf32>
    %761 = vector.shape_cast %757 : vector<8x128xf32> to vector<1x8x128xf32>
    tpu.vector_store %arg13[%758, %c0_204, %c0_205], %761 {strides = array<i32>} : memref<8x8x256xf32, #tpu.memory_space<vmem>>, vector<1x8x128xf32>,
    %c5_i32_206 = arith.constant 5 : i32
    %762 = arith.index_cast %c5_i32_206 : i32 to index
    %c0_207 = arith.constant 0 : index
    %c0_208 = arith.constant 0 : index
    %763 = vector.load %arg12[%762, %c0_207, %c0_208] : memref<8x8x256xf32, #tpu.memory_space<vmem>>, vector<1x8x256xf32>
    %764 = vector.shape_cast %763 : vector<1x8x256xf32> to vector<8x256xf32>
    %765 = tpu.concatenate %764, %757 in 1 : vector<8x256xf32>, vector<8x128xf32> -> vector<8x384xf32>
    %cst_209 = arith.constant dense<0.000000e+00> : vector<8x512xf32>
    %766 = tpu.matmul %765, %578, %cst_209 {dimension_numbers = #tpu.dot_dimension_numbers<[1], [0], [0], [1], [0, 0, 1, 1], [], []>} : vector<8x384xf32>, vector<384x512xf32>, vector<8x512xf32> -> vector<8x512xf32>
    %767 = arith.addf %766, %582 : vector<8x512xf32>
    %768 = vector.extract_strided_slice %767 {offsets = [0, 0], sizes = [8, 128], strides = [1, 1]} : vector<8x512xf32> to vector<8x128xf32>
    %769 = arith.negf %768 : vector<8x128xf32>
    %770 = math.exp %769 : vector<8x128xf32>
    %cst_210 = arith.constant 1.000000e+00 : f32
    %771 = vector.broadcast %cst_210 : f32 to vector<8x128xf32>
    %772 = arith.addf %771, %770 : vector<8x128xf32>
    %773 = arith.divf %771, %772 : vector<8x128xf32>
    %774 = vector.extract_strided_slice %767 {offsets = [0, 128], sizes = [8, 128], strides = [1, 1]} : vector<8x512xf32> to vector<8x128xf32>
    %775 = arith.negf %774 : vector<8x128xf32>
    %776 = math.exp %775 : vector<8x128xf32>
    %cst_211 = arith.constant 1.000000e+00 : f32
    %777 = vector.broadcast %cst_211 : f32 to vector<8x128xf32>
    %778 = arith.addf %777, %776 : vector<8x128xf32>
    %779 = arith.divf %777, %778 : vector<8x128xf32>
    %780 = vector.extract_strided_slice %767 {offsets = [0, 256], sizes = [8, 128], strides = [1, 1]} : vector<8x512xf32> to vector<8x128xf32>
    %781 = math.tanh %780 : vector<8x128xf32>
    %782 = vector.extract_strided_slice %767 {offsets = [0, 384], sizes = [8, 128], strides = [1, 1]} : vector<8x512xf32> to vector<8x128xf32>
    %783 = arith.negf %782 : vector<8x128xf32>
    %784 = math.exp %783 : vector<8x128xf32>
    %cst_212 = arith.constant 1.000000e+00 : f32
    %785 = vector.broadcast %cst_212 : f32 to vector<8x128xf32>
    %786 = arith.addf %785, %784 : vector<8x128xf32>
    %787 = arith.divf %785, %786 : vector<8x128xf32>
    %788 = arith.mulf %779, %755 : vector<8x128xf32>
    %789 = arith.mulf %773, %781 : vector<8x128xf32>
    %790 = arith.addf %788, %789 : vector<8x128xf32>
    %791 = math.tanh %790 : vector<8x128xf32>
    %792 = arith.mulf %787, %791 : vector<8x128xf32>
    %793 = arith.index_cast %c5_i32_206 : i32 to index
    %c0_213 = arith.constant 0 : index
    %c0_214 = arith.constant 0 : index
    %794 = vector.load %arg13[%793, %c0_213, %c0_214] : memref<8x8x256xf32, #tpu.memory_space<vmem>>, vector<1x8x128xf32>
    %795 = vector.shape_cast %794 : vector<1x8x128xf32> to vector<8x128xf32>
    %796 = vector.shape_cast %792 : vector<8x128xf32> to vector<1x8x128xf32>
    tpu.vector_store %arg13[%793, %c0_213, %c0_214], %796 {strides = array<i32>} : memref<8x8x256xf32, #tpu.memory_space<vmem>>, vector<1x8x128xf32>,
    %c6_i32_215 = arith.constant 6 : i32
    %797 = arith.index_cast %c6_i32_215 : i32 to index
    %c0_216 = arith.constant 0 : index
    %c0_217 = arith.constant 0 : index
    %798 = vector.load %arg12[%797, %c0_216, %c0_217] : memref<8x8x256xf32, #tpu.memory_space<vmem>>, vector<1x8x256xf32>
    %799 = vector.shape_cast %798 : vector<1x8x256xf32> to vector<8x256xf32>
    %800 = tpu.concatenate %799, %792 in 1 : vector<8x256xf32>, vector<8x128xf32> -> vector<8x384xf32>
    %cst_218 = arith.constant dense<0.000000e+00> : vector<8x512xf32>
    %801 = tpu.matmul %800, %578, %cst_218 {dimension_numbers = #tpu.dot_dimension_numbers<[1], [0], [0], [1], [0, 0, 1, 1], [], []>} : vector<8x384xf32>, vector<384x512xf32>, vector<8x512xf32> -> vector<8x512xf32>
    %802 = arith.addf %801, %582 : vector<8x512xf32>
    %803 = vector.extract_strided_slice %802 {offsets = [0, 0], sizes = [8, 128], strides = [1, 1]} : vector<8x512xf32> to vector<8x128xf32>
    %804 = arith.negf %803 : vector<8x128xf32>
    %805 = math.exp %804 : vector<8x128xf32>
    %cst_219 = arith.constant 1.000000e+00 : f32
    %806 = vector.broadcast %cst_219 : f32 to vector<8x128xf32>
    %807 = arith.addf %806, %805 : vector<8x128xf32>
    %808 = arith.divf %806, %807 : vector<8x128xf32>
    %809 = vector.extract_strided_slice %802 {offsets = [0, 128], sizes = [8, 128], strides = [1, 1]} : vector<8x512xf32> to vector<8x128xf32>
    %810 = arith.negf %809 : vector<8x128xf32>
    %811 = math.exp %810 : vector<8x128xf32>
    %cst_220 = arith.constant 1.000000e+00 : f32
    %812 = vector.broadcast %cst_220 : f32 to vector<8x128xf32>
    %813 = arith.addf %812, %811 : vector<8x128xf32>
    %814 = arith.divf %812, %813 : vector<8x128xf32>
    %815 = vector.extract_strided_slice %802 {offsets = [0, 256], sizes = [8, 128], strides = [1, 1]} : vector<8x512xf32> to vector<8x128xf32>
    %816 = math.tanh %815 : vector<8x128xf32>
    %817 = vector.extract_strided_slice %802 {offsets = [0, 384], sizes = [8, 128], strides = [1, 1]} : vector<8x512xf32> to vector<8x128xf32>
    %818 = arith.negf %817 : vector<8x128xf32>
    %819 = math.exp %818 : vector<8x128xf32>
    %cst_221 = arith.constant 1.000000e+00 : f32
    %820 = vector.broadcast %cst_221 : f32 to vector<8x128xf32>
    %821 = arith.addf %820, %819 : vector<8x128xf32>
    %822 = arith.divf %820, %821 : vector<8x128xf32>
    %823 = arith.mulf %814, %790 : vector<8x128xf32>
    %824 = arith.mulf %808, %816 : vector<8x128xf32>
    %825 = arith.addf %823, %824 : vector<8x128xf32>
    %826 = math.tanh %825 : vector<8x128xf32>
    %827 = arith.mulf %822, %826 : vector<8x128xf32>
    %828 = arith.index_cast %c6_i32_215 : i32 to index
    %c0_222 = arith.constant 0 : index
    %c0_223 = arith.constant 0 : index
    %829 = vector.load %arg13[%828, %c0_222, %c0_223] : memref<8x8x256xf32, #tpu.memory_space<vmem>>, vector<1x8x128xf32>
    %830 = vector.shape_cast %829 : vector<1x8x128xf32> to vector<8x128xf32>
    %831 = vector.shape_cast %827 : vector<8x128xf32> to vector<1x8x128xf32>
    tpu.vector_store %arg13[%828, %c0_222, %c0_223], %831 {strides = array<i32>} : memref<8x8x256xf32, #tpu.memory_space<vmem>>, vector<1x8x128xf32>,
    %c7_i32_224 = arith.constant 7 : i32
    %832 = arith.index_cast %c7_i32_224 : i32 to index
    %c0_225 = arith.constant 0 : index
    %c0_226 = arith.constant 0 : index
    %833 = vector.load %arg12[%832, %c0_225, %c0_226] : memref<8x8x256xf32, #tpu.memory_space<vmem>>, vector<1x8x256xf32>
    %834 = vector.shape_cast %833 : vector<1x8x256xf32> to vector<8x256xf32>
    %835 = tpu.concatenate %834, %827 in 1 : vector<8x256xf32>, vector<8x128xf32> -> vector<8x384xf32>
    %cst_227 = arith.constant dense<0.000000e+00> : vector<8x512xf32>
    %836 = tpu.matmul %835, %578, %cst_227 {dimension_numbers = #tpu.dot_dimension_numbers<[1], [0], [0], [1], [0, 0, 1, 1], [], []>} : vector<8x384xf32>, vector<384x512xf32>, vector<8x512xf32> -> vector<8x512xf32>
    %837 = arith.addf %836, %582 : vector<8x512xf32>
    %838 = vector.extract_strided_slice %837 {offsets = [0, 0], sizes = [8, 128], strides = [1, 1]} : vector<8x512xf32> to vector<8x128xf32>
    %839 = arith.negf %838 : vector<8x128xf32>
    %840 = math.exp %839 : vector<8x128xf32>
    %cst_228 = arith.constant 1.000000e+00 : f32
    %841 = vector.broadcast %cst_228 : f32 to vector<8x128xf32>
    %842 = arith.addf %841, %840 : vector<8x128xf32>
    %843 = arith.divf %841, %842 : vector<8x128xf32>
    %844 = vector.extract_strided_slice %837 {offsets = [0, 128], sizes = [8, 128], strides = [1, 1]} : vector<8x512xf32> to vector<8x128xf32>
    %845 = arith.negf %844 : vector<8x128xf32>
    %846 = math.exp %845 : vector<8x128xf32>
    %cst_229 = arith.constant 1.000000e+00 : f32
    %847 = vector.broadcast %cst_229 : f32 to vector<8x128xf32>
    %848 = arith.addf %847, %846 : vector<8x128xf32>
    %849 = arith.divf %847, %848 : vector<8x128xf32>
    %850 = vector.extract_strided_slice %837 {offsets = [0, 256], sizes = [8, 128], strides = [1, 1]} : vector<8x512xf32> to vector<8x128xf32>
    %851 = math.tanh %850 : vector<8x128xf32>
    %852 = vector.extract_strided_slice %837 {offsets = [0, 384], sizes = [8, 128], strides = [1, 1]} : vector<8x512xf32> to vector<8x128xf32>
    %853 = arith.negf %852 : vector<8x128xf32>
    %854 = math.exp %853 : vector<8x128xf32>
    %cst_230 = arith.constant 1.000000e+00 : f32
    %855 = vector.broadcast %cst_230 : f32 to vector<8x128xf32>
    %856 = arith.addf %855, %854 : vector<8x128xf32>
    %857 = arith.divf %855, %856 : vector<8x128xf32>
    %858 = arith.mulf %849, %825 : vector<8x128xf32>
    %859 = arith.mulf %843, %851 : vector<8x128xf32>
    %860 = arith.addf %858, %859 : vector<8x128xf32>
    %861 = math.tanh %860 : vector<8x128xf32>
    %862 = arith.mulf %857, %861 : vector<8x128xf32>
    %863 = arith.index_cast %c7_i32_224 : i32 to index
    %c0_231 = arith.constant 0 : index
    %c0_232 = arith.constant 0 : index
    %864 = vector.load %arg13[%863, %c0_231, %c0_232] : memref<8x8x256xf32, #tpu.memory_space<vmem>>, vector<1x8x128xf32>
    %865 = vector.shape_cast %864 : vector<1x8x128xf32> to vector<8x128xf32>
    %866 = vector.shape_cast %862 : vector<8x128xf32> to vector<1x8x128xf32>
    tpu.vector_store %arg13[%863, %c0_231, %c0_232], %866 {strides = array<i32>} : memref<8x8x256xf32, #tpu.memory_space<vmem>>, vector<1x8x128xf32>,
    %c8_i32_233 = arith.constant 8 : i32
    %cst_234 = arith.constant 0.000000e+00 : f32
    %867 = vector.broadcast %cst_234 : f32 to vector<8x128xf32>
    %c0_i32_235 = arith.constant 0 : i32
    %c7_i32_236 = arith.constant 7 : i32
    %868 = arith.subi %c7_i32_236, %c0_i32_235 : i32
    %869 = arith.index_cast %868 : i32 to index
    %c0_237 = arith.constant 0 : index
    %c0_238 = arith.constant 0 : index
    %870 = vector.load %arg12[%869, %c0_237, %c0_238] : memref<8x8x256xf32, #tpu.memory_space<vmem>>, vector<1x8x256xf32>
    %871 = vector.shape_cast %870 : vector<1x8x256xf32> to vector<8x256xf32>
    %872 = tpu.concatenate %871, %867 in 1 : vector<8x256xf32>, vector<8x128xf32> -> vector<8x384xf32>
    %cst_239 = arith.constant dense<0.000000e+00> : vector<8x512xf32>
    %873 = tpu.matmul %872, %579, %cst_239 {dimension_numbers = #tpu.dot_dimension_numbers<[1], [0], [0], [1], [0, 0, 1, 1], [], []>} : vector<8x384xf32>, vector<384x512xf32>, vector<8x512xf32> -> vector<8x512xf32>
    %874 = arith.addf %873, %585 : vector<8x512xf32>
    %875 = vector.extract_strided_slice %874 {offsets = [0, 0], sizes = [8, 128], strides = [1, 1]} : vector<8x512xf32> to vector<8x128xf32>
    %876 = arith.negf %875 : vector<8x128xf32>
    %877 = math.exp %876 : vector<8x128xf32>
    %cst_240 = arith.constant 1.000000e+00 : f32
    %878 = vector.broadcast %cst_240 : f32 to vector<8x128xf32>
    %879 = arith.addf %878, %877 : vector<8x128xf32>
    %880 = arith.divf %878, %879 : vector<8x128xf32>
    %881 = vector.extract_strided_slice %874 {offsets = [0, 128], sizes = [8, 128], strides = [1, 1]} : vector<8x512xf32> to vector<8x128xf32>
    %882 = arith.negf %881 : vector<8x128xf32>
    %883 = math.exp %882 : vector<8x128xf32>
    %cst_241 = arith.constant 1.000000e+00 : f32
    %884 = vector.broadcast %cst_241 : f32 to vector<8x128xf32>
    %885 = arith.addf %884, %883 : vector<8x128xf32>
    %886 = arith.divf %884, %885 : vector<8x128xf32>
    %887 = vector.extract_strided_slice %874 {offsets = [0, 256], sizes = [8, 128], strides = [1, 1]} : vector<8x512xf32> to vector<8x128xf32>
    %888 = math.tanh %887 : vector<8x128xf32>
    %889 = vector.extract_strided_slice %874 {offsets = [0, 384], sizes = [8, 128], strides = [1, 1]} : vector<8x512xf32> to vector<8x128xf32>
    %890 = arith.negf %889 : vector<8x128xf32>
    %891 = math.exp %890 : vector<8x128xf32>
    %cst_242 = arith.constant 1.000000e+00 : f32
    %892 = vector.broadcast %cst_242 : f32 to vector<8x128xf32>
    %893 = arith.addf %892, %891 : vector<8x128xf32>
    %894 = arith.divf %892, %893 : vector<8x128xf32>
    %895 = arith.mulf %886, %867 : vector<8x128xf32>
    %896 = arith.mulf %880, %888 : vector<8x128xf32>
    %897 = arith.addf %895, %896 : vector<8x128xf32>
    %898 = math.tanh %897 : vector<8x128xf32>
    %899 = arith.mulf %894, %898 : vector<8x128xf32>
    %900 = arith.index_cast %868 : i32 to index
    %c0_243 = arith.constant 0 : index
    %c128_244 = arith.constant 128 : index
    %901 = vector.load %arg13[%900, %c0_243, %c128_244] : memref<8x8x256xf32, #tpu.memory_space<vmem>>, vector<1x8x128xf32>
    %902 = vector.shape_cast %901 : vector<1x8x128xf32> to vector<8x128xf32>
    %903 = vector.shape_cast %899 : vector<8x128xf32> to vector<1x8x128xf32>
    tpu.vector_store %arg13[%900, %c0_243, %c128_244], %903 {strides = array<i32>} : memref<8x8x256xf32, #tpu.memory_space<vmem>>, vector<1x8x128xf32>,
    %c1_i32_245 = arith.constant 1 : i32
    %c7_i32_246 = arith.constant 7 : i32
    %904 = arith.subi %c7_i32_246, %c1_i32_245 : i32
    %905 = arith.index_cast %904 : i32 to index
    %c0_247 = arith.constant 0 : index
    %c0_248 = arith.constant 0 : index
    %906 = vector.load %arg12[%905, %c0_247, %c0_248] : memref<8x8x256xf32, #tpu.memory_space<vmem>>, vector<1x8x256xf32>
    %907 = vector.shape_cast %906 : vector<1x8x256xf32> to vector<8x256xf32>
    %908 = tpu.concatenate %907, %899 in 1 : vector<8x256xf32>, vector<8x128xf32> -> vector<8x384xf32>
    %cst_249 = arith.constant dense<0.000000e+00> : vector<8x512xf32>
    %909 = tpu.matmul %908, %579, %cst_249 {dimension_numbers = #tpu.dot_dimension_numbers<[1], [0], [0], [1], [0, 0, 1, 1], [], []>} : vector<8x384xf32>, vector<384x512xf32>, vector<8x512xf32> -> vector<8x512xf32>
    %910 = arith.addf %909, %585 : vector<8x512xf32>
    %911 = vector.extract_strided_slice %910 {offsets = [0, 0], sizes = [8, 128], strides = [1, 1]} : vector<8x512xf32> to vector<8x128xf32>
    %912 = arith.negf %911 : vector<8x128xf32>
    %913 = math.exp %912 : vector<8x128xf32>
    %cst_250 = arith.constant 1.000000e+00 : f32
    %914 = vector.broadcast %cst_250 : f32 to vector<8x128xf32>
    %915 = arith.addf %914, %913 : vector<8x128xf32>
    %916 = arith.divf %914, %915 : vector<8x128xf32>
    %917 = vector.extract_strided_slice %910 {offsets = [0, 128], sizes = [8, 128], strides = [1, 1]} : vector<8x512xf32> to vector<8x128xf32>
    %918 = arith.negf %917 : vector<8x128xf32>
    %919 = math.exp %918 : vector<8x128xf32>
    %cst_251 = arith.constant 1.000000e+00 : f32
    %920 = vector.broadcast %cst_251 : f32 to vector<8x128xf32>
    %921 = arith.addf %920, %919 : vector<8x128xf32>
    %922 = arith.divf %920, %921 : vector<8x128xf32>
    %923 = vector.extract_strided_slice %910 {offsets = [0, 256], sizes = [8, 128], strides = [1, 1]} : vector<8x512xf32> to vector<8x128xf32>
    %924 = math.tanh %923 : vector<8x128xf32>
    %925 = vector.extract_strided_slice %910 {offsets = [0, 384], sizes = [8, 128], strides = [1, 1]} : vector<8x512xf32> to vector<8x128xf32>
    %926 = arith.negf %925 : vector<8x128xf32>
    %927 = math.exp %926 : vector<8x128xf32>
    %cst_252 = arith.constant 1.000000e+00 : f32
    %928 = vector.broadcast %cst_252 : f32 to vector<8x128xf32>
    %929 = arith.addf %928, %927 : vector<8x128xf32>
    %930 = arith.divf %928, %929 : vector<8x128xf32>
    %931 = arith.mulf %922, %897 : vector<8x128xf32>
    %932 = arith.mulf %916, %924 : vector<8x128xf32>
    %933 = arith.addf %931, %932 : vector<8x128xf32>
    %934 = math.tanh %933 : vector<8x128xf32>
    %935 = arith.mulf %930, %934 : vector<8x128xf32>
    %936 = arith.index_cast %904 : i32 to index
    %c0_253 = arith.constant 0 : index
    %c128_254 = arith.constant 128 : index
    %937 = vector.load %arg13[%936, %c0_253, %c128_254] : memref<8x8x256xf32, #tpu.memory_space<vmem>>, vector<1x8x128xf32>
    %938 = vector.shape_cast %937 : vector<1x8x128xf32> to vector<8x128xf32>
    %939 = vector.shape_cast %935 : vector<8x128xf32> to vector<1x8x128xf32>
    tpu.vector_store %arg13[%936, %c0_253, %c128_254], %939 {strides = array<i32>} : memref<8x8x256xf32, #tpu.memory_space<vmem>>, vector<1x8x128xf32>,
    %c2_i32_255 = arith.constant 2 : i32
    %c7_i32_256 = arith.constant 7 : i32
    %940 = arith.subi %c7_i32_256, %c2_i32_255 : i32
    %941 = arith.index_cast %940 : i32 to index
    %c0_257 = arith.constant 0 : index
    %c0_258 = arith.constant 0 : index
    %942 = vector.load %arg12[%941, %c0_257, %c0_258] : memref<8x8x256xf32, #tpu.memory_space<vmem>>, vector<1x8x256xf32>
    %943 = vector.shape_cast %942 : vector<1x8x256xf32> to vector<8x256xf32>
    %944 = tpu.concatenate %943, %935 in 1 : vector<8x256xf32>, vector<8x128xf32> -> vector<8x384xf32>
    %cst_259 = arith.constant dense<0.000000e+00> : vector<8x512xf32>
    %945 = tpu.matmul %944, %579, %cst_259 {dimension_numbers = #tpu.dot_dimension_numbers<[1], [0], [0], [1], [0, 0, 1, 1], [], []>} : vector<8x384xf32>, vector<384x512xf32>, vector<8x512xf32> -> vector<8x512xf32>
    %946 = arith.addf %945, %585 : vector<8x512xf32>
    %947 = vector.extract_strided_slice %946 {offsets = [0, 0], sizes = [8, 128], strides = [1, 1]} : vector<8x512xf32> to vector<8x128xf32>
    %948 = arith.negf %947 : vector<8x128xf32>
    %949 = math.exp %948 : vector<8x128xf32>
    %cst_260 = arith.constant 1.000000e+00 : f32
    %950 = vector.broadcast %cst_260 : f32 to vector<8x128xf32>
    %951 = arith.addf %950, %949 : vector<8x128xf32>
    %952 = arith.divf %950, %951 : vector<8x128xf32>
    %953 = vector.extract_strided_slice %946 {offsets = [0, 128], sizes = [8, 128], strides = [1, 1]} : vector<8x512xf32> to vector<8x128xf32>
    %954 = arith.negf %953 : vector<8x128xf32>
    %955 = math.exp %954 : vector<8x128xf32>
    %cst_261 = arith.constant 1.000000e+00 : f32
    %956 = vector.broadcast %cst_261 : f32 to vector<8x128xf32>
    %957 = arith.addf %956, %955 : vector<8x128xf32>
    %958 = arith.divf %956, %957 : vector<8x128xf32>
    %959 = vector.extract_strided_slice %946 {offsets = [0, 256], sizes = [8, 128], strides = [1, 1]} : vector<8x512xf32> to vector<8x128xf32>
    %960 = math.tanh %959 : vector<8x128xf32>
    %961 = vector.extract_strided_slice %946 {offsets = [0, 384], sizes = [8, 128], strides = [1, 1]} : vector<8x512xf32> to vector<8x128xf32>
    %962 = arith.negf %961 : vector<8x128xf32>
    %963 = math.exp %962 : vector<8x128xf32>
    %cst_262 = arith.constant 1.000000e+00 : f32
    %964 = vector.broadcast %cst_262 : f32 to vector<8x128xf32>
    %965 = arith.addf %964, %963 : vector<8x128xf32>
    %966 = arith.divf %964, %965 : vector<8x128xf32>
    %967 = arith.mulf %958, %933 : vector<8x128xf32>
    %968 = arith.mulf %952, %960 : vector<8x128xf32>
    %969 = arith.addf %967, %968 : vector<8x128xf32>
    %970 = math.tanh %969 : vector<8x128xf32>
    %971 = arith.mulf %966, %970 : vector<8x128xf32>
    %972 = arith.index_cast %940 : i32 to index
    %c0_263 = arith.constant 0 : index
    %c128_264 = arith.constant 128 : index
    %973 = vector.load %arg13[%972, %c0_263, %c128_264] : memref<8x8x256xf32, #tpu.memory_space<vmem>>, vector<1x8x128xf32>
    %974 = vector.shape_cast %973 : vector<1x8x128xf32> to vector<8x128xf32>
    %975 = vector.shape_cast %971 : vector<8x128xf32> to vector<1x8x128xf32>
    tpu.vector_store %arg13[%972, %c0_263, %c128_264], %975 {strides = array<i32>} : memref<8x8x256xf32, #tpu.memory_space<vmem>>, vector<1x8x128xf32>,
    %c3_i32_265 = arith.constant 3 : i32
    %c7_i32_266 = arith.constant 7 : i32
    %976 = arith.subi %c7_i32_266, %c3_i32_265 : i32
    %977 = arith.index_cast %976 : i32 to index
    %c0_267 = arith.constant 0 : index
    %c0_268 = arith.constant 0 : index
    %978 = vector.load %arg12[%977, %c0_267, %c0_268] : memref<8x8x256xf32, #tpu.memory_space<vmem>>, vector<1x8x256xf32>
    %979 = vector.shape_cast %978 : vector<1x8x256xf32> to vector<8x256xf32>
    %980 = tpu.concatenate %979, %971 in 1 : vector<8x256xf32>, vector<8x128xf32> -> vector<8x384xf32>
    %cst_269 = arith.constant dense<0.000000e+00> : vector<8x512xf32>
    %981 = tpu.matmul %980, %579, %cst_269 {dimension_numbers = #tpu.dot_dimension_numbers<[1], [0], [0], [1], [0, 0, 1, 1], [], []>} : vector<8x384xf32>, vector<384x512xf32>, vector<8x512xf32> -> vector<8x512xf32>
    %982 = arith.addf %981, %585 : vector<8x512xf32>
    %983 = vector.extract_strided_slice %982 {offsets = [0, 0], sizes = [8, 128], strides = [1, 1]} : vector<8x512xf32> to vector<8x128xf32>
    %984 = arith.negf %983 : vector<8x128xf32>
    %985 = math.exp %984 : vector<8x128xf32>
    %cst_270 = arith.constant 1.000000e+00 : f32
    %986 = vector.broadcast %cst_270 : f32 to vector<8x128xf32>
    %987 = arith.addf %986, %985 : vector<8x128xf32>
    %988 = arith.divf %986, %987 : vector<8x128xf32>
    %989 = vector.extract_strided_slice %982 {offsets = [0, 128], sizes = [8, 128], strides = [1, 1]} : vector<8x512xf32> to vector<8x128xf32>
    %990 = arith.negf %989 : vector<8x128xf32>
    %991 = math.exp %990 : vector<8x128xf32>
    %cst_271 = arith.constant 1.000000e+00 : f32
    %992 = vector.broadcast %cst_271 : f32 to vector<8x128xf32>
    %993 = arith.addf %992, %991 : vector<8x128xf32>
    %994 = arith.divf %992, %993 : vector<8x128xf32>
    %995 = vector.extract_strided_slice %982 {offsets = [0, 256], sizes = [8, 128], strides = [1, 1]} : vector<8x512xf32> to vector<8x128xf32>
    %996 = math.tanh %995 : vector<8x128xf32>
    %997 = vector.extract_strided_slice %982 {offsets = [0, 384], sizes = [8, 128], strides = [1, 1]} : vector<8x512xf32> to vector<8x128xf32>
    %998 = arith.negf %997 : vector<8x128xf32>
    %999 = math.exp %998 : vector<8x128xf32>
    %cst_272 = arith.constant 1.000000e+00 : f32
    %1000 = vector.broadcast %cst_272 : f32 to vector<8x128xf32>
    %1001 = arith.addf %1000, %999 : vector<8x128xf32>
    %1002 = arith.divf %1000, %1001 : vector<8x128xf32>
    %1003 = arith.mulf %994, %969 : vector<8x128xf32>
    %1004 = arith.mulf %988, %996 : vector<8x128xf32>
    %1005 = arith.addf %1003, %1004 : vector<8x128xf32>
    %1006 = math.tanh %1005 : vector<8x128xf32>
    %1007 = arith.mulf %1002, %1006 : vector<8x128xf32>
    %1008 = arith.index_cast %976 : i32 to index
    %c0_273 = arith.constant 0 : index
    %c128_274 = arith.constant 128 : index
    %1009 = vector.load %arg13[%1008, %c0_273, %c128_274] : memref<8x8x256xf32, #tpu.memory_space<vmem>>, vector<1x8x128xf32>
    %1010 = vector.shape_cast %1009 : vector<1x8x128xf32> to vector<8x128xf32>
    %1011 = vector.shape_cast %1007 : vector<8x128xf32> to vector<1x8x128xf32>
    tpu.vector_store %arg13[%1008, %c0_273, %c128_274], %1011 {strides = array<i32>} : memref<8x8x256xf32, #tpu.memory_space<vmem>>, vector<1x8x128xf32>,
    %c4_i32_275 = arith.constant 4 : i32
    %c7_i32_276 = arith.constant 7 : i32
    %1012 = arith.subi %c7_i32_276, %c4_i32_275 : i32
    %1013 = arith.index_cast %1012 : i32 to index
    %c0_277 = arith.constant 0 : index
    %c0_278 = arith.constant 0 : index
    %1014 = vector.load %arg12[%1013, %c0_277, %c0_278] : memref<8x8x256xf32, #tpu.memory_space<vmem>>, vector<1x8x256xf32>
    %1015 = vector.shape_cast %1014 : vector<1x8x256xf32> to vector<8x256xf32>
    %1016 = tpu.concatenate %1015, %1007 in 1 : vector<8x256xf32>, vector<8x128xf32> -> vector<8x384xf32>
    %cst_279 = arith.constant dense<0.000000e+00> : vector<8x512xf32>
    %1017 = tpu.matmul %1016, %579, %cst_279 {dimension_numbers = #tpu.dot_dimension_numbers<[1], [0], [0], [1], [0, 0, 1, 1], [], []>} : vector<8x384xf32>, vector<384x512xf32>, vector<8x512xf32> -> vector<8x512xf32>
    %1018 = arith.addf %1017, %585 : vector<8x512xf32>
    %1019 = vector.extract_strided_slice %1018 {offsets = [0, 0], sizes = [8, 128], strides = [1, 1]} : vector<8x512xf32> to vector<8x128xf32>
    %1020 = arith.negf %1019 : vector<8x128xf32>
    %1021 = math.exp %1020 : vector<8x128xf32>
    %cst_280 = arith.constant 1.000000e+00 : f32
    %1022 = vector.broadcast %cst_280 : f32 to vector<8x128xf32>
    %1023 = arith.addf %1022, %1021 : vector<8x128xf32>
    %1024 = arith.divf %1022, %1023 : vector<8x128xf32>
    %1025 = vector.extract_strided_slice %1018 {offsets = [0, 128], sizes = [8, 128], strides = [1, 1]} : vector<8x512xf32> to vector<8x128xf32>
    %1026 = arith.negf %1025 : vector<8x128xf32>
    %1027 = math.exp %1026 : vector<8x128xf32>
    %cst_281 = arith.constant 1.000000e+00 : f32
    %1028 = vector.broadcast %cst_281 : f32 to vector<8x128xf32>
    %1029 = arith.addf %1028, %1027 : vector<8x128xf32>
    %1030 = arith.divf %1028, %1029 : vector<8x128xf32>
    %1031 = vector.extract_strided_slice %1018 {offsets = [0, 256], sizes = [8, 128], strides = [1, 1]} : vector<8x512xf32> to vector<8x128xf32>
    %1032 = math.tanh %1031 : vector<8x128xf32>
    %1033 = vector.extract_strided_slice %1018 {offsets = [0, 384], sizes = [8, 128], strides = [1, 1]} : vector<8x512xf32> to vector<8x128xf32>
    %1034 = arith.negf %1033 : vector<8x128xf32>
    %1035 = math.exp %1034 : vector<8x128xf32>
    %cst_282 = arith.constant 1.000000e+00 : f32
    %1036 = vector.broadcast %cst_282 : f32 to vector<8x128xf32>
    %1037 = arith.addf %1036, %1035 : vector<8x128xf32>
    %1038 = arith.divf %1036, %1037 : vector<8x128xf32>
    %1039 = arith.mulf %1030, %1005 : vector<8x128xf32>
    %1040 = arith.mulf %1024, %1032 : vector<8x128xf32>
    %1041 = arith.addf %1039, %1040 : vector<8x128xf32>
    %1042 = math.tanh %1041 : vector<8x128xf32>
    %1043 = arith.mulf %1038, %1042 : vector<8x128xf32>
    %1044 = arith.index_cast %1012 : i32 to index
    %c0_283 = arith.constant 0 : index
    %c128_284 = arith.constant 128 : index
    %1045 = vector.load %arg13[%1044, %c0_283, %c128_284] : memref<8x8x256xf32, #tpu.memory_space<vmem>>, vector<1x8x128xf32>
    %1046 = vector.shape_cast %1045 : vector<1x8x128xf32> to vector<8x128xf32>
    %1047 = vector.shape_cast %1043 : vector<8x128xf32> to vector<1x8x128xf32>
    tpu.vector_store %arg13[%1044, %c0_283, %c128_284], %1047 {strides = array<i32>} : memref<8x8x256xf32, #tpu.memory_space<vmem>>, vector<1x8x128xf32>,
    %c5_i32_285 = arith.constant 5 : i32
    %c7_i32_286 = arith.constant 7 : i32
    %1048 = arith.subi %c7_i32_286, %c5_i32_285 : i32
    %1049 = arith.index_cast %1048 : i32 to index
    %c0_287 = arith.constant 0 : index
    %c0_288 = arith.constant 0 : index
    %1050 = vector.load %arg12[%1049, %c0_287, %c0_288] : memref<8x8x256xf32, #tpu.memory_space<vmem>>, vector<1x8x256xf32>
    %1051 = vector.shape_cast %1050 : vector<1x8x256xf32> to vector<8x256xf32>
    %1052 = tpu.concatenate %1051, %1043 in 1 : vector<8x256xf32>, vector<8x128xf32> -> vector<8x384xf32>
    %cst_289 = arith.constant dense<0.000000e+00> : vector<8x512xf32>
    %1053 = tpu.matmul %1052, %579, %cst_289 {dimension_numbers = #tpu.dot_dimension_numbers<[1], [0], [0], [1], [0, 0, 1, 1], [], []>} : vector<8x384xf32>, vector<384x512xf32>, vector<8x512xf32> -> vector<8x512xf32>
    %1054 = arith.addf %1053, %585 : vector<8x512xf32>
    %1055 = vector.extract_strided_slice %1054 {offsets = [0, 0], sizes = [8, 128], strides = [1, 1]} : vector<8x512xf32> to vector<8x128xf32>
    %1056 = arith.negf %1055 : vector<8x128xf32>
    %1057 = math.exp %1056 : vector<8x128xf32>
    %cst_290 = arith.constant 1.000000e+00 : f32
    %1058 = vector.broadcast %cst_290 : f32 to vector<8x128xf32>
    %1059 = arith.addf %1058, %1057 : vector<8x128xf32>
    %1060 = arith.divf %1058, %1059 : vector<8x128xf32>
    %1061 = vector.extract_strided_slice %1054 {offsets = [0, 128], sizes = [8, 128], strides = [1, 1]} : vector<8x512xf32> to vector<8x128xf32>
    %1062 = arith.negf %1061 : vector<8x128xf32>
    %1063 = math.exp %1062 : vector<8x128xf32>
    %cst_291 = arith.constant 1.000000e+00 : f32
    %1064 = vector.broadcast %cst_291 : f32 to vector<8x128xf32>
    %1065 = arith.addf %1064, %1063 : vector<8x128xf32>
    %1066 = arith.divf %1064, %1065 : vector<8x128xf32>
    %1067 = vector.extract_strided_slice %1054 {offsets = [0, 256], sizes = [8, 128], strides = [1, 1]} : vector<8x512xf32> to vector<8x128xf32>
    %1068 = math.tanh %1067 : vector<8x128xf32>
    %1069 = vector.extract_strided_slice %1054 {offsets = [0, 384], sizes = [8, 128], strides = [1, 1]} : vector<8x512xf32> to vector<8x128xf32>
    %1070 = arith.negf %1069 : vector<8x128xf32>
    %1071 = math.exp %1070 : vector<8x128xf32>
    %cst_292 = arith.constant 1.000000e+00 : f32
    %1072 = vector.broadcast %cst_292 : f32 to vector<8x128xf32>
    %1073 = arith.addf %1072, %1071 : vector<8x128xf32>
    %1074 = arith.divf %1072, %1073 : vector<8x128xf32>
    %1075 = arith.mulf %1066, %1041 : vector<8x128xf32>
    %1076 = arith.mulf %1060, %1068 : vector<8x128xf32>
    %1077 = arith.addf %1075, %1076 : vector<8x128xf32>
    %1078 = math.tanh %1077 : vector<8x128xf32>
    %1079 = arith.mulf %1074, %1078 : vector<8x128xf32>
    %1080 = arith.index_cast %1048 : i32 to index
    %c0_293 = arith.constant 0 : index
    %c128_294 = arith.constant 128 : index
    %1081 = vector.load %arg13[%1080, %c0_293, %c128_294] : memref<8x8x256xf32, #tpu.memory_space<vmem>>, vector<1x8x128xf32>
    %1082 = vector.shape_cast %1081 : vector<1x8x128xf32> to vector<8x128xf32>
    %1083 = vector.shape_cast %1079 : vector<8x128xf32> to vector<1x8x128xf32>
    tpu.vector_store %arg13[%1080, %c0_293, %c128_294], %1083 {strides = array<i32>} : memref<8x8x256xf32, #tpu.memory_space<vmem>>, vector<1x8x128xf32>,
    %c6_i32_295 = arith.constant 6 : i32
    %c7_i32_296 = arith.constant 7 : i32
    %1084 = arith.subi %c7_i32_296, %c6_i32_295 : i32
    %1085 = arith.index_cast %1084 : i32 to index
    %c0_297 = arith.constant 0 : index
    %c0_298 = arith.constant 0 : index
    %1086 = vector.load %arg12[%1085, %c0_297, %c0_298] : memref<8x8x256xf32, #tpu.memory_space<vmem>>, vector<1x8x256xf32>
    %1087 = vector.shape_cast %1086 : vector<1x8x256xf32> to vector<8x256xf32>
    %1088 = tpu.concatenate %1087, %1079 in 1 : vector<8x256xf32>, vector<8x128xf32> -> vector<8x384xf32>
    %cst_299 = arith.constant dense<0.000000e+00> : vector<8x512xf32>
    %1089 = tpu.matmul %1088, %579, %cst_299 {dimension_numbers = #tpu.dot_dimension_numbers<[1], [0], [0], [1], [0, 0, 1, 1], [], []>} : vector<8x384xf32>, vector<384x512xf32>, vector<8x512xf32> -> vector<8x512xf32>
    %1090 = arith.addf %1089, %585 : vector<8x512xf32>
    %1091 = vector.extract_strided_slice %1090 {offsets = [0, 0], sizes = [8, 128], strides = [1, 1]} : vector<8x512xf32> to vector<8x128xf32>
    %1092 = arith.negf %1091 : vector<8x128xf32>
    %1093 = math.exp %1092 : vector<8x128xf32>
    %cst_300 = arith.constant 1.000000e+00 : f32
    %1094 = vector.broadcast %cst_300 : f32 to vector<8x128xf32>
    %1095 = arith.addf %1094, %1093 : vector<8x128xf32>
    %1096 = arith.divf %1094, %1095 : vector<8x128xf32>
    %1097 = vector.extract_strided_slice %1090 {offsets = [0, 128], sizes = [8, 128], strides = [1, 1]} : vector<8x512xf32> to vector<8x128xf32>
    %1098 = arith.negf %1097 : vector<8x128xf32>
    %1099 = math.exp %1098 : vector<8x128xf32>
    %cst_301 = arith.constant 1.000000e+00 : f32
    %1100 = vector.broadcast %cst_301 : f32 to vector<8x128xf32>
    %1101 = arith.addf %1100, %1099 : vector<8x128xf32>
    %1102 = arith.divf %1100, %1101 : vector<8x128xf32>
    %1103 = vector.extract_strided_slice %1090 {offsets = [0, 256], sizes = [8, 128], strides = [1, 1]} : vector<8x512xf32> to vector<8x128xf32>
    %1104 = math.tanh %1103 : vector<8x128xf32>
    %1105 = vector.extract_strided_slice %1090 {offsets = [0, 384], sizes = [8, 128], strides = [1, 1]} : vector<8x512xf32> to vector<8x128xf32>
    %1106 = arith.negf %1105 : vector<8x128xf32>
    %1107 = math.exp %1106 : vector<8x128xf32>
    %cst_302 = arith.constant 1.000000e+00 : f32
    %1108 = vector.broadcast %cst_302 : f32 to vector<8x128xf32>
    %1109 = arith.addf %1108, %1107 : vector<8x128xf32>
    %1110 = arith.divf %1108, %1109 : vector<8x128xf32>
    %1111 = arith.mulf %1102, %1077 : vector<8x128xf32>
    %1112 = arith.mulf %1096, %1104 : vector<8x128xf32>
    %1113 = arith.addf %1111, %1112 : vector<8x128xf32>
    %1114 = math.tanh %1113 : vector<8x128xf32>
    %1115 = arith.mulf %1110, %1114 : vector<8x128xf32>
    %1116 = arith.index_cast %1084 : i32 to index
    %c0_303 = arith.constant 0 : index
    %c128_304 = arith.constant 128 : index
    %1117 = vector.load %arg13[%1116, %c0_303, %c128_304] : memref<8x8x256xf32, #tpu.memory_space<vmem>>, vector<1x8x128xf32>
    %1118 = vector.shape_cast %1117 : vector<1x8x128xf32> to vector<8x128xf32>
    %1119 = vector.shape_cast %1115 : vector<8x128xf32> to vector<1x8x128xf32>
    tpu.vector_store %arg13[%1116, %c0_303, %c128_304], %1119 {strides = array<i32>} : memref<8x8x256xf32, #tpu.memory_space<vmem>>, vector<1x8x128xf32>,
    %c7_i32_305 = arith.constant 7 : i32
    %c7_i32_306 = arith.constant 7 : i32
    %1120 = arith.subi %c7_i32_306, %c7_i32_305 : i32
    %1121 = arith.index_cast %1120 : i32 to index
    %c0_307 = arith.constant 0 : index
    %c0_308 = arith.constant 0 : index
    %1122 = vector.load %arg12[%1121, %c0_307, %c0_308] : memref<8x8x256xf32, #tpu.memory_space<vmem>>, vector<1x8x256xf32>
    %1123 = vector.shape_cast %1122 : vector<1x8x256xf32> to vector<8x256xf32>
    %1124 = tpu.concatenate %1123, %1115 in 1 : vector<8x256xf32>, vector<8x128xf32> -> vector<8x384xf32>
    %cst_309 = arith.constant dense<0.000000e+00> : vector<8x512xf32>
    %1125 = tpu.matmul %1124, %579, %cst_309 {dimension_numbers = #tpu.dot_dimension_numbers<[1], [0], [0], [1], [0, 0, 1, 1], [], []>} : vector<8x384xf32>, vector<384x512xf32>, vector<8x512xf32> -> vector<8x512xf32>
    %1126 = arith.addf %1125, %585 : vector<8x512xf32>
    %1127 = vector.extract_strided_slice %1126 {offsets = [0, 0], sizes = [8, 128], strides = [1, 1]} : vector<8x512xf32> to vector<8x128xf32>
    %1128 = arith.negf %1127 : vector<8x128xf32>
    %1129 = math.exp %1128 : vector<8x128xf32>
    %cst_310 = arith.constant 1.000000e+00 : f32
    %1130 = vector.broadcast %cst_310 : f32 to vector<8x128xf32>
    %1131 = arith.addf %1130, %1129 : vector<8x128xf32>
    %1132 = arith.divf %1130, %1131 : vector<8x128xf32>
    %1133 = vector.extract_strided_slice %1126 {offsets = [0, 128], sizes = [8, 128], strides = [1, 1]} : vector<8x512xf32> to vector<8x128xf32>
    %1134 = arith.negf %1133 : vector<8x128xf32>
    %1135 = math.exp %1134 : vector<8x128xf32>
    %cst_311 = arith.constant 1.000000e+00 : f32
    %1136 = vector.broadcast %cst_311 : f32 to vector<8x128xf32>
    %1137 = arith.addf %1136, %1135 : vector<8x128xf32>
    %1138 = arith.divf %1136, %1137 : vector<8x128xf32>
    %1139 = vector.extract_strided_slice %1126 {offsets = [0, 256], sizes = [8, 128], strides = [1, 1]} : vector<8x512xf32> to vector<8x128xf32>
    %1140 = math.tanh %1139 : vector<8x128xf32>
    %1141 = vector.extract_strided_slice %1126 {offsets = [0, 384], sizes = [8, 128], strides = [1, 1]} : vector<8x512xf32> to vector<8x128xf32>
    %1142 = arith.negf %1141 : vector<8x128xf32>
    %1143 = math.exp %1142 : vector<8x128xf32>
    %cst_312 = arith.constant 1.000000e+00 : f32
    %1144 = vector.broadcast %cst_312 : f32 to vector<8x128xf32>
    %1145 = arith.addf %1144, %1143 : vector<8x128xf32>
    %1146 = arith.divf %1144, %1145 : vector<8x128xf32>
    %1147 = arith.mulf %1138, %1113 : vector<8x128xf32>
    %1148 = arith.mulf %1132, %1140 : vector<8x128xf32>
    %1149 = arith.addf %1147, %1148 : vector<8x128xf32>
    %1150 = math.tanh %1149 : vector<8x128xf32>
    %1151 = arith.mulf %1146, %1150 : vector<8x128xf32>
    %1152 = arith.index_cast %1120 : i32 to index
    %c0_313 = arith.constant 0 : index
    %c128_314 = arith.constant 128 : index
    %1153 = vector.load %arg13[%1152, %c0_313, %c128_314] : memref<8x8x256xf32, #tpu.memory_space<vmem>>, vector<1x8x128xf32>
    %1154 = vector.shape_cast %1153 : vector<1x8x128xf32> to vector<8x128xf32>
    %1155 = vector.shape_cast %1151 : vector<8x128xf32> to vector<1x8x128xf32>
    tpu.vector_store %arg13[%1152, %c0_313, %c128_314], %1155 {strides = array<i32>} : memref<8x8x256xf32, #tpu.memory_space<vmem>>, vector<1x8x128xf32>,
    %c8_i32_315 = arith.constant 8 : i32
    %c7 = arith.constant 7 : index
    %c0_316 = arith.constant 0 : index
    %c0_317 = arith.constant 0 : index
    %1156 = vector.load %arg13[%c7, %c0_316, %c0_317] : memref<8x8x256xf32, #tpu.memory_space<vmem>>, vector<1x8x256xf32>
    %1157 = vector.shape_cast %1156 : vector<1x8x256xf32> to vector<8x256xf32>
    %c0_318 = arith.constant 0 : index
    %c0_319 = arith.constant 0 : index
    %1158 = vector.load %arg9[%c0_318, %c0_319] : memref<256x128xf32, #tpu.memory_space<vmem>>, vector<256x128xf32>
    %cst_320 = arith.constant dense<0.000000e+00> : vector<8x128xf32>
    %1159 = tpu.matmul %1157, %1158, %cst_320 {dimension_numbers = #tpu.dot_dimension_numbers<[1], [0], [0], [1], [0, 0, 1, 1], [], []>} : vector<8x256xf32>, vector<256x128xf32>, vector<8x128xf32> -> vector<8x128xf32>
    %c0_321 = arith.constant 0 : index
    %c0_322 = arith.constant 0 : index
    %1160 = vector.load %arg10[%c0_321, %c0_322] : memref<1x128xf32, #tpu.memory_space<vmem>>, vector<1x128xf32>
    %1161 = vector.broadcast %1160 : vector<1x128xf32> to vector<8x128xf32>
    %1162 = arith.addf %1159, %1161 : vector<8x128xf32>
    %1163 = arith.negf %1162 : vector<8x128xf32>
    %1164 = math.exp %1163 : vector<8x128xf32>
    %cst_323 = arith.constant 1.000000e+00 : f32
    %1165 = vector.broadcast %cst_323 : f32 to vector<8x128xf32>
    %1166 = arith.addf %1165, %1164 : vector<8x128xf32>
    %1167 = arith.divf %1165, %1166 : vector<8x128xf32>
    %c0_324 = arith.constant 0 : index
    %c0_325 = arith.constant 0 : index
    %1168 = vector.load %arg11[%c0_324, %c0_325] : memref<8x128xf32, #tpu.memory_space<vmem>>, vector<8x128xf32>
    tpu.vector_store %arg11[%c0_324, %c0_325], %1167 {strides = array<i32>} : memref<8x128xf32, #tpu.memory_space<vmem>>, vector<8x128xf32>,
    return
  }
}

</mosaic_0001>

<llo_original>
// kernel: tpu_custom_call.1
$region0: #{tpu_custom_call.1}
  #allocation0 [shape = 'u32[]', space=smem, size = 0x4, offset = 0x4, fixed_abs, tag = 'smem constant byte address 0x4 - core index']
  #allocation1 [shape = 'u32[144,128]{1,0:T(1,128)}', space=vmem, size = 0x12000, scoped, tag = 'internal scratch']
  #allocation2 [shape = 'f32[8,8,256]{2,1,0:T(8,128)}', space=vmem, size = 0x10000, scoped, tag = 'scratch operand']
  #allocation3 [shape = 'f32[8,8,256]{2,1,0:T(8,128)}', space=vmem, size = 0x10000, scoped, tag = 'scratch operand']
  %s0 = inlined_call_operand.hbm [shape: f32[8,8,128], index: 0, kind: input, shape index: {}]
  %s1 = inlined_call_operand.hbm [shape: f32[256,512], index: 1, kind: input, shape index: {}]
  %s2 = inlined_call_operand.vmem [shape: f32[1,512], index: 2, kind: input, shape index: {}]
  %s3 = inlined_call_operand.hbm [shape: f32[256,512], index: 3, kind: input, shape index: {}]
  %s4 = inlined_call_operand.vmem [shape: f32[1,512], index: 4, kind: input, shape index: {}]
  %s5 = inlined_call_operand.hbm [shape: f32[384,512], index: 5, kind: input, shape index: {}]
  %s6 = inlined_call_operand.vmem [shape: f32[1,512], index: 6, kind: input, shape index: {}]
  %s7 = inlined_call_operand.hbm [shape: f32[384,512], index: 7, kind: input, shape index: {}]
  %s8 = inlined_call_operand.vmem [shape: f32[1,512], index: 8, kind: input, shape index: {}]
  %s9 = inlined_call_operand.hbm [shape: f32[256,128], index: 9, kind: input, shape index: {}]
  %s10 = inlined_call_operand.vmem [shape: f32[1,128], index: 10, kind: input, shape index: {}]
  %s11 = inlined_call_operand.hbm [shape: f32[8,128], index: 11, kind: output, shape index: {}]
  %s12 = sld [smem:[#allocation0]]
  $region78: #{tpu_custom_call.1} parent=0
    _
  %s14 = ssub.s32 1, %s12
  %s15 = scalar_select 0, %s14, %s12
  $region1: #{tpu_custom_call.1} parent=0
    #allocation4 [shape = 'u8[32768]{0}', space=vmem, size = 0x8000, scoped, tag = 'input window, operand 0, single buffered']
    #allocation5 [shape = 's32[1]{0}', space=sflag, size = 0x4, scoped, tag = 'scoped memory for tpu_custom_call.1']
    #allocation6 [shape = 's32[1]{0}', space=sflag, size = 0x4, scoped, tag = 'scoped memory for tpu_custom_call.1']
    #allocation7 [shape = 'u8[524288]{0}', space=vmem, size = 0x80000, scoped, tag = 'input window, operand 1, single buffered']
    #allocation8 [shape = 's32[1]{0}', space=sflag, size = 0x4, scoped, tag = 'scoped memory for tpu_custom_call.1']
    #allocation9 [shape = 'u8[524288]{0}', space=vmem, size = 0x80000, scoped, tag = 'input window, operand 3, single buffered']
    #allocation10 [shape = 'u8[786432]{0}', space=vmem, size = 0xc0000, scoped, tag = 'input window, operand 5, single buffered']
    #allocation11 [shape = 's32[1]{0}', space=sflag, size = 0x4, scoped, tag = 'scoped memory for tpu_custom_call.1']
    #allocation12 [shape = 'u8[786432]{0}', space=vmem, size = 0xc0000, scoped, tag = 'input window, operand 7, single buffered']
    #allocation13 [shape = 'u8[131072]{0}', space=vmem, size = 0x20000, scoped, tag = 'input window, operand 9, single buffered']
    #allocation14 [shape = 's32[1]{0}', space=sflag, size = 0x4, scoped, tag = 'scoped memory for tpu_custom_call.1']
    #allocation15 [shape = 'u8[4096]{0}', space=vmem, size = 0x1000, scoped, tag = 'output window, operand 0, single buffered']
    %16 = vsyncpa [#allocation5], 0
    %17 = vsyncpa [#allocation8], 0
    %18 = vsyncpa [#allocation11], 0
    %19 = vsyncpa [#allocation14], 0
    %20 = vsyncpa [#allocation6], 0
    // Predicated region
    $region2: #{tpu_custom_call.1} parent=1 // pred_check
      _
    $region3: #{tpu_custom_call.1} parent=1 // pred_check_branch
      %22 = sbr.rel (0) target = $region5
    $region4: #{tpu_custom_call.1} parent=1 // pred_region
      %s24 = ssub.s32 1024, 1024
      %25 = vsyncadd [#allocation5], %s24
      %s26 = sshll.u32 [#allocation4], 4
      %s27 = int_to_ptr.vmem [resolvable:$true] %s26
      %32 = dma.hbm_to_vmem [thread:$0]  %s0, 1024, %s27, [#allocation5], 128, 128, 8
    $region5: #{tpu_custom_call.1} parent=1 // pred_fallthru
      _
    // Predicated region
    $region6: #{tpu_custom_call.1} parent=1 // pred_check
      _
    $region7: #{tpu_custom_call.1} parent=1 // pred_check_branch
      %34 = sbr.rel (0) target = $region9
    $region8: #{tpu_custom_call.1} parent=1 // pred_region
      %s36 = ssub.s32 16384, 16384
      %37 = vsyncadd [#allocation8], %s36
      %s38 = sshll.u32 [#allocation7], 4
      %s39 = int_to_ptr.vmem [resolvable:$true] %s38
      %44 = dma.hbm_to_vmem [thread:$0]  %s1, 16384, %s39, [#allocation8], 512, 512, 32
    $region9: #{tpu_custom_call.1} parent=1 // pred_fallthru
      _
    // Predicated region
    $region10: #{tpu_custom_call.1} parent=1 // pred_check
      _
    $region11: #{tpu_custom_call.1} parent=1 // pred_check_branch
      %46 = sbr.rel (0) target = $region13
    $region12: #{tpu_custom_call.1} parent=1 // pred_region
      _
    $region13: #{tpu_custom_call.1} parent=1 // pred_fallthru
      _
    // Predicated region
    $region14: #{tpu_custom_call.1} parent=1 // pred_check
      _
    $region15: #{tpu_custom_call.1} parent=1 // pred_check_branch
      %48 = sbr.rel (0) target = $region17
    $region16: #{tpu_custom_call.1} parent=1 // pred_region
      %s50 = ssub.s32 16384, 16384
      %51 = vsyncadd [#allocation8], %s50
      %s52 = sshll.u32 [#allocation9], 4
      %s53 = int_to_ptr.vmem [resolvable:$true] %s52
      %58 = dma.hbm_to_vmem [thread:$0]  %s3, 16384, %s53, [#allocation8], 512, 512, 32
    $region17: #{tpu_custom_call.1} parent=1 // pred_fallthru
      _
    // Predicated region
    $region18: #{tpu_custom_call.1} parent=1 // pred_check
      _
    $region19: #{tpu_custom_call.1} parent=1 // pred_check_branch
      %60 = sbr.rel (0) target = $region21
    $region20: #{tpu_custom_call.1} parent=1 // pred_region
      _
    $region21: #{tpu_custom_call.1} parent=1 // pred_fallthru
      _
    // Predicated region
    $region22: #{tpu_custom_call.1} parent=1 // pred_check
      _
    $region23: #{tpu_custom_call.1} parent=1 // pred_check_branch
      %62 = sbr.rel (0) target = $region25
    $region24: #{tpu_custom_call.1} parent=1 // pred_region
      %s64 = ssub.s32 24576, 24576
      %65 = vsyncadd [#allocation11], %s64
      %s66 = sshll.u32 [#allocation10], 4
      %s67 = int_to_ptr.vmem [resolvable:$true] %s66
      %72 = dma.hbm_to_vmem [thread:$0]  %s5, 24576, %s67, [#allocation11], 512, 512, 32
    $region25: #{tpu_custom_call.1} parent=1 // pred_fallthru
      _
    // Predicated region
    $region26: #{tpu_custom_call.1} parent=1 // pred_check
      _
    $region27: #{tpu_custom_call.1} parent=1 // pred_check_branch
      %74 = sbr.rel (0) target = $region29
    $region28: #{tpu_custom_call.1} parent=1 // pred_region
      _
    $region29: #{tpu_custom_call.1} parent=1 // pred_fallthru
      _
    // Predicated region
    $region30: #{tpu_custom_call.1} parent=1 // pred_check
      _
    $region31: #{tpu_custom_call.1} parent=1 // pred_check_branch
      %76 = sbr.rel (0) target = $region33
    $region32: #{tpu_custom_call.1} parent=1 // pred_region
      %s78 = ssub.s32 24576, 24576
      %79 = vsyncadd [#allocation11], %s78
      %s80 = sshll.u32 [#allocation12], 4
      %s81 = int_to_ptr.vmem [resolvable:$true] %s80
      %86 = dma.hbm_to_vmem [thread:$0]  %s7, 24576, %s81, [#allocation11], 512, 512, 32
    $region33: #{tpu_custom_call.1} parent=1 // pred_fallthru
      _
    // Predicated region
    $region34: #{tpu_custom_call.1} parent=1 // pred_check
      _
    $region35: #{tpu_custom_call.1} parent=1 // pred_check_branch
      %88 = sbr.rel (0) target = $region37
    $region36: #{tpu_custom_call.1} parent=1 // pred_region
      _
    $region37: #{tpu_custom_call.1} parent=1 // pred_fallthru
      _
    // Predicated region
    $region38: #{tpu_custom_call.1} parent=1 // pred_check
      _
    $region39: #{tpu_custom_call.1} parent=1 // pred_check_branch
      %90 = sbr.rel (0) target = $region41
    $region40: #{tpu_custom_call.1} parent=1 // pred_region
      %s92 = ssub.s32 4096, 4096
      %93 = vsyncadd [#allocation14], %s92
      %s94 = sshll.u32 [#allocation13], 4
      %s95 = int_to_ptr.vmem [resolvable:$true] %s94
      %100 = dma.hbm_to_vmem [thread:$0]  %s9, 4096, %s95, [#allocation14], 128, 128, 8
    $region41: #{tpu_custom_call.1} parent=1 // pred_fallthru
      _
    // Predicated region
    $region42: #{tpu_custom_call.1} parent=1 // pred_check
      _
    $region43: #{tpu_custom_call.1} parent=1 // pred_check_branch
      %102 = sbr.rel (0) target = $region45
    $region44: #{tpu_custom_call.1} parent=1 // pred_region
      _
    $region45: #{tpu_custom_call.1} parent=1 // pred_fallthru
      _
    // Predicated region
    $region46: #{tpu_custom_call.1} parent=1 // pred_check
      _
    $region47: #{tpu_custom_call.1} parent=1 // pred_check_branch
      %104 = sbr.rel (0) target = $region49
    $region48: #{tpu_custom_call.1} parent=1 // pred_region
      %105 = dma.done [#allocation5], 1024
    $region49: #{tpu_custom_call.1} parent=1 // pred_fallthru
      _
    // Predicated region
    $region50: #{tpu_custom_call.1} parent=1 // pred_check
      _
    $region51: #{tpu_custom_call.1} parent=1 // pred_check_branch
      %107 = sbr.rel (0) target = $region53
    $region52: #{tpu_custom_call.1} parent=1 // pred_region
      %108 = dma.done [#allocation8], 16384
    $region53: #{tpu_custom_call.1} parent=1 // pred_fallthru
      _
    // Predicated region
    $region54: #{tpu_custom_call.1} parent=1 // pred_check
      _
    $region55: #{tpu_custom_call.1} parent=1 // pred_check_branch
      %110 = sbr.rel (0) target = $region57
    $region56: #{tpu_custom_call.1} parent=1 // pred_region
      %111 = dma.done [#allocation8], 16384
    $region57: #{tpu_custom_call.1} parent=1 // pred_fallthru
      _
    // Predicated region
    $region58: #{tpu_custom_call.1} parent=1 // pred_check
      _
    $region59: #{tpu_custom_call.1} parent=1 // pred_check_branch
      %113 = sbr.rel (0) target = $region61
    $region60: #{tpu_custom_call.1} parent=1 // pred_region
      %114 = dma.done [#allocation11], 24576
    $region61: #{tpu_custom_call.1} parent=1 // pred_fallthru
      _
    // Predicated region
    $region62: #{tpu_custom_call.1} parent=1 // pred_check
      _
    $region63: #{tpu_custom_call.1} parent=1 // pred_check_branch
      %116 = sbr.rel (0) target = $region65
    $region64: #{tpu_custom_call.1} parent=1 // pred_region
      %117 = dma.done [#allocation11], 24576
    $region65: #{tpu_custom_call.1} parent=1 // pred_fallthru
      _
    // Predicated region
    $region66: #{tpu_custom_call.1} parent=1 // pred_check
      _
    $region67: #{tpu_custom_call.1} parent=1 // pred_check_branch
      %119 = sbr.rel (0) target = $region69
    $region68: #{tpu_custom_call.1} parent=1 // pred_region
      %120 = dma.done [#allocation14], 4096
    $region69: #{tpu_custom_call.1} parent=1 // pred_fallthru
      _
    %v121 = vld [vmem:[#allocation7] sm:$0xff]
    %v122 = vld [vmem:[#allocation7 + $0x8] sm:$0xff]
    %v123 = vld [vmem:[#allocation7 + $0x10] sm:$0xff]
    %v124 = vld [vmem:[#allocation7 + $0x18] sm:$0xff]
    %v125 = vld [vmem:[#allocation7 + $0x20] sm:$0xff]
    %v126 = vld [vmem:[#allocation7 + $0x28] sm:$0xff]
    %v127 = vld [vmem:[#allocation7 + $0x30] sm:$0xff]
    %v128 = vld [vmem:[#allocation7 + $0x38] sm:$0xff]
    %v129 = vld [vmem:[#allocation7 + $0x40] sm:$0xff]
    %v130 = vld [vmem:[#allocation7 + $0x48] sm:$0xff]
    %v131 = vld [vmem:[#allocation7 + $0x50] sm:$0xff]
    %v132 = vld [vmem:[#allocation7 + $0x58] sm:$0xff]
    %v133 = vld [vmem:[#allocation7 + $0x60] sm:$0xff]
    %v134 = vld [vmem:[#allocation7 + $0x68] sm:$0xff]
    %v135 = vld [vmem:[#allocation7 + $0x70] sm:$0xff]
    %v136 = vld [vmem:[#allocation7 + $0x78] sm:$0xff]
    %v137 = vld [vmem:[#allocation7 + $0x80] sm:$0xff]
    %v138 = vld [vmem:[#allocation7 + $0x88] sm:$0xff]
    %v139 = vld [vmem:[#allocation7 + $0x90] sm:$0xff]
    %v140 = vld [vmem:[#allocation7 + $0x98] sm:$0xff]
    %v141 = vld [vmem:[#allocation7 + $0xa0] sm:$0xff]
    %v142 = vld [vmem:[#allocation7 + $0xa8] sm:$0xff]
    %v143 = vld [vmem:[#allocation7 + $0xb0] sm:$0xff]
    %v144 = vld [vmem:[#allocation7 + $0xb8] sm:$0xff]
    %v145 = vld [vmem:[#allocation7 + $0xc0] sm:$0xff]
    %v146 = vld [vmem:[#allocation7 + $0xc8] sm:$0xff]
    %v147 = vld [vmem:[#allocation7 + $0xd0] sm:$0xff]
    %v148 = vld [vmem:[#allocation7 + $0xd8] sm:$0xff]
    %v149 = vld [vmem:[#allocation7 + $0xe0] sm:$0xff]
    %v150 = vld [vmem:[#allocation7 + $0xe8] sm:$0xff]
    %v151 = vld [vmem:[#allocation7 + $0xf0] sm:$0xff]
    %v152 = vld [vmem:[#allocation7 + $0xf8] sm:$0xff]
    %v153 = vld [vmem:[#allocation7 + $0x100] sm:$0xff]
    %v154 = vld [vmem:[#allocation7 + $0x108] sm:$0xff]
    %v155 = vld [vmem:[#allocation7 + $0x110] sm:$0xff]
    %v156 = vld [vmem:[#allocation7 + $0x118] sm:$0xff]
    %v157 = vld [vmem:[#allocation7 + $0x120] sm:$0xff]
    %v158 = vld [vmem:[#allocation7 + $0x128] sm:$0xff]
    %v159 = vld [vmem:[#allocation7 + $0x130] sm:$0xff]
    %v160 = vld [vmem:[#allocation7 + $0x138] sm:$0xff]
    %v161 = vld [vmem:[#allocation7 + $0x140] sm:$0xff]
    %v162 = vld [vmem:[#allocation7 + $0x148] sm:$0xff]
    %v163 = vld [vmem:[#allocation7 + $0x150] sm:$0xff]
    %v164 = vld [vmem:[#allocation7 + $0x158] sm:$0xff]
    %v165 = vld [vmem:[#allocation7 + $0x160] sm:$0xff]
    %v166 = vld [vmem:[#allocation7 + $0x168] sm:$0xff]
    %v167 = vld [vmem:[#allocation7 + $0x170] sm:$0xff]
    %v168 = vld [vmem:[#allocation7 + $0x178] sm:$0xff]
    %v169 = vld [vmem:[#allocation7 + $0x180] sm:$0xff]
    %v170 = vld [vmem:[#allocation7 + $0x188] sm:$0xff]
    %v171 = vld [vmem:[#allocation7 + $0x190] sm:$0xff]
    %v172 = vld [vmem:[#allocation7 + $0x198] sm:$0xff]
    %v173 = vld [vmem:[#allocation7 + $0x1a0] sm:$0xff]
    %v174 = vld [vmem:[#allocation7 + $0x1a8] sm:$0xff]
    %v175 = vld [vmem:[#allocation7 + $0x1b0] sm:$0xff]
    %v176 = vld [vmem:[#allocation7 + $0x1b8] sm:$0xff]
    %v177 = vld [vmem:[#allocation7 + $0x1c0] sm:$0xff]
    %v178 = vld [vmem:[#allocation7 + $0x1c8] sm:$0xff]
    %v179 = vld [vmem:[#allocation7 + $0x1d0] sm:$0xff]
    %v180 = vld [vmem:[#allocation7 + $0x1d8] sm:$0xff]
    %v181 = vld [vmem:[#allocation7 + $0x1e0] sm:$0xff]
    %v182 = vld [vmem:[#allocation7 + $0x1e8] sm:$0xff]
    %v183 = vld [vmem:[#allocation7 + $0x1f0] sm:$0xff]
    %v184 = vld [vmem:[#allocation7 + $0x1f8] sm:$0xff]
    %v185 = vld [vmem:[#allocation7 + $0x200] sm:$0xff]
    %v186 = vld [vmem:[#allocation7 + $0x208] sm:$0xff]
    %v187 = vld [vmem:[#allocation7 + $0x210] sm:$0xff]
    %v188 = vld [vmem:[#allocation7 + $0x218] sm:$0xff]
    %v189 = vld [vmem:[#allocation7 + $0x220] sm:$0xff]
    %v190 = vld [vmem:[#allocation7 + $0x228] sm:$0xff]
    %v191 = vld [vmem:[#allocation7 + $0x230] sm:$0xff]
    %v192 = vld [vmem:[#allocation7 + $0x238] sm:$0xff]
    %v193 = vld [vmem:[#allocation7 + $0x240] sm:$0xff]
    %v194 = vld [vmem:[#allocation7 + $0x248] sm:$0xff]
    %v195 = vld [vmem:[#allocation7 + $0x250] sm:$0xff]
    %v196 = vld [vmem:[#allocation7 + $0x258] sm:$0xff]
    %v197 = vld [vmem:[#allocation7 + $0x260] sm:$0xff]
    %v198 = vld [vmem:[#allocation7 + $0x268] sm:$0xff]
    %v199 = vld [vmem:[#allocation7 + $0x270] sm:$0xff]
    %v200 = vld [vmem:[#allocation7 + $0x278] sm:$0xff]
    %v201 = vld [vmem:[#allocation7 + $0x280] sm:$0xff]
    %v202 = vld [vmem:[#allocation7 + $0x288] sm:$0xff]
    %v203 = vld [vmem:[#allocation7 + $0x290] sm:$0xff]
    %v204 = vld [vmem:[#allocation7 + $0x298] sm:$0xff]
    %v205 = vld [vmem:[#allocation7 + $0x2a0] sm:$0xff]
    %v206 = vld [vmem:[#allocation7 + $0x2a8] sm:$0xff]
    %v207 = vld [vmem:[#allocation7 + $0x2b0] sm:$0xff]
    %v208 = vld [vmem:[#allocation7 + $0x2b8] sm:$0xff]
    %v209 = vld [vmem:[#allocation7 + $0x2c0] sm:$0xff]
    %v210 = vld [vmem:[#allocation7 + $0x2c8] sm:$0xff]
    %v211 = vld [vmem:[#allocation7 + $0x2d0] sm:$0xff]
    %v212 = vld [vmem:[#allocation7 + $0x2d8] sm:$0xff]
    %v213 = vld [vmem:[#allocation7 + $0x2e0] sm:$0xff]
    %v214 = vld [vmem:[#allocation7 + $0x2e8] sm:$0xff]
    %v215 = vld [vmem:[#allocation7 + $0x2f0] sm:$0xff]
    %v216 = vld [vmem:[#allocation7 + $0x2f8] sm:$0xff]
    %v217 = vld [vmem:[#allocation7 + $0x300] sm:$0xff]
    %v218 = vld [vmem:[#allocation7 + $0x308] sm:$0xff]
    %v219 = vld [vmem:[#allocation7 + $0x310] sm:$0xff]
    %v220 = vld [vmem:[#allocation7 + $0x318] sm:$0xff]
    %v221 = vld [vmem:[#allocation7 + $0x320] sm:$0xff]
    %v222 = vld [vmem:[#allocation7 + $0x328] sm:$0xff]
    %v223 = vld [vmem:[#allocation7 + $0x330] sm:$0xff]
    %v224 = vld [vmem:[#allocation7 + $0x338] sm:$0xff]
    %v225 = vld [vmem:[#allocation7 + $0x340] sm:$0xff]
    %v226 = vld [vmem:[#allocation7 + $0x348] sm:$0xff]
    %v227 = vld [vmem:[#allocation7 + $0x350] sm:$0xff]
    %v228 = vld [vmem:[#allocation7 + $0x358] sm:$0xff]
    %v229 = vld [vmem:[#allocation7 + $0x360] sm:$0xff]
    %v230 = vld [vmem:[#allocation7 + $0x368] sm:$0xff]
    %v231 = vld [vmem:[#allocation7 + $0x370] sm:$0xff]
    %v232 = vld [vmem:[#allocation7 + $0x378] sm:$0xff]
    %v233 = vld [vmem:[#allocation7 + $0x380] sm:$0xff]
    %v234 = vld [vmem:[#allocation7 + $0x388] sm:$0xff]
    %v235 = vld [vmem:[#allocation7 + $0x390] sm:$0xff]
    %v236 = vld [vmem:[#allocation7 + $0x398] sm:$0xff]
    %v237 = vld [vmem:[#allocation7 + $0x3a0] sm:$0xff]
    %v238 = vld [vmem:[#allocation7 + $0x3a8] sm:$0xff]
    %v239 = vld [vmem:[#allocation7 + $0x3b0] sm:$0xff]
    %v240 = vld [vmem:[#allocation7 + $0x3b8] sm:$0xff]
    %v241 = vld [vmem:[#allocation7 + $0x3c0] sm:$0xff]
    %v242 = vld [vmem:[#allocation7 + $0x3c8] sm:$0xff]
    %v243 = vld [vmem:[#allocation7 + $0x3d0] sm:$0xff]
    %v244 = vld [vmem:[#allocation7 + $0x3d8] sm:$0xff]
    %v245 = vld [vmem:[#allocation7 + $0x3e0] sm:$0xff]
    %v246 = vld [vmem:[#allocation7 + $0x3e8] sm:$0xff]
    %v247 = vld [vmem:[#allocation7 + $0x3f0] sm:$0xff]
    %v248 = vld [vmem:[#allocation7 + $0x3f8] sm:$0xff]
    %v249 = vld [vmem:[#allocation9] sm:$0xff]
    %v250 = vld [vmem:[#allocation9 + $0x8] sm:$0xff]
    %v251 = vld [vmem:[#allocation9 + $0x10] sm:$0xff]
    %v252 = vld [vmem:[#allocation9 + $0x18] sm:$0xff]
    %v253 = vld [vmem:[#allocation9 + $0x20] sm:$0xff]
    %v254 = vld [vmem:[#allocation9 + $0x28] sm:$0xff]
    %v255 = vld [vmem:[#allocation9 + $0x30] sm:$0xff]
    %v256 = vld [vmem:[#allocation9 + $0x38] sm:$0xff]
    %v257 = vld [vmem:[#allocation9 + $0x40] sm:$0xff]
    %v258 = vld [vmem:[#allocation9 + $0x48] sm:$0xff]
    %v259 = vld [vmem:[#allocation9 + $0x50] sm:$0xff]
    %v260 = vld [vmem:[#allocation9 + $0x58] sm:$0xff]
    %v261 = vld [vmem:[#allocation9 + $0x60] sm:$0xff]
    %v262 = vld [vmem:[#allocation9 + $0x68] sm:$0xff]
    %v263 = vld [vmem:[#allocation9 + $0x70] sm:$0xff]
    %v264 = vld [vmem:[#allocation9 + $0x78] sm:$0xff]
    %v265 = vld [vmem:[#allocation9 + $0x80] sm:$0xff]
    %v266 = vld [vmem:[#allocation9 + $0x88] sm:$0xff]
    %v267 = vld [vmem:[#allocation9 + $0x90] sm:$0xff]
    %v268 = vld [vmem:[#allocation9 + $0x98] sm:$0xff]
    %v269 = vld [vmem:[#allocation9 + $0xa0] sm:$0xff]
    %v270 = vld [vmem:[#allocation9 + $0xa8] sm:$0xff]
    %v271 = vld [vmem:[#allocation9 + $0xb0] sm:$0xff]
    %v272 = vld [vmem:[#allocation9 + $0xb8] sm:$0xff]
    %v273 = vld [vmem:[#allocation9 + $0xc0] sm:$0xff]
    %v274 = vld [vmem:[#allocation9 + $0xc8] sm:$0xff]
    %v275 = vld [vmem:[#allocation9 + $0xd0] sm:$0xff]
    %v276 = vld [vmem:[#allocation9 + $0xd8] sm:$0xff]
    %v277 = vld [vmem:[#allocation9 + $0xe0] sm:$0xff]
    %v278 = vld [vmem:[#allocation9 + $0xe8] sm:$0xff]
    %v279 = vld [vmem:[#allocation9 + $0xf0] sm:$0xff]
    %v280 = vld [vmem:[#allocation9 + $0xf8] sm:$0xff]
    %v281 = vld [vmem:[#allocation9 + $0x100] sm:$0xff]
    %v282 = vld [vmem:[#allocation9 + $0x108] sm:$0xff]
    %v283 = vld [vmem:[#allocation9 + $0x110] sm:$0xff]
    %v284 = vld [vmem:[#allocation9 + $0x118] sm:$0xff]
    %v285 = vld [vmem:[#allocation9 + $0x120] sm:$0xff]
    %v286 = vld [vmem:[#allocation9 + $0x128] sm:$0xff]
    %v287 = vld [vmem:[#allocation9 + $0x130] sm:$0xff]
    %v288 = vld [vmem:[#allocation9 + $0x138] sm:$0xff]
    %v289 = vld [vmem:[#allocation9 + $0x140] sm:$0xff]
    %v290 = vld [vmem:[#allocation9 + $0x148] sm:$0xff]
    %v291 = vld [vmem:[#allocation9 + $0x150] sm:$0xff]
    %v292 = vld [vmem:[#allocation9 + $0x158] sm:$0xff]
    %v293 = vld [vmem:[#allocation9 + $0x160] sm:$0xff]
    %v294 = vld [vmem:[#allocation9 + $0x168] sm:$0xff]
    %v295 = vld [vmem:[#allocation9 + $0x170] sm:$0xff]
    %v296 = vld [vmem:[#allocation9 + $0x178] sm:$0xff]
    %v297 = vld [vmem:[#allocation9 + $0x180] sm:$0xff]
    %v298 = vld [vmem:[#allocation9 + $0x188] sm:$0xff]
    %v299 = vld [vmem:[#allocation9 + $0x190] sm:$0xff]
    %v300 = vld [vmem:[#allocation9 + $0x198] sm:$0xff]
    %v301 = vld [vmem:[#allocation9 + $0x1a0] sm:$0xff]
    %v302 = vld [vmem:[#allocation9 + $0x1a8] sm:$0xff]
    %v303 = vld [vmem:[#allocation9 + $0x1b0] sm:$0xff]
    %v304 = vld [vmem:[#allocation9 + $0x1b8] sm:$0xff]
    %v305 = vld [vmem:[#allocation9 + $0x1c0] sm:$0xff]
    %v306 = vld [vmem:[#allocation9 + $0x1c8] sm:$0xff]
    %v307 = vld [vmem:[#allocation9 + $0x1d0] sm:$0xff]
    %v308 = vld [vmem:[#allocation9 + $0x1d8] sm:$0xff]
    %v309 = vld [vmem:[#allocation9 + $0x1e0] sm:$0xff]
    %v310 = vld [vmem:[#allocation9 + $0x1e8] sm:$0xff]
    %v311 = vld [vmem:[#allocation9 + $0x1f0] sm:$0xff]
    %v312 = vld [vmem:[#allocation9 + $0x1f8] sm:$0xff]
    %v313 = vld [vmem:[#allocation9 + $0x200] sm:$0xff]
    %v314 = vld [vmem:[#allocation9 + $0x208] sm:$0xff]
    %v315 = vld [vmem:[#allocation9 + $0x210] sm:$0xff]
    %v316 = vld [vmem:[#allocation9 + $0x218] sm:$0xff]
    %v317 = vld [vmem:[#allocation9 + $0x220] sm:$0xff]
    %v318 = vld [vmem:[#allocation9 + $0x228] sm:$0xff]
    %v319 = vld [vmem:[#allocation9 + $0x230] sm:$0xff]
    %v320 = vld [vmem:[#allocation9 + $0x238] sm:$0xff]
    %v321 = vld [vmem:[#allocation9 + $0x240] sm:$0xff]
    %v322 = vld [vmem:[#allocation9 + $0x248] sm:$0xff]
    %v323 = vld [vmem:[#allocation9 + $0x250] sm:$0xff]
    %v324 = vld [vmem:[#allocation9 + $0x258] sm:$0xff]
    %v325 = vld [vmem:[#allocation9 + $0x260] sm:$0xff]
    %v326 = vld [vmem:[#allocation9 + $0x268] sm:$0xff]
    %v327 = vld [vmem:[#allocation9 + $0x270] sm:$0xff]
    %v328 = vld [vmem:[#allocation9 + $0x278] sm:$0xff]
    %v329 = vld [vmem:[#allocation9 + $0x280] sm:$0xff]
    %v330 = vld [vmem:[#allocation9 + $0x288] sm:$0xff]
    %v331 = vld [vmem:[#allocation9 + $0x290] sm:$0xff]
    %v332 = vld [vmem:[#allocation9 + $0x298] sm:$0xff]
    %v333 = vld [vmem:[#allocation9 + $0x2a0] sm:$0xff]
    %v334 = vld [vmem:[#allocation9 + $0x2a8] sm:$0xff]
    %v335 = vld [vmem:[#allocation9 + $0x2b0] sm:$0xff]
    %v336 = vld [vmem:[#allocation9 + $0x2b8] sm:$0xff]
    %v337 = vld [vmem:[#allocation9 + $0x2c0] sm:$0xff]
    %v338 = vld [vmem:[#allocation9 + $0x2c8] sm:$0xff]
    %v339 = vld [vmem:[#allocation9 + $0x2d0] sm:$0xff]
    %v340 = vld [vmem:[#allocation9 + $0x2d8] sm:$0xff]
    %v341 = vld [vmem:[#allocation9 + $0x2e0] sm:$0xff]
    %v342 = vld [vmem:[#allocation9 + $0x2e8] sm:$0xff]
    %v343 = vld [vmem:[#allocation9 + $0x2f0] sm:$0xff]
    %v344 = vld [vmem:[#allocation9 + $0x2f8] sm:$0xff]
    %v345 = vld [vmem:[#allocation9 + $0x300] sm:$0xff]
    %v346 = vld [vmem:[#allocation9 + $0x308] sm:$0xff]
    %v347 = vld [vmem:[#allocation9 + $0x310] sm:$0xff]
    %v348 = vld [vmem:[#allocation9 + $0x318] sm:$0xff]
    %v349 = vld [vmem:[#allocation9 + $0x320] sm:$0xff]
    %v350 = vld [vmem:[#allocation9 + $0x328] sm:$0xff]
    %v351 = vld [vmem:[#allocation9 + $0x330] sm:$0xff]
    %v352 = vld [vmem:[#allocation9 + $0x338] sm:$0xff]
    %v353 = vld [vmem:[#allocation9 + $0x340] sm:$0xff]
    %v354 = vld [vmem:[#allocation9 + $0x348] sm:$0xff]
    %v355 = vld [vmem:[#allocation9 + $0x350] sm:$0xff]
    %v356 = vld [vmem:[#allocation9 + $0x358] sm:$0xff]
    %v357 = vld [vmem:[#allocation9 + $0x360] sm:$0xff]
    %v358 = vld [vmem:[#allocation9 + $0x368] sm:$0xff]
    %v359 = vld [vmem:[#allocation9 + $0x370] sm:$0xff]
    %v360 = vld [vmem:[#allocation9 + $0x378] sm:$0xff]
    %v361 = vld [vmem:[#allocation9 + $0x380] sm:$0xff]
    %v362 = vld [vmem:[#allocation9 + $0x388] sm:$0xff]
    %v363 = vld [vmem:[#allocation9 + $0x390] sm:$0xff]
    %v364 = vld [vmem:[#allocation9 + $0x398] sm:$0xff]
    %v365 = vld [vmem:[#allocation9 + $0x3a0] sm:$0xff]
    %v366 = vld [vmem:[#allocation9 + $0x3a8] sm:$0xff]
    %v367 = vld [vmem:[#allocation9 + $0x3b0] sm:$0xff]
    %v368 = vld [vmem:[#allocation9 + $0x3b8] sm:$0xff]
    %v369 = vld [vmem:[#allocation9 + $0x3c0] sm:$0xff]
    %v370 = vld [vmem:[#allocation9 + $0x3c8] sm:$0xff]
    %v371 = vld [vmem:[#allocation9 + $0x3d0] sm:$0xff]
    %v372 = vld [vmem:[#allocation9 + $0x3d8] sm:$0xff]
    %v373 = vld [vmem:[#allocation9 + $0x3e0] sm:$0xff]
    %v374 = vld [vmem:[#allocation9 + $0x3e8] sm:$0xff]
    %v375 = vld [vmem:[#allocation9 + $0x3f0] sm:$0xff]
    %v376 = vld [vmem:[#allocation9 + $0x3f8] sm:$0xff]
    %v377 = vld [vmem:[%s2] sm:$0xf]
    %v379 = vlaneseq
    %v380 = vshrl.u32 %v379, 7
    %v381 = vsub.s32 0, %v380
    %v382 = vrot.slane %v377, %v381
    %v383 = vlaneseq
    %v384 = vshrl.u32 %v383, 7
    %v385 = vsub.s32 1, %v384
    %v386 = vrot.slane %v377, %v385
    %v387 = vlaneseq
    %v388 = vshrl.u32 %v387, 7
    %v389 = vsub.s32 2, %v388
    %v390 = vrot.slane %v377, %v389
    %v391 = vlaneseq
    %v392 = vshrl.u32 %v391, 7
    %v393 = vsub.s32 3, %v392
    %v394 = vrot.slane %v377, %v393
    %v399 = vld [vmem:[%s4] sm:$0xf]
    %v401 = vlaneseq
    %v402 = vshrl.u32 %v401, 7
    %v403 = vsub.s32 0, %v402
    %v404 = vrot.slane %v399, %v403
    %v405 = vlaneseq
    %v406 = vshrl.u32 %v405, 7
    %v407 = vsub.s32 1, %v406
    %v408 = vrot.slane %v399, %v407
    %v409 = vlaneseq
    %v410 = vshrl.u32 %v409, 7
    %v411 = vsub.s32 2, %v410
    %v412 = vrot.slane %v399, %v411
    %v413 = vlaneseq
    %v414 = vshrl.u32 %v413, 7
    %v415 = vsub.s32 3, %v414
    %v416 = vrot.slane %v399, %v415
    %v421 = vld [vmem:[#allocation4] sm:$0xff]
    %422 = vmatprep.subr.mxu0 %v122
    %423 = vmatpush1.msra.mxu0 %v121
    %424 = vmatprep.subr.mxu0 %v126
    %425 = vmatpush1.msra.mxu0 %v125
    %426 = vmatprep.subr.mxu0 %v130
    %427 = vmatpush1.msra.mxu0 %v129
    %428 = vmatprep.subr.mxu0 %v134
    %429 = vmatpush1.msra.mxu0 %v133
    %430 = vmatprep.subr.mxu0 %v138
    %431 = vmatpush1.msra.mxu0 %v137
    %432 = vmatprep.subr.mxu0 %v142
    %433 = vmatpush1.msra.mxu0 %v141
    %434 = vmatprep.subr.mxu0 %v146
    %435 = vmatpush1.msra.mxu0 %v145
    %436 = vmatprep.subr.mxu0 %v150
    %437 = vmatpush1.msra.mxu0 %v149
    %438 = vmatprep.subr.mxu0 %v154
    %439 = vmatpush1.msra.mxu0 %v153
    %440 = vmatprep.subr.mxu0 %v158
    %441 = vmatpush1.msra.mxu0 %v157
    %442 = vmatprep.subr.mxu0 %v162
    %443 = vmatpush1.msra.mxu0 %v161
    %444 = vmatprep.subr.mxu0 %v166
    %445 = vmatpush1.msra.mxu0 %v165
    %446 = vmatprep.subr.mxu0 %v170
    %447 = vmatpush1.msra.mxu0 %v169
    %448 = vmatprep.subr.mxu0 %v174
    %449 = vmatpush1.msra.mxu0 %v173
    %450 = vmatprep.subr.mxu0 %v178
    %451 = vmatpush1.msra.mxu0 %v177
    %452 = vmatprep.subr.mxu0 %v182
    %453 = vmatpush1.msra.mxu0 %v181
    %454 = vmatprep.subr.mxu0 %v186
    %455 = vmatpush1.msra.mxu0 %v185
    %456 = vmatprep.subr.mxu0 %v190
    %457 = vmatpush1.msra.mxu0 %v189
    %458 = vmatprep.subr.mxu0 %v194
    %459 = vmatpush1.msra.mxu0 %v193
    %460 = vmatprep.subr.mxu0 %v198
    %461 = vmatpush1.msra.mxu0 %v197
    %462 = vmatprep.subr.mxu0 %v202
    %463 = vmatpush1.msra.mxu0 %v201
    %464 = vmatprep.subr.mxu0 %v206
    %465 = vmatpush1.msra.mxu0 %v205
    %466 = vmatprep.subr.mxu0 %v210
    %467 = vmatpush1.msra.mxu0 %v209
    %468 = vmatprep.subr.mxu0 %v214
    %469 = vmatpush1.msra.mxu0 %v213
    %470 = vmatprep.subr.mxu0 %v218
    %471 = vmatpush1.msra.mxu0 %v217
    %472 = vmatprep.subr.mxu0 %v222
    %473 = vmatpush1.msra.mxu0 %v221
    %474 = vmatprep.subr.mxu0 %v226
    %475 = vmatpush1.msra.mxu0 %v225
    %476 = vmatprep.subr.mxu0 %v230
    %477 = vmatpush1.msra.mxu0 %v229
    %478 = vmatprep.subr.mxu0 %v234
    %479 = vmatpush1.msra.mxu0 %v233
    %480 = vmatprep.subr.mxu0 %v238
    %481 = vmatpush1.msra.mxu0 %v237
    %482 = vmatprep.subr.mxu0 %v242
    %483 = vmatpush1.msra.mxu0 %v241
    %484 = vmatprep.subr.mxu0 %v246
    %485 = vmatpush1.msra.mxu0 %v245
    %486 = vmatprep.mubr.f32.mxu0 0.0
    %487 = vmatmul.mubr.f32.gmra.mrb[0].mxu0 %v421
    %v488 = vpop.f32.mrb[0].mxu0
    %v489 = vadd.f32 %v382, %v488
    %v490 = vpop.f32.mrb[0].mxu0
    %v491 = vadd.f32 %v386, %v490
    %492 = vdwg.mxu0
    %493 = vmatprep.subr.mxu0 %v124
    %494 = vmatpush1.msra.mxu0 %v123
    %495 = vmatprep.subr.mxu0 %v128
    %496 = vmatpush1.msra.mxu0 %v127
    %497 = vmatprep.subr.mxu0 %v132
    %498 = vmatpush1.msra.mxu0 %v131
    %499 = vmatprep.subr.mxu0 %v136
    %500 = vmatpush1.msra.mxu0 %v135
    %501 = vmatprep.subr.mxu0 %v140
    %502 = vmatpush1.msra.mxu0 %v139
    %503 = vmatprep.subr.mxu0 %v144
    %504 = vmatpush1.msra.mxu0 %v143
    %505 = vmatprep.subr.mxu0 %v148
    %506 = vmatpush1.msra.mxu0 %v147
    %507 = vmatprep.subr.mxu0 %v152
    %508 = vmatpush1.msra.mxu0 %v151
    %509 = vmatprep.subr.mxu0 %v156
    %510 = vmatpush1.msra.mxu0 %v155
    %511 = vmatprep.subr.mxu0 %v160
    %512 = vmatpush1.msra.mxu0 %v159
    %513 = vmatprep.subr.mxu0 %v164
    %514 = vmatpush1.msra.mxu0 %v163
    %515 = vmatprep.subr.mxu0 %v168
    %516 = vmatpush1.msra.mxu0 %v167
    %517 = vmatprep.subr.mxu0 %v172
    %518 = vmatpush1.msra.mxu0 %v171
    %519 = vmatprep.subr.mxu0 %v176
    %520 = vmatpush1.msra.mxu0 %v175
    %521 = vmatprep.subr.mxu0 %v180
    %522 = vmatpush1.msra.mxu0 %v179
    %523 = vmatprep.subr.mxu0 %v184
    %524 = vmatpush1.msra.mxu0 %v183
    %525 = vmatprep.subr.mxu0 %v188
    %526 = vmatpush1.msra.mxu0 %v187
    %527 = vmatprep.subr.mxu0 %v192
    %528 = vmatpush1.msra.mxu0 %v191
    %529 = vmatprep.subr.mxu0 %v196
    %530 = vmatpush1.msra.mxu0 %v195
    %531 = vmatprep.subr.mxu0 %v200
    %532 = vmatpush1.msra.mxu0 %v199
    %533 = vmatprep.subr.mxu0 %v204
    %534 = vmatpush1.msra.mxu0 %v203
    %535 = vmatprep.subr.mxu0 %v208
    %536 = vmatpush1.msra.mxu0 %v207
    %537 = vmatprep.subr.mxu0 %v212
    %538 = vmatpush1.msra.mxu0 %v211
    %539 = vmatprep.subr.mxu0 %v216
    %540 = vmatpush1.msra.mxu0 %v215
    %541 = vmatprep.subr.mxu0 %v220
    %542 = vmatpush1.msra.mxu0 %v219
    %543 = vmatprep.subr.mxu0 %v224
    %544 = vmatpush1.msra.mxu0 %v223
    %545 = vmatprep.subr.mxu0 %v228
    %546 = vmatpush1.msra.mxu0 %v227
    %547 = vmatprep.subr.mxu0 %v232
    %548 = vmatpush1.msra.mxu0 %v231
    %549 = vmatprep.subr.mxu0 %v236
    %550 = vmatpush1.msra.mxu0 %v235
    %551 = vmatprep.subr.mxu0 %v240
    %552 = vmatpush1.msra.mxu0 %v239
    %553 = vmatprep.subr.mxu0 %v244
    %554 = vmatpush1.msra.mxu0 %v243
    %555 = vmatprep.subr.mxu0 %v248
    %556 = vmatpush1.msra.mxu0 %v247
    %557 = vmatprep.mubr.f32.mxu0 0.0
    %558 = vmatmul.mubr.f32.gmra.mrb[0].mxu0 %v421
    %v559 = vpop.f32.mrb[0].mxu0
    %v560 = vadd.f32 %v390, %v559
    %v561 = vpop.f32.mrb[0].mxu0
    %v562 = vadd.f32 %v394, %v561
    %563 = vdwg.mxu0
    %v564 = vxor.u32 %v489, 2147483648
    %v565 = vmul.f32 %v564, 1.442695
    %v566 = vpow.pop %v565
    %v567 = vadd.f32 %v566, 1.0
    %v568 = vrcp.pop %v567
    %v569 = vmul.f32 1.0, %v568
    %v570 = vxor.u32 %v491, 2147483648
    %v571 = vmul.f32 %v570, 1.442695
    %v572 = vpow.pop %v571
    %v573 = vadd.f32 %v572, 1.0
    %v574 = vrcp.pop %v573
    %v575 = vmul.f32 1.0, %v574
    %v576 = vtanh.pop %v560
    %v577 = vxor.u32 %v562, 2147483648
    %v578 = vmul.f32 %v577, 1.442695
    %v579 = vpow.pop %v578
    %v580 = vadd.f32 %v579, 1.0
    %v581 = vrcp.pop %v580
    %v582 = vmul.f32 1.0, %v581
    %v583 = vmul.f32 %v575, 0.0
    %v584 = vmul.f32 %v569, %v576
    %v585 = vadd.f32 %v583, %v584
    %v586 = vtanh.pop %v585
    %v587 = vmul.f32 %v582, %v586
    %588 = vst [vmem:[#allocation2] sm:$0xff] %v587
    %s589 = scalar_lea.vmem [#allocation4], 8
    %v590 = vld [vmem:[%s589] sm:$0xff]
    %591 = vmatprep.subr.mxu0 %v122
    %592 = vmatpush1.msra.mxu0 %v121
    %593 = vmatprep.subr.mxu0 %v126
    %594 = vmatpush1.msra.mxu0 %v125
    %595 = vmatprep.subr.mxu0 %v130
    %596 = vmatpush1.msra.mxu0 %v129
    %597 = vmatprep.subr.mxu0 %v134
    %598 = vmatpush1.msra.mxu0 %v133
    %599 = vmatprep.subr.mxu0 %v138
    %600 = vmatpush1.msra.mxu0 %v137
    %601 = vmatprep.subr.mxu0 %v142
    %602 = vmatpush1.msra.mxu0 %v141
    %603 = vmatprep.subr.mxu0 %v146
    %604 = vmatpush1.msra.mxu0 %v145
    %605 = vmatprep.subr.mxu0 %v150
    %606 = vmatpush1.msra.mxu0 %v149
    %607 = vmatprep.subr.mxu0 %v154
    %608 = vmatpush1.msra.mxu0 %v153
    %609 = vmatprep.subr.mxu0 %v158
    %610 = vmatpush1.msra.mxu0 %v157
    %611 = vmatprep.subr.mxu0 %v162
    %612 = vmatpush1.msra.mxu0 %v161
    %613 = vmatprep.subr.mxu0 %v166
    %614 = vmatpush1.msra.mxu0 %v165
    %615 = vmatprep.subr.mxu0 %v170
    %616 = vmatpush1.msra.mxu0 %v169
    %617 = vmatprep.subr.mxu0 %v174
    %618 = vmatpush1.msra.mxu0 %v173
    %619 = vmatprep.subr.mxu0 %v178
    %620 = vmatpush1.msra.mxu0 %v177
    %621 = vmatprep.subr.mxu0 %v182
    %622 = vmatpush1.msra.mxu0 %v181
    %623 = vmatprep.subr.mxu0 %v186
    %624 = vmatpush1.msra.mxu0 %v185
    %625 = vmatprep.subr.mxu0 %v190
    %626 = vmatpush1.msra.mxu0 %v189
    %627 = vmatprep.subr.mxu0 %v194
    %628 = vmatpush1.msra.mxu0 %v193
    %629 = vmatprep.subr.mxu0 %v198
    %630 = vmatpush1.msra.mxu0 %v197
    %631 = vmatprep.subr.mxu0 %v202
    %632 = vmatpush1.msra.mxu0 %v201
    %633 = vmatprep.subr.mxu0 %v206
    %634 = vmatpush1.msra.mxu0 %v205
    %635 = vmatprep.subr.mxu0 %v210
    %636 = vmatpush1.msra.mxu0 %v209
    %637 = vmatprep.subr.mxu0 %v214
    %638 = vmatpush1.msra.mxu0 %v213
    %639 = vmatprep.subr.mxu0 %v218
    %640 = vmatpush1.msra.mxu0 %v217
    %641 = vmatprep.subr.mxu0 %v222
    %642 = vmatpush1.msra.mxu0 %v221
    %643 = vmatprep.subr.mxu0 %v226
    %644 = vmatpush1.msra.mxu0 %v225
    %645 = vmatprep.subr.mxu0 %v230
    %646 = vmatpush1.msra.mxu0 %v229
    %647 = vmatprep.subr.mxu0 %v234
    %648 = vmatpush1.msra.mxu0 %v233
    %649 = vmatprep.subr.mxu0 %v238
    %650 = vmatpush1.msra.mxu0 %v237
    %651 = vmatprep.subr.mxu0 %v242
    %652 = vmatpush1.msra.mxu0 %v241
    %653 = vmatprep.subr.mxu0 %v246
    %654 = vmatpush1.msra.mxu0 %v245
    %655 = vmatprep.mubr.f32.mxu0 %v587
    %656 = vmatmul.mubr.f32.gmra.mrb[0].mxu0 %v590
    %v657 = vpop.f32.mrb[0].mxu0
    %v658 = vadd.f32 %v382, %v657
    %v659 = vpop.f32.mrb[0].mxu0
    %v660 = vadd.f32 %v386, %v659
    %661 = vdwg.mxu0
    %662 = vmatprep.subr.mxu0 %v124
    %663 = vmatpush1.msra.mxu0 %v123
    %664 = vmatprep.subr.mxu0 %v128
    %665 = vmatpush1.msra.mxu0 %v127
    %666 = vmatprep.subr.mxu0 %v132
    %667 = vmatpush1.msra.mxu0 %v131
    %668 = vmatprep.subr.mxu0 %v136
    %669 = vmatpush1.msra.mxu0 %v135
    %670 = vmatprep.subr.mxu0 %v140
    %671 = vmatpush1.msra.mxu0 %v139
    %672 = vmatprep.subr.mxu0 %v144
    %673 = vmatpush1.msra.mxu0 %v143
    %674 = vmatprep.subr.mxu0 %v148
    %675 = vmatpush1.msra.mxu0 %v147
    %676 = vmatprep.subr.mxu0 %v152
    %677 = vmatpush1.msra.mxu0 %v151
    %678 = vmatprep.subr.mxu0 %v156
    %679 = vmatpush1.msra.mxu0 %v155
    %680 = vmatprep.subr.mxu0 %v160
    %681 = vmatpush1.msra.mxu0 %v159
    %682 = vmatprep.subr.mxu0 %v164
    %683 = vmatpush1.msra.mxu0 %v163
    %684 = vmatprep.subr.mxu0 %v168
    %685 = vmatpush1.msra.mxu0 %v167
    %686 = vmatprep.subr.mxu0 %v172
    %687 = vmatpush1.msra.mxu0 %v171
    %688 = vmatprep.subr.mxu0 %v176
    %689 = vmatpush1.msra.mxu0 %v175
    %690 = vmatprep.subr.mxu0 %v180
    %691 = vmatpush1.msra.mxu0 %v179
    %692 = vmatprep.subr.mxu0 %v184
    %693 = vmatpush1.msra.mxu0 %v183
    %694 = vmatprep.subr.mxu0 %v188
    %695 = vmatpush1.msra.mxu0 %v187
    %696 = vmatprep.subr.mxu0 %v192
    %697 = vmatpush1.msra.mxu0 %v191
    %698 = vmatprep.subr.mxu0 %v196
    %699 = vmatpush1.msra.mxu0 %v195
    %700 = vmatprep.subr.mxu0 %v200
    %701 = vmatpush1.msra.mxu0 %v199
    %702 = vmatprep.subr.mxu0 %v204
    %703 = vmatpush1.msra.mxu0 %v203
    %704 = vmatprep.subr.mxu0 %v208
    %705 = vmatpush1.msra.mxu0 %v207
    %706 = vmatprep.subr.mxu0 %v212
    %707 = vmatpush1.msra.mxu0 %v211
    %708 = vmatprep.subr.mxu0 %v216
    %709 = vmatpush1.msra.mxu0 %v215
    %710 = vmatprep.subr.mxu0 %v220
    %711 = vmatpush1.msra.mxu0 %v219
    %712 = vmatprep.subr.mxu0 %v224
    %713 = vmatpush1.msra.mxu0 %v223
    %714 = vmatprep.subr.mxu0 %v228
    %715 = vmatpush1.msra.mxu0 %v227
    %716 = vmatprep.subr.mxu0 %v232
    %717 = vmatpush1.msra.mxu0 %v231
    %718 = vmatprep.subr.mxu0 %v236
    %719 = vmatpush1.msra.mxu0 %v235
    %720 = vmatprep.subr.mxu0 %v240
    %721 = vmatpush1.msra.mxu0 %v239
    %722 = vmatprep.subr.mxu0 %v244
    %723 = vmatpush1.msra.mxu0 %v243
    %724 = vmatprep.subr.mxu0 %v248
    %725 = vmatpush1.msra.mxu0 %v247
    %726 = vmatprep.mubr.f32.mxu0 %v587
    %727 = vmatmul.mubr.f32.gmra.mrb[0].mxu0 %v590
    %v728 = vpop.f32.mrb[0].mxu0
    %v729 = vadd.f32 %v390, %v728
    %v730 = vpop.f32.mrb[0].mxu0
    %v731 = vadd.f32 %v394, %v730
    %732 = vdwg.mxu0
    %v733 = vxor.u32 %v658, 2147483648
    %v734 = vmul.f32 %v733, 1.442695
    %v735 = vpow.pop %v734
    %v736 = vadd.f32 %v735, 1.0
    %v737 = vrcp.pop %v736
    %v738 = vmul.f32 1.0, %v737
    %v739 = vxor.u32 %v660, 2147483648
    %v740 = vmul.f32 %v739, 1.442695
    %v741 = vpow.pop %v740
    %v742 = vadd.f32 %v741, 1.0
    %v743 = vrcp.pop %v742
    %v744 = vmul.f32 1.0, %v743
    %v745 = vtanh.pop %v729
    %v746 = vxor.u32 %v731, 2147483648
    %v747 = vmul.f32 %v746, 1.442695
    %v748 = vpow.pop %v747
    %v749 = vadd.f32 %v748, 1.0
    %v750 = vrcp.pop %v749
    %v751 = vmul.f32 1.0, %v750
    %v752 = vmul.f32 %v744, %v585
    %v753 = vmul.f32 %v738, %v745
    %v754 = vadd.f32 %v752, %v753
    %v755 = vtanh.pop %v754
    %v756 = vmul.f32 %v751, %v755
    %s757 = scalar_lea.vmem [#allocation2], 16
    %758 = vst [vmem:[%s757] sm:$0xff] %v756
    %s759 = scalar_lea.vmem [#allocation4], 16
    %v760 = vld [vmem:[%s759] sm:$0xff]
    %761 = vmatprep.subr.mxu0 %v122
    %762 = vmatpush1.msra.mxu0 %v121
    %763 = vmatprep.subr.mxu0 %v126
    %764 = vmatpush1.msra.mxu0 %v125
    %765 = vmatprep.subr.mxu0 %v130
    %766 = vmatpush1.msra.mxu0 %v129
    %767 = vmatprep.subr.mxu0 %v134
    %768 = vmatpush1.msra.mxu0 %v133
    %769 = vmatprep.subr.mxu0 %v138
    %770 = vmatpush1.msra.mxu0 %v137
    %771 = vmatprep.subr.mxu0 %v142
    %772 = vmatpush1.msra.mxu0 %v141
    %773 = vmatprep.subr.mxu0 %v146
    %774 = vmatpush1.msra.mxu0 %v145
    %775 = vmatprep.subr.mxu0 %v150
    %776 = vmatpush1.msra.mxu0 %v149
    %777 = vmatprep.subr.mxu0 %v154
    %778 = vmatpush1.msra.mxu0 %v153
    %779 = vmatprep.subr.mxu0 %v158
    %780 = vmatpush1.msra.mxu0 %v157
    %781 = vmatprep.subr.mxu0 %v162
    %782 = vmatpush1.msra.mxu0 %v161
    %783 = vmatprep.subr.mxu0 %v166
    %784 = vmatpush1.msra.mxu0 %v165
    %785 = vmatprep.subr.mxu0 %v170
    %786 = vmatpush1.msra.mxu0 %v169
    %787 = vmatprep.subr.mxu0 %v174
    %788 = vmatpush1.msra.mxu0 %v173
    %789 = vmatprep.subr.mxu0 %v178
    %790 = vmatpush1.msra.mxu0 %v177
    %791 = vmatprep.subr.mxu0 %v182
    %792 = vmatpush1.msra.mxu0 %v181
    %793 = vmatprep.subr.mxu0 %v186
    %794 = vmatpush1.msra.mxu0 %v185
    %795 = vmatprep.subr.mxu0 %v190
    %796 = vmatpush1.msra.mxu0 %v189
    %797 = vmatprep.subr.mxu0 %v194
    %798 = vmatpush1.msra.mxu0 %v193
    %799 = vmatprep.subr.mxu0 %v198
    %800 = vmatpush1.msra.mxu0 %v197
    %801 = vmatprep.subr.mxu0 %v202
    %802 = vmatpush1.msra.mxu0 %v201
    %803 = vmatprep.subr.mxu0 %v206
    %804 = vmatpush1.msra.mxu0 %v205
    %805 = vmatprep.subr.mxu0 %v210
    %806 = vmatpush1.msra.mxu0 %v209
    %807 = vmatprep.subr.mxu0 %v214
    %808 = vmatpush1.msra.mxu0 %v213
    %809 = vmatprep.subr.mxu0 %v218
    %810 = vmatpush1.msra.mxu0 %v217
    %811 = vmatprep.subr.mxu0 %v222
    %812 = vmatpush1.msra.mxu0 %v221
    %813 = vmatprep.subr.mxu0 %v226
    %814 = vmatpush1.msra.mxu0 %v225
    %815 = vmatprep.subr.mxu0 %v230
    %816 = vmatpush1.msra.mxu0 %v229
    %817 = vmatprep.subr.mxu0 %v234
    %818 = vmatpush1.msra.mxu0 %v233
    %819 = vmatprep.subr.mxu0 %v238
    %820 = vmatpush1.msra.mxu0 %v237
    %821 = vmatprep.subr.mxu0 %v242
    %822 = vmatpush1.msra.mxu0 %v241
    %823 = vmatprep.subr.mxu0 %v246
    %824 = vmatpush1.msra.mxu0 %v245
    %825 = vmatprep.mubr.f32.mxu0 %v756
    %826 = vmatmul.mubr.f32.gmra.mrb[0].mxu0 %v760
    %v827 = vpop.f32.mrb[0].mxu0
    %v828 = vadd.f32 %v382, %v827
    %v829 = vpop.f32.mrb[0].mxu0
    %v830 = vadd.f32 %v386, %v829
    %831 = vdwg.mxu0
    %832 = vmatprep.subr.mxu0 %v124
    %833 = vmatpush1.msra.mxu0 %v123
    %834 = vmatprep.subr.mxu0 %v128
    %835 = vmatpush1.msra.mxu0 %v127
    %836 = vmatprep.subr.mxu0 %v132
    %837 = vmatpush1.msra.mxu0 %v131
    %838 = vmatprep.subr.mxu0 %v136
    %839 = vmatpush1.msra.mxu0 %v135
    %840 = vmatprep.subr.mxu0 %v140
    %841 = vmatpush1.msra.mxu0 %v139
    %842 = vmatprep.subr.mxu0 %v144
    %843 = vmatpush1.msra.mxu0 %v143
    %844 = vmatprep.subr.mxu0 %v148
    %845 = vmatpush1.msra.mxu0 %v147
    %846 = vmatprep.subr.mxu0 %v152
    %847 = vmatpush1.msra.mxu0 %v151
    %848 = vmatprep.subr.mxu0 %v156
    %849 = vmatpush1.msra.mxu0 %v155
    %850 = vmatprep.subr.mxu0 %v160
    %851 = vmatpush1.msra.mxu0 %v159
    %852 = vmatprep.subr.mxu0 %v164
    %853 = vmatpush1.msra.mxu0 %v163
    %854 = vmatprep.subr.mxu0 %v168
    %855 = vmatpush1.msra.mxu0 %v167
    %856 = vmatprep.subr.mxu0 %v172
    %857 = vmatpush1.msra.mxu0 %v171
    %858 = vmatprep.subr.mxu0 %v176
    %859 = vmatpush1.msra.mxu0 %v175
    %860 = vmatprep.subr.mxu0 %v180
    %861 = vmatpush1.msra.mxu0 %v179
    %862 = vmatprep.subr.mxu0 %v184
    %863 = vmatpush1.msra.mxu0 %v183
    %864 = vmatprep.subr.mxu0 %v188
    %865 = vmatpush1.msra.mxu0 %v187
    %866 = vmatprep.subr.mxu0 %v192
    %867 = vmatpush1.msra.mxu0 %v191
    %868 = vmatprep.subr.mxu0 %v196
    %869 = vmatpush1.msra.mxu0 %v195
    %870 = vmatprep.subr.mxu0 %v200
    %871 = vmatpush1.msra.mxu0 %v199
    %872 = vmatprep.subr.mxu0 %v204
    %873 = vmatpush1.msra.mxu0 %v203
    %874 = vmatprep.subr.mxu0 %v208
    %875 = vmatpush1.msra.mxu0 %v207
    %876 = vmatprep.subr.mxu0 %v212
    %877 = vmatpush1.msra.mxu0 %v211
    %878 = vmatprep.subr.mxu0 %v216
    %879 = vmatpush1.msra.mxu0 %v215
    %880 = vmatprep.subr.mxu0 %v220
    %881 = vmatpush1.msra.mxu0 %v219
    %882 = vmatprep.subr.mxu0 %v224
    %883 = vmatpush1.msra.mxu0 %v223
    %884 = vmatprep.subr.mxu0 %v228
    %885 = vmatpush1.msra.mxu0 %v227
    %886 = vmatprep.subr.mxu0 %v232
    %887 = vmatpush1.msra.mxu0 %v231
    %888 = vmatprep.subr.mxu0 %v236
    %889 = vmatpush1.msra.mxu0 %v235
    %890 = vmatprep.subr.mxu0 %v240
    %891 = vmatpush1.msra.mxu0 %v239
    %892 = vmatprep.subr.mxu0 %v244
    %893 = vmatpush1.msra.mxu0 %v243
    %894 = vmatprep.subr.mxu0 %v248
    %895 = vmatpush1.msra.mxu0 %v247
    %896 = vmatprep.mubr.f32.mxu0 %v756
    %897 = vmatmul.mubr.f32.gmra.mrb[0].mxu0 %v760
    %v898 = vpop.f32.mrb[0].mxu0
    %v899 = vadd.f32 %v390, %v898
    %v900 = vpop.f32.mrb[0].mxu0
    %v901 = vadd.f32 %v394, %v900
    %902 = vdwg.mxu0
    %v903 = vxor.u32 %v828, 2147483648
    %v904 = vmul.f32 %v903, 1.442695
    %v905 = vpow.pop %v904
    %v906 = vadd.f32 %v905, 1.0
    %v907 = vrcp.pop %v906
    %v908 = vmul.f32 1.0, %v907
    %v909 = vxor.u32 %v830, 2147483648
    %v910 = vmul.f32 %v909, 1.442695
    %v911 = vpow.pop %v910
    %v912 = vadd.f32 %v911, 1.0
    %v913 = vrcp.pop %v912
    %v914 = vmul.f32 1.0, %v913
    %v915 = vtanh.pop %v899
    %v916 = vxor.u32 %v901, 2147483648
    %v917 = vmul.f32 %v916, 1.442695
    %v918 = vpow.pop %v917
    %v919 = vadd.f32 %v918, 1.0
    %v920 = vrcp.pop %v919
    %v921 = vmul.f32 1.0, %v920
    %v922 = vmul.f32 %v914, %v754
    %v923 = vmul.f32 %v908, %v915
    %v924 = vadd.f32 %v922, %v923
    %v925 = vtanh.pop %v924
    %v926 = vmul.f32 %v921, %v925
    %s927 = scalar_lea.vmem [#allocation2], 32
    %928 = vst [vmem:[%s927] sm:$0xff] %v926
    %s929 = scalar_lea.vmem [#allocation4], 24
    %v930 = vld [vmem:[%s929] sm:$0xff]
    %931 = vmatprep.subr.mxu0 %v122
    %932 = vmatpush1.msra.mxu0 %v121
    %933 = vmatprep.subr.mxu0 %v126
    %934 = vmatpush1.msra.mxu0 %v125
    %935 = vmatprep.subr.mxu0 %v130
    %936 = vmatpush1.msra.mxu0 %v129
    %937 = vmatprep.subr.mxu0 %v134
    %938 = vmatpush1.msra.mxu0 %v133
    %939 = vmatprep.subr.mxu0 %v138
    %940 = vmatpush1.msra.mxu0 %v137
    %941 = vmatprep.subr.mxu0 %v142
    %942 = vmatpush1.msra.mxu0 %v141
    %943 = vmatprep.subr.mxu0 %v146
    %944 = vmatpush1.msra.mxu0 %v145
    %945 = vmatprep.subr.mxu0 %v150
    %946 = vmatpush1.msra.mxu0 %v149
    %947 = vmatprep.subr.mxu0 %v154
    %948 = vmatpush1.msra.mxu0 %v153
    %949 = vmatprep.subr.mxu0 %v158
    %950 = vmatpush1.msra.mxu0 %v157
    %951 = vmatprep.subr.mxu0 %v162
    %952 = vmatpush1.msra.mxu0 %v161
    %953 = vmatprep.subr.mxu0 %v166
    %954 = vmatpush1.msra.mxu0 %v165
    %955 = vmatprep.subr.mxu0 %v170
    %956 = vmatpush1.msra.mxu0 %v169
    %957 = vmatprep.subr.mxu0 %v174
    %958 = vmatpush1.msra.mxu0 %v173
    %959 = vmatprep.subr.mxu0 %v178
    %960 = vmatpush1.msra.mxu0 %v177
    %961 = vmatprep.subr.mxu0 %v182
    %962 = vmatpush1.msra.mxu0 %v181
    %963 = vmatprep.subr.mxu0 %v186
    %964 = vmatpush1.msra.mxu0 %v185
    %965 = vmatprep.subr.mxu0 %v190
    %966 = vmatpush1.msra.mxu0 %v189
    %967 = vmatprep.subr.mxu0 %v194
    %968 = vmatpush1.msra.mxu0 %v193
    %969 = vmatprep.subr.mxu0 %v198
    %970 = vmatpush1.msra.mxu0 %v197
    %971 = vmatprep.subr.mxu0 %v202
    %972 = vmatpush1.msra.mxu0 %v201
    %973 = vmatprep.subr.mxu0 %v206
    %974 = vmatpush1.msra.mxu0 %v205
    %975 = vmatprep.subr.mxu0 %v210
    %976 = vmatpush1.msra.mxu0 %v209
    %977 = vmatprep.subr.mxu0 %v214
    %978 = vmatpush1.msra.mxu0 %v213
    %979 = vmatprep.subr.mxu0 %v218
    %980 = vmatpush1.msra.mxu0 %v217
    %981 = vmatprep.subr.mxu0 %v222
    %982 = vmatpush1.msra.mxu0 %v221
    %983 = vmatprep.subr.mxu0 %v226
    %984 = vmatpush1.msra.mxu0 %v225
    %985 = vmatprep.subr.mxu0 %v230
    %986 = vmatpush1.msra.mxu0 %v229
    %987 = vmatprep.subr.mxu0 %v234
    %988 = vmatpush1.msra.mxu0 %v233
    %989 = vmatprep.subr.mxu0 %v238
    %990 = vmatpush1.msra.mxu0 %v237
    %991 = vmatprep.subr.mxu0 %v242
    %992 = vmatpush1.msra.mxu0 %v241
    %993 = vmatprep.subr.mxu0 %v246
    %994 = vmatpush1.msra.mxu0 %v245
    %995 = vmatprep.mubr.f32.mxu0 %v926
    %996 = vmatmul.mubr.f32.gmra.mrb[0].mxu0 %v930
    %v997 = vpop.f32.mrb[0].mxu0
    %v998 = vadd.f32 %v382, %v997
    %v999 = vpop.f32.mrb[0].mxu0
    %v1000 = vadd.f32 %v386, %v999
    %1001 = vdwg.mxu0
    %1002 = vmatprep.subr.mxu0 %v124
    %1003 = vmatpush1.msra.mxu0 %v123
    %1004 = vmatprep.subr.mxu0 %v128
    %1005 = vmatpush1.msra.mxu0 %v127
    %1006 = vmatprep.subr.mxu0 %v132
    %1007 = vmatpush1.msra.mxu0 %v131
    %1008 = vmatprep.subr.mxu0 %v136
    %1009 = vmatpush1.msra.mxu0 %v135
    %1010 = vmatprep.subr.mxu0 %v140
    %1011 = vmatpush1.msra.mxu0 %v139
    %1012 = vmatprep.subr.mxu0 %v144
    %1013 = vmatpush1.msra.mxu0 %v143
    %1014 = vmatprep.subr.mxu0 %v148
    %1015 = vmatpush1.msra.mxu0 %v147
    %1016 = vmatprep.subr.mxu0 %v152
    %1017 = vmatpush1.msra.mxu0 %v151
    %1018 = vmatprep.subr.mxu0 %v156
    %1019 = vmatpush1.msra.mxu0 %v155
    %1020 = vmatprep.subr.mxu0 %v160
    %1021 = vmatpush1.msra.mxu0 %v159
    %1022 = vmatprep.subr.mxu0 %v164
    %1023 = vmatpush1.msra.mxu0 %v163
    %1024 = vmatprep.subr.mxu0 %v168
    %1025 = vmatpush1.msra.mxu0 %v167
    %1026 = vmatprep.subr.mxu0 %v172
    %1027 = vmatpush1.msra.mxu0 %v171
    %1028 = vmatprep.subr.mxu0 %v176
    %1029 = vmatpush1.msra.mxu0 %v175
    %1030 = vmatprep.subr.mxu0 %v180
    %1031 = vmatpush1.msra.mxu0 %v179
    %1032 = vmatprep.subr.mxu0 %v184
    %1033 = vmatpush1.msra.mxu0 %v183
    %1034 = vmatprep.subr.mxu0 %v188
    %1035 = vmatpush1.msra.mxu0 %v187
    %1036 = vmatprep.subr.mxu0 %v192
    %1037 = vmatpush1.msra.mxu0 %v191
    %1038 = vmatprep.subr.mxu0 %v196
    %1039 = vmatpush1.msra.mxu0 %v195
    %1040 = vmatprep.subr.mxu0 %v200
    %1041 = vmatpush1.msra.mxu0 %v199
    %1042 = vmatprep.subr.mxu0 %v204
    %1043 = vmatpush1.msra.mxu0 %v203
    %1044 = vmatprep.subr.mxu0 %v208
    %1045 = vmatpush1.msra.mxu0 %v207
    %1046 = vmatprep.subr.mxu0 %v212
    %1047 = vmatpush1.msra.mxu0 %v211
    %1048 = vmatprep.subr.mxu0 %v216
    %1049 = vmatpush1.msra.mxu0 %v215
    %1050 = vmatprep.subr.mxu0 %v220
    %1051 = vmatpush1.msra.mxu0 %v219
    %1052 = vmatprep.subr.mxu0 %v224
    %1053 = vmatpush1.msra.mxu0 %v223
    %1054 = vmatprep.subr.mxu0 %v228
    %1055 = vmatpush1.msra.mxu0 %v227
    %1056 = vmatprep.subr.mxu0 %v232
    %1057 = vmatpush1.msra.mxu0 %v231
    %1058 = vmatprep.subr.mxu0 %v236
    %1059 = vmatpush1.msra.mxu0 %v235
    %1060 = vmatprep.subr.mxu0 %v240
    %1061 = vmatpush1.msra.mxu0 %v239
    %1062 = vmatprep.subr.mxu0 %v244
    %1063 = vmatpush1.msra.mxu0 %v243
    %1064 = vmatprep.subr.mxu0 %v248
    %1065 = vmatpush1.msra.mxu0 %v247
    %1066 = vmatprep.mubr.f32.mxu0 %v926
    %1067 = vmatmul.mubr.f32.gmra.mrb[0].mxu0 %v930
    %v1068 = vpop.f32.mrb[0].mxu0
    %v1069 = vadd.f32 %v390, %v1068
    %v1070 = vpop.f32.mrb[0].mxu0
    %v1071 = vadd.f32 %v394, %v1070
    %1072 = vdwg.mxu0
    %v1073 = vxor.u32 %v998, 2147483648
    %v1074 = vmul.f32 %v1073, 1.442695
    %v1075 = vpow.pop %v1074
    %v1076 = vadd.f32 %v1075, 1.0
    %v1077 = vrcp.pop %v1076
    %v1078 = vmul.f32 1.0, %v1077
    %v1079 = vxor.u32 %v1000, 2147483648
    %v1080 = vmul.f32 %v1079, 1.442695
    %v1081 = vpow.pop %v1080
    %v1082 = vadd.f32 %v1081, 1.0
    %v1083 = vrcp.pop %v1082
    %v1084 = vmul.f32 1.0, %v1083
    %v1085 = vtanh.pop %v1069
    %v1086 = vxor.u32 %v1071, 2147483648
    %v1087 = vmul.f32 %v1086, 1.442695
    %v1088 = vpow.pop %v1087
    %v1089 = vadd.f32 %v1088, 1.0
    %v1090 = vrcp.pop %v1089
    %v1091 = vmul.f32 1.0, %v1090
    %v1092 = vmul.f32 %v1084, %v924
    %v1093 = vmul.f32 %v1078, %v1085
    %v1094 = vadd.f32 %v1092, %v1093
    %v1095 = vtanh.pop %v1094
    %v1096 = vmul.f32 %v1091, %v1095
    %s1097 = scalar_lea.vmem [#allocation2], 48
    %1098 = vst [vmem:[%s1097] sm:$0xff] %v1096
    %s1099 = scalar_lea.vmem [#allocation4], 32
    %v1100 = vld [vmem:[%s1099] sm:$0xff]
    %1101 = vmatprep.subr.mxu0 %v122
    %1102 = vmatpush1.msra.mxu0 %v121
    %1103 = vmatprep.subr.mxu0 %v126
    %1104 = vmatpush1.msra.mxu0 %v125
    %1105 = vmatprep.subr.mxu0 %v130
    %1106 = vmatpush1.msra.mxu0 %v129
    %1107 = vmatprep.subr.mxu0 %v134
    %1108 = vmatpush1.msra.mxu0 %v133
    %1109 = vmatprep.subr.mxu0 %v138
    %1110 = vmatpush1.msra.mxu0 %v137
    %1111 = vmatprep.subr.mxu0 %v142
    %1112 = vmatpush1.msra.mxu0 %v141
    %1113 = vmatprep.subr.mxu0 %v146
    %1114 = vmatpush1.msra.mxu0 %v145
    %1115 = vmatprep.subr.mxu0 %v150
    %1116 = vmatpush1.msra.mxu0 %v149
    %1117 = vmatprep.subr.mxu0 %v154
    %1118 = vmatpush1.msra.mxu0 %v153
    %1119 = vmatprep.subr.mxu0 %v158
    %1120 = vmatpush1.msra.mxu0 %v157
    %1121 = vmatprep.subr.mxu0 %v162
    %1122 = vmatpush1.msra.mxu0 %v161
    %1123 = vmatprep.subr.mxu0 %v166
    %1124 = vmatpush1.msra.mxu0 %v165
    %1125 = vmatprep.subr.mxu0 %v170
    %1126 = vmatpush1.msra.mxu0 %v169
    %1127 = vmatprep.subr.mxu0 %v174
    %1128 = vmatpush1.msra.mxu0 %v173
    %1129 = vmatprep.subr.mxu0 %v178
    %1130 = vmatpush1.msra.mxu0 %v177
    %1131 = vmatprep.subr.mxu0 %v182
    %1132 = vmatpush1.msra.mxu0 %v181
    %1133 = vmatprep.subr.mxu0 %v186
    %1134 = vmatpush1.msra.mxu0 %v185
    %1135 = vmatprep.subr.mxu0 %v190
    %1136 = vmatpush1.msra.mxu0 %v189
    %1137 = vmatprep.subr.mxu0 %v194
    %1138 = vmatpush1.msra.mxu0 %v193
    %1139 = vmatprep.subr.mxu0 %v198
    %1140 = vmatpush1.msra.mxu0 %v197
    %1141 = vmatprep.subr.mxu0 %v202
    %1142 = vmatpush1.msra.mxu0 %v201
    %1143 = vmatprep.subr.mxu0 %v206
    %1144 = vmatpush1.msra.mxu0 %v205
    %1145 = vmatprep.subr.mxu0 %v210
    %1146 = vmatpush1.msra.mxu0 %v209
    %1147 = vmatprep.subr.mxu0 %v214
    %1148 = vmatpush1.msra.mxu0 %v213
    %1149 = vmatprep.subr.mxu0 %v218
    %1150 = vmatpush1.msra.mxu0 %v217
    %1151 = vmatprep.subr.mxu0 %v222
    %1152 = vmatpush1.msra.mxu0 %v221
    %1153 = vmatprep.subr.mxu0 %v226
    %1154 = vmatpush1.msra.mxu0 %v225
    %1155 = vmatprep.subr.mxu0 %v230
    %1156 = vmatpush1.msra.mxu0 %v229
    %1157 = vmatprep.subr.mxu0 %v234
    %1158 = vmatpush1.msra.mxu0 %v233
    %1159 = vmatprep.subr.mxu0 %v238
    %1160 = vmatpush1.msra.mxu0 %v237
    %1161 = vmatprep.subr.mxu0 %v242
    %1162 = vmatpush1.msra.mxu0 %v241
    %1163 = vmatprep.subr.mxu0 %v246
    %1164 = vmatpush1.msra.mxu0 %v245
    %1165 = vmatprep.mubr.f32.mxu0 %v1096
    %1166 = vmatmul.mubr.f32.gmra.mrb[0].mxu0 %v1100
    %v1167 = vpop.f32.mrb[0].mxu0
    %v1168 = vadd.f32 %v382, %v1167
    %v1169 = vpop.f32.mrb[0].mxu0
    %v1170 = vadd.f32 %v386, %v1169
    %1171 = vdwg.mxu0
    %1172 = vmatprep.subr.mxu0 %v124
    %1173 = vmatpush1.msra.mxu0 %v123
    %1174 = vmatprep.subr.mxu0 %v128
    %1175 = vmatpush1.msra.mxu0 %v127
    %1176 = vmatprep.subr.mxu0 %v132
    %1177 = vmatpush1.msra.mxu0 %v131
    %1178 = vmatprep.subr.mxu0 %v136
    %1179 = vmatpush1.msra.mxu0 %v135
    %1180 = vmatprep.subr.mxu0 %v140
    %1181 = vmatpush1.msra.mxu0 %v139
    %1182 = vmatprep.subr.mxu0 %v144
    %1183 = vmatpush1.msra.mxu0 %v143
    %1184 = vmatprep.subr.mxu0 %v148
    %1185 = vmatpush1.msra.mxu0 %v147
    %1186 = vmatprep.subr.mxu0 %v152
    %1187 = vmatpush1.msra.mxu0 %v151
    %1188 = vmatprep.subr.mxu0 %v156
    %1189 = vmatpush1.msra.mxu0 %v155
    %1190 = vmatprep.subr.mxu0 %v160
    %1191 = vmatpush1.msra.mxu0 %v159
    %1192 = vmatprep.subr.mxu0 %v164
    %1193 = vmatpush1.msra.mxu0 %v163
    %1194 = vmatprep.subr.mxu0 %v168
    %1195 = vmatpush1.msra.mxu0 %v167
    %1196 = vmatprep.subr.mxu0 %v172
    %1197 = vmatpush1.msra.mxu0 %v171
    %1198 = vmatprep.subr.mxu0 %v176
    %1199 = vmatpush1.msra.mxu0 %v175
    %1200 = vmatprep.subr.mxu0 %v180
    %1201 = vmatpush1.msra.mxu0 %v179
    %1202 = vmatprep.subr.mxu0 %v184
    %1203 = vmatpush1.msra.mxu0 %v183
    %1204 = vmatprep.subr.mxu0 %v188
    %1205 = vmatpush1.msra.mxu0 %v187
    %1206 = vmatprep.subr.mxu0 %v192
    %1207 = vmatpush1.msra.mxu0 %v191
    %1208 = vmatprep.subr.mxu0 %v196
    %1209 = vmatpush1.msra.mxu0 %v195
    %1210 = vmatprep.subr.mxu0 %v200
    %1211 = vmatpush1.msra.mxu0 %v199
    %1212 = vmatprep.subr.mxu0 %v204
    %1213 = vmatpush1.msra.mxu0 %v203
    %1214 = vmatprep.subr.mxu0 %v208
    %1215 = vmatpush1.msra.mxu0 %v207
    %1216 = vmatprep.subr.mxu0 %v212
    %1217 = vmatpush1.msra.mxu0 %v211
    %1218 = vmatprep.subr.mxu0 %v216
    %1219 = vmatpush1.msra.mxu0 %v215
    %1220 = vmatprep.subr.mxu0 %v220
    %1221 = vmatpush1.msra.mxu0 %v219
    %1222 = vmatprep.subr.mxu0 %v224
    %1223 = vmatpush1.msra.mxu0 %v223
    %1224 = vmatprep.subr.mxu0 %v228
    %1225 = vmatpush1.msra.mxu0 %v227
    %1226 = vmatprep.subr.mxu0 %v232
    %1227 = vmatpush1.msra.mxu0 %v231
    %1228 = vmatprep.subr.mxu0 %v236
    %1229 = vmatpush1.msra.mxu0 %v235
    %1230 = vmatprep.subr.mxu0 %v240
    %1231 = vmatpush1.msra.mxu0 %v239
    %1232 = vmatprep.subr.mxu0 %v244
    %1233 = vmatpush1.msra.mxu0 %v243
    %1234 = vmatprep.subr.mxu0 %v248
    %1235 = vmatpush1.msra.mxu0 %v247
    %1236 = vmatprep.mubr.f32.mxu0 %v1096
    %1237 = vmatmul.mubr.f32.gmra.mrb[0].mxu0 %v1100
    %v1238 = vpop.f32.mrb[0].mxu0
    %v1239 = vadd.f32 %v390, %v1238
    %v1240 = vpop.f32.mrb[0].mxu0
    %v1241 = vadd.f32 %v394, %v1240
    %1242 = vdwg.mxu0
    %v1243 = vxor.u32 %v1168, 2147483648
    %v1244 = vmul.f32 %v1243, 1.442695
    %v1245 = vpow.pop %v1244
    %v1246 = vadd.f32 %v1245, 1.0
    %v1247 = vrcp.pop %v1246
    %v1248 = vmul.f32 1.0, %v1247
    %v1249 = vxor.u32 %v1170, 2147483648
    %v1250 = vmul.f32 %v1249, 1.442695
    %v1251 = vpow.pop %v1250
    %v1252 = vadd.f32 %v1251, 1.0
    %v1253 = vrcp.pop %v1252
    %v1254 = vmul.f32 1.0, %v1253
    %v1255 = vtanh.pop %v1239
    %v1256 = vxor.u32 %v1241, 2147483648
    %v1257 = vmul.f32 %v1256, 1.442695
    %v1258 = vpow.pop %v1257
    %v1259 = vadd.f32 %v1258, 1.0
    %v1260 = vrcp.pop %v1259
    %v1261 = vmul.f32 1.0, %v1260
    %v1262 = vmul.f32 %v1254, %v1094
    %v1263 = vmul.f32 %v1248, %v1255
    %v1264 = vadd.f32 %v1262, %v1263
    %v1265 = vtanh.pop %v1264
    %v1266 = vmul.f32 %v1261, %v1265
    %s1267 = scalar_lea.vmem [#allocation2], 64
    %1268 = vst [vmem:[%s1267] sm:$0xff] %v1266
    %s1269 = scalar_lea.vmem [#allocation4], 40
    %v1270 = vld [vmem:[%s1269] sm:$0xff]
    %1271 = vmatprep.subr.mxu0 %v122
    %1272 = vmatpush1.msra.mxu0 %v121
    %1273 = vmatprep.subr.mxu0 %v126
    %1274 = vmatpush1.msra.mxu0 %v125
    %1275 = vmatprep.subr.mxu0 %v130
    %1276 = vmatpush1.msra.mxu0 %v129
    %1277 = vmatprep.subr.mxu0 %v134
    %1278 = vmatpush1.msra.mxu0 %v133
    %1279 = vmatprep.subr.mxu0 %v138
    %1280 = vmatpush1.msra.mxu0 %v137
    %1281 = vmatprep.subr.mxu0 %v142
    %1282 = vmatpush1.msra.mxu0 %v141
    %1283 = vmatprep.subr.mxu0 %v146
    %1284 = vmatpush1.msra.mxu0 %v145
    %1285 = vmatprep.subr.mxu0 %v150
    %1286 = vmatpush1.msra.mxu0 %v149
    %1287 = vmatprep.subr.mxu0 %v154
    %1288 = vmatpush1.msra.mxu0 %v153
    %1289 = vmatprep.subr.mxu0 %v158
    %1290 = vmatpush1.msra.mxu0 %v157
    %1291 = vmatprep.subr.mxu0 %v162
    %1292 = vmatpush1.msra.mxu0 %v161
    %1293 = vmatprep.subr.mxu0 %v166
    %1294 = vmatpush1.msra.mxu0 %v165
    %1295 = vmatprep.subr.mxu0 %v170
    %1296 = vmatpush1.msra.mxu0 %v169
    %1297 = vmatprep.subr.mxu0 %v174
    %1298 = vmatpush1.msra.mxu0 %v173
    %1299 = vmatprep.subr.mxu0 %v178
    %1300 = vmatpush1.msra.mxu0 %v177
    %1301 = vmatprep.subr.mxu0 %v182
    %1302 = vmatpush1.msra.mxu0 %v181
    %1303 = vmatprep.subr.mxu0 %v186
    %1304 = vmatpush1.msra.mxu0 %v185
    %1305 = vmatprep.subr.mxu0 %v190
    %1306 = vmatpush1.msra.mxu0 %v189
    %1307 = vmatprep.subr.mxu0 %v194
    %1308 = vmatpush1.msra.mxu0 %v193
    %1309 = vmatprep.subr.mxu0 %v198
    %1310 = vmatpush1.msra.mxu0 %v197
    %1311 = vmatprep.subr.mxu0 %v202
    %1312 = vmatpush1.msra.mxu0 %v201
    %1313 = vmatprep.subr.mxu0 %v206
    %1314 = vmatpush1.msra.mxu0 %v205
    %1315 = vmatprep.subr.mxu0 %v210
    %1316 = vmatpush1.msra.mxu0 %v209
    %1317 = vmatprep.subr.mxu0 %v214
    %1318 = vmatpush1.msra.mxu0 %v213
    %1319 = vmatprep.subr.mxu0 %v218
    %1320 = vmatpush1.msra.mxu0 %v217
    %1321 = vmatprep.subr.mxu0 %v222
    %1322 = vmatpush1.msra.mxu0 %v221
    %1323 = vmatprep.subr.mxu0 %v226
    %1324 = vmatpush1.msra.mxu0 %v225
    %1325 = vmatprep.subr.mxu0 %v230
    %1326 = vmatpush1.msra.mxu0 %v229
    %1327 = vmatprep.subr.mxu0 %v234
    %1328 = vmatpush1.msra.mxu0 %v233
    %1329 = vmatprep.subr.mxu0 %v238
    %1330 = vmatpush1.msra.mxu0 %v237
    %1331 = vmatprep.subr.mxu0 %v242
    %1332 = vmatpush1.msra.mxu0 %v241
    %1333 = vmatprep.subr.mxu0 %v246
    %1334 = vmatpush1.msra.mxu0 %v245
    %1335 = vmatprep.mubr.f32.mxu0 %v1266
    %1336 = vmatmul.mubr.f32.gmra.mrb[0].mxu0 %v1270
    %v1337 = vpop.f32.mrb[0].mxu0
    %v1338 = vadd.f32 %v382, %v1337
    %v1339 = vpop.f32.mrb[0].mxu0
    %v1340 = vadd.f32 %v386, %v1339
    %1341 = vdwg.mxu0
    %1342 = vmatprep.subr.mxu0 %v124
    %1343 = vmatpush1.msra.mxu0 %v123
    %1344 = vmatprep.subr.mxu0 %v128
    %1345 = vmatpush1.msra.mxu0 %v127
    %1346 = vmatprep.subr.mxu0 %v132
    %1347 = vmatpush1.msra.mxu0 %v131
    %1348 = vmatprep.subr.mxu0 %v136
    %1349 = vmatpush1.msra.mxu0 %v135
    %1350 = vmatprep.subr.mxu0 %v140
    %1351 = vmatpush1.msra.mxu0 %v139
    %1352 = vmatprep.subr.mxu0 %v144
    %1353 = vmatpush1.msra.mxu0 %v143
    %1354 = vmatprep.subr.mxu0 %v148
    %1355 = vmatpush1.msra.mxu0 %v147
    %1356 = vmatprep.subr.mxu0 %v152
    %1357 = vmatpush1.msra.mxu0 %v151
    %1358 = vmatprep.subr.mxu0 %v156
    %1359 = vmatpush1.msra.mxu0 %v155
    %1360 = vmatprep.subr.mxu0 %v160
    %1361 = vmatpush1.msra.mxu0 %v159
    %1362 = vmatprep.subr.mxu0 %v164
    %1363 = vmatpush1.msra.mxu0 %v163
    %1364 = vmatprep.subr.mxu0 %v168
    %1365 = vmatpush1.msra.mxu0 %v167
    %1366 = vmatprep.subr.mxu0 %v172
    %1367 = vmatpush1.msra.mxu0 %v171
    %1368 = vmatprep.subr.mxu0 %v176
    %1369 = vmatpush1.msra.mxu0 %v175
    %1370 = vmatprep.subr.mxu0 %v180
    %1371 = vmatpush1.msra.mxu0 %v179
    %1372 = vmatprep.subr.mxu0 %v184
    %1373 = vmatpush1.msra.mxu0 %v183
    %1374 = vmatprep.subr.mxu0 %v188
    %1375 = vmatpush1.msra.mxu0 %v187
    %1376 = vmatprep.subr.mxu0 %v192
    %1377 = vmatpush1.msra.mxu0 %v191
    %1378 = vmatprep.subr.mxu0 %v196
    %1379 = vmatpush1.msra.mxu0 %v195
    %1380 = vmatprep.subr.mxu0 %v200
    %1381 = vmatpush1.msra.mxu0 %v199
    %1382 = vmatprep.subr.mxu0 %v204
    %1383 = vmatpush1.msra.mxu0 %v203
    %1384 = vmatprep.subr.mxu0 %v208
    %1385 = vmatpush1.msra.mxu0 %v207
    %1386 = vmatprep.subr.mxu0 %v212
    %1387 = vmatpush1.msra.mxu0 %v211
    %1388 = vmatprep.subr.mxu0 %v216
    %1389 = vmatpush1.msra.mxu0 %v215
    %1390 = vmatprep.subr.mxu0 %v220
    %1391 = vmatpush1.msra.mxu0 %v219
    %1392 = vmatprep.subr.mxu0 %v224
    %1393 = vmatpush1.msra.mxu0 %v223
    %1394 = vmatprep.subr.mxu0 %v228
    %1395 = vmatpush1.msra.mxu0 %v227
    %1396 = vmatprep.subr.mxu0 %v232
    %1397 = vmatpush1.msra.mxu0 %v231
    %1398 = vmatprep.subr.mxu0 %v236
    %1399 = vmatpush1.msra.mxu0 %v235
    %1400 = vmatprep.subr.mxu0 %v240
    %1401 = vmatpush1.msra.mxu0 %v239
    %1402 = vmatprep.subr.mxu0 %v244
    %1403 = vmatpush1.msra.mxu0 %v243
    %1404 = vmatprep.subr.mxu0 %v248
    %1405 = vmatpush1.msra.mxu0 %v247
    %1406 = vmatprep.mubr.f32.mxu0 %v1266
    %1407 = vmatmul.mubr.f32.gmra.mrb[0].mxu0 %v1270
    %v1408 = vpop.f32.mrb[0].mxu0
    %v1409 = vadd.f32 %v390, %v1408
    %v1410 = vpop.f32.mrb[0].mxu0
    %v1411 = vadd.f32 %v394, %v1410
    %1412 = vdwg.mxu0
    %v1413 = vxor.u32 %v1338, 2147483648
    %v1414 = vmul.f32 %v1413, 1.442695
    %v1415 = vpow.pop %v1414
    %v1416 = vadd.f32 %v1415, 1.0
    %v1417 = vrcp.pop %v1416
    %v1418 = vmul.f32 1.0, %v1417
    %v1419 = vxor.u32 %v1340, 2147483648
    %v1420 = vmul.f32 %v1419, 1.442695
    %v1421 = vpow.pop %v1420
    %v1422 = vadd.f32 %v1421, 1.0
    %v1423 = vrcp.pop %v1422
    %v1424 = vmul.f32 1.0, %v1423
    %v1425 = vtanh.pop %v1409
    %v1426 = vxor.u32 %v1411, 2147483648
    %v1427 = vmul.f32 %v1426, 1.442695
    %v1428 = vpow.pop %v1427
    %v1429 = vadd.f32 %v1428, 1.0
    %v1430 = vrcp.pop %v1429
    %v1431 = vmul.f32 1.0, %v1430
    %v1432 = vmul.f32 %v1424, %v1264
    %v1433 = vmul.f32 %v1418, %v1425
    %v1434 = vadd.f32 %v1432, %v1433
    %v1435 = vtanh.pop %v1434
    %v1436 = vmul.f32 %v1431, %v1435
    %s1437 = scalar_lea.vmem [#allocation2], 80
    %1438 = vst [vmem:[%s1437] sm:$0xff] %v1436
    %s1439 = scalar_lea.vmem [#allocation4], 48
    %v1440 = vld [vmem:[%s1439] sm:$0xff]
    %1441 = vmatprep.subr.mxu0 %v122
    %1442 = vmatpush1.msra.mxu0 %v121
    %1443 = vmatprep.subr.mxu0 %v126
    %1444 = vmatpush1.msra.mxu0 %v125
    %1445 = vmatprep.subr.mxu0 %v130
    %1446 = vmatpush1.msra.mxu0 %v129
    %1447 = vmatprep.subr.mxu0 %v134
    %1448 = vmatpush1.msra.mxu0 %v133
    %1449 = vmatprep.subr.mxu0 %v138
    %1450 = vmatpush1.msra.mxu0 %v137
    %1451 = vmatprep.subr.mxu0 %v142
    %1452 = vmatpush1.msra.mxu0 %v141
    %1453 = vmatprep.subr.mxu0 %v146
    %1454 = vmatpush1.msra.mxu0 %v145
    %1455 = vmatprep.subr.mxu0 %v150
    %1456 = vmatpush1.msra.mxu0 %v149
    %1457 = vmatprep.subr.mxu0 %v154
    %1458 = vmatpush1.msra.mxu0 %v153
    %1459 = vmatprep.subr.mxu0 %v158
    %1460 = vmatpush1.msra.mxu0 %v157
    %1461 = vmatprep.subr.mxu0 %v162
    %1462 = vmatpush1.msra.mxu0 %v161
    %1463 = vmatprep.subr.mxu0 %v166
    %1464 = vmatpush1.msra.mxu0 %v165
    %1465 = vmatprep.subr.mxu0 %v170
    %1466 = vmatpush1.msra.mxu0 %v169
    %1467 = vmatprep.subr.mxu0 %v174
    %1468 = vmatpush1.msra.mxu0 %v173
    %1469 = vmatprep.subr.mxu0 %v178
    %1470 = vmatpush1.msra.mxu0 %v177
    %1471 = vmatprep.subr.mxu0 %v182
    %1472 = vmatpush1.msra.mxu0 %v181
    %1473 = vmatprep.subr.mxu0 %v186
    %1474 = vmatpush1.msra.mxu0 %v185
    %1475 = vmatprep.subr.mxu0 %v190
    %1476 = vmatpush1.msra.mxu0 %v189
    %1477 = vmatprep.subr.mxu0 %v194
    %1478 = vmatpush1.msra.mxu0 %v193
    %1479 = vmatprep.subr.mxu0 %v198
    %1480 = vmatpush1.msra.mxu0 %v197
    %1481 = vmatprep.subr.mxu0 %v202
    %1482 = vmatpush1.msra.mxu0 %v201
    %1483 = vmatprep.subr.mxu0 %v206
    %1484 = vmatpush1.msra.mxu0 %v205
    %1485 = vmatprep.subr.mxu0 %v210
    %1486 = vmatpush1.msra.mxu0 %v209
    %1487 = vmatprep.subr.mxu0 %v214
    %1488 = vmatpush1.msra.mxu0 %v213
    %1489 = vmatprep.subr.mxu0 %v218
    %1490 = vmatpush1.msra.mxu0 %v217
    %1491 = vmatprep.subr.mxu0 %v222
    %1492 = vmatpush1.msra.mxu0 %v221
    %1493 = vmatprep.subr.mxu0 %v226
    %1494 = vmatpush1.msra.mxu0 %v225
    %1495 = vmatprep.subr.mxu0 %v230
    %1496 = vmatpush1.msra.mxu0 %v229
    %1497 = vmatprep.subr.mxu0 %v234
    %1498 = vmatpush1.msra.mxu0 %v233
    %1499 = vmatprep.subr.mxu0 %v238
    %1500 = vmatpush1.msra.mxu0 %v237
    %1501 = vmatprep.subr.mxu0 %v242
    %1502 = vmatpush1.msra.mxu0 %v241
    %1503 = vmatprep.subr.mxu0 %v246
    %1504 = vmatpush1.msra.mxu0 %v245
    %1505 = vmatprep.mubr.f32.mxu0 %v1436
    %1506 = vmatmul.mubr.f32.gmra.mrb[0].mxu0 %v1440
    %v1507 = vpop.f32.mrb[0].mxu0
    %v1508 = vadd.f32 %v382, %v1507
    %v1509 = vpop.f32.mrb[0].mxu0
    %v1510 = vadd.f32 %v386, %v1509
    %1511 = vdwg.mxu0
    %1512 = vmatprep.subr.mxu0 %v124
    %1513 = vmatpush1.msra.mxu0 %v123
    %1514 = vmatprep.subr.mxu0 %v128
    %1515 = vmatpush1.msra.mxu0 %v127
    %1516 = vmatprep.subr.mxu0 %v132
    %1517 = vmatpush1.msra.mxu0 %v131
    %1518 = vmatprep.subr.mxu0 %v136
    %1519 = vmatpush1.msra.mxu0 %v135
    %1520 = vmatprep.subr.mxu0 %v140
    %1521 = vmatpush1.msra.mxu0 %v139
    %1522 = vmatprep.subr.mxu0 %v144
    %1523 = vmatpush1.msra.mxu0 %v143
    %1524 = vmatprep.subr.mxu0 %v148
    %1525 = vmatpush1.msra.mxu0 %v147
    %1526 = vmatprep.subr.mxu0 %v152
    %1527 = vmatpush1.msra.mxu0 %v151
    %1528 = vmatprep.subr.mxu0 %v156
    %1529 = vmatpush1.msra.mxu0 %v155
    %1530 = vmatprep.subr.mxu0 %v160
    %1531 = vmatpush1.msra.mxu0 %v159
    %1532 = vmatprep.subr.mxu0 %v164
    %1533 = vmatpush1.msra.mxu0 %v163
    %1534 = vmatprep.subr.mxu0 %v168
    %1535 = vmatpush1.msra.mxu0 %v167
    %1536 = vmatprep.subr.mxu0 %v172
    %1537 = vmatpush1.msra.mxu0 %v171
    %1538 = vmatprep.subr.mxu0 %v176
    %1539 = vmatpush1.msra.mxu0 %v175
    %1540 = vmatprep.subr.mxu0 %v180
    %1541 = vmatpush1.msra.mxu0 %v179
    %1542 = vmatprep.subr.mxu0 %v184
    %1543 = vmatpush1.msra.mxu0 %v183
    %1544 = vmatprep.subr.mxu0 %v188
    %1545 = vmatpush1.msra.mxu0 %v187
    %1546 = vmatprep.subr.mxu0 %v192
    %1547 = vmatpush1.msra.mxu0 %v191
    %1548 = vmatprep.subr.mxu0 %v196
    %1549 = vmatpush1.msra.mxu0 %v195
    %1550 = vmatprep.subr.mxu0 %v200
    %1551 = vmatpush1.msra.mxu0 %v199
    %1552 = vmatprep.subr.mxu0 %v204
    %1553 = vmatpush1.msra.mxu0 %v203
    %1554 = vmatprep.subr.mxu0 %v208
    %1555 = vmatpush1.msra.mxu0 %v207
    %1556 = vmatprep.subr.mxu0 %v212
    %1557 = vmatpush1.msra.mxu0 %v211
    %1558 = vmatprep.subr.mxu0 %v216
    %1559 = vmatpush1.msra.mxu0 %v215
    %1560 = vmatprep.subr.mxu0 %v220
    %1561 = vmatpush1.msra.mxu0 %v219
    %1562 = vmatprep.subr.mxu0 %v224
    %1563 = vmatpush1.msra.mxu0 %v223
    %1564 = vmatprep.subr.mxu0 %v228
    %1565 = vmatpush1.msra.mxu0 %v227
    %1566 = vmatprep.subr.mxu0 %v232
    %1567 = vmatpush1.msra.mxu0 %v231
    %1568 = vmatprep.subr.mxu0 %v236
    %1569 = vmatpush1.msra.mxu0 %v235
    %1570 = vmatprep.subr.mxu0 %v240
    %1571 = vmatpush1.msra.mxu0 %v239
    %1572 = vmatprep.subr.mxu0 %v244
    %1573 = vmatpush1.msra.mxu0 %v243
    %1574 = vmatprep.subr.mxu0 %v248
    %1575 = vmatpush1.msra.mxu0 %v247
    %1576 = vmatprep.mubr.f32.mxu0 %v1436
    %1577 = vmatmul.mubr.f32.gmra.mrb[0].mxu0 %v1440
    %v1578 = vpop.f32.mrb[0].mxu0
    %v1579 = vadd.f32 %v390, %v1578
    %v1580 = vpop.f32.mrb[0].mxu0
    %v1581 = vadd.f32 %v394, %v1580
    %1582 = vdwg.mxu0
    %v1583 = vxor.u32 %v1508, 2147483648
    %v1584 = vmul.f32 %v1583, 1.442695
    %v1585 = vpow.pop %v1584
    %v1586 = vadd.f32 %v1585, 1.0
    %v1587 = vrcp.pop %v1586
    %v1588 = vmul.f32 1.0, %v1587
    %v1589 = vxor.u32 %v1510, 2147483648
    %v1590 = vmul.f32 %v1589, 1.442695
    %v1591 = vpow.pop %v1590
    %v1592 = vadd.f32 %v1591, 1.0
    %v1593 = vrcp.pop %v1592
    %v1594 = vmul.f32 1.0, %v1593
    %v1595 = vtanh.pop %v1579
    %v1596 = vxor.u32 %v1581, 2147483648
    %v1597 = vmul.f32 %v1596, 1.442695
    %v1598 = vpow.pop %v1597
    %v1599 = vadd.f32 %v1598, 1.0
    %v1600 = vrcp.pop %v1599
    %v1601 = vmul.f32 1.0, %v1600
    %v1602 = vmul.f32 %v1594, %v1434
    %v1603 = vmul.f32 %v1588, %v1595
    %v1604 = vadd.f32 %v1602, %v1603
    %v1605 = vtanh.pop %v1604
    %v1606 = vmul.f32 %v1601, %v1605
    %s1607 = scalar_lea.vmem [#allocation2], 96
    %1608 = vst [vmem:[%s1607] sm:$0xff] %v1606
    %s1609 = scalar_lea.vmem [#allocation4], 56
    %v1610 = vld [vmem:[%s1609] sm:$0xff]
    %1611 = vmatprep.subr.mxu0 %v122
    %1612 = vmatpush1.msra.mxu0 %v121
    %1613 = vmatprep.subr.mxu0 %v126
    %1614 = vmatpush1.msra.mxu0 %v125
    %1615 = vmatprep.subr.mxu0 %v130
    %1616 = vmatpush1.msra.mxu0 %v129
    %1617 = vmatprep.subr.mxu0 %v134
    %1618 = vmatpush1.msra.mxu0 %v133
    %1619 = vmatprep.subr.mxu0 %v138
    %1620 = vmatpush1.msra.mxu0 %v137
    %1621 = vmatprep.subr.mxu0 %v142
    %1622 = vmatpush1.msra.mxu0 %v141
    %1623 = vmatprep.subr.mxu0 %v146
    %1624 = vmatpush1.msra.mxu0 %v145
    %1625 = vmatprep.subr.mxu0 %v150
    %1626 = vmatpush1.msra.mxu0 %v149
    %1627 = vmatprep.subr.mxu0 %v154
    %1628 = vmatpush1.msra.mxu0 %v153
    %1629 = vmatprep.subr.mxu0 %v158
    %1630 = vmatpush1.msra.mxu0 %v157
    %1631 = vmatprep.subr.mxu0 %v162
    %1632 = vmatpush1.msra.mxu0 %v161
    %1633 = vmatprep.subr.mxu0 %v166
    %1634 = vmatpush1.msra.mxu0 %v165
    %1635 = vmatprep.subr.mxu0 %v170
    %1636 = vmatpush1.msra.mxu0 %v169
    %1637 = vmatprep.subr.mxu0 %v174
    %1638 = vmatpush1.msra.mxu0 %v173
    %1639 = vmatprep.subr.mxu0 %v178
    %1640 = vmatpush1.msra.mxu0 %v177
    %1641 = vmatprep.subr.mxu0 %v182
    %1642 = vmatpush1.msra.mxu0 %v181
    %1643 = vmatprep.subr.mxu0 %v186
    %1644 = vmatpush1.msra.mxu0 %v185
    %1645 = vmatprep.subr.mxu0 %v190
    %1646 = vmatpush1.msra.mxu0 %v189
    %1647 = vmatprep.subr.mxu0 %v194
    %1648 = vmatpush1.msra.mxu0 %v193
    %1649 = vmatprep.subr.mxu0 %v198
    %1650 = vmatpush1.msra.mxu0 %v197
    %1651 = vmatprep.subr.mxu0 %v202
    %1652 = vmatpush1.msra.mxu0 %v201
    %1653 = vmatprep.subr.mxu0 %v206
    %1654 = vmatpush1.msra.mxu0 %v205
    %1655 = vmatprep.subr.mxu0 %v210
    %1656 = vmatpush1.msra.mxu0 %v209
    %1657 = vmatprep.subr.mxu0 %v214
    %1658 = vmatpush1.msra.mxu0 %v213
    %1659 = vmatprep.subr.mxu0 %v218
    %1660 = vmatpush1.msra.mxu0 %v217
    %1661 = vmatprep.subr.mxu0 %v222
    %1662 = vmatpush1.msra.mxu0 %v221
    %1663 = vmatprep.subr.mxu0 %v226
    %1664 = vmatpush1.msra.mxu0 %v225
    %1665 = vmatprep.subr.mxu0 %v230
    %1666 = vmatpush1.msra.mxu0 %v229
    %1667 = vmatprep.subr.mxu0 %v234
    %1668 = vmatpush1.msra.mxu0 %v233
    %1669 = vmatprep.subr.mxu0 %v238
    %1670 = vmatpush1.msra.mxu0 %v237
    %1671 = vmatprep.subr.mxu0 %v242
    %1672 = vmatpush1.msra.mxu0 %v241
    %1673 = vmatprep.subr.mxu0 %v246
    %1674 = vmatpush1.msra.mxu0 %v245
    %1675 = vmatprep.mubr.f32.mxu0 %v1606
    %1676 = vmatmul.mubr.f32.gmra.mrb[0].mxu0 %v1610
    %v1677 = vpop.f32.mrb[0].mxu0
    %v1678 = vadd.f32 %v382, %v1677
    %v1679 = vpop.f32.mrb[0].mxu0
    %v1680 = vadd.f32 %v386, %v1679
    %1681 = vdwg.mxu0
    %1682 = vmatprep.subr.mxu0 %v124
    %1683 = vmatpush1.msra.mxu0 %v123
    %1684 = vmatprep.subr.mxu0 %v128
    %1685 = vmatpush1.msra.mxu0 %v127
    %1686 = vmatprep.subr.mxu0 %v132
    %1687 = vmatpush1.msra.mxu0 %v131
    %1688 = vmatprep.subr.mxu0 %v136
    %1689 = vmatpush1.msra.mxu0 %v135
    %1690 = vmatprep.subr.mxu0 %v140
    %1691 = vmatpush1.msra.mxu0 %v139
    %1692 = vmatprep.subr.mxu0 %v144
    %1693 = vmatpush1.msra.mxu0 %v143
    %1694 = vmatprep.subr.mxu0 %v148
    %1695 = vmatpush1.msra.mxu0 %v147
    %1696 = vmatprep.subr.mxu0 %v152
    %1697 = vmatpush1.msra.mxu0 %v151
    %1698 = vmatprep.subr.mxu0 %v156
    %1699 = vmatpush1.msra.mxu0 %v155
    %1700 = vmatprep.subr.mxu0 %v160
    %1701 = vmatpush1.msra.mxu0 %v159
    %1702 = vmatprep.subr.mxu0 %v164
    %1703 = vmatpush1.msra.mxu0 %v163
    %1704 = vmatprep.subr.mxu0 %v168
    %1705 = vmatpush1.msra.mxu0 %v167
    %1706 = vmatprep.subr.mxu0 %v172
    %1707 = vmatpush1.msra.mxu0 %v171
    %1708 = vmatprep.subr.mxu0 %v176
    %1709 = vmatpush1.msra.mxu0 %v175
    %1710 = vmatprep.subr.mxu0 %v180
    %1711 = vmatpush1.msra.mxu0 %v179
    %1712 = vmatprep.subr.mxu0 %v184
    %1713 = vmatpush1.msra.mxu0 %v183
    %1714 = vmatprep.subr.mxu0 %v188
    %1715 = vmatpush1.msra.mxu0 %v187
    %1716 = vmatprep.subr.mxu0 %v192
    %1717 = vmatpush1.msra.mxu0 %v191
    %1718 = vmatprep.subr.mxu0 %v196
    %1719 = vmatpush1.msra.mxu0 %v195
    %1720 = vmatprep.subr.mxu0 %v200
    %1721 = vmatpush1.msra.mxu0 %v199
    %1722 = vmatprep.subr.mxu0 %v204
    %1723 = vmatpush1.msra.mxu0 %v203
    %1724 = vmatprep.subr.mxu0 %v208
    %1725 = vmatpush1.msra.mxu0 %v207
    %1726 = vmatprep.subr.mxu0 %v212
    %1727 = vmatpush1.msra.mxu0 %v211
    %1728 = vmatprep.subr.mxu0 %v216
    %1729 = vmatpush1.msra.mxu0 %v215
    %1730 = vmatprep.subr.mxu0 %v220
    %1731 = vmatpush1.msra.mxu0 %v219
    %1732 = vmatprep.subr.mxu0 %v224
    %1733 = vmatpush1.msra.mxu0 %v223
    %1734 = vmatprep.subr.mxu0 %v228
    %1735 = vmatpush1.msra.mxu0 %v227
    %1736 = vmatprep.subr.mxu0 %v232
    %1737 = vmatpush1.msra.mxu0 %v231
    %1738 = vmatprep.subr.mxu0 %v236
    %1739 = vmatpush1.msra.mxu0 %v235
    %1740 = vmatprep.subr.mxu0 %v240
    %1741 = vmatpush1.msra.mxu0 %v239
    %1742 = vmatprep.subr.mxu0 %v244
    %1743 = vmatpush1.msra.mxu0 %v243
    %1744 = vmatprep.subr.mxu0 %v248
    %1745 = vmatpush1.msra.mxu0 %v247
    %1746 = vmatprep.mubr.f32.mxu0 %v1606
    %1747 = vmatmul.mubr.f32.gmra.mrb[0].mxu0 %v1610
    %v1748 = vpop.f32.mrb[0].mxu0
    %v1749 = vadd.f32 %v390, %v1748
    %v1750 = vpop.f32.mrb[0].mxu0
    %v1751 = vadd.f32 %v394, %v1750
    %1752 = vdwg.mxu0
    %v1753 = vxor.u32 %v1678, 2147483648
    %v1754 = vmul.f32 %v1753, 1.442695
    %v1755 = vpow.pop %v1754
    %v1756 = vadd.f32 %v1755, 1.0
    %v1757 = vrcp.pop %v1756
    %v1758 = vmul.f32 1.0, %v1757
    %v1759 = vxor.u32 %v1680, 2147483648
    %v1760 = vmul.f32 %v1759, 1.442695
    %v1761 = vpow.pop %v1760
    %v1762 = vadd.f32 %v1761, 1.0
    %v1763 = vrcp.pop %v1762
    %v1764 = vmul.f32 1.0, %v1763
    %v1765 = vtanh.pop %v1749
    %v1766 = vxor.u32 %v1751, 2147483648
    %v1767 = vmul.f32 %v1766, 1.442695
    %v1768 = vpow.pop %v1767
    %v1769 = vadd.f32 %v1768, 1.0
    %v1770 = vrcp.pop %v1769
    %v1771 = vmul.f32 1.0, %v1770
    %v1772 = vmul.f32 %v1764, %v1604
    %v1773 = vmul.f32 %v1758, %v1765
    %v1774 = vadd.f32 %v1772, %v1773
    %v1775 = vtanh.pop %v1774
    %v1776 = vmul.f32 %v1771, %v1775
    %s1777 = scalar_lea.vmem [#allocation2], 112
    %1778 = vst [vmem:[%s1777] sm:$0xff] %v1776
    %v1779 = vld [vmem:[%s1609] sm:$0xff]
    %1780 = vmatprep.subr.mxu0 %v250
    %1781 = vmatpush1.msra.mxu0 %v249
    %1782 = vmatprep.subr.mxu0 %v254
    %1783 = vmatpush1.msra.mxu0 %v253
    %1784 = vmatprep.subr.mxu0 %v258
    %1785 = vmatpush1.msra.mxu0 %v257
    %1786 = vmatprep.subr.mxu0 %v262
    %1787 = vmatpush1.msra.mxu0 %v261
    %1788 = vmatprep.subr.mxu0 %v266
    %1789 = vmatpush1.msra.mxu0 %v265
    %1790 = vmatprep.subr.mxu0 %v270
    %1791 = vmatpush1.msra.mxu0 %v269
    %1792 = vmatprep.subr.mxu0 %v274
    %1793 = vmatpush1.msra.mxu0 %v273
    %1794 = vmatprep.subr.mxu0 %v278
    %1795 = vmatpush1.msra.mxu0 %v277
    %1796 = vmatprep.subr.mxu0 %v282
    %1797 = vmatpush1.msra.mxu0 %v281
    %1798 = vmatprep.subr.mxu0 %v286
    %1799 = vmatpush1.msra.mxu0 %v285
    %1800 = vmatprep.subr.mxu0 %v290
    %1801 = vmatpush1.msra.mxu0 %v289
    %1802 = vmatprep.subr.mxu0 %v294
    %1803 = vmatpush1.msra.mxu0 %v293
    %1804 = vmatprep.subr.mxu0 %v298
    %1805 = vmatpush1.msra.mxu0 %v297
    %1806 = vmatprep.subr.mxu0 %v302
    %1807 = vmatpush1.msra.mxu0 %v301
    %1808 = vmatprep.subr.mxu0 %v306
    %1809 = vmatpush1.msra.mxu0 %v305
    %1810 = vmatprep.subr.mxu0 %v310
    %1811 = vmatpush1.msra.mxu0 %v309
    %1812 = vmatprep.subr.mxu0 %v314
    %1813 = vmatpush1.msra.mxu0 %v313
    %1814 = vmatprep.subr.mxu0 %v318
    %1815 = vmatpush1.msra.mxu0 %v317
    %1816 = vmatprep.subr.mxu0 %v322
    %1817 = vmatpush1.msra.mxu0 %v321
    %1818 = vmatprep.subr.mxu0 %v326
    %1819 = vmatpush1.msra.mxu0 %v325
    %1820 = vmatprep.subr.mxu0 %v330
    %1821 = vmatpush1.msra.mxu0 %v329
    %1822 = vmatprep.subr.mxu0 %v334
    %1823 = vmatpush1.msra.mxu0 %v333
    %1824 = vmatprep.subr.mxu0 %v338
    %1825 = vmatpush1.msra.mxu0 %v337
    %1826 = vmatprep.subr.mxu0 %v342
    %1827 = vmatpush1.msra.mxu0 %v341
    %1828 = vmatprep.subr.mxu0 %v346
    %1829 = vmatpush1.msra.mxu0 %v345
    %1830 = vmatprep.subr.mxu0 %v350
    %1831 = vmatpush1.msra.mxu0 %v349
    %1832 = vmatprep.subr.mxu0 %v354
    %1833 = vmatpush1.msra.mxu0 %v353
    %1834 = vmatprep.subr.mxu0 %v358
    %1835 = vmatpush1.msra.mxu0 %v357
    %1836 = vmatprep.subr.mxu0 %v362
    %1837 = vmatpush1.msra.mxu0 %v361
    %1838 = vmatprep.subr.mxu0 %v366
    %1839 = vmatpush1.msra.mxu0 %v365
    %1840 = vmatprep.subr.mxu0 %v370
    %1841 = vmatpush1.msra.mxu0 %v369
    %1842 = vmatprep.subr.mxu0 %v374
    %1843 = vmatpush1.msra.mxu0 %v373
    %1844 = vmatprep.mubr.f32.mxu0 0.0
    %1845 = vmatmul.mubr.f32.gmra.mrb[0].mxu0 %v1779
    %v1846 = vpop.f32.mrb[0].mxu0
    %v1847 = vadd.f32 %v404, %v1846
    %v1848 = vpop.f32.mrb[0].mxu0
    %v1849 = vadd.f32 %v408, %v1848
    %1850 = vdwg.mxu0
    %1851 = vmatprep.subr.mxu0 %v252
    %1852 = vmatpush1.msra.mxu0 %v251
    %1853 = vmatprep.subr.mxu0 %v256
    %1854 = vmatpush1.msra.mxu0 %v255
    %1855 = vmatprep.subr.mxu0 %v260
    %1856 = vmatpush1.msra.mxu0 %v259
    %1857 = vmatprep.subr.mxu0 %v264
    %1858 = vmatpush1.msra.mxu0 %v263
    %1859 = vmatprep.subr.mxu0 %v268
    %1860 = vmatpush1.msra.mxu0 %v267
    %1861 = vmatprep.subr.mxu0 %v272
    %1862 = vmatpush1.msra.mxu0 %v271
    %1863 = vmatprep.subr.mxu0 %v276
    %1864 = vmatpush1.msra.mxu0 %v275
    %1865 = vmatprep.subr.mxu0 %v280
    %1866 = vmatpush1.msra.mxu0 %v279
    %1867 = vmatprep.subr.mxu0 %v284
    %1868 = vmatpush1.msra.mxu0 %v283
    %1869 = vmatprep.subr.mxu0 %v288
    %1870 = vmatpush1.msra.mxu0 %v287
    %1871 = vmatprep.subr.mxu0 %v292
    %1872 = vmatpush1.msra.mxu0 %v291
    %1873 = vmatprep.subr.mxu0 %v296
    %1874 = vmatpush1.msra.mxu0 %v295
    %1875 = vmatprep.subr.mxu0 %v300
    %1876 = vmatpush1.msra.mxu0 %v299
    %1877 = vmatprep.subr.mxu0 %v304
    %1878 = vmatpush1.msra.mxu0 %v303
    %1879 = vmatprep.subr.mxu0 %v308
    %1880 = vmatpush1.msra.mxu0 %v307
    %1881 = vmatprep.subr.mxu0 %v312
    %1882 = vmatpush1.msra.mxu0 %v311
    %1883 = vmatprep.subr.mxu0 %v316
    %1884 = vmatpush1.msra.mxu0 %v315
    %1885 = vmatprep.subr.mxu0 %v320
    %1886 = vmatpush1.msra.mxu0 %v319
    %1887 = vmatprep.subr.mxu0 %v324
    %1888 = vmatpush1.msra.mxu0 %v323
    %1889 = vmatprep.subr.mxu0 %v328
    %1890 = vmatpush1.msra.mxu0 %v327
    %1891 = vmatprep.subr.mxu0 %v332
    %1892 = vmatpush1.msra.mxu0 %v331
    %1893 = vmatprep.subr.mxu0 %v336
    %1894 = vmatpush1.msra.mxu0 %v335
    %1895 = vmatprep.subr.mxu0 %v340
    %1896 = vmatpush1.msra.mxu0 %v339
    %1897 = vmatprep.subr.mxu0 %v344
    %1898 = vmatpush1.msra.mxu0 %v343
    %1899 = vmatprep.subr.mxu0 %v348
    %1900 = vmatpush1.msra.mxu0 %v347
    %1901 = vmatprep.subr.mxu0 %v352
    %1902 = vmatpush1.msra.mxu0 %v351
    %1903 = vmatprep.subr.mxu0 %v356
    %1904 = vmatpush1.msra.mxu0 %v355
    %1905 = vmatprep.subr.mxu0 %v360
    %1906 = vmatpush1.msra.mxu0 %v359
    %1907 = vmatprep.subr.mxu0 %v364
    %1908 = vmatpush1.msra.mxu0 %v363
    %1909 = vmatprep.subr.mxu0 %v368
    %1910 = vmatpush1.msra.mxu0 %v367
    %1911 = vmatprep.subr.mxu0 %v372
    %1912 = vmatpush1.msra.mxu0 %v371
    %1913 = vmatprep.subr.mxu0 %v376
    %1914 = vmatpush1.msra.mxu0 %v375
    %1915 = vmatprep.mubr.f32.mxu0 0.0
    %1916 = vmatmul.mubr.f32.gmra.mrb[0].mxu0 %v1779
    %v1917 = vpop.f32.mrb[0].mxu0
    %v1918 = vadd.f32 %v412, %v1917
    %v1919 = vpop.f32.mrb[0].mxu0
    %v1920 = vadd.f32 %v416, %v1919
    %1921 = vdwg.mxu0
    %v1922 = vxor.u32 %v1847, 2147483648
    %v1923 = vmul.f32 %v1922, 1.442695
    %v1924 = vpow.pop %v1923
    %v1925 = vadd.f32 %v1924, 1.0
    %v1926 = vrcp.pop %v1925
    %v1927 = vmul.f32 1.0, %v1926
    %v1928 = vxor.u32 %v1849, 2147483648
    %v1929 = vmul.f32 %v1928, 1.442695
    %v1930 = vpow.pop %v1929
    %v1931 = vadd.f32 %v1930, 1.0
    %v1932 = vrcp.pop %v1931
    %v1933 = vmul.f32 1.0, %v1932
    %v1934 = vtanh.pop %v1918
    %v1935 = vxor.u32 %v1920, 2147483648
    %v1936 = vmul.f32 %v1935, 1.442695
    %v1937 = vpow.pop %v1936
    %v1938 = vadd.f32 %v1937, 1.0
    %v1939 = vrcp.pop %v1938
    %v1940 = vmul.f32 1.0, %v1939
    %v1941 = vmul.f32 %v1933, 0.0
    %v1942 = vmul.f32 %v1927, %v1934
    %v1943 = vadd.f32 %v1941, %v1942
    %v1944 = vtanh.pop %v1943
    %v1945 = vmul.f32 %v1940, %v1944
    %1946 = vst [vmem:[%s1777 + $0x8] sm:$0xff] %v1945
    %v1947 = vld [vmem:[%s1439] sm:$0xff]
    %1948 = vmatprep.subr.mxu0 %v250
    %1949 = vmatpush1.msra.mxu0 %v249
    %1950 = vmatprep.subr.mxu0 %v254
    %1951 = vmatpush1.msra.mxu0 %v253
    %1952 = vmatprep.subr.mxu0 %v258
    %1953 = vmatpush1.msra.mxu0 %v257
    %1954 = vmatprep.subr.mxu0 %v262
    %1955 = vmatpush1.msra.mxu0 %v261
    %1956 = vmatprep.subr.mxu0 %v266
    %1957 = vmatpush1.msra.mxu0 %v265
    %1958 = vmatprep.subr.mxu0 %v270
    %1959 = vmatpush1.msra.mxu0 %v269
    %1960 = vmatprep.subr.mxu0 %v274
    %1961 = vmatpush1.msra.mxu0 %v273
    %1962 = vmatprep.subr.mxu0 %v278
    %1963 = vmatpush1.msra.mxu0 %v277
    %1964 = vmatprep.subr.mxu0 %v282
    %1965 = vmatpush1.msra.mxu0 %v281
    %1966 = vmatprep.subr.mxu0 %v286
    %1967 = vmatpush1.msra.mxu0 %v285
    %1968 = vmatprep.subr.mxu0 %v290
    %1969 = vmatpush1.msra.mxu0 %v289
    %1970 = vmatprep.subr.mxu0 %v294
    %1971 = vmatpush1.msra.mxu0 %v293
    %1972 = vmatprep.subr.mxu0 %v298
    %1973 = vmatpush1.msra.mxu0 %v297
    %1974 = vmatprep.subr.mxu0 %v302
    %1975 = vmatpush1.msra.mxu0 %v301
    %1976 = vmatprep.subr.mxu0 %v306
    %1977 = vmatpush1.msra.mxu0 %v305
    %1978 = vmatprep.subr.mxu0 %v310
    %1979 = vmatpush1.msra.mxu0 %v309
    %1980 = vmatprep.subr.mxu0 %v314
    %1981 = vmatpush1.msra.mxu0 %v313
    %1982 = vmatprep.subr.mxu0 %v318
    %1983 = vmatpush1.msra.mxu0 %v317
    %1984 = vmatprep.subr.mxu0 %v322
    %1985 = vmatpush1.msra.mxu0 %v321
    %1986 = vmatprep.subr.mxu0 %v326
    %1987 = vmatpush1.msra.mxu0 %v325
    %1988 = vmatprep.subr.mxu0 %v330
    %1989 = vmatpush1.msra.mxu0 %v329
    %1990 = vmatprep.subr.mxu0 %v334
    %1991 = vmatpush1.msra.mxu0 %v333
    %1992 = vmatprep.subr.mxu0 %v338
    %1993 = vmatpush1.msra.mxu0 %v337
    %1994 = vmatprep.subr.mxu0 %v342
    %1995 = vmatpush1.msra.mxu0 %v341
    %1996 = vmatprep.subr.mxu0 %v346
    %1997 = vmatpush1.msra.mxu0 %v345
    %1998 = vmatprep.subr.mxu0 %v350
    %1999 = vmatpush1.msra.mxu0 %v349
    %2000 = vmatprep.subr.mxu0 %v354
    %2001 = vmatpush1.msra.mxu0 %v353
    %2002 = vmatprep.subr.mxu0 %v358
    %2003 = vmatpush1.msra.mxu0 %v357
    %2004 = vmatprep.subr.mxu0 %v362
    %2005 = vmatpush1.msra.mxu0 %v361
    %2006 = vmatprep.subr.mxu0 %v366
    %2007 = vmatpush1.msra.mxu0 %v365
    %2008 = vmatprep.subr.mxu0 %v370
    %2009 = vmatpush1.msra.mxu0 %v369
    %2010 = vmatprep.subr.mxu0 %v374
    %2011 = vmatpush1.msra.mxu0 %v373
    %2012 = vmatprep.mubr.f32.mxu0 %v1945
    %2013 = vmatmul.mubr.f32.gmra.mrb[0].mxu0 %v1947
    %v2014 = vpop.f32.mrb[0].mxu0
    %v2015 = vadd.f32 %v404, %v2014
    %v2016 = vpop.f32.mrb[0].mxu0
    %v2017 = vadd.f32 %v408, %v2016
    %2018 = vdwg.mxu0
    %2019 = vmatprep.subr.mxu0 %v252
    %2020 = vmatpush1.msra.mxu0 %v251
    %2021 = vmatprep.subr.mxu0 %v256
    %2022 = vmatpush1.msra.mxu0 %v255
    %2023 = vmatprep.subr.mxu0 %v260
    %2024 = vmatpush1.msra.mxu0 %v259
    %2025 = vmatprep.subr.mxu0 %v264
    %2026 = vmatpush1.msra.mxu0 %v263
    %2027 = vmatprep.subr.mxu0 %v268
    %2028 = vmatpush1.msra.mxu0 %v267
    %2029 = vmatprep.subr.mxu0 %v272
    %2030 = vmatpush1.msra.mxu0 %v271
    %2031 = vmatprep.subr.mxu0 %v276
    %2032 = vmatpush1.msra.mxu0 %v275
    %2033 = vmatprep.subr.mxu0 %v280
    %2034 = vmatpush1.msra.mxu0 %v279
    %2035 = vmatprep.subr.mxu0 %v284
    %2036 = vmatpush1.msra.mxu0 %v283
    %2037 = vmatprep.subr.mxu0 %v288
    %2038 = vmatpush1.msra.mxu0 %v287
    %2039 = vmatprep.subr.mxu0 %v292
    %2040 = vmatpush1.msra.mxu0 %v291
    %2041 = vmatprep.subr.mxu0 %v296
    %2042 = vmatpush1.msra.mxu0 %v295
    %2043 = vmatprep.subr.mxu0 %v300
    %2044 = vmatpush1.msra.mxu0 %v299
    %2045 = vmatprep.subr.mxu0 %v304
    %2046 = vmatpush1.msra.mxu0 %v303
    %2047 = vmatprep.subr.mxu0 %v308
    %2048 = vmatpush1.msra.mxu0 %v307
    %2049 = vmatprep.subr.mxu0 %v312
    %2050 = vmatpush1.msra.mxu0 %v311
    %2051 = vmatprep.subr.mxu0 %v316
    %2052 = vmatpush1.msra.mxu0 %v315
    %2053 = vmatprep.subr.mxu0 %v320
    %2054 = vmatpush1.msra.mxu0 %v319
    %2055 = vmatprep.subr.mxu0 %v324
    %2056 = vmatpush1.msra.mxu0 %v323
    %2057 = vmatprep.subr.mxu0 %v328
    %2058 = vmatpush1.msra.mxu0 %v327
    %2059 = vmatprep.subr.mxu0 %v332
    %2060 = vmatpush1.msra.mxu0 %v331
    %2061 = vmatprep.subr.mxu0 %v336
    %2062 = vmatpush1.msra.mxu0 %v335
    %2063 = vmatprep.subr.mxu0 %v340
    %2064 = vmatpush1.msra.mxu0 %v339
    %2065 = vmatprep.subr.mxu0 %v344
    %2066 = vmatpush1.msra.mxu0 %v343
    %2067 = vmatprep.subr.mxu0 %v348
    %2068 = vmatpush1.msra.mxu0 %v347
    %2069 = vmatprep.subr.mxu0 %v352
    %2070 = vmatpush1.msra.mxu0 %v351
    %2071 = vmatprep.subr.mxu0 %v356
    %2072 = vmatpush1.msra.mxu0 %v355
    %2073 = vmatprep.subr.mxu0 %v360
    %2074 = vmatpush1.msra.mxu0 %v359
    %2075 = vmatprep.subr.mxu0 %v364
    %2076 = vmatpush1.msra.mxu0 %v363
    %2077 = vmatprep.subr.mxu0 %v368
    %2078 = vmatpush1.msra.mxu0 %v367
    %2079 = vmatprep.subr.mxu0 %v372
    %2080 = vmatpush1.msra.mxu0 %v371
    %2081 = vmatprep.subr.mxu0 %v376
    %2082 = vmatpush1.msra.mxu0 %v375
    %2083 = vmatprep.mubr.f32.mxu0 %v1945
    %2084 = vmatmul.mubr.f32.gmra.mrb[0].mxu0 %v1947
    %v2085 = vpop.f32.mrb[0].mxu0
    %v2086 = vadd.f32 %v412, %v2085
    %v2087 = vpop.f32.mrb[0].mxu0
    %v2088 = vadd.f32 %v416, %v2087
    %2089 = vdwg.mxu0
    %v2090 = vxor.u32 %v2015, 2147483648
    %v2091 = vmul.f32 %v2090, 1.442695
    %v2092 = vpow.pop %v2091
    %v2093 = vadd.f32 %v2092, 1.0
    %v2094 = vrcp.pop %v2093
    %v2095 = vmul.f32 1.0, %v2094
    %v2096 = vxor.u32 %v2017, 2147483648
    %v2097 = vmul.f32 %v2096, 1.442695
    %v2098 = vpow.pop %v2097
    %v2099 = vadd.f32 %v2098, 1.0
    %v2100 = vrcp.pop %v2099
    %v2101 = vmul.f32 1.0, %v2100
    %v2102 = vtanh.pop %v2086
    %v2103 = vxor.u32 %v2088, 2147483648
    %v2104 = vmul.f32 %v2103, 1.442695
    %v2105 = vpow.pop %v2104
    %v2106 = vadd.f32 %v2105, 1.0
    %v2107 = vrcp.pop %v2106
    %v2108 = vmul.f32 1.0, %v2107
    %v2109 = vmul.f32 %v2101, %v1943
    %v2110 = vmul.f32 %v2095, %v2102
    %v2111 = vadd.f32 %v2109, %v2110
    %v2112 = vtanh.pop %v2111
    %v2113 = vmul.f32 %v2108, %v2112
    %2114 = vst [vmem:[%s1607 + $0x8] sm:$0xff] %v2113
    %v2115 = vld [vmem:[%s1269] sm:$0xff]
    %2116 = vmatprep.subr.mxu0 %v250
    %2117 = vmatpush1.msra.mxu0 %v249
    %2118 = vmatprep.subr.mxu0 %v254
    %2119 = vmatpush1.msra.mxu0 %v253
    %2120 = vmatprep.subr.mxu0 %v258
    %2121 = vmatpush1.msra.mxu0 %v257
    %2122 = vmatprep.subr.mxu0 %v262
    %2123 = vmatpush1.msra.mxu0 %v261
    %2124 = vmatprep.subr.mxu0 %v266
    %2125 = vmatpush1.msra.mxu0 %v265
    %2126 = vmatprep.subr.mxu0 %v270
    %2127 = vmatpush1.msra.mxu0 %v269
    %2128 = vmatprep.subr.mxu0 %v274
    %2129 = vmatpush1.msra.mxu0 %v273
    %2130 = vmatprep.subr.mxu0 %v278
    %2131 = vmatpush1.msra.mxu0 %v277
    %2132 = vmatprep.subr.mxu0 %v282
    %2133 = vmatpush1.msra.mxu0 %v281
    %2134 = vmatprep.subr.mxu0 %v286
    %2135 = vmatpush1.msra.mxu0 %v285
    %2136 = vmatprep.subr.mxu0 %v290
    %2137 = vmatpush1.msra.mxu0 %v289
    %2138 = vmatprep.subr.mxu0 %v294
    %2139 = vmatpush1.msra.mxu0 %v293
    %2140 = vmatprep.subr.mxu0 %v298
    %2141 = vmatpush1.msra.mxu0 %v297
    %2142 = vmatprep.subr.mxu0 %v302
    %2143 = vmatpush1.msra.mxu0 %v301
    %2144 = vmatprep.subr.mxu0 %v306
    %2145 = vmatpush1.msra.mxu0 %v305
    %2146 = vmatprep.subr.mxu0 %v310
    %2147 = vmatpush1.msra.mxu0 %v309
    %2148 = vmatprep.subr.mxu0 %v314
    %2149 = vmatpush1.msra.mxu0 %v313
    %2150 = vmatprep.subr.mxu0 %v318
    %2151 = vmatpush1.msra.mxu0 %v317
    %2152 = vmatprep.subr.mxu0 %v322
    %2153 = vmatpush1.msra.mxu0 %v321
    %2154 = vmatprep.subr.mxu0 %v326
    %2155 = vmatpush1.msra.mxu0 %v325
    %2156 = vmatprep.subr.mxu0 %v330
    %2157 = vmatpush1.msra.mxu0 %v329
    %2158 = vmatprep.subr.mxu0 %v334
    %2159 = vmatpush1.msra.mxu0 %v333
    %2160 = vmatprep.subr.mxu0 %v338
    %2161 = vmatpush1.msra.mxu0 %v337
    %2162 = vmatprep.subr.mxu0 %v342
    %2163 = vmatpush1.msra.mxu0 %v341
    %2164 = vmatprep.subr.mxu0 %v346
    %2165 = vmatpush1.msra.mxu0 %v345
    %2166 = vmatprep.subr.mxu0 %v350
    %2167 = vmatpush1.msra.mxu0 %v349
    %2168 = vmatprep.subr.mxu0 %v354
    %2169 = vmatpush1.msra.mxu0 %v353
    %2170 = vmatprep.subr.mxu0 %v358
    %2171 = vmatpush1.msra.mxu0 %v357
    %2172 = vmatprep.subr.mxu0 %v362
    %2173 = vmatpush1.msra.mxu0 %v361
    %2174 = vmatprep.subr.mxu0 %v366
    %2175 = vmatpush1.msra.mxu0 %v365
    %2176 = vmatprep.subr.mxu0 %v370
    %2177 = vmatpush1.msra.mxu0 %v369
    %2178 = vmatprep.subr.mxu0 %v374
    %2179 = vmatpush1.msra.mxu0 %v373
    %2180 = vmatprep.mubr.f32.mxu0 %v2113
    %2181 = vmatmul.mubr.f32.gmra.mrb[0].mxu0 %v2115
    %v2182 = vpop.f32.mrb[0].mxu0
    %v2183 = vadd.f32 %v404, %v2182
    %v2184 = vpop.f32.mrb[0].mxu0
    %v2185 = vadd.f32 %v408, %v2184
    %2186 = vdwg.mxu0
    %2187 = vmatprep.subr.mxu0 %v252
    %2188 = vmatpush1.msra.mxu0 %v251
    %2189 = vmatprep.subr.mxu0 %v256
    %2190 = vmatpush1.msra.mxu0 %v255
    %2191 = vmatprep.subr.mxu0 %v260
    %2192 = vmatpush1.msra.mxu0 %v259
    %2193 = vmatprep.subr.mxu0 %v264
    %2194 = vmatpush1.msra.mxu0 %v263
    %2195 = vmatprep.subr.mxu0 %v268
    %2196 = vmatpush1.msra.mxu0 %v267
    %2197 = vmatprep.subr.mxu0 %v272
    %2198 = vmatpush1.msra.mxu0 %v271
    %2199 = vmatprep.subr.mxu0 %v276
    %2200 = vmatpush1.msra.mxu0 %v275
    %2201 = vmatprep.subr.mxu0 %v280
    %2202 = vmatpush1.msra.mxu0 %v279
    %2203 = vmatprep.subr.mxu0 %v284
    %2204 = vmatpush1.msra.mxu0 %v283
    %2205 = vmatprep.subr.mxu0 %v288
    %2206 = vmatpush1.msra.mxu0 %v287
    %2207 = vmatprep.subr.mxu0 %v292
    %2208 = vmatpush1.msra.mxu0 %v291
    %2209 = vmatprep.subr.mxu0 %v296
    %2210 = vmatpush1.msra.mxu0 %v295
    %2211 = vmatprep.subr.mxu0 %v300
    %2212 = vmatpush1.msra.mxu0 %v299
    %2213 = vmatprep.subr.mxu0 %v304
    %2214 = vmatpush1.msra.mxu0 %v303
    %2215 = vmatprep.subr.mxu0 %v308
    %2216 = vmatpush1.msra.mxu0 %v307
    %2217 = vmatprep.subr.mxu0 %v312
    %2218 = vmatpush1.msra.mxu0 %v311
    %2219 = vmatprep.subr.mxu0 %v316
    %2220 = vmatpush1.msra.mxu0 %v315
    %2221 = vmatprep.subr.mxu0 %v320
    %2222 = vmatpush1.msra.mxu0 %v319
    %2223 = vmatprep.subr.mxu0 %v324
    %2224 = vmatpush1.msra.mxu0 %v323
    %2225 = vmatprep.subr.mxu0 %v328
    %2226 = vmatpush1.msra.mxu0 %v327
    %2227 = vmatprep.subr.mxu0 %v332
    %2228 = vmatpush1.msra.mxu0 %v331
    %2229 = vmatprep.subr.mxu0 %v336
    %2230 = vmatpush1.msra.mxu0 %v335
    %2231 = vmatprep.subr.mxu0 %v340
    %2232 = vmatpush1.msra.mxu0 %v339
    %2233 = vmatprep.subr.mxu0 %v344
    %2234 = vmatpush1.msra.mxu0 %v343
    %2235 = vmatprep.subr.mxu0 %v348
    %2236 = vmatpush1.msra.mxu0 %v347
    %2237 = vmatprep.subr.mxu0 %v352
    %2238 = vmatpush1.msra.mxu0 %v351
    %2239 = vmatprep.subr.mxu0 %v356
    %2240 = vmatpush1.msra.mxu0 %v355
    %2241 = vmatprep.subr.mxu0 %v360
    %2242 = vmatpush1.msra.mxu0 %v359
    %2243 = vmatprep.subr.mxu0 %v364
    %2244 = vmatpush1.msra.mxu0 %v363
    %2245 = vmatprep.subr.mxu0 %v368
    %2246 = vmatpush1.msra.mxu0 %v367
    %2247 = vmatprep.subr.mxu0 %v372
    %2248 = vmatpush1.msra.mxu0 %v371
    %2249 = vmatprep.subr.mxu0 %v376
    %2250 = vmatpush1.msra.mxu0 %v375
    %2251 = vmatprep.mubr.f32.mxu0 %v2113
    %2252 = vmatmul.mubr.f32.gmra.mrb[0].mxu0 %v2115
    %v2253 = vpop.f32.mrb[0].mxu0
    %v2254 = vadd.f32 %v412, %v2253
    %v2255 = vpop.f32.mrb[0].mxu0
    %v2256 = vadd.f32 %v416, %v2255
    %2257 = vdwg.mxu0
    %v2258 = vxor.u32 %v2183, 2147483648
    %v2259 = vmul.f32 %v2258, 1.442695
    %v2260 = vpow.pop %v2259
    %v2261 = vadd.f32 %v2260, 1.0
    %v2262 = vrcp.pop %v2261
    %v2263 = vmul.f32 1.0, %v2262
    %v2264 = vxor.u32 %v2185, 2147483648
    %v2265 = vmul.f32 %v2264, 1.442695
    %v2266 = vpow.pop %v2265
    %v2267 = vadd.f32 %v2266, 1.0
    %v2268 = vrcp.pop %v2267
    %v2269 = vmul.f32 1.0, %v2268
    %v2270 = vtanh.pop %v2254
    %v2271 = vxor.u32 %v2256, 2147483648
    %v2272 = vmul.f32 %v2271, 1.442695
    %v2273 = vpow.pop %v2272
    %v2274 = vadd.f32 %v2273, 1.0
    %v2275 = vrcp.pop %v2274
    %v2276 = vmul.f32 1.0, %v2275
    %v2277 = vmul.f32 %v2269, %v2111
    %v2278 = vmul.f32 %v2263, %v2270
    %v2279 = vadd.f32 %v2277, %v2278
    %v2280 = vtanh.pop %v2279
    %v2281 = vmul.f32 %v2276, %v2280
    %2282 = vst [vmem:[%s1437 + $0x8] sm:$0xff] %v2281
    %v2283 = vld [vmem:[%s1099] sm:$0xff]
    %2284 = vmatprep.subr.mxu0 %v250
    %2285 = vmatpush1.msra.mxu0 %v249
    %2286 = vmatprep.subr.mxu0 %v254
    %2287 = vmatpush1.msra.mxu0 %v253
    %2288 = vmatprep.subr.mxu0 %v258
    %2289 = vmatpush1.msra.mxu0 %v257
    %2290 = vmatprep.subr.mxu0 %v262
    %2291 = vmatpush1.msra.mxu0 %v261
    %2292 = vmatprep.subr.mxu0 %v266
    %2293 = vmatpush1.msra.mxu0 %v265
    %2294 = vmatprep.subr.mxu0 %v270
    %2295 = vmatpush1.msra.mxu0 %v269
    %2296 = vmatprep.subr.mxu0 %v274
    %2297 = vmatpush1.msra.mxu0 %v273
    %2298 = vmatprep.subr.mxu0 %v278
    %2299 = vmatpush1.msra.mxu0 %v277
    %2300 = vmatprep.subr.mxu0 %v282
    %2301 = vmatpush1.msra.mxu0 %v281
    %2302 = vmatprep.subr.mxu0 %v286
    %2303 = vmatpush1.msra.mxu0 %v285
    %2304 = vmatprep.subr.mxu0 %v290
    %2305 = vmatpush1.msra.mxu0 %v289
    %2306 = vmatprep.subr.mxu0 %v294
    %2307 = vmatpush1.msra.mxu0 %v293
    %2308 = vmatprep.subr.mxu0 %v298
    %2309 = vmatpush1.msra.mxu0 %v297
    %2310 = vmatprep.subr.mxu0 %v302
    %2311 = vmatpush1.msra.mxu0 %v301
    %2312 = vmatprep.subr.mxu0 %v306
    %2313 = vmatpush1.msra.mxu0 %v305
    %2314 = vmatprep.subr.mxu0 %v310
    %2315 = vmatpush1.msra.mxu0 %v309
    %2316 = vmatprep.subr.mxu0 %v314
    %2317 = vmatpush1.msra.mxu0 %v313
    %2318 = vmatprep.subr.mxu0 %v318
    %2319 = vmatpush1.msra.mxu0 %v317
    %2320 = vmatprep.subr.mxu0 %v322
    %2321 = vmatpush1.msra.mxu0 %v321
    %2322 = vmatprep.subr.mxu0 %v326
    %2323 = vmatpush1.msra.mxu0 %v325
    %2324 = vmatprep.subr.mxu0 %v330
    %2325 = vmatpush1.msra.mxu0 %v329
    %2326 = vmatprep.subr.mxu0 %v334
    %2327 = vmatpush1.msra.mxu0 %v333
    %2328 = vmatprep.subr.mxu0 %v338
    %2329 = vmatpush1.msra.mxu0 %v337
    %2330 = vmatprep.subr.mxu0 %v342
    %2331 = vmatpush1.msra.mxu0 %v341
    %2332 = vmatprep.subr.mxu0 %v346
    %2333 = vmatpush1.msra.mxu0 %v345
    %2334 = vmatprep.subr.mxu0 %v350
    %2335 = vmatpush1.msra.mxu0 %v349
    %2336 = vmatprep.subr.mxu0 %v354
    %2337 = vmatpush1.msra.mxu0 %v353
    %2338 = vmatprep.subr.mxu0 %v358
    %2339 = vmatpush1.msra.mxu0 %v357
    %2340 = vmatprep.subr.mxu0 %v362
    %2341 = vmatpush1.msra.mxu0 %v361
    %2342 = vmatprep.subr.mxu0 %v366
    %2343 = vmatpush1.msra.mxu0 %v365
    %2344 = vmatprep.subr.mxu0 %v370
    %2345 = vmatpush1.msra.mxu0 %v369
    %2346 = vmatprep.subr.mxu0 %v374
    %2347 = vmatpush1.msra.mxu0 %v373
    %2348 = vmatprep.mubr.f32.mxu0 %v2281
    %2349 = vmatmul.mubr.f32.gmra.mrb[0].mxu0 %v2283
    %v2350 = vpop.f32.mrb[0].mxu0
    %v2351 = vadd.f32 %v404, %v2350
    %v2352 = vpop.f32.mrb[0].mxu0
    %v2353 = vadd.f32 %v408, %v2352
    %2354 = vdwg.mxu0
    %2355 = vmatprep.subr.mxu0 %v252
    %2356 = vmatpush1.msra.mxu0 %v251
    %2357 = vmatprep.subr.mxu0 %v256
    %2358 = vmatpush1.msra.mxu0 %v255
    %2359 = vmatprep.subr.mxu0 %v260
    %2360 = vmatpush1.msra.mxu0 %v259
    %2361 = vmatprep.subr.mxu0 %v264
    %2362 = vmatpush1.msra.mxu0 %v263
    %2363 = vmatprep.subr.mxu0 %v268
    %2364 = vmatpush1.msra.mxu0 %v267
    %2365 = vmatprep.subr.mxu0 %v272
    %2366 = vmatpush1.msra.mxu0 %v271
    %2367 = vmatprep.subr.mxu0 %v276
    %2368 = vmatpush1.msra.mxu0 %v275
    %2369 = vmatprep.subr.mxu0 %v280
    %2370 = vmatpush1.msra.mxu0 %v279
    %2371 = vmatprep.subr.mxu0 %v284
    %2372 = vmatpush1.msra.mxu0 %v283
    %2373 = vmatprep.subr.mxu0 %v288
    %2374 = vmatpush1.msra.mxu0 %v287
    %2375 = vmatprep.subr.mxu0 %v292
    %2376 = vmatpush1.msra.mxu0 %v291
    %2377 = vmatprep.subr.mxu0 %v296
    %2378 = vmatpush1.msra.mxu0 %v295
    %2379 = vmatprep.subr.mxu0 %v300
    %2380 = vmatpush1.msra.mxu0 %v299
    %2381 = vmatprep.subr.mxu0 %v304
    %2382 = vmatpush1.msra.mxu0 %v303
    %2383 = vmatprep.subr.mxu0 %v308
    %2384 = vmatpush1.msra.mxu0 %v307
    %2385 = vmatprep.subr.mxu0 %v312
    %2386 = vmatpush1.msra.mxu0 %v311
    %2387 = vmatprep.subr.mxu0 %v316
    %2388 = vmatpush1.msra.mxu0 %v315
    %2389 = vmatprep.subr.mxu0 %v320
    %2390 = vmatpush1.msra.mxu0 %v319
    %2391 = vmatprep.subr.mxu0 %v324
    %2392 = vmatpush1.msra.mxu0 %v323
    %2393 = vmatprep.subr.mxu0 %v328
    %2394 = vmatpush1.msra.mxu0 %v327
    %2395 = vmatprep.subr.mxu0 %v332
    %2396 = vmatpush1.msra.mxu0 %v331
    %2397 = vmatprep.subr.mxu0 %v336
    %2398 = vmatpush1.msra.mxu0 %v335
    %2399 = vmatprep.subr.mxu0 %v340
    %2400 = vmatpush1.msra.mxu0 %v339
    %2401 = vmatprep.subr.mxu0 %v344
    %2402 = vmatpush1.msra.mxu0 %v343
    %2403 = vmatprep.subr.mxu0 %v348
    %2404 = vmatpush1.msra.mxu0 %v347
    %2405 = vmatprep.subr.mxu0 %v352
    %2406 = vmatpush1.msra.mxu0 %v351
    %2407 = vmatprep.subr.mxu0 %v356
    %2408 = vmatpush1.msra.mxu0 %v355
    %2409 = vmatprep.subr.mxu0 %v360
    %2410 = vmatpush1.msra.mxu0 %v359
    %2411 = vmatprep.subr.mxu0 %v364
    %2412 = vmatpush1.msra.mxu0 %v363
    %2413 = vmatprep.subr.mxu0 %v368
    %2414 = vmatpush1.msra.mxu0 %v367
    %2415 = vmatprep.subr.mxu0 %v372
    %2416 = vmatpush1.msra.mxu0 %v371
    %2417 = vmatprep.subr.mxu0 %v376
    %2418 = vmatpush1.msra.mxu0 %v375
    %2419 = vmatprep.mubr.f32.mxu0 %v2281
    %2420 = vmatmul.mubr.f32.gmra.mrb[0].mxu0 %v2283
    %v2421 = vpop.f32.mrb[0].mxu0
    %v2422 = vadd.f32 %v412, %v2421
    %v2423 = vpop.f32.mrb[0].mxu0
    %v2424 = vadd.f32 %v416, %v2423
    %2425 = vdwg.mxu0
    %v2426 = vxor.u32 %v2351, 2147483648
    %v2427 = vmul.f32 %v2426, 1.442695
    %v2428 = vpow.pop %v2427
    %v2429 = vadd.f32 %v2428, 1.0
    %v2430 = vrcp.pop %v2429
    %v2431 = vmul.f32 1.0, %v2430
    %v2432 = vxor.u32 %v2353, 2147483648
    %v2433 = vmul.f32 %v2432, 1.442695
    %v2434 = vpow.pop %v2433
    %v2435 = vadd.f32 %v2434, 1.0
    %v2436 = vrcp.pop %v2435
    %v2437 = vmul.f32 1.0, %v2436
    %v2438 = vtanh.pop %v2422
    %v2439 = vxor.u32 %v2424, 2147483648
    %v2440 = vmul.f32 %v2439, 1.442695
    %v2441 = vpow.pop %v2440
    %v2442 = vadd.f32 %v2441, 1.0
    %v2443 = vrcp.pop %v2442
    %v2444 = vmul.f32 1.0, %v2443
    %v2445 = vmul.f32 %v2437, %v2279
    %v2446 = vmul.f32 %v2431, %v2438
    %v2447 = vadd.f32 %v2445, %v2446
    %v2448 = vtanh.pop %v2447
    %v2449 = vmul.f32 %v2444, %v2448
    %2450 = vst [vmem:[%s1267 + $0x8] sm:$0xff] %v2449
    %v2451 = vld [vmem:[%s929] sm:$0xff]
    %2452 = vmatprep.subr.mxu0 %v250
    %2453 = vmatpush1.msra.mxu0 %v249
    %2454 = vmatprep.subr.mxu0 %v254
    %2455 = vmatpush1.msra.mxu0 %v253
    %2456 = vmatprep.subr.mxu0 %v258
    %2457 = vmatpush1.msra.mxu0 %v257
    %2458 = vmatprep.subr.mxu0 %v262
    %2459 = vmatpush1.msra.mxu0 %v261
    %2460 = vmatprep.subr.mxu0 %v266
    %2461 = vmatpush1.msra.mxu0 %v265
    %2462 = vmatprep.subr.mxu0 %v270
    %2463 = vmatpush1.msra.mxu0 %v269
    %2464 = vmatprep.subr.mxu0 %v274
    %2465 = vmatpush1.msra.mxu0 %v273
    %2466 = vmatprep.subr.mxu0 %v278
    %2467 = vmatpush1.msra.mxu0 %v277
    %2468 = vmatprep.subr.mxu0 %v282
    %2469 = vmatpush1.msra.mxu0 %v281
    %2470 = vmatprep.subr.mxu0 %v286
    %2471 = vmatpush1.msra.mxu0 %v285
    %2472 = vmatprep.subr.mxu0 %v290
    %2473 = vmatpush1.msra.mxu0 %v289
    %2474 = vmatprep.subr.mxu0 %v294
    %2475 = vmatpush1.msra.mxu0 %v293
    %2476 = vmatprep.subr.mxu0 %v298
    %2477 = vmatpush1.msra.mxu0 %v297
    %2478 = vmatprep.subr.mxu0 %v302
    %2479 = vmatpush1.msra.mxu0 %v301
    %2480 = vmatprep.subr.mxu0 %v306
    %2481 = vmatpush1.msra.mxu0 %v305
    %2482 = vmatprep.subr.mxu0 %v310
    %2483 = vmatpush1.msra.mxu0 %v309
    %2484 = vmatprep.subr.mxu0 %v314
    %2485 = vmatpush1.msra.mxu0 %v313
    %2486 = vmatprep.subr.mxu0 %v318
    %2487 = vmatpush1.msra.mxu0 %v317
    %2488 = vmatprep.subr.mxu0 %v322
    %2489 = vmatpush1.msra.mxu0 %v321
    %2490 = vmatprep.subr.mxu0 %v326
    %2491 = vmatpush1.msra.mxu0 %v325
    %2492 = vmatprep.subr.mxu0 %v330
    %2493 = vmatpush1.msra.mxu0 %v329
    %2494 = vmatprep.subr.mxu0 %v334
    %2495 = vmatpush1.msra.mxu0 %v333
    %2496 = vmatprep.subr.mxu0 %v338
    %2497 = vmatpush1.msra.mxu0 %v337
    %2498 = vmatprep.subr.mxu0 %v342
    %2499 = vmatpush1.msra.mxu0 %v341
    %2500 = vmatprep.subr.mxu0 %v346
    %2501 = vmatpush1.msra.mxu0 %v345
    %2502 = vmatprep.subr.mxu0 %v350
    %2503 = vmatpush1.msra.mxu0 %v349
    %2504 = vmatprep.subr.mxu0 %v354
    %2505 = vmatpush1.msra.mxu0 %v353
    %2506 = vmatprep.subr.mxu0 %v358
    %2507 = vmatpush1.msra.mxu0 %v357
    %2508 = vmatprep.subr.mxu0 %v362
    %2509 = vmatpush1.msra.mxu0 %v361
    %2510 = vmatprep.subr.mxu0 %v366
    %2511 = vmatpush1.msra.mxu0 %v365
    %2512 = vmatprep.subr.mxu0 %v370
    %2513 = vmatpush1.msra.mxu0 %v369
    %2514 = vmatprep.subr.mxu0 %v374
    %2515 = vmatpush1.msra.mxu0 %v373
    %2516 = vmatprep.mubr.f32.mxu0 %v2449
    %2517 = vmatmul.mubr.f32.gmra.mrb[0].mxu0 %v2451
    %v2518 = vpop.f32.mrb[0].mxu0
    %v2519 = vadd.f32 %v404, %v2518
    %v2520 = vpop.f32.mrb[0].mxu0
    %v2521 = vadd.f32 %v408, %v2520
    %2522 = vdwg.mxu0
    %2523 = vmatprep.subr.mxu0 %v252
    %2524 = vmatpush1.msra.mxu0 %v251
    %2525 = vmatprep.subr.mxu0 %v256
    %2526 = vmatpush1.msra.mxu0 %v255
    %2527 = vmatprep.subr.mxu0 %v260
    %2528 = vmatpush1.msra.mxu0 %v259
    %2529 = vmatprep.subr.mxu0 %v264
    %2530 = vmatpush1.msra.mxu0 %v263
    %2531 = vmatprep.subr.mxu0 %v268
    %2532 = vmatpush1.msra.mxu0 %v267
    %2533 = vmatprep.subr.mxu0 %v272
    %2534 = vmatpush1.msra.mxu0 %v271
    %2535 = vmatprep.subr.mxu0 %v276
    %2536 = vmatpush1.msra.mxu0 %v275
    %2537 = vmatprep.subr.mxu0 %v280
    %2538 = vmatpush1.msra.mxu0 %v279
    %2539 = vmatprep.subr.mxu0 %v284
    %2540 = vmatpush1.msra.mxu0 %v283
    %2541 = vmatprep.subr.mxu0 %v288
    %2542 = vmatpush1.msra.mxu0 %v287
    %2543 = vmatprep.subr.mxu0 %v292
    %2544 = vmatpush1.msra.mxu0 %v291
    %2545 = vmatprep.subr.mxu0 %v296
    %2546 = vmatpush1.msra.mxu0 %v295
    %2547 = vmatprep.subr.mxu0 %v300
    %2548 = vmatpush1.msra.mxu0 %v299
    %2549 = vmatprep.subr.mxu0 %v304
    %2550 = vmatpush1.msra.mxu0 %v303
    %2551 = vmatprep.subr.mxu0 %v308
    %2552 = vmatpush1.msra.mxu0 %v307
    %2553 = vmatprep.subr.mxu0 %v312
    %2554 = vmatpush1.msra.mxu0 %v311
    %2555 = vmatprep.subr.mxu0 %v316
    %2556 = vmatpush1.msra.mxu0 %v315
    %2557 = vmatprep.subr.mxu0 %v320
    %2558 = vmatpush1.msra.mxu0 %v319
    %2559 = vmatprep.subr.mxu0 %v324
    %2560 = vmatpush1.msra.mxu0 %v323
    %2561 = vmatprep.subr.mxu0 %v328
    %2562 = vmatpush1.msra.mxu0 %v327
    %2563 = vmatprep.subr.mxu0 %v332
    %2564 = vmatpush1.msra.mxu0 %v331
    %2565 = vmatprep.subr.mxu0 %v336
    %2566 = vmatpush1.msra.mxu0 %v335
    %2567 = vmatprep.subr.mxu0 %v340
    %2568 = vmatpush1.msra.mxu0 %v339
    %2569 = vmatprep.subr.mxu0 %v344
    %2570 = vmatpush1.msra.mxu0 %v343
    %2571 = vmatprep.subr.mxu0 %v348
    %2572 = vmatpush1.msra.mxu0 %v347
    %2573 = vmatprep.subr.mxu0 %v352
    %2574 = vmatpush1.msra.mxu0 %v351
    %2575 = vmatprep.subr.mxu0 %v356
    %2576 = vmatpush1.msra.mxu0 %v355
    %2577 = vmatprep.subr.mxu0 %v360
    %2578 = vmatpush1.msra.mxu0 %v359
    %2579 = vmatprep.subr.mxu0 %v364
    %2580 = vmatpush1.msra.mxu0 %v363
    %2581 = vmatprep.subr.mxu0 %v368
    %2582 = vmatpush1.msra.mxu0 %v367
    %2583 = vmatprep.subr.mxu0 %v372
    %2584 = vmatpush1.msra.mxu0 %v371
    %2585 = vmatprep.subr.mxu0 %v376
    %2586 = vmatpush1.msra.mxu0 %v375
    %2587 = vmatprep.mubr.f32.mxu0 %v2449
    %2588 = vmatmul.mubr.f32.gmra.mrb[0].mxu0 %v2451
    %v2589 = vpop.f32.mrb[0].mxu0
    %v2590 = vadd.f32 %v412, %v2589
    %v2591 = vpop.f32.mrb[0].mxu0
    %v2592 = vadd.f32 %v416, %v2591
    %2593 = vdwg.mxu0
    %v2594 = vxor.u32 %v2519, 2147483648
    %v2595 = vmul.f32 %v2594, 1.442695
    %v2596 = vpow.pop %v2595
    %v2597 = vadd.f32 %v2596, 1.0
    %v2598 = vrcp.pop %v2597
    %v2599 = vmul.f32 1.0, %v2598
    %v2600 = vxor.u32 %v2521, 2147483648
    %v2601 = vmul.f32 %v2600, 1.442695
    %v2602 = vpow.pop %v2601
    %v2603 = vadd.f32 %v2602, 1.0
    %v2604 = vrcp.pop %v2603
    %v2605 = vmul.f32 1.0, %v2604
    %v2606 = vtanh.pop %v2590
    %v2607 = vxor.u32 %v2592, 2147483648
    %v2608 = vmul.f32 %v2607, 1.442695
    %v2609 = vpow.pop %v2608
    %v2610 = vadd.f32 %v2609, 1.0
    %v2611 = vrcp.pop %v2610
    %v2612 = vmul.f32 1.0, %v2611
    %v2613 = vmul.f32 %v2605, %v2447
    %v2614 = vmul.f32 %v2599, %v2606
    %v2615 = vadd.f32 %v2613, %v2614
    %v2616 = vtanh.pop %v2615
    %v2617 = vmul.f32 %v2612, %v2616
    %2618 = vst [vmem:[%s1097 + $0x8] sm:$0xff] %v2617
    %v2619 = vld [vmem:[%s759] sm:$0xff]
    %2620 = vmatprep.subr.mxu0 %v250
    %2621 = vmatpush1.msra.mxu0 %v249
    %2622 = vmatprep.subr.mxu0 %v254
    %2623 = vmatpush1.msra.mxu0 %v253
    %2624 = vmatprep.subr.mxu0 %v258
    %2625 = vmatpush1.msra.mxu0 %v257
    %2626 = vmatprep.subr.mxu0 %v262
    %2627 = vmatpush1.msra.mxu0 %v261
    %2628 = vmatprep.subr.mxu0 %v266
    %2629 = vmatpush1.msra.mxu0 %v265
    %2630 = vmatprep.subr.mxu0 %v270
    %2631 = vmatpush1.msra.mxu0 %v269
    %2632 = vmatprep.subr.mxu0 %v274
    %2633 = vmatpush1.msra.mxu0 %v273
    %2634 = vmatprep.subr.mxu0 %v278
    %2635 = vmatpush1.msra.mxu0 %v277
    %2636 = vmatprep.subr.mxu0 %v282
    %2637 = vmatpush1.msra.mxu0 %v281
    %2638 = vmatprep.subr.mxu0 %v286
    %2639 = vmatpush1.msra.mxu0 %v285
    %2640 = vmatprep.subr.mxu0 %v290
    %2641 = vmatpush1.msra.mxu0 %v289
    %2642 = vmatprep.subr.mxu0 %v294
    %2643 = vmatpush1.msra.mxu0 %v293
    %2644 = vmatprep.subr.mxu0 %v298
    %2645 = vmatpush1.msra.mxu0 %v297
    %2646 = vmatprep.subr.mxu0 %v302
    %2647 = vmatpush1.msra.mxu0 %v301
    %2648 = vmatprep.subr.mxu0 %v306
    %2649 = vmatpush1.msra.mxu0 %v305
    %2650 = vmatprep.subr.mxu0 %v310
    %2651 = vmatpush1.msra.mxu0 %v309
    %2652 = vmatprep.subr.mxu0 %v314
    %2653 = vmatpush1.msra.mxu0 %v313
    %2654 = vmatprep.subr.mxu0 %v318
    %2655 = vmatpush1.msra.mxu0 %v317
    %2656 = vmatprep.subr.mxu0 %v322
    %2657 = vmatpush1.msra.mxu0 %v321
    %2658 = vmatprep.subr.mxu0 %v326
    %2659 = vmatpush1.msra.mxu0 %v325
    %2660 = vmatprep.subr.mxu0 %v330
    %2661 = vmatpush1.msra.mxu0 %v329
    %2662 = vmatprep.subr.mxu0 %v334
    %2663 = vmatpush1.msra.mxu0 %v333
    %2664 = vmatprep.subr.mxu0 %v338
    %2665 = vmatpush1.msra.mxu0 %v337
    %2666 = vmatprep.subr.mxu0 %v342
    %2667 = vmatpush1.msra.mxu0 %v341
    %2668 = vmatprep.subr.mxu0 %v346
    %2669 = vmatpush1.msra.mxu0 %v345
    %2670 = vmatprep.subr.mxu0 %v350
    %2671 = vmatpush1.msra.mxu0 %v349
    %2672 = vmatprep.subr.mxu0 %v354
    %2673 = vmatpush1.msra.mxu0 %v353
    %2674 = vmatprep.subr.mxu0 %v358
    %2675 = vmatpush1.msra.mxu0 %v357
    %2676 = vmatprep.subr.mxu0 %v362
    %2677 = vmatpush1.msra.mxu0 %v361
    %2678 = vmatprep.subr.mxu0 %v366
    %2679 = vmatpush1.msra.mxu0 %v365
    %2680 = vmatprep.subr.mxu0 %v370
    %2681 = vmatpush1.msra.mxu0 %v369
    %2682 = vmatprep.subr.mxu0 %v374
    %2683 = vmatpush1.msra.mxu0 %v373
    %2684 = vmatprep.mubr.f32.mxu0 %v2617
    %2685 = vmatmul.mubr.f32.gmra.mrb[0].mxu0 %v2619
    %v2686 = vpop.f32.mrb[0].mxu0
    %v2687 = vadd.f32 %v404, %v2686
    %v2688 = vpop.f32.mrb[0].mxu0
    %v2689 = vadd.f32 %v408, %v2688
    %2690 = vdwg.mxu0
    %2691 = vmatprep.subr.mxu0 %v252
    %2692 = vmatpush1.msra.mxu0 %v251
    %2693 = vmatprep.subr.mxu0 %v256
    %2694 = vmatpush1.msra.mxu0 %v255
    %2695 = vmatprep.subr.mxu0 %v260
    %2696 = vmatpush1.msra.mxu0 %v259
    %2697 = vmatprep.subr.mxu0 %v264
    %2698 = vmatpush1.msra.mxu0 %v263
    %2699 = vmatprep.subr.mxu0 %v268
    %2700 = vmatpush1.msra.mxu0 %v267
    %2701 = vmatprep.subr.mxu0 %v272
    %2702 = vmatpush1.msra.mxu0 %v271
    %2703 = vmatprep.subr.mxu0 %v276
    %2704 = vmatpush1.msra.mxu0 %v275
    %2705 = vmatprep.subr.mxu0 %v280
    %2706 = vmatpush1.msra.mxu0 %v279
    %2707 = vmatprep.subr.mxu0 %v284
    %2708 = vmatpush1.msra.mxu0 %v283
    %2709 = vmatprep.subr.mxu0 %v288
    %2710 = vmatpush1.msra.mxu0 %v287
    %2711 = vmatprep.subr.mxu0 %v292
    %2712 = vmatpush1.msra.mxu0 %v291
    %2713 = vmatprep.subr.mxu0 %v296
    %2714 = vmatpush1.msra.mxu0 %v295
    %2715 = vmatprep.subr.mxu0 %v300
    %2716 = vmatpush1.msra.mxu0 %v299
    %2717 = vmatprep.subr.mxu0 %v304
    %2718 = vmatpush1.msra.mxu0 %v303
    %2719 = vmatprep.subr.mxu0 %v308
    %2720 = vmatpush1.msra.mxu0 %v307
    %2721 = vmatprep.subr.mxu0 %v312
    %2722 = vmatpush1.msra.mxu0 %v311
    %2723 = vmatprep.subr.mxu0 %v316
    %2724 = vmatpush1.msra.mxu0 %v315
    %2725 = vmatprep.subr.mxu0 %v320
    %2726 = vmatpush1.msra.mxu0 %v319
    %2727 = vmatprep.subr.mxu0 %v324
    %2728 = vmatpush1.msra.mxu0 %v323
    %2729 = vmatprep.subr.mxu0 %v328
    %2730 = vmatpush1.msra.mxu0 %v327
    %2731 = vmatprep.subr.mxu0 %v332
    %2732 = vmatpush1.msra.mxu0 %v331
    %2733 = vmatprep.subr.mxu0 %v336
    %2734 = vmatpush1.msra.mxu0 %v335
    %2735 = vmatprep.subr.mxu0 %v340
    %2736 = vmatpush1.msra.mxu0 %v339
    %2737 = vmatprep.subr.mxu0 %v344
    %2738 = vmatpush1.msra.mxu0 %v343
    %2739 = vmatprep.subr.mxu0 %v348
    %2740 = vmatpush1.msra.mxu0 %v347
    %2741 = vmatprep.subr.mxu0 %v352
    %2742 = vmatpush1.msra.mxu0 %v351
    %2743 = vmatprep.subr.mxu0 %v356
    %2744 = vmatpush1.msra.mxu0 %v355
    %2745 = vmatprep.subr.mxu0 %v360
    %2746 = vmatpush1.msra.mxu0 %v359
    %2747 = vmatprep.subr.mxu0 %v364
    %2748 = vmatpush1.msra.mxu0 %v363
    %2749 = vmatprep.subr.mxu0 %v368
    %2750 = vmatpush1.msra.mxu0 %v367
    %2751 = vmatprep.subr.mxu0 %v372
    %2752 = vmatpush1.msra.mxu0 %v371
    %2753 = vmatprep.subr.mxu0 %v376
    %2754 = vmatpush1.msra.mxu0 %v375
    %2755 = vmatprep.mubr.f32.mxu0 %v2617
    %2756 = vmatmul.mubr.f32.gmra.mrb[0].mxu0 %v2619
    %v2757 = vpop.f32.mrb[0].mxu0
    %v2758 = vadd.f32 %v412, %v2757
    %v2759 = vpop.f32.mrb[0].mxu0
    %v2760 = vadd.f32 %v416, %v2759
    %2761 = vdwg.mxu0
    %v2762 = vxor.u32 %v2687, 2147483648
    %v2763 = vmul.f32 %v2762, 1.442695
    %v2764 = vpow.pop %v2763
    %v2765 = vadd.f32 %v2764, 1.0
    %v2766 = vrcp.pop %v2765
    %v2767 = vmul.f32 1.0, %v2766
    %v2768 = vxor.u32 %v2689, 2147483648
    %v2769 = vmul.f32 %v2768, 1.442695
    %v2770 = vpow.pop %v2769
    %v2771 = vadd.f32 %v2770, 1.0
    %v2772 = vrcp.pop %v2771
    %v2773 = vmul.f32 1.0, %v2772
    %v2774 = vtanh.pop %v2758
    %v2775 = vxor.u32 %v2760, 2147483648
    %v2776 = vmul.f32 %v2775, 1.442695
    %v2777 = vpow.pop %v2776
    %v2778 = vadd.f32 %v2777, 1.0
    %v2779 = vrcp.pop %v2778
    %v2780 = vmul.f32 1.0, %v2779
    %v2781 = vmul.f32 %v2773, %v2615
    %v2782 = vmul.f32 %v2767, %v2774
    %v2783 = vadd.f32 %v2781, %v2782
    %v2784 = vtanh.pop %v2783
    %v2785 = vmul.f32 %v2780, %v2784
    %2786 = vst [vmem:[%s927 + $0x8] sm:$0xff] %v2785
    %v2787 = vld [vmem:[%s589] sm:$0xff]
    %2788 = vmatprep.subr.mxu0 %v250
    %2789 = vmatpush1.msra.mxu0 %v249
    %2790 = vmatprep.subr.mxu0 %v254
    %2791 = vmatpush1.msra.mxu0 %v253
    %2792 = vmatprep.subr.mxu0 %v258
    %2793 = vmatpush1.msra.mxu0 %v257
    %2794 = vmatprep.subr.mxu0 %v262
    %2795 = vmatpush1.msra.mxu0 %v261
    %2796 = vmatprep.subr.mxu0 %v266
    %2797 = vmatpush1.msra.mxu0 %v265
    %2798 = vmatprep.subr.mxu0 %v270
    %2799 = vmatpush1.msra.mxu0 %v269
    %2800 = vmatprep.subr.mxu0 %v274
    %2801 = vmatpush1.msra.mxu0 %v273
    %2802 = vmatprep.subr.mxu0 %v278
    %2803 = vmatpush1.msra.mxu0 %v277
    %2804 = vmatprep.subr.mxu0 %v282
    %2805 = vmatpush1.msra.mxu0 %v281
    %2806 = vmatprep.subr.mxu0 %v286
    %2807 = vmatpush1.msra.mxu0 %v285
    %2808 = vmatprep.subr.mxu0 %v290
    %2809 = vmatpush1.msra.mxu0 %v289
    %2810 = vmatprep.subr.mxu0 %v294
    %2811 = vmatpush1.msra.mxu0 %v293
    %2812 = vmatprep.subr.mxu0 %v298
    %2813 = vmatpush1.msra.mxu0 %v297
    %2814 = vmatprep.subr.mxu0 %v302
    %2815 = vmatpush1.msra.mxu0 %v301
    %2816 = vmatprep.subr.mxu0 %v306
    %2817 = vmatpush1.msra.mxu0 %v305
    %2818 = vmatprep.subr.mxu0 %v310
    %2819 = vmatpush1.msra.mxu0 %v309
    %2820 = vmatprep.subr.mxu0 %v314
    %2821 = vmatpush1.msra.mxu0 %v313
    %2822 = vmatprep.subr.mxu0 %v318
    %2823 = vmatpush1.msra.mxu0 %v317
    %2824 = vmatprep.subr.mxu0 %v322
    %2825 = vmatpush1.msra.mxu0 %v321
    %2826 = vmatprep.subr.mxu0 %v326
    %2827 = vmatpush1.msra.mxu0 %v325
    %2828 = vmatprep.subr.mxu0 %v330
    %2829 = vmatpush1.msra.mxu0 %v329
    %2830 = vmatprep.subr.mxu0 %v334
    %2831 = vmatpush1.msra.mxu0 %v333
    %2832 = vmatprep.subr.mxu0 %v338
    %2833 = vmatpush1.msra.mxu0 %v337
    %2834 = vmatprep.subr.mxu0 %v342
    %2835 = vmatpush1.msra.mxu0 %v341
    %2836 = vmatprep.subr.mxu0 %v346
    %2837 = vmatpush1.msra.mxu0 %v345
    %2838 = vmatprep.subr.mxu0 %v350
    %2839 = vmatpush1.msra.mxu0 %v349
    %2840 = vmatprep.subr.mxu0 %v354
    %2841 = vmatpush1.msra.mxu0 %v353
    %2842 = vmatprep.subr.mxu0 %v358
    %2843 = vmatpush1.msra.mxu0 %v357
    %2844 = vmatprep.subr.mxu0 %v362
    %2845 = vmatpush1.msra.mxu0 %v361
    %2846 = vmatprep.subr.mxu0 %v366
    %2847 = vmatpush1.msra.mxu0 %v365
    %2848 = vmatprep.subr.mxu0 %v370
    %2849 = vmatpush1.msra.mxu0 %v369
    %2850 = vmatprep.subr.mxu0 %v374
    %2851 = vmatpush1.msra.mxu0 %v373
    %2852 = vmatprep.mubr.f32.mxu0 %v2785
    %2853 = vmatmul.mubr.f32.gmra.mrb[0].mxu0 %v2787
    %v2854 = vpop.f32.mrb[0].mxu0
    %v2855 = vadd.f32 %v404, %v2854
    %v2856 = vpop.f32.mrb[0].mxu0
    %v2857 = vadd.f32 %v408, %v2856
    %2858 = vdwg.mxu0
    %2859 = vmatprep.subr.mxu0 %v252
    %2860 = vmatpush1.msra.mxu0 %v251
    %2861 = vmatprep.subr.mxu0 %v256
    %2862 = vmatpush1.msra.mxu0 %v255
    %2863 = vmatprep.subr.mxu0 %v260
    %2864 = vmatpush1.msra.mxu0 %v259
    %2865 = vmatprep.subr.mxu0 %v264
    %2866 = vmatpush1.msra.mxu0 %v263
    %2867 = vmatprep.subr.mxu0 %v268
    %2868 = vmatpush1.msra.mxu0 %v267
    %2869 = vmatprep.subr.mxu0 %v272
    %2870 = vmatpush1.msra.mxu0 %v271
    %2871 = vmatprep.subr.mxu0 %v276
    %2872 = vmatpush1.msra.mxu0 %v275
    %2873 = vmatprep.subr.mxu0 %v280
    %2874 = vmatpush1.msra.mxu0 %v279
    %2875 = vmatprep.subr.mxu0 %v284
    %2876 = vmatpush1.msra.mxu0 %v283
    %2877 = vmatprep.subr.mxu0 %v288
    %2878 = vmatpush1.msra.mxu0 %v287
    %2879 = vmatprep.subr.mxu0 %v292
    %2880 = vmatpush1.msra.mxu0 %v291
    %2881 = vmatprep.subr.mxu0 %v296
    %2882 = vmatpush1.msra.mxu0 %v295
    %2883 = vmatprep.subr.mxu0 %v300
    %2884 = vmatpush1.msra.mxu0 %v299
    %2885 = vmatprep.subr.mxu0 %v304
    %2886 = vmatpush1.msra.mxu0 %v303
    %2887 = vmatprep.subr.mxu0 %v308
    %2888 = vmatpush1.msra.mxu0 %v307
    %2889 = vmatprep.subr.mxu0 %v312
    %2890 = vmatpush1.msra.mxu0 %v311
    %2891 = vmatprep.subr.mxu0 %v316
    %2892 = vmatpush1.msra.mxu0 %v315
    %2893 = vmatprep.subr.mxu0 %v320
    %2894 = vmatpush1.msra.mxu0 %v319
    %2895 = vmatprep.subr.mxu0 %v324
    %2896 = vmatpush1.msra.mxu0 %v323
    %2897 = vmatprep.subr.mxu0 %v328
    %2898 = vmatpush1.msra.mxu0 %v327
    %2899 = vmatprep.subr.mxu0 %v332
    %2900 = vmatpush1.msra.mxu0 %v331
    %2901 = vmatprep.subr.mxu0 %v336
    %2902 = vmatpush1.msra.mxu0 %v335
    %2903 = vmatprep.subr.mxu0 %v340
    %2904 = vmatpush1.msra.mxu0 %v339
    %2905 = vmatprep.subr.mxu0 %v344
    %2906 = vmatpush1.msra.mxu0 %v343
    %2907 = vmatprep.subr.mxu0 %v348
    %2908 = vmatpush1.msra.mxu0 %v347
    %2909 = vmatprep.subr.mxu0 %v352
    %2910 = vmatpush1.msra.mxu0 %v351
    %2911 = vmatprep.subr.mxu0 %v356
    %2912 = vmatpush1.msra.mxu0 %v355
    %2913 = vmatprep.subr.mxu0 %v360
    %2914 = vmatpush1.msra.mxu0 %v359
    %2915 = vmatprep.subr.mxu0 %v364
    %2916 = vmatpush1.msra.mxu0 %v363
    %2917 = vmatprep.subr.mxu0 %v368
    %2918 = vmatpush1.msra.mxu0 %v367
    %2919 = vmatprep.subr.mxu0 %v372
    %2920 = vmatpush1.msra.mxu0 %v371
    %2921 = vmatprep.subr.mxu0 %v376
    %2922 = vmatpush1.msra.mxu0 %v375
    %2923 = vmatprep.mubr.f32.mxu0 %v2785
    %2924 = vmatmul.mubr.f32.gmra.mrb[0].mxu0 %v2787
    %v2925 = vpop.f32.mrb[0].mxu0
    %v2926 = vadd.f32 %v412, %v2925
    %v2927 = vpop.f32.mrb[0].mxu0
    %v2928 = vadd.f32 %v416, %v2927
    %2929 = vdwg.mxu0
    %v2930 = vxor.u32 %v2855, 2147483648
    %v2931 = vmul.f32 %v2930, 1.442695
    %v2932 = vpow.pop %v2931
    %v2933 = vadd.f32 %v2932, 1.0
    %v2934 = vrcp.pop %v2933
    %v2935 = vmul.f32 1.0, %v2934
    %v2936 = vxor.u32 %v2857, 2147483648
    %v2937 = vmul.f32 %v2936, 1.442695
    %v2938 = vpow.pop %v2937
    %v2939 = vadd.f32 %v2938, 1.0
    %v2940 = vrcp.pop %v2939
    %v2941 = vmul.f32 1.0, %v2940
    %v2942 = vtanh.pop %v2926
    %v2943 = vxor.u32 %v2928, 2147483648
    %v2944 = vmul.f32 %v2943, 1.442695
    %v2945 = vpow.pop %v2944
    %v2946 = vadd.f32 %v2945, 1.0
    %v2947 = vrcp.pop %v2946
    %v2948 = vmul.f32 1.0, %v2947
    %v2949 = vmul.f32 %v2941, %v2783
    %v2950 = vmul.f32 %v2935, %v2942
    %v2951 = vadd.f32 %v2949, %v2950
    %v2952 = vtanh.pop %v2951
    %v2953 = vmul.f32 %v2948, %v2952
    %2954 = vst [vmem:[%s757 + $0x8] sm:$0xff] %v2953
    %v2955 = vld [vmem:[#allocation4] sm:$0xff]
    %2956 = vmatprep.subr.mxu0 %v250
    %2957 = vmatpush1.msra.mxu0 %v249
    %2958 = vmatprep.subr.mxu0 %v254
    %2959 = vmatpush1.msra.mxu0 %v253
    %2960 = vmatprep.subr.mxu0 %v258
    %2961 = vmatpush1.msra.mxu0 %v257
    %2962 = vmatprep.subr.mxu0 %v262
    %2963 = vmatpush1.msra.mxu0 %v261
    %2964 = vmatprep.subr.mxu0 %v266
    %2965 = vmatpush1.msra.mxu0 %v265
    %2966 = vmatprep.subr.mxu0 %v270
    %2967 = vmatpush1.msra.mxu0 %v269
    %2968 = vmatprep.subr.mxu0 %v274
    %2969 = vmatpush1.msra.mxu0 %v273
    %2970 = vmatprep.subr.mxu0 %v278
    %2971 = vmatpush1.msra.mxu0 %v277
    %2972 = vmatprep.subr.mxu0 %v282
    %2973 = vmatpush1.msra.mxu0 %v281
    %2974 = vmatprep.subr.mxu0 %v286
    %2975 = vmatpush1.msra.mxu0 %v285
    %2976 = vmatprep.subr.mxu0 %v290
    %2977 = vmatpush1.msra.mxu0 %v289
    %2978 = vmatprep.subr.mxu0 %v294
    %2979 = vmatpush1.msra.mxu0 %v293
    %2980 = vmatprep.subr.mxu0 %v298
    %2981 = vmatpush1.msra.mxu0 %v297
    %2982 = vmatprep.subr.mxu0 %v302
    %2983 = vmatpush1.msra.mxu0 %v301
    %2984 = vmatprep.subr.mxu0 %v306
    %2985 = vmatpush1.msra.mxu0 %v305
    %2986 = vmatprep.subr.mxu0 %v310
    %2987 = vmatpush1.msra.mxu0 %v309
    %2988 = vmatprep.subr.mxu0 %v314
    %2989 = vmatpush1.msra.mxu0 %v313
    %2990 = vmatprep.subr.mxu0 %v318
    %2991 = vmatpush1.msra.mxu0 %v317
    %2992 = vmatprep.subr.mxu0 %v322
    %2993 = vmatpush1.msra.mxu0 %v321
    %2994 = vmatprep.subr.mxu0 %v326
    %2995 = vmatpush1.msra.mxu0 %v325
    %2996 = vmatprep.subr.mxu0 %v330
    %2997 = vmatpush1.msra.mxu0 %v329
    %2998 = vmatprep.subr.mxu0 %v334
    %2999 = vmatpush1.msra.mxu0 %v333
    %3000 = vmatprep.subr.mxu0 %v338
    %3001 = vmatpush1.msra.mxu0 %v337
    %3002 = vmatprep.subr.mxu0 %v342
    %3003 = vmatpush1.msra.mxu0 %v341
    %3004 = vmatprep.subr.mxu0 %v346
    %3005 = vmatpush1.msra.mxu0 %v345
    %3006 = vmatprep.subr.mxu0 %v350
    %3007 = vmatpush1.msra.mxu0 %v349
    %3008 = vmatprep.subr.mxu0 %v354
    %3009 = vmatpush1.msra.mxu0 %v353
    %3010 = vmatprep.subr.mxu0 %v358
    %3011 = vmatpush1.msra.mxu0 %v357
    %3012 = vmatprep.subr.mxu0 %v362
    %3013 = vmatpush1.msra.mxu0 %v361
    %3014 = vmatprep.subr.mxu0 %v366
    %3015 = vmatpush1.msra.mxu0 %v365
    %3016 = vmatprep.subr.mxu0 %v370
    %3017 = vmatpush1.msra.mxu0 %v369
    %3018 = vmatprep.subr.mxu0 %v374
    %3019 = vmatpush1.msra.mxu0 %v373
    %3020 = vmatprep.mubr.f32.mxu0 %v2953
    %3021 = vmatmul.mubr.f32.gmra.mrb[0].mxu0 %v2955
    %v3022 = vpop.f32.mrb[0].mxu0
    %v3023 = vadd.f32 %v404, %v3022
    %v3024 = vpop.f32.mrb[0].mxu0
    %v3025 = vadd.f32 %v408, %v3024
    %3026 = vdwg.mxu0
    %3027 = vmatprep.subr.mxu0 %v252
    %3028 = vmatpush1.msra.mxu0 %v251
    %3029 = vmatprep.subr.mxu0 %v256
    %3030 = vmatpush1.msra.mxu0 %v255
    %3031 = vmatprep.subr.mxu0 %v260
    %3032 = vmatpush1.msra.mxu0 %v259
    %3033 = vmatprep.subr.mxu0 %v264
    %3034 = vmatpush1.msra.mxu0 %v263
    %3035 = vmatprep.subr.mxu0 %v268
    %3036 = vmatpush1.msra.mxu0 %v267
    %3037 = vmatprep.subr.mxu0 %v272
    %3038 = vmatpush1.msra.mxu0 %v271
    %3039 = vmatprep.subr.mxu0 %v276
    %3040 = vmatpush1.msra.mxu0 %v275
    %3041 = vmatprep.subr.mxu0 %v280
    %3042 = vmatpush1.msra.mxu0 %v279
    %3043 = vmatprep.subr.mxu0 %v284
    %3044 = vmatpush1.msra.mxu0 %v283
    %3045 = vmatprep.subr.mxu0 %v288
    %3046 = vmatpush1.msra.mxu0 %v287
    %3047 = vmatprep.subr.mxu0 %v292
    %3048 = vmatpush1.msra.mxu0 %v291
    %3049 = vmatprep.subr.mxu0 %v296
    %3050 = vmatpush1.msra.mxu0 %v295
    %3051 = vmatprep.subr.mxu0 %v300
    %3052 = vmatpush1.msra.mxu0 %v299
    %3053 = vmatprep.subr.mxu0 %v304
    %3054 = vmatpush1.msra.mxu0 %v303
    %3055 = vmatprep.subr.mxu0 %v308
    %3056 = vmatpush1.msra.mxu0 %v307
    %3057 = vmatprep.subr.mxu0 %v312
    %3058 = vmatpush1.msra.mxu0 %v311
    %3059 = vmatprep.subr.mxu0 %v316
    %3060 = vmatpush1.msra.mxu0 %v315
    %3061 = vmatprep.subr.mxu0 %v320
    %3062 = vmatpush1.msra.mxu0 %v319
    %3063 = vmatprep.subr.mxu0 %v324
    %3064 = vmatpush1.msra.mxu0 %v323
    %3065 = vmatprep.subr.mxu0 %v328
    %3066 = vmatpush1.msra.mxu0 %v327
    %3067 = vmatprep.subr.mxu0 %v332
    %3068 = vmatpush1.msra.mxu0 %v331
    %3069 = vmatprep.subr.mxu0 %v336
    %3070 = vmatpush1.msra.mxu0 %v335
    %3071 = vmatprep.subr.mxu0 %v340
    %3072 = vmatpush1.msra.mxu0 %v339
    %3073 = vmatprep.subr.mxu0 %v344
    %3074 = vmatpush1.msra.mxu0 %v343
    %3075 = vmatprep.subr.mxu0 %v348
    %3076 = vmatpush1.msra.mxu0 %v347
    %3077 = vmatprep.subr.mxu0 %v352
    %3078 = vmatpush1.msra.mxu0 %v351
    %3079 = vmatprep.subr.mxu0 %v356
    %3080 = vmatpush1.msra.mxu0 %v355
    %3081 = vmatprep.subr.mxu0 %v360
    %3082 = vmatpush1.msra.mxu0 %v359
    %3083 = vmatprep.subr.mxu0 %v364
    %3084 = vmatpush1.msra.mxu0 %v363
    %3085 = vmatprep.subr.mxu0 %v368
    %3086 = vmatpush1.msra.mxu0 %v367
    %3087 = vmatprep.subr.mxu0 %v372
    %3088 = vmatpush1.msra.mxu0 %v371
    %3089 = vmatprep.subr.mxu0 %v376
    %3090 = vmatpush1.msra.mxu0 %v375
    %3091 = vmatprep.mubr.f32.mxu0 %v2953
    %3092 = vmatmul.mubr.f32.gmra.mrb[0].mxu0 %v2955
    %v3093 = vpop.f32.mrb[0].mxu0
    %v3094 = vadd.f32 %v412, %v3093
    %v3095 = vpop.f32.mrb[0].mxu0
    %v3096 = vadd.f32 %v416, %v3095
    %3097 = vdwg.mxu0
    %v3098 = vxor.u32 %v3023, 2147483648
    %v3099 = vmul.f32 %v3098, 1.442695
    %v3100 = vpow.pop %v3099
    %v3101 = vadd.f32 %v3100, 1.0
    %v3102 = vrcp.pop %v3101
    %v3103 = vmul.f32 1.0, %v3102
    %v3104 = vxor.u32 %v3025, 2147483648
    %v3105 = vmul.f32 %v3104, 1.442695
    %v3106 = vpow.pop %v3105
    %v3107 = vadd.f32 %v3106, 1.0
    %v3108 = vrcp.pop %v3107
    %v3109 = vmul.f32 1.0, %v3108
    %v3110 = vtanh.pop %v3094
    %v3111 = vxor.u32 %v3096, 2147483648
    %v3112 = vmul.f32 %v3111, 1.442695
    %v3113 = vpow.pop %v3112
    %v3114 = vadd.f32 %v3113, 1.0
    %v3115 = vrcp.pop %v3114
    %v3116 = vmul.f32 1.0, %v3115
    %v3117 = vmul.f32 %v3109, %v2951
    %v3118 = vmul.f32 %v3103, %v3110
    %v3119 = vadd.f32 %v3117, %v3118
    %v3120 = vtanh.pop %v3119
    %v3121 = vmul.f32 %v3116, %v3120
    %3122 = vst [vmem:[#allocation2 + $0x8] sm:$0xff] %v3121
    %v3123 = vld [vmem:[#allocation10] sm:$0xff]
    %v3124 = vld [vmem:[#allocation10 + $0x8] sm:$0xff]
    %v3125 = vld [vmem:[#allocation10 + $0x10] sm:$0xff]
    %v3126 = vld [vmem:[#allocation10 + $0x18] sm:$0xff]
    %v3127 = vld [vmem:[#allocation10 + $0x20] sm:$0xff]
    %v3128 = vld [vmem:[#allocation10 + $0x28] sm:$0xff]
    %v3129 = vld [vmem:[#allocation10 + $0x30] sm:$0xff]
    %v3130 = vld [vmem:[#allocation10 + $0x38] sm:$0xff]
    %v3131 = vld [vmem:[#allocation10 + $0x40] sm:$0xff]
    %v3132 = vld [vmem:[#allocation10 + $0x48] sm:$0xff]
    %v3133 = vld [vmem:[#allocation10 + $0x50] sm:$0xff]
    %v3134 = vld [vmem:[#allocation10 + $0x58] sm:$0xff]
    %v3135 = vld [vmem:[#allocation10 + $0x60] sm:$0xff]
    %v3136 = vld [vmem:[#allocation10 + $0x68] sm:$0xff]
    %v3137 = vld [vmem:[#allocation10 + $0x70] sm:$0xff]
    %v3138 = vld [vmem:[#allocation10 + $0x78] sm:$0xff]
    %v3139 = vld [vmem:[#allocation10 + $0x80] sm:$0xff]
    %v3140 = vld [vmem:[#allocation10 + $0x88] sm:$0xff]
    %v3141 = vld [vmem:[#allocation10 + $0x90] sm:$0xff]
    %v3142 = vld [vmem:[#allocation10 + $0x98] sm:$0xff]
    %v3143 = vld [vmem:[#allocation10 + $0xa0] sm:$0xff]
    %v3144 = vld [vmem:[#allocation10 + $0xa8] sm:$0xff]
    %v3145 = vld [vmem:[#allocation10 + $0xb0] sm:$0xff]
    %v3146 = vld [vmem:[#allocation10 + $0xb8] sm:$0xff]
    %v3147 = vld [vmem:[#allocation10 + $0xc0] sm:$0xff]
    %v3148 = vld [vmem:[#allocation10 + $0xc8] sm:$0xff]
    %v3149 = vld [vmem:[#allocation10 + $0xd0] sm:$0xff]
    %v3150 = vld [vmem:[#allocation10 + $0xd8] sm:$0xff]
    %v3151 = vld [vmem:[#allocation10 + $0xe0] sm:$0xff]
    %v3152 = vld [vmem:[#allocation10 + $0xe8] sm:$0xff]
    %v3153 = vld [vmem:[#allocation10 + $0xf0] sm:$0xff]
    %v3154 = vld [vmem:[#allocation10 + $0xf8] sm:$0xff]
    %v3155 = vld [vmem:[#allocation10 + $0x100] sm:$0xff]
    %v3156 = vld [vmem:[#allocation10 + $0x108] sm:$0xff]
    %v3157 = vld [vmem:[#allocation10 + $0x110] sm:$0xff]
    %v3158 = vld [vmem:[#allocation10 + $0x118] sm:$0xff]
    %v3159 = vld [vmem:[#allocation10 + $0x120] sm:$0xff]
    %v3160 = vld [vmem:[#allocation10 + $0x128] sm:$0xff]
    %v3161 = vld [vmem:[#allocation10 + $0x130] sm:$0xff]
    %v3162 = vld [vmem:[#allocation10 + $0x138] sm:$0xff]
    %v3163 = vld [vmem:[#allocation10 + $0x140] sm:$0xff]
    %v3164 = vld [vmem:[#allocation10 + $0x148] sm:$0xff]
    %v3165 = vld [vmem:[#allocation10 + $0x150] sm:$0xff]
    %v3166 = vld [vmem:[#allocation10 + $0x158] sm:$0xff]
    %v3167 = vld [vmem:[#allocation10 + $0x160] sm:$0xff]
    %v3168 = vld [vmem:[#allocation10 + $0x168] sm:$0xff]
    %v3169 = vld [vmem:[#allocation10 + $0x170] sm:$0xff]
    %v3170 = vld [vmem:[#allocation10 + $0x178] sm:$0xff]
    %v3171 = vld [vmem:[#allocation10 + $0x180] sm:$0xff]
    %v3172 = vld [vmem:[#allocation10 + $0x188] sm:$0xff]
    %v3173 = vld [vmem:[#allocation10 + $0x190] sm:$0xff]
    %v3174 = vld [vmem:[#allocation10 + $0x198] sm:$0xff]
    %v3175 = vld [vmem:[#allocation10 + $0x1a0] sm:$0xff]
    %v3176 = vld [vmem:[#allocation10 + $0x1a8] sm:$0xff]
    %v3177 = vld [vmem:[#allocation10 + $0x1b0] sm:$0xff]
    %v3178 = vld [vmem:[#allocation10 + $0x1b8] sm:$0xff]
    %v3179 = vld [vmem:[#allocation10 + $0x1c0] sm:$0xff]
    %v3180 = vld [vmem:[#allocation10 + $0x1c8] sm:$0xff]
    %v3181 = vld [vmem:[#allocation10 + $0x1d0] sm:$0xff]
    %v3182 = vld [vmem:[#allocation10 + $0x1d8] sm:$0xff]
    %v3183 = vld [vmem:[#allocation10 + $0x1e0] sm:$0xff]
    %v3184 = vld [vmem:[#allocation10 + $0x1e8] sm:$0xff]
    %v3185 = vld [vmem:[#allocation10 + $0x1f0] sm:$0xff]
    %v3186 = vld [vmem:[#allocation10 + $0x1f8] sm:$0xff]
    %v3187 = vld [vmem:[#allocation10 + $0x200] sm:$0xff]
    %v3188 = vld [vmem:[#allocation10 + $0x208] sm:$0xff]
    %v3189 = vld [vmem:[#allocation10 + $0x210] sm:$0xff]
    %v3190 = vld [vmem:[#allocation10 + $0x218] sm:$0xff]
    %v3191 = vld [vmem:[#allocation10 + $0x220] sm:$0xff]
    %v3192 = vld [vmem:[#allocation10 + $0x228] sm:$0xff]
    %v3193 = vld [vmem:[#allocation10 + $0x230] sm:$0xff]
    %v3194 = vld [vmem:[#allocation10 + $0x238] sm:$0xff]
    %v3195 = vld [vmem:[#allocation10 + $0x240] sm:$0xff]
    %v3196 = vld [vmem:[#allocation10 + $0x248] sm:$0xff]
    %v3197 = vld [vmem:[#allocation10 + $0x250] sm:$0xff]
    %v3198 = vld [vmem:[#allocation10 + $0x258] sm:$0xff]
    %v3199 = vld [vmem:[#allocation10 + $0x260] sm:$0xff]
    %v3200 = vld [vmem:[#allocation10 + $0x268] sm:$0xff]
    %v3201 = vld [vmem:[#allocation10 + $0x270] sm:$0xff]
    %v3202 = vld [vmem:[#allocation10 + $0x278] sm:$0xff]
    %v3203 = vld [vmem:[#allocation10 + $0x280] sm:$0xff]
    %v3204 = vld [vmem:[#allocation10 + $0x288] sm:$0xff]
    %v3205 = vld [vmem:[#allocation10 + $0x290] sm:$0xff]
    %v3206 = vld [vmem:[#allocation10 + $0x298] sm:$0xff]
    %v3207 = vld [vmem:[#allocation10 + $0x2a0] sm:$0xff]
    %v3208 = vld [vmem:[#allocation10 + $0x2a8] sm:$0xff]
    %v3209 = vld [vmem:[#allocation10 + $0x2b0] sm:$0xff]
    %v3210 = vld [vmem:[#allocation10 + $0x2b8] sm:$0xff]
    %v3211 = vld [vmem:[#allocation10 + $0x2c0] sm:$0xff]
    %v3212 = vld [vmem:[#allocation10 + $0x2c8] sm:$0xff]
    %v3213 = vld [vmem:[#allocation10 + $0x2d0] sm:$0xff]
    %v3214 = vld [vmem:[#allocation10 + $0x2d8] sm:$0xff]
    %v3215 = vld [vmem:[#allocation10 + $0x2e0] sm:$0xff]
    %v3216 = vld [vmem:[#allocation10 + $0x2e8] sm:$0xff]
    %v3217 = vld [vmem:[#allocation10 + $0x2f0] sm:$0xff]
    %v3218 = vld [vmem:[#allocation10 + $0x2f8] sm:$0xff]
    %v3219 = vld [vmem:[#allocation10 + $0x300] sm:$0xff]
    %v3220 = vld [vmem:[#allocation10 + $0x308] sm:$0xff]
    %v3221 = vld [vmem:[#allocation10 + $0x310] sm:$0xff]
    %v3222 = vld [vmem:[#allocation10 + $0x318] sm:$0xff]
    %v3223 = vld [vmem:[#allocation10 + $0x320] sm:$0xff]
    %v3224 = vld [vmem:[#allocation10 + $0x328] sm:$0xff]
    %v3225 = vld [vmem:[#allocation10 + $0x330] sm:$0xff]
    %v3226 = vld [vmem:[#allocation10 + $0x338] sm:$0xff]
    %v3227 = vld [vmem:[#allocation10 + $0x340] sm:$0xff]
    %v3228 = vld [vmem:[#allocation10 + $0x348] sm:$0xff]
    %v3229 = vld [vmem:[#allocation10 + $0x350] sm:$0xff]
    %v3230 = vld [vmem:[#allocation10 + $0x358] sm:$0xff]
    %v3231 = vld [vmem:[#allocation10 + $0x360] sm:$0xff]
    %v3232 = vld [vmem:[#allocation10 + $0x368] sm:$0xff]
    %v3233 = vld [vmem:[#allocation10 + $0x370] sm:$0xff]
    %v3234 = vld [vmem:[#allocation10 + $0x378] sm:$0xff]
    %v3235 = vld [vmem:[#allocation10 + $0x380] sm:$0xff]
    %v3236 = vld [vmem:[#allocation10 + $0x388] sm:$0xff]
    %v3237 = vld [vmem:[#allocation10 + $0x390] sm:$0xff]
    %v3238 = vld [vmem:[#allocation10 + $0x398] sm:$0xff]
    %v3239 = vld [vmem:[#allocation10 + $0x3a0] sm:$0xff]
    %v3240 = vld [vmem:[#allocation10 + $0x3a8] sm:$0xff]
    %v3241 = vld [vmem:[#allocation10 + $0x3b0] sm:$0xff]
    %v3242 = vld [vmem:[#allocation10 + $0x3b8] sm:$0xff]
    %v3243 = vld [vmem:[#allocation10 + $0x3c0] sm:$0xff]
    %v3244 = vld [vmem:[#allocation10 + $0x3c8] sm:$0xff]
    %v3245 = vld [vmem:[#allocation10 + $0x3d0] sm:$0xff]
    %v3246 = vld [vmem:[#allocation10 + $0x3d8] sm:$0xff]
    %v3247 = vld [vmem:[#allocation10 + $0x3e0] sm:$0xff]
    %v3248 = vld [vmem:[#allocation10 + $0x3e8] sm:$0xff]
    %v3249 = vld [vmem:[#allocation10 + $0x3f0] sm:$0xff]
    %v3250 = vld [vmem:[#allocation10 + $0x3f8] sm:$0xff]
    %v3251 = vld [vmem:[#allocation10 + $0x400] sm:$0xff]
    %v3252 = vld [vmem:[#allocation10 + $0x408] sm:$0xff]
    %v3253 = vld [vmem:[#allocation10 + $0x410] sm:$0xff]
    %v3254 = vld [vmem:[#allocation10 + $0x418] sm:$0xff]
    %v3255 = vld [vmem:[#allocation10 + $0x420] sm:$0xff]
    %v3256 = vld [vmem:[#allocation10 + $0x428] sm:$0xff]
    %v3257 = vld [vmem:[#allocation10 + $0x430] sm:$0xff]
    %v3258 = vld [vmem:[#allocation10 + $0x438] sm:$0xff]
    %v3259 = vld [vmem:[#allocation10 + $0x440] sm:$0xff]
    %v3260 = vld [vmem:[#allocation10 + $0x448] sm:$0xff]
    %v3261 = vld [vmem:[#allocation10 + $0x450] sm:$0xff]
    %v3262 = vld [vmem:[#allocation10 + $0x458] sm:$0xff]
    %v3263 = vld [vmem:[#allocation10 + $0x460] sm:$0xff]
    %v3264 = vld [vmem:[#allocation10 + $0x468] sm:$0xff]
    %v3265 = vld [vmem:[#allocation10 + $0x470] sm:$0xff]
    %v3266 = vld [vmem:[#allocation10 + $0x478] sm:$0xff]
    %v3267 = vld [vmem:[#allocation10 + $0x480] sm:$0xff]
    %v3268 = vld [vmem:[#allocation10 + $0x488] sm:$0xff]
    %v3269 = vld [vmem:[#allocation10 + $0x490] sm:$0xff]
    %v3270 = vld [vmem:[#allocation10 + $0x498] sm:$0xff]
    %v3271 = vld [vmem:[#allocation10 + $0x4a0] sm:$0xff]
    %v3272 = vld [vmem:[#allocation10 + $0x4a8] sm:$0xff]
    %v3273 = vld [vmem:[#allocation10 + $0x4b0] sm:$0xff]
    %v3274 = vld [vmem:[#allocation10 + $0x4b8] sm:$0xff]
    %v3275 = vld [vmem:[#allocation10 + $0x4c0] sm:$0xff]
    %v3276 = vld [vmem:[#allocation10 + $0x4c8] sm:$0xff]
    %v3277 = vld [vmem:[#allocation10 + $0x4d0] sm:$0xff]
    %v3278 = vld [vmem:[#allocation10 + $0x4d8] sm:$0xff]
    %v3279 = vld [vmem:[#allocation10 + $0x4e0] sm:$0xff]
    %v3280 = vld [vmem:[#allocation10 + $0x4e8] sm:$0xff]
    %v3281 = vld [vmem:[#allocation10 + $0x4f0] sm:$0xff]
    %v3282 = vld [vmem:[#allocation10 + $0x4f8] sm:$0xff]
    %v3283 = vld [vmem:[#allocation10 + $0x500] sm:$0xff]
    %v3284 = vld [vmem:[#allocation10 + $0x508] sm:$0xff]
    %v3285 = vld [vmem:[#allocation10 + $0x510] sm:$0xff]
    %v3286 = vld [vmem:[#allocation10 + $0x518] sm:$0xff]
    %v3287 = vld [vmem:[#allocation10 + $0x520] sm:$0xff]
    %v3288 = vld [vmem:[#allocation10 + $0x528] sm:$0xff]
    %v3289 = vld [vmem:[#allocation10 + $0x530] sm:$0xff]
    %v3290 = vld [vmem:[#allocation10 + $0x538] sm:$0xff]
    %v3291 = vld [vmem:[#allocation10 + $0x540] sm:$0xff]
    %v3292 = vld [vmem:[#allocation10 + $0x548] sm:$0xff]
    %v3293 = vld [vmem:[#allocation10 + $0x550] sm:$0xff]
    %v3294 = vld [vmem:[#allocation10 + $0x558] sm:$0xff]
    %v3295 = vld [vmem:[#allocation10 + $0x560] sm:$0xff]
    %v3296 = vld [vmem:[#allocation10 + $0x568] sm:$0xff]
    %v3297 = vld [vmem:[#allocation10 + $0x570] sm:$0xff]
    %v3298 = vld [vmem:[#allocation10 + $0x578] sm:$0xff]
    %v3299 = vld [vmem:[#allocation10 + $0x580] sm:$0xff]
    %v3300 = vld [vmem:[#allocation10 + $0x588] sm:$0xff]
    %v3301 = vld [vmem:[#allocation10 + $0x590] sm:$0xff]
    %v3302 = vld [vmem:[#allocation10 + $0x598] sm:$0xff]
    %v3303 = vld [vmem:[#allocation10 + $0x5a0] sm:$0xff]
    %v3304 = vld [vmem:[#allocation10 + $0x5a8] sm:$0xff]
    %v3305 = vld [vmem:[#allocation10 + $0x5b0] sm:$0xff]
    %v3306 = vld [vmem:[#allocation10 + $0x5b8] sm:$0xff]
    %v3307 = vld [vmem:[#allocation10 + $0x5c0] sm:$0xff]
    %v3308 = vld [vmem:[#allocation10 + $0x5c8] sm:$0xff]
    %v3309 = vld [vmem:[#allocation10 + $0x5d0] sm:$0xff]
    %v3310 = vld [vmem:[#allocation10 + $0x5d8] sm:$0xff]
    %v3311 = vld [vmem:[#allocation10 + $0x5e0] sm:$0xff]
    %v3312 = vld [vmem:[#allocation10 + $0x5e8] sm:$0xff]
    %v3313 = vld [vmem:[#allocation10 + $0x5f0] sm:$0xff]
    %v3314 = vld [vmem:[#allocation10 + $0x5f8] sm:$0xff]
    %v3315 = vld [vmem:[#allocation12] sm:$0xff]
    %v3316 = vld [vmem:[#allocation12 + $0x8] sm:$0xff]
    %v3317 = vld [vmem:[#allocation12 + $0x10] sm:$0xff]
    %v3318 = vld [vmem:[#allocation12 + $0x18] sm:$0xff]
    %v3319 = vld [vmem:[#allocation12 + $0x20] sm:$0xff]
    %v3320 = vld [vmem:[#allocation12 + $0x28] sm:$0xff]
    %v3321 = vld [vmem:[#allocation12 + $0x30] sm:$0xff]
    %v3322 = vld [vmem:[#allocation12 + $0x38] sm:$0xff]
    %v3323 = vld [vmem:[#allocation12 + $0x40] sm:$0xff]
    %v3324 = vld [vmem:[#allocation12 + $0x48] sm:$0xff]
    %v3325 = vld [vmem:[#allocation12 + $0x50] sm:$0xff]
    %v3326 = vld [vmem:[#allocation12 + $0x58] sm:$0xff]
    %v3327 = vld [vmem:[#allocation12 + $0x60] sm:$0xff]
    %v3328 = vld [vmem:[#allocation12 + $0x68] sm:$0xff]
    %v3329 = vld [vmem:[#allocation12 + $0x70] sm:$0xff]
    %v3330 = vld [vmem:[#allocation12 + $0x78] sm:$0xff]
    %v3331 = vld [vmem:[#allocation12 + $0x80] sm:$0xff]
    %v3332 = vld [vmem:[#allocation12 + $0x88] sm:$0xff]
    %v3333 = vld [vmem:[#allocation12 + $0x90] sm:$0xff]
    %v3334 = vld [vmem:[#allocation12 + $0x98] sm:$0xff]
    %v3335 = vld [vmem:[#allocation12 + $0xa0] sm:$0xff]
    %v3336 = vld [vmem:[#allocation12 + $0xa8] sm:$0xff]
    %v3337 = vld [vmem:[#allocation12 + $0xb0] sm:$0xff]
    %v3338 = vld [vmem:[#allocation12 + $0xb8] sm:$0xff]
    %v3339 = vld [vmem:[#allocation12 + $0xc0] sm:$0xff]
    %v3340 = vld [vmem:[#allocation12 + $0xc8] sm:$0xff]
    %v3341 = vld [vmem:[#allocation12 + $0xd0] sm:$0xff]
    %v3342 = vld [vmem:[#allocation12 + $0xd8] sm:$0xff]
    %v3343 = vld [vmem:[#allocation12 + $0xe0] sm:$0xff]
    %v3344 = vld [vmem:[#allocation12 + $0xe8] sm:$0xff]
    %v3345 = vld [vmem:[#allocation12 + $0xf0] sm:$0xff]
    %v3346 = vld [vmem:[#allocation12 + $0xf8] sm:$0xff]
    %v3347 = vld [vmem:[#allocation12 + $0x100] sm:$0xff]
    %v3348 = vld [vmem:[#allocation12 + $0x108] sm:$0xff]
    %v3349 = vld [vmem:[#allocation12 + $0x110] sm:$0xff]
    %v3350 = vld [vmem:[#allocation12 + $0x118] sm:$0xff]
    %v3351 = vld [vmem:[#allocation12 + $0x120] sm:$0xff]
    %v3352 = vld [vmem:[#allocation12 + $0x128] sm:$0xff]
    %v3353 = vld [vmem:[#allocation12 + $0x130] sm:$0xff]
    %v3354 = vld [vmem:[#allocation12 + $0x138] sm:$0xff]
    %v3355 = vld [vmem:[#allocation12 + $0x140] sm:$0xff]
    %v3356 = vld [vmem:[#allocation12 + $0x148] sm:$0xff]
    %v3357 = vld [vmem:[#allocation12 + $0x150] sm:$0xff]
    %v3358 = vld [vmem:[#allocation12 + $0x158] sm:$0xff]
    %v3359 = vld [vmem:[#allocation12 + $0x160] sm:$0xff]
    %v3360 = vld [vmem:[#allocation12 + $0x168] sm:$0xff]
    %v3361 = vld [vmem:[#allocation12 + $0x170] sm:$0xff]
    %v3362 = vld [vmem:[#allocation12 + $0x178] sm:$0xff]
    %v3363 = vld [vmem:[#allocation12 + $0x180] sm:$0xff]
    %v3364 = vld [vmem:[#allocation12 + $0x188] sm:$0xff]
    %v3365 = vld [vmem:[#allocation12 + $0x190] sm:$0xff]
    %v3366 = vld [vmem:[#allocation12 + $0x198] sm:$0xff]
    %v3367 = vld [vmem:[#allocation12 + $0x1a0] sm:$0xff]
    %v3368 = vld [vmem:[#allocation12 + $0x1a8] sm:$0xff]
    %v3369 = vld [vmem:[#allocation12 + $0x1b0] sm:$0xff]
    %v3370 = vld [vmem:[#allocation12 + $0x1b8] sm:$0xff]
    %v3371 = vld [vmem:[#allocation12 + $0x1c0] sm:$0xff]
    %v3372 = vld [vmem:[#allocation12 + $0x1c8] sm:$0xff]
    %v3373 = vld [vmem:[#allocation12 + $0x1d0] sm:$0xff]
    %v3374 = vld [vmem:[#allocation12 + $0x1d8] sm:$0xff]
    %v3375 = vld [vmem:[#allocation12 + $0x1e0] sm:$0xff]
    %v3376 = vld [vmem:[#allocation12 + $0x1e8] sm:$0xff]
    %v3377 = vld [vmem:[#allocation12 + $0x1f0] sm:$0xff]
    %v3378 = vld [vmem:[#allocation12 + $0x1f8] sm:$0xff]
    %v3379 = vld [vmem:[#allocation12 + $0x200] sm:$0xff]
    %v3380 = vld [vmem:[#allocation12 + $0x208] sm:$0xff]
    %v3381 = vld [vmem:[#allocation12 + $0x210] sm:$0xff]
    %v3382 = vld [vmem:[#allocation12 + $0x218] sm:$0xff]
    %v3383 = vld [vmem:[#allocation12 + $0x220] sm:$0xff]
    %v3384 = vld [vmem:[#allocation12 + $0x228] sm:$0xff]
    %v3385 = vld [vmem:[#allocation12 + $0x230] sm:$0xff]
    %v3386 = vld [vmem:[#allocation12 + $0x238] sm:$0xff]
    %v3387 = vld [vmem:[#allocation12 + $0x240] sm:$0xff]
    %v3388 = vld [vmem:[#allocation12 + $0x248] sm:$0xff]
    %v3389 = vld [vmem:[#allocation12 + $0x250] sm:$0xff]
    %v3390 = vld [vmem:[#allocation12 + $0x258] sm:$0xff]
    %v3391 = vld [vmem:[#allocation12 + $0x260] sm:$0xff]
    %v3392 = vld [vmem:[#allocation12 + $0x268] sm:$0xff]
    %v3393 = vld [vmem:[#allocation12 + $0x270] sm:$0xff]
    %v3394 = vld [vmem:[#allocation12 + $0x278] sm:$0xff]
    %v3395 = vld [vmem:[#allocation12 + $0x280] sm:$0xff]
    %v3396 = vld [vmem:[#allocation12 + $0x288] sm:$0xff]
    %v3397 = vld [vmem:[#allocation12 + $0x290] sm:$0xff]
    %v3398 = vld [vmem:[#allocation12 + $0x298] sm:$0xff]
    %v3399 = vld [vmem:[#allocation12 + $0x2a0] sm:$0xff]
    %v3400 = vld [vmem:[#allocation12 + $0x2a8] sm:$0xff]
    %v3401 = vld [vmem:[#allocation12 + $0x2b0] sm:$0xff]
    %v3402 = vld [vmem:[#allocation12 + $0x2b8] sm:$0xff]
    %v3403 = vld [vmem:[#allocation12 + $0x2c0] sm:$0xff]
    %v3404 = vld [vmem:[#allocation12 + $0x2c8] sm:$0xff]
    %v3405 = vld [vmem:[#allocation12 + $0x2d0] sm:$0xff]
    %v3406 = vld [vmem:[#allocation12 + $0x2d8] sm:$0xff]
    %v3407 = vld [vmem:[#allocation12 + $0x2e0] sm:$0xff]
    %v3408 = vld [vmem:[#allocation12 + $0x2e8] sm:$0xff]
    %v3409 = vld [vmem:[#allocation12 + $0x2f0] sm:$0xff]
    %v3410 = vld [vmem:[#allocation12 + $0x2f8] sm:$0xff]
    %v3411 = vld [vmem:[#allocation12 + $0x300] sm:$0xff]
    %v3412 = vld [vmem:[#allocation12 + $0x308] sm:$0xff]
    %v3413 = vld [vmem:[#allocation12 + $0x310] sm:$0xff]
    %v3414 = vld [vmem:[#allocation12 + $0x318] sm:$0xff]
    %v3415 = vld [vmem:[#allocation12 + $0x320] sm:$0xff]
    %v3416 = vld [vmem:[#allocation12 + $0x328] sm:$0xff]
    %v3417 = vld [vmem:[#allocation12 + $0x330] sm:$0xff]
    %v3418 = vld [vmem:[#allocation12 + $0x338] sm:$0xff]
    %v3419 = vld [vmem:[#allocation12 + $0x340] sm:$0xff]
    %v3420 = vld [vmem:[#allocation12 + $0x348] sm:$0xff]
    %v3421 = vld [vmem:[#allocation12 + $0x350] sm:$0xff]
    %v3422 = vld [vmem:[#allocation12 + $0x358] sm:$0xff]
    %v3423 = vld [vmem:[#allocation12 + $0x360] sm:$0xff]
    %v3424 = vld [vmem:[#allocation12 + $0x368] sm:$0xff]
    %v3425 = vld [vmem:[#allocation12 + $0x370] sm:$0xff]
    %v3426 = vld [vmem:[#allocation12 + $0x378] sm:$0xff]
    %v3427 = vld [vmem:[#allocation12 + $0x380] sm:$0xff]
    %v3428 = vld [vmem:[#allocation12 + $0x388] sm:$0xff]
    %v3429 = vld [vmem:[#allocation12 + $0x390] sm:$0xff]
    %v3430 = vld [vmem:[#allocation12 + $0x398] sm:$0xff]
    %v3431 = vld [vmem:[#allocation12 + $0x3a0] sm:$0xff]
    %v3432 = vld [vmem:[#allocation12 + $0x3a8] sm:$0xff]
    %v3433 = vld [vmem:[#allocation12 + $0x3b0] sm:$0xff]
    %v3434 = vld [vmem:[#allocation12 + $0x3b8] sm:$0xff]
    %v3435 = vld [vmem:[#allocation12 + $0x3c0] sm:$0xff]
    %v3436 = vld [vmem:[#allocation12 + $0x3c8] sm:$0xff]
    %v3437 = vld [vmem:[#allocation12 + $0x3d0] sm:$0xff]
    %v3438 = vld [vmem:[#allocation12 + $0x3d8] sm:$0xff]
    %v3439 = vld [vmem:[#allocation12 + $0x3e0] sm:$0xff]
    %v3440 = vld [vmem:[#allocation12 + $0x3e8] sm:$0xff]
    %v3441 = vld [vmem:[#allocation12 + $0x3f0] sm:$0xff]
    %v3442 = vld [vmem:[#allocation12 + $0x3f8] sm:$0xff]
    %v3443 = vld [vmem:[#allocation12 + $0x400] sm:$0xff]
    %v3444 = vld [vmem:[#allocation12 + $0x408] sm:$0xff]
    %v3445 = vld [vmem:[#allocation12 + $0x410] sm:$0xff]
    %v3446 = vld [vmem:[#allocation12 + $0x418] sm:$0xff]
    %v3447 = vld [vmem:[#allocation12 + $0x420] sm:$0xff]
    %v3448 = vld [vmem:[#allocation12 + $0x428] sm:$0xff]
    %v3449 = vld [vmem:[#allocation12 + $0x430] sm:$0xff]
    %v3450 = vld [vmem:[#allocation12 + $0x438] sm:$0xff]
    %v3451 = vld [vmem:[#allocation12 + $0x440] sm:$0xff]
    %v3452 = vld [vmem:[#allocation12 + $0x448] sm:$0xff]
    %v3453 = vld [vmem:[#allocation12 + $0x450] sm:$0xff]
    %v3454 = vld [vmem:[#allocation12 + $0x458] sm:$0xff]
    %v3455 = vld [vmem:[#allocation12 + $0x460] sm:$0xff]
    %v3456 = vld [vmem:[#allocation12 + $0x468] sm:$0xff]
    %v3457 = vld [vmem:[#allocation12 + $0x470] sm:$0xff]
    %v3458 = vld [vmem:[#allocation12 + $0x478] sm:$0xff]
    %v3459 = vld [vmem:[#allocation12 + $0x480] sm:$0xff]
    %v3460 = vld [vmem:[#allocation12 + $0x488] sm:$0xff]
    %v3461 = vld [vmem:[#allocation12 + $0x490] sm:$0xff]
    %v3462 = vld [vmem:[#allocation12 + $0x498] sm:$0xff]
    %v3463 = vld [vmem:[#allocation12 + $0x4a0] sm:$0xff]
    %v3464 = vld [vmem:[#allocation12 + $0x4a8] sm:$0xff]
    %v3465 = vld [vmem:[#allocation12 + $0x4b0] sm:$0xff]
    %v3466 = vld [vmem:[#allocation12 + $0x4b8] sm:$0xff]
    %v3467 = vld [vmem:[#allocation12 + $0x4c0] sm:$0xff]
    %v3468 = vld [vmem:[#allocation12 + $0x4c8] sm:$0xff]
    %v3469 = vld [vmem:[#allocation12 + $0x4d0] sm:$0xff]
    %v3470 = vld [vmem:[#allocation12 + $0x4d8] sm:$0xff]
    %v3471 = vld [vmem:[#allocation12 + $0x4e0] sm:$0xff]
    %v3472 = vld [vmem:[#allocation12 + $0x4e8] sm:$0xff]
    %v3473 = vld [vmem:[#allocation12 + $0x4f0] sm:$0xff]
    %v3474 = vld [vmem:[#allocation12 + $0x4f8] sm:$0xff]
    %v3475 = vld [vmem:[#allocation12 + $0x500] sm:$0xff]
    %v3476 = vld [vmem:[#allocation12 + $0x508] sm:$0xff]
    %v3477 = vld [vmem:[#allocation12 + $0x510] sm:$0xff]
    %v3478 = vld [vmem:[#allocation12 + $0x518] sm:$0xff]
    %v3479 = vld [vmem:[#allocation12 + $0x520] sm:$0xff]
    %v3480 = vld [vmem:[#allocation12 + $0x528] sm:$0xff]
    %v3481 = vld [vmem:[#allocation12 + $0x530] sm:$0xff]
    %v3482 = vld [vmem:[#allocation12 + $0x538] sm:$0xff]
    %v3483 = vld [vmem:[#allocation12 + $0x540] sm:$0xff]
    %v3484 = vld [vmem:[#allocation12 + $0x548] sm:$0xff]
    %v3485 = vld [vmem:[#allocation12 + $0x550] sm:$0xff]
    %v3486 = vld [vmem:[#allocation12 + $0x558] sm:$0xff]
    %v3487 = vld [vmem:[#allocation12 + $0x560] sm:$0xff]
    %v3488 = vld [vmem:[#allocation12 + $0x568] sm:$0xff]
    %v3489 = vld [vmem:[#allocation12 + $0x570] sm:$0xff]
    %v3490 = vld [vmem:[#allocation12 + $0x578] sm:$0xff]
    %v3491 = vld [vmem:[#allocation12 + $0x580] sm:$0xff]
    %v3492 = vld [vmem:[#allocation12 + $0x588] sm:$0xff]
    %v3493 = vld [vmem:[#allocation12 + $0x590] sm:$0xff]
    %v3494 = vld [vmem:[#allocation12 + $0x598] sm:$0xff]
    %v3495 = vld [vmem:[#allocation12 + $0x5a0] sm:$0xff]
    %v3496 = vld [vmem:[#allocation12 + $0x5a8] sm:$0xff]
    %v3497 = vld [vmem:[#allocation12 + $0x5b0] sm:$0xff]
    %v3498 = vld [vmem:[#allocation12 + $0x5b8] sm:$0xff]
    %v3499 = vld [vmem:[#allocation12 + $0x5c0] sm:$0xff]
    %v3500 = vld [vmem:[#allocation12 + $0x5c8] sm:$0xff]
    %v3501 = vld [vmem:[#allocation12 + $0x5d0] sm:$0xff]
    %v3502 = vld [vmem:[#allocation12 + $0x5d8] sm:$0xff]
    %v3503 = vld [vmem:[#allocation12 + $0x5e0] sm:$0xff]
    %v3504 = vld [vmem:[#allocation12 + $0x5e8] sm:$0xff]
    %v3505 = vld [vmem:[#allocation12 + $0x5f0] sm:$0xff]
    %v3506 = vld [vmem:[#allocation12 + $0x5f8] sm:$0xff]
    %v3507 = vld [vmem:[%s6] sm:$0xf]
    %v3509 = vlaneseq
    %v3510 = vshrl.u32 %v3509, 7
    %v3511 = vsub.s32 0, %v3510
    %v3512 = vrot.slane %v3507, %v3511
    %v3513 = vlaneseq
    %v3514 = vshrl.u32 %v3513, 7
    %v3515 = vsub.s32 1, %v3514
    %v3516 = vrot.slane %v3507, %v3515
    %v3517 = vlaneseq
    %v3518 = vshrl.u32 %v3517, 7
    %v3519 = vsub.s32 2, %v3518
    %v3520 = vrot.slane %v3507, %v3519
    %v3521 = vlaneseq
    %v3522 = vshrl.u32 %v3521, 7
    %v3523 = vsub.s32 3, %v3522
    %v3524 = vrot.slane %v3507, %v3523
    %v3529 = vld [vmem:[%s8] sm:$0xf]
    %v3531 = vlaneseq
    %v3532 = vshrl.u32 %v3531, 7
    %v3533 = vsub.s32 0, %v3532
    %v3534 = vrot.slane %v3529, %v3533
    %v3535 = vlaneseq
    %v3536 = vshrl.u32 %v3535, 7
    %v3537 = vsub.s32 1, %v3536
    %v3538 = vrot.slane %v3529, %v3537
    %v3539 = vlaneseq
    %v3540 = vshrl.u32 %v3539, 7
    %v3541 = vsub.s32 2, %v3540
    %v3542 = vrot.slane %v3529, %v3541
    %v3543 = vlaneseq
    %v3544 = vshrl.u32 %v3543, 7
    %v3545 = vsub.s32 3, %v3544
    %v3546 = vrot.slane %v3529, %v3545
    %v3551 = vld [vmem:[#allocation2] sm:$0xff]
    %v3552 = vld [vmem:[#allocation2 + $0x8] sm:$0xff]
    %3553 = vmatprep.subr.mxu0 %v3124
    %3554 = vmatpush1.msra.mxu0 %v3123
    %3555 = vmatprep.subr.mxu0 %v3128
    %3556 = vmatpush1.msra.mxu0 %v3127
    %3557 = vmatprep.subr.mxu0 %v3132
    %3558 = vmatpush1.msra.mxu0 %v3131
    %3559 = vmatprep.subr.mxu0 %v3136
    %3560 = vmatpush1.msra.mxu0 %v3135
    %3561 = vmatprep.subr.mxu0 %v3140
    %3562 = vmatpush1.msra.mxu0 %v3139
    %3563 = vmatprep.subr.mxu0 %v3144
    %3564 = vmatpush1.msra.mxu0 %v3143
    %3565 = vmatprep.subr.mxu0 %v3148
    %3566 = vmatpush1.msra.mxu0 %v3147
    %3567 = vmatprep.subr.mxu0 %v3152
    %3568 = vmatpush1.msra.mxu0 %v3151
    %3569 = vmatprep.subr.mxu0 %v3156
    %3570 = vmatpush1.msra.mxu0 %v3155
    %3571 = vmatprep.subr.mxu0 %v3160
    %3572 = vmatpush1.msra.mxu0 %v3159
    %3573 = vmatprep.subr.mxu0 %v3164
    %3574 = vmatpush1.msra.mxu0 %v3163
    %3575 = vmatprep.subr.mxu0 %v3168
    %3576 = vmatpush1.msra.mxu0 %v3167
    %3577 = vmatprep.subr.mxu0 %v3172
    %3578 = vmatpush1.msra.mxu0 %v3171
    %3579 = vmatprep.subr.mxu0 %v3176
    %3580 = vmatpush1.msra.mxu0 %v3175
    %3581 = vmatprep.subr.mxu0 %v3180
    %3582 = vmatpush1.msra.mxu0 %v3179
    %3583 = vmatprep.subr.mxu0 %v3184
    %3584 = vmatpush1.msra.mxu0 %v3183
    %3585 = vmatprep.subr.mxu0 %v3188
    %3586 = vmatpush1.msra.mxu0 %v3187
    %3587 = vmatprep.subr.mxu0 %v3192
    %3588 = vmatpush1.msra.mxu0 %v3191
    %3589 = vmatprep.subr.mxu0 %v3196
    %3590 = vmatpush1.msra.mxu0 %v3195
    %3591 = vmatprep.subr.mxu0 %v3200
    %3592 = vmatpush1.msra.mxu0 %v3199
    %3593 = vmatprep.subr.mxu0 %v3204
    %3594 = vmatpush1.msra.mxu0 %v3203
    %3595 = vmatprep.subr.mxu0 %v3208
    %3596 = vmatpush1.msra.mxu0 %v3207
    %3597 = vmatprep.subr.mxu0 %v3212
    %3598 = vmatpush1.msra.mxu0 %v3211
    %3599 = vmatprep.subr.mxu0 %v3216
    %3600 = vmatpush1.msra.mxu0 %v3215
    %3601 = vmatprep.subr.mxu0 %v3220
    %3602 = vmatpush1.msra.mxu0 %v3219
    %3603 = vmatprep.subr.mxu0 %v3224
    %3604 = vmatpush1.msra.mxu0 %v3223
    %3605 = vmatprep.subr.mxu0 %v3228
    %3606 = vmatpush1.msra.mxu0 %v3227
    %3607 = vmatprep.subr.mxu0 %v3232
    %3608 = vmatpush1.msra.mxu0 %v3231
    %3609 = vmatprep.subr.mxu0 %v3236
    %3610 = vmatpush1.msra.mxu0 %v3235
    %3611 = vmatprep.subr.mxu0 %v3240
    %3612 = vmatpush1.msra.mxu0 %v3239
    %3613 = vmatprep.subr.mxu0 %v3244
    %3614 = vmatpush1.msra.mxu0 %v3243
    %3615 = vmatprep.subr.mxu0 %v3248
    %3616 = vmatpush1.msra.mxu0 %v3247
    %3617 = vmatprep.mubr.f32.mxu0 %v3552
    %3618 = vmatmul.mubr.f32.gmra.mrb[0].mxu0 %v3551
    %v3619 = vpop.f32.mrb[0].mxu0
    %v3620 = vadd.f32 %v3512, %v3619
    %v3621 = vpop.f32.mrb[0].mxu0
    %v3622 = vadd.f32 %v3516, %v3621
    %3623 = vdwg.mxu0
    %3624 = vmatprep.subr.mxu0 %v3252
    %3625 = vmatpush1.msra.mxu0 %v3251
    %3626 = vmatprep.subr.mxu0 %v3256
    %3627 = vmatpush1.msra.mxu0 %v3255
    %3628 = vmatprep.subr.mxu0 %v3260
    %3629 = vmatpush1.msra.mxu0 %v3259
    %3630 = vmatprep.subr.mxu0 %v3264
    %3631 = vmatpush1.msra.mxu0 %v3263
    %3632 = vmatprep.subr.mxu0 %v3268
    %3633 = vmatpush1.msra.mxu0 %v3267
    %3634 = vmatprep.subr.mxu0 %v3272
    %3635 = vmatpush1.msra.mxu0 %v3271
    %3636 = vmatprep.subr.mxu0 %v3276
    %3637 = vmatpush1.msra.mxu0 %v3275
    %3638 = vmatprep.subr.mxu0 %v3280
    %3639 = vmatpush1.msra.mxu0 %v3279
    %3640 = vmatprep.subr.mxu0 %v3284
    %3641 = vmatpush1.msra.mxu0 %v3283
    %3642 = vmatprep.subr.mxu0 %v3288
    %3643 = vmatpush1.msra.mxu0 %v3287
    %3644 = vmatprep.subr.mxu0 %v3292
    %3645 = vmatpush1.msra.mxu0 %v3291
    %3646 = vmatprep.subr.mxu0 %v3296
    %3647 = vmatpush1.msra.mxu0 %v3295
    %3648 = vmatprep.subr.mxu0 %v3300
    %3649 = vmatpush1.msra.mxu0 %v3299
    %3650 = vmatprep.subr.mxu0 %v3304
    %3651 = vmatpush1.msra.mxu0 %v3303
    %3652 = vmatprep.subr.mxu0 %v3308
    %3653 = vmatpush1.msra.mxu0 %v3307
    %3654 = vmatprep.subr.mxu0 %v3312
    %3655 = vmatpush1.msra.mxu0 %v3311
    %3656 = vmatprep.subr.mxu0 0.0
    %3657 = vmatpush1.msra.mxu0 0.0
    %3658 = vmatprep.subr.mxu0 0.0
    %3659 = vmatpush1.msra.mxu0 0.0
    %3660 = vmatprep.subr.mxu0 0.0
    %3661 = vmatpush1.msra.mxu0 0.0
    %3662 = vmatprep.subr.mxu0 0.0
    %3663 = vmatpush1.msra.mxu0 0.0
    %3664 = vmatprep.subr.mxu0 0.0
    %3665 = vmatpush1.msra.mxu0 0.0
    %3666 = vmatprep.subr.mxu0 0.0
    %3667 = vmatpush1.msra.mxu0 0.0
    %3668 = vmatprep.subr.mxu0 0.0
    %3669 = vmatpush1.msra.mxu0 0.0
    %3670 = vmatprep.subr.mxu0 0.0
    %3671 = vmatpush1.msra.mxu0 0.0
    %3672 = vmatprep.subr.mxu0 0.0
    %3673 = vmatpush1.msra.mxu0 0.0
    %3674 = vmatprep.subr.mxu0 0.0
    %3675 = vmatpush1.msra.mxu0 0.0
    %3676 = vmatprep.subr.mxu0 0.0
    %3677 = vmatpush1.msra.mxu0 0.0
    %3678 = vmatprep.subr.mxu0 0.0
    %3679 = vmatpush1.msra.mxu0 0.0
    %3680 = vmatprep.subr.mxu0 0.0
    %3681 = vmatpush1.msra.mxu0 0.0
    %3682 = vmatprep.subr.mxu0 0.0
    %3683 = vmatpush1.msra.mxu0 0.0
    %3684 = vmatprep.subr.mxu0 0.0
    %3685 = vmatpush1.msra.mxu0 0.0
    %3686 = vmatprep.subr.mxu0 0.0
    %3687 = vmatpush1.msra.mxu0 0.0
    %3688 = vmatprep.mubr.f32.mxu0 0.0
    %3689 = vmatmul.mubr.f32.gmra.mrb[0].mxu0 0.0
    %v3690 = vpop.f32.mrb[0].mxu0
    %v3691 = vadd.f32 %v3620, %v3690
    %v3692 = vpop.f32.mrb[0].mxu0
    %v3693 = vadd.f32 %v3622, %v3692
    %3694 = vdwg.mxu0
    %3695 = vmatprep.subr.mxu0 %v3126
    %3696 = vmatpush1.msra.mxu0 %v3125
    %3697 = vmatprep.subr.mxu0 %v3130
    %3698 = vmatpush1.msra.mxu0 %v3129
    %3699 = vmatprep.subr.mxu0 %v3134
    %3700 = vmatpush1.msra.mxu0 %v3133
    %3701 = vmatprep.subr.mxu0 %v3138
    %3702 = vmatpush1.msra.mxu0 %v3137
    %3703 = vmatprep.subr.mxu0 %v3142
    %3704 = vmatpush1.msra.mxu0 %v3141
    %3705 = vmatprep.subr.mxu0 %v3146
    %3706 = vmatpush1.msra.mxu0 %v3145
    %3707 = vmatprep.subr.mxu0 %v3150
    %3708 = vmatpush1.msra.mxu0 %v3149
    %3709 = vmatprep.subr.mxu0 %v3154
    %3710 = vmatpush1.msra.mxu0 %v3153
    %3711 = vmatprep.subr.mxu0 %v3158
    %3712 = vmatpush1.msra.mxu0 %v3157
    %3713 = vmatprep.subr.mxu0 %v3162
    %3714 = vmatpush1.msra.mxu0 %v3161
    %3715 = vmatprep.subr.mxu0 %v3166
    %3716 = vmatpush1.msra.mxu0 %v3165
    %3717 = vmatprep.subr.mxu0 %v3170
    %3718 = vmatpush1.msra.mxu0 %v3169
    %3719 = vmatprep.subr.mxu0 %v3174
    %3720 = vmatpush1.msra.mxu0 %v3173
    %3721 = vmatprep.subr.mxu0 %v3178
    %3722 = vmatpush1.msra.mxu0 %v3177
    %3723 = vmatprep.subr.mxu0 %v3182
    %3724 = vmatpush1.msra.mxu0 %v3181
    %3725 = vmatprep.subr.mxu0 %v3186
    %3726 = vmatpush1.msra.mxu0 %v3185
    %3727 = vmatprep.subr.mxu0 %v3190
    %3728 = vmatpush1.msra.mxu0 %v3189
    %3729 = vmatprep.subr.mxu0 %v3194
    %3730 = vmatpush1.msra.mxu0 %v3193
    %3731 = vmatprep.subr.mxu0 %v3198
    %3732 = vmatpush1.msra.mxu0 %v3197
    %3733 = vmatprep.subr.mxu0 %v3202
    %3734 = vmatpush1.msra.mxu0 %v3201
    %3735 = vmatprep.subr.mxu0 %v3206
    %3736 = vmatpush1.msra.mxu0 %v3205
    %3737 = vmatprep.subr.mxu0 %v3210
    %3738 = vmatpush1.msra.mxu0 %v3209
    %3739 = vmatprep.subr.mxu0 %v3214
    %3740 = vmatpush1.msra.mxu0 %v3213
    %3741 = vmatprep.subr.mxu0 %v3218
    %3742 = vmatpush1.msra.mxu0 %v3217
    %3743 = vmatprep.subr.mxu0 %v3222
    %3744 = vmatpush1.msra.mxu0 %v3221
    %3745 = vmatprep.subr.mxu0 %v3226
    %3746 = vmatpush1.msra.mxu0 %v3225
    %3747 = vmatprep.subr.mxu0 %v3230
    %3748 = vmatpush1.msra.mxu0 %v3229
    %3749 = vmatprep.subr.mxu0 %v3234
    %3750 = vmatpush1.msra.mxu0 %v3233
    %3751 = vmatprep.subr.mxu0 %v3238
    %3752 = vmatpush1.msra.mxu0 %v3237
    %3753 = vmatprep.subr.mxu0 %v3242
    %3754 = vmatpush1.msra.mxu0 %v3241
    %3755 = vmatprep.subr.mxu0 %v3246
    %3756 = vmatpush1.msra.mxu0 %v3245
    %3757 = vmatprep.subr.mxu0 %v3250
    %3758 = vmatpush1.msra.mxu0 %v3249
    %3759 = vmatprep.mubr.f32.mxu0 %v3552
    %3760 = vmatmul.mubr.f32.gmra.mrb[0].mxu0 %v3551
    %v3761 = vpop.f32.mrb[0].mxu0
    %v3762 = vadd.f32 %v3520, %v3761
    %v3763 = vpop.f32.mrb[0].mxu0
    %v3764 = vadd.f32 %v3524, %v3763
    %3765 = vdwg.mxu0
    %3766 = vmatprep.subr.mxu0 %v3254
    %3767 = vmatpush1.msra.mxu0 %v3253
    %3768 = vmatprep.subr.mxu0 %v3258
    %3769 = vmatpush1.msra.mxu0 %v3257
    %3770 = vmatprep.subr.mxu0 %v3262
    %3771 = vmatpush1.msra.mxu0 %v3261
    %3772 = vmatprep.subr.mxu0 %v3266
    %3773 = vmatpush1.msra.mxu0 %v3265
    %3774 = vmatprep.subr.mxu0 %v3270
    %3775 = vmatpush1.msra.mxu0 %v3269
    %3776 = vmatprep.subr.mxu0 %v3274
    %3777 = vmatpush1.msra.mxu0 %v3273
    %3778 = vmatprep.subr.mxu0 %v3278
    %3779 = vmatpush1.msra.mxu0 %v3277
    %3780 = vmatprep.subr.mxu0 %v3282
    %3781 = vmatpush1.msra.mxu0 %v3281
    %3782 = vmatprep.subr.mxu0 %v3286
    %3783 = vmatpush1.msra.mxu0 %v3285
    %3784 = vmatprep.subr.mxu0 %v3290
    %3785 = vmatpush1.msra.mxu0 %v3289
    %3786 = vmatprep.subr.mxu0 %v3294
    %3787 = vmatpush1.msra.mxu0 %v3293
    %3788 = vmatprep.subr.mxu0 %v3298
    %3789 = vmatpush1.msra.mxu0 %v3297
    %3790 = vmatprep.subr.mxu0 %v3302
    %3791 = vmatpush1.msra.mxu0 %v3301
    %3792 = vmatprep.subr.mxu0 %v3306
    %3793 = vmatpush1.msra.mxu0 %v3305
    %3794 = vmatprep.subr.mxu0 %v3310
    %3795 = vmatpush1.msra.mxu0 %v3309
    %3796 = vmatprep.subr.mxu0 %v3314
    %3797 = vmatpush1.msra.mxu0 %v3313
    %3798 = vmatprep.subr.mxu0 0.0
    %3799 = vmatpush1.msra.mxu0 0.0
    %3800 = vmatprep.subr.mxu0 0.0
    %3801 = vmatpush1.msra.mxu0 0.0
    %3802 = vmatprep.subr.mxu0 0.0
    %3803 = vmatpush1.msra.mxu0 0.0
    %3804 = vmatprep.subr.mxu0 0.0
    %3805 = vmatpush1.msra.mxu0 0.0
    %3806 = vmatprep.subr.mxu0 0.0
    %3807 = vmatpush1.msra.mxu0 0.0
    %3808 = vmatprep.subr.mxu0 0.0
    %3809 = vmatpush1.msra.mxu0 0.0
    %3810 = vmatprep.subr.mxu0 0.0
    %3811 = vmatpush1.msra.mxu0 0.0
    %3812 = vmatprep.subr.mxu0 0.0
    %3813 = vmatpush1.msra.mxu0 0.0
    %3814 = vmatprep.subr.mxu0 0.0
    %3815 = vmatpush1.msra.mxu0 0.0
    %3816 = vmatprep.subr.mxu0 0.0
    %3817 = vmatpush1.msra.mxu0 0.0
    %3818 = vmatprep.subr.mxu0 0.0
    %3819 = vmatpush1.msra.mxu0 0.0
    %3820 = vmatprep.subr.mxu0 0.0
    %3821 = vmatpush1.msra.mxu0 0.0
    %3822 = vmatprep.subr.mxu0 0.0
    %3823 = vmatpush1.msra.mxu0 0.0
    %3824 = vmatprep.subr.mxu0 0.0
    %3825 = vmatpush1.msra.mxu0 0.0
    %3826 = vmatprep.subr.mxu0 0.0
    %3827 = vmatpush1.msra.mxu0 0.0
    %3828 = vmatprep.subr.mxu0 0.0
    %3829 = vmatpush1.msra.mxu0 0.0
    %3830 = vmatprep.mubr.f32.mxu0 0.0
    %3831 = vmatmul.mubr.f32.gmra.mrb[0].mxu0 0.0
    %v3832 = vpop.f32.mrb[0].mxu0
    %v3833 = vadd.f32 %v3762, %v3832
    %v3834 = vpop.f32.mrb[0].mxu0
    %v3835 = vadd.f32 %v3764, %v3834
    %3836 = vdwg.mxu0
    %v3837 = vxor.u32 %v3691, 2147483648
    %v3838 = vmul.f32 %v3837, 1.442695
    %v3839 = vpow.pop %v3838
    %v3840 = vadd.f32 %v3839, 1.0
    %v3841 = vrcp.pop %v3840
    %v3842 = vmul.f32 1.0, %v3841
    %v3843 = vxor.u32 %v3693, 2147483648
    %v3844 = vmul.f32 %v3843, 1.442695
    %v3845 = vpow.pop %v3844
    %v3846 = vadd.f32 %v3845, 1.0
    %v3847 = vrcp.pop %v3846
    %v3848 = vmul.f32 1.0, %v3847
    %v3849 = vtanh.pop %v3833
    %v3850 = vxor.u32 %v3835, 2147483648
    %v3851 = vmul.f32 %v3850, 1.442695
    %v3852 = vpow.pop %v3851
    %v3853 = vadd.f32 %v3852, 1.0
    %v3854 = vrcp.pop %v3853
    %v3855 = vmul.f32 1.0, %v3854
    %v3856 = vmul.f32 %v3848, 0.0
    %v3857 = vmul.f32 %v3842, %v3849
    %v3858 = vadd.f32 %v3856, %v3857
    %v3859 = vtanh.pop %v3858
    %v3860 = vmul.f32 %v3855, %v3859
    %3861 = vst [vmem:[#allocation3] sm:$0xff] %v3860
    %v3862 = vld [vmem:[%s757] sm:$0xff]
    %v3863 = vld [vmem:[%s757 + $0x8] sm:$0xff]
    %3864 = vmatprep.subr.mxu0 %v3124
    %3865 = vmatpush1.msra.mxu0 %v3123
    %3866 = vmatprep.subr.mxu0 %v3128
    %3867 = vmatpush1.msra.mxu0 %v3127
    %3868 = vmatprep.subr.mxu0 %v3132
    %3869 = vmatpush1.msra.mxu0 %v3131
    %3870 = vmatprep.subr.mxu0 %v3136
    %3871 = vmatpush1.msra.mxu0 %v3135
    %3872 = vmatprep.subr.mxu0 %v3140
    %3873 = vmatpush1.msra.mxu0 %v3139
    %3874 = vmatprep.subr.mxu0 %v3144
    %3875 = vmatpush1.msra.mxu0 %v3143
    %3876 = vmatprep.subr.mxu0 %v3148
    %3877 = vmatpush1.msra.mxu0 %v3147
    %3878 = vmatprep.subr.mxu0 %v3152
    %3879 = vmatpush1.msra.mxu0 %v3151
    %3880 = vmatprep.subr.mxu0 %v3156
    %3881 = vmatpush1.msra.mxu0 %v3155
    %3882 = vmatprep.subr.mxu0 %v3160
    %3883 = vmatpush1.msra.mxu0 %v3159
    %3884 = vmatprep.subr.mxu0 %v3164
    %3885 = vmatpush1.msra.mxu0 %v3163
    %3886 = vmatprep.subr.mxu0 %v3168
    %3887 = vmatpush1.msra.mxu0 %v3167
    %3888 = vmatprep.subr.mxu0 %v3172
    %3889 = vmatpush1.msra.mxu0 %v3171
    %3890 = vmatprep.subr.mxu0 %v3176
    %3891 = vmatpush1.msra.mxu0 %v3175
    %3892 = vmatprep.subr.mxu0 %v3180
    %3893 = vmatpush1.msra.mxu0 %v3179
    %3894 = vmatprep.subr.mxu0 %v3184
    %3895 = vmatpush1.msra.mxu0 %v3183
    %3896 = vmatprep.subr.mxu0 %v3188
    %3897 = vmatpush1.msra.mxu0 %v3187
    %3898 = vmatprep.subr.mxu0 %v3192
    %3899 = vmatpush1.msra.mxu0 %v3191
    %3900 = vmatprep.subr.mxu0 %v3196
    %3901 = vmatpush1.msra.mxu0 %v3195
    %3902 = vmatprep.subr.mxu0 %v3200
    %3903 = vmatpush1.msra.mxu0 %v3199
    %3904 = vmatprep.subr.mxu0 %v3204
    %3905 = vmatpush1.msra.mxu0 %v3203
    %3906 = vmatprep.subr.mxu0 %v3208
    %3907 = vmatpush1.msra.mxu0 %v3207
    %3908 = vmatprep.subr.mxu0 %v3212
    %3909 = vmatpush1.msra.mxu0 %v3211
    %3910 = vmatprep.subr.mxu0 %v3216
    %3911 = vmatpush1.msra.mxu0 %v3215
    %3912 = vmatprep.subr.mxu0 %v3220
    %3913 = vmatpush1.msra.mxu0 %v3219
    %3914 = vmatprep.subr.mxu0 %v3224
    %3915 = vmatpush1.msra.mxu0 %v3223
    %3916 = vmatprep.subr.mxu0 %v3228
    %3917 = vmatpush1.msra.mxu0 %v3227
    %3918 = vmatprep.subr.mxu0 %v3232
    %3919 = vmatpush1.msra.mxu0 %v3231
    %3920 = vmatprep.subr.mxu0 %v3236
    %3921 = vmatpush1.msra.mxu0 %v3235
    %3922 = vmatprep.subr.mxu0 %v3240
    %3923 = vmatpush1.msra.mxu0 %v3239
    %3924 = vmatprep.subr.mxu0 %v3244
    %3925 = vmatpush1.msra.mxu0 %v3243
    %3926 = vmatprep.subr.mxu0 %v3248
    %3927 = vmatpush1.msra.mxu0 %v3247
    %3928 = vmatprep.mubr.f32.mxu0 %v3863
    %3929 = vmatmul.mubr.f32.gmra.mrb[0].mxu0 %v3862
    %v3930 = vpop.f32.mrb[0].mxu0
    %v3931 = vadd.f32 %v3512, %v3930
    %v3932 = vpop.f32.mrb[0].mxu0
    %v3933 = vadd.f32 %v3516, %v3932
    %3934 = vdwg.mxu0
    %3935 = vmatprep.subr.mxu0 %v3252
    %3936 = vmatpush1.msra.mxu0 %v3251
    %3937 = vmatprep.subr.mxu0 %v3256
    %3938 = vmatpush1.msra.mxu0 %v3255
    %3939 = vmatprep.subr.mxu0 %v3260
    %3940 = vmatpush1.msra.mxu0 %v3259
    %3941 = vmatprep.subr.mxu0 %v3264
    %3942 = vmatpush1.msra.mxu0 %v3263
    %3943 = vmatprep.subr.mxu0 %v3268
    %3944 = vmatpush1.msra.mxu0 %v3267
    %3945 = vmatprep.subr.mxu0 %v3272
    %3946 = vmatpush1.msra.mxu0 %v3271
    %3947 = vmatprep.subr.mxu0 %v3276
    %3948 = vmatpush1.msra.mxu0 %v3275
    %3949 = vmatprep.subr.mxu0 %v3280
    %3950 = vmatpush1.msra.mxu0 %v3279
    %3951 = vmatprep.subr.mxu0 %v3284
    %3952 = vmatpush1.msra.mxu0 %v3283
    %3953 = vmatprep.subr.mxu0 %v3288
    %3954 = vmatpush1.msra.mxu0 %v3287
    %3955 = vmatprep.subr.mxu0 %v3292
    %3956 = vmatpush1.msra.mxu0 %v3291
    %3957 = vmatprep.subr.mxu0 %v3296
    %3958 = vmatpush1.msra.mxu0 %v3295
    %3959 = vmatprep.subr.mxu0 %v3300
    %3960 = vmatpush1.msra.mxu0 %v3299
    %3961 = vmatprep.subr.mxu0 %v3304
    %3962 = vmatpush1.msra.mxu0 %v3303
    %3963 = vmatprep.subr.mxu0 %v3308
    %3964 = vmatpush1.msra.mxu0 %v3307
    %3965 = vmatprep.subr.mxu0 %v3312
    %3966 = vmatpush1.msra.mxu0 %v3311
    %3967 = vmatprep.subr.mxu0 0.0
    %3968 = vmatpush1.msra.mxu0 0.0
    %3969 = vmatprep.subr.mxu0 0.0
    %3970 = vmatpush1.msra.mxu0 0.0
    %3971 = vmatprep.subr.mxu0 0.0
    %3972 = vmatpush1.msra.mxu0 0.0
    %3973 = vmatprep.subr.mxu0 0.0
    %3974 = vmatpush1.msra.mxu0 0.0
    %3975 = vmatprep.subr.mxu0 0.0
    %3976 = vmatpush1.msra.mxu0 0.0
    %3977 = vmatprep.subr.mxu0 0.0
    %3978 = vmatpush1.msra.mxu0 0.0
    %3979 = vmatprep.subr.mxu0 0.0
    %3980 = vmatpush1.msra.mxu0 0.0
    %3981 = vmatprep.subr.mxu0 0.0
    %3982 = vmatpush1.msra.mxu0 0.0
    %3983 = vmatprep.subr.mxu0 0.0
    %3984 = vmatpush1.msra.mxu0 0.0
    %3985 = vmatprep.subr.mxu0 0.0
    %3986 = vmatpush1.msra.mxu0 0.0
    %3987 = vmatprep.subr.mxu0 0.0
    %3988 = vmatpush1.msra.mxu0 0.0
    %3989 = vmatprep.subr.mxu0 0.0
    %3990 = vmatpush1.msra.mxu0 0.0
    %3991 = vmatprep.subr.mxu0 0.0
    %3992 = vmatpush1.msra.mxu0 0.0
    %3993 = vmatprep.subr.mxu0 0.0
    %3994 = vmatpush1.msra.mxu0 0.0
    %3995 = vmatprep.subr.mxu0 0.0
    %3996 = vmatpush1.msra.mxu0 0.0
    %3997 = vmatprep.subr.mxu0 0.0
    %3998 = vmatpush1.msra.mxu0 0.0
    %3999 = vmatprep.mubr.f32.mxu0 0.0
    %4000 = vmatmul.mubr.f32.gmra.mrb[0].mxu0 %v3860
    %v4001 = vpop.f32.mrb[0].mxu0
    %v4002 = vadd.f32 %v3931, %v4001
    %v4003 = vpop.f32.mrb[0].mxu0
    %v4004 = vadd.f32 %v3933, %v4003
    %4005 = vdwg.mxu0
    %4006 = vmatprep.subr.mxu0 %v3126
    %4007 = vmatpush1.msra.mxu0 %v3125
    %4008 = vmatprep.subr.mxu0 %v3130
    %4009 = vmatpush1.msra.mxu0 %v3129
    %4010 = vmatprep.subr.mxu0 %v3134
    %4011 = vmatpush1.msra.mxu0 %v3133
    %4012 = vmatprep.subr.mxu0 %v3138
    %4013 = vmatpush1.msra.mxu0 %v3137
    %4014 = vmatprep.subr.mxu0 %v3142
    %4015 = vmatpush1.msra.mxu0 %v3141
    %4016 = vmatprep.subr.mxu0 %v3146
    %4017 = vmatpush1.msra.mxu0 %v3145
    %4018 = vmatprep.subr.mxu0 %v3150
    %4019 = vmatpush1.msra.mxu0 %v3149
    %4020 = vmatprep.subr.mxu0 %v3154
    %4021 = vmatpush1.msra.mxu0 %v3153
    %4022 = vmatprep.subr.mxu0 %v3158
    %4023 = vmatpush1.msra.mxu0 %v3157
    %4024 = vmatprep.subr.mxu0 %v3162
    %4025 = vmatpush1.msra.mxu0 %v3161
    %4026 = vmatprep.subr.mxu0 %v3166
    %4027 = vmatpush1.msra.mxu0 %v3165
    %4028 = vmatprep.subr.mxu0 %v3170
    %4029 = vmatpush1.msra.mxu0 %v3169
    %4030 = vmatprep.subr.mxu0 %v3174
    %4031 = vmatpush1.msra.mxu0 %v3173
    %4032 = vmatprep.subr.mxu0 %v3178
    %4033 = vmatpush1.msra.mxu0 %v3177
    %4034 = vmatprep.subr.mxu0 %v3182
    %4035 = vmatpush1.msra.mxu0 %v3181
    %4036 = vmatprep.subr.mxu0 %v3186
    %4037 = vmatpush1.msra.mxu0 %v3185
    %4038 = vmatprep.subr.mxu0 %v3190
    %4039 = vmatpush1.msra.mxu0 %v3189
    %4040 = vmatprep.subr.mxu0 %v3194
    %4041 = vmatpush1.msra.mxu0 %v3193
    %4042 = vmatprep.subr.mxu0 %v3198
    %4043 = vmatpush1.msra.mxu0 %v3197
    %4044 = vmatprep.subr.mxu0 %v3202
    %4045 = vmatpush1.msra.mxu0 %v3201
    %4046 = vmatprep.subr.mxu0 %v3206
    %4047 = vmatpush1.msra.mxu0 %v3205
    %4048 = vmatprep.subr.mxu0 %v3210
    %4049 = vmatpush1.msra.mxu0 %v3209
    %4050 = vmatprep.subr.mxu0 %v3214
    %4051 = vmatpush1.msra.mxu0 %v3213
    %4052 = vmatprep.subr.mxu0 %v3218
    %4053 = vmatpush1.msra.mxu0 %v3217
    %4054 = vmatprep.subr.mxu0 %v3222
    %4055 = vmatpush1.msra.mxu0 %v3221
    %4056 = vmatprep.subr.mxu0 %v3226
    %4057 = vmatpush1.msra.mxu0 %v3225
    %4058 = vmatprep.subr.mxu0 %v3230
    %4059 = vmatpush1.msra.mxu0 %v3229
    %4060 = vmatprep.subr.mxu0 %v3234
    %4061 = vmatpush1.msra.mxu0 %v3233
    %4062 = vmatprep.subr.mxu0 %v3238
    %4063 = vmatpush1.msra.mxu0 %v3237
    %4064 = vmatprep.subr.mxu0 %v3242
    %4065 = vmatpush1.msra.mxu0 %v3241
    %4066 = vmatprep.subr.mxu0 %v3246
    %4067 = vmatpush1.msra.mxu0 %v3245
    %4068 = vmatprep.subr.mxu0 %v3250
    %4069 = vmatpush1.msra.mxu0 %v3249
    %4070 = vmatprep.mubr.f32.mxu0 %v3863
    %4071 = vmatmul.mubr.f32.gmra.mrb[0].mxu0 %v3862
    %v4072 = vpop.f32.mrb[0].mxu0
    %v4073 = vadd.f32 %v3520, %v4072
    %v4074 = vpop.f32.mrb[0].mxu0
    %v4075 = vadd.f32 %v3524, %v4074
    %4076 = vdwg.mxu0
    %4077 = vmatprep.subr.mxu0 %v3254
    %4078 = vmatpush1.msra.mxu0 %v3253
    %4079 = vmatprep.subr.mxu0 %v3258
    %4080 = vmatpush1.msra.mxu0 %v3257
    %4081 = vmatprep.subr.mxu0 %v3262
    %4082 = vmatpush1.msra.mxu0 %v3261
    %4083 = vmatprep.subr.mxu0 %v3266
    %4084 = vmatpush1.msra.mxu0 %v3265
    %4085 = vmatprep.subr.mxu0 %v3270
    %4086 = vmatpush1.msra.mxu0 %v3269
    %4087 = vmatprep.subr.mxu0 %v3274
    %4088 = vmatpush1.msra.mxu0 %v3273
    %4089 = vmatprep.subr.mxu0 %v3278
    %4090 = vmatpush1.msra.mxu0 %v3277
    %4091 = vmatprep.subr.mxu0 %v3282
    %4092 = vmatpush1.msra.mxu0 %v3281
    %4093 = vmatprep.subr.mxu0 %v3286
    %4094 = vmatpush1.msra.mxu0 %v3285
    %4095 = vmatprep.subr.mxu0 %v3290
    %4096 = vmatpush1.msra.mxu0 %v3289
    %4097 = vmatprep.subr.mxu0 %v3294
    %4098 = vmatpush1.msra.mxu0 %v3293
    %4099 = vmatprep.subr.mxu0 %v3298
    %4100 = vmatpush1.msra.mxu0 %v3297
    %4101 = vmatprep.subr.mxu0 %v3302
    %4102 = vmatpush1.msra.mxu0 %v3301
    %4103 = vmatprep.subr.mxu0 %v3306
    %4104 = vmatpush1.msra.mxu0 %v3305
    %4105 = vmatprep.subr.mxu0 %v3310
    %4106 = vmatpush1.msra.mxu0 %v3309
    %4107 = vmatprep.subr.mxu0 %v3314
    %4108 = vmatpush1.msra.mxu0 %v3313
    %4109 = vmatprep.subr.mxu0 0.0
    %4110 = vmatpush1.msra.mxu0 0.0
    %4111 = vmatprep.subr.mxu0 0.0
    %4112 = vmatpush1.msra.mxu0 0.0
    %4113 = vmatprep.subr.mxu0 0.0
    %4114 = vmatpush1.msra.mxu0 0.0
    %4115 = vmatprep.subr.mxu0 0.0
    %4116 = vmatpush1.msra.mxu0 0.0
    %4117 = vmatprep.subr.mxu0 0.0
    %4118 = vmatpush1.msra.mxu0 0.0
    %4119 = vmatprep.subr.mxu0 0.0
    %4120 = vmatpush1.msra.mxu0 0.0
    %4121 = vmatprep.subr.mxu0 0.0
    %4122 = vmatpush1.msra.mxu0 0.0
    %4123 = vmatprep.subr.mxu0 0.0
    %4124 = vmatpush1.msra.mxu0 0.0
    %4125 = vmatprep.subr.mxu0 0.0
    %4126 = vmatpush1.msra.mxu0 0.0
    %4127 = vmatprep.subr.mxu0 0.0
    %4128 = vmatpush1.msra.mxu0 0.0
    %4129 = vmatprep.subr.mxu0 0.0
    %4130 = vmatpush1.msra.mxu0 0.0
    %4131 = vmatprep.subr.mxu0 0.0
    %4132 = vmatpush1.msra.mxu0 0.0
    %4133 = vmatprep.subr.mxu0 0.0
    %4134 = vmatpush1.msra.mxu0 0.0
    %4135 = vmatprep.subr.mxu0 0.0
    %4136 = vmatpush1.msra.mxu0 0.0
    %4137 = vmatprep.subr.mxu0 0.0
    %4138 = vmatpush1.msra.mxu0 0.0
    %4139 = vmatprep.subr.mxu0 0.0
    %4140 = vmatpush1.msra.mxu0 0.0
    %4141 = vmatprep.mubr.f32.mxu0 0.0
    %4142 = vmatmul.mubr.f32.gmra.mrb[0].mxu0 %v3860
    %v4143 = vpop.f32.mrb[0].mxu0
    %v4144 = vadd.f32 %v4073, %v4143
    %v4145 = vpop.f32.mrb[0].mxu0
    %v4146 = vadd.f32 %v4075, %v4145
    %4147 = vdwg.mxu0
    %v4148 = vxor.u32 %v4002, 2147483648
    %v4149 = vmul.f32 %v4148, 1.442695
    %v4150 = vpow.pop %v4149
    %v4151 = vadd.f32 %v4150, 1.0
    %v4152 = vrcp.pop %v4151
    %v4153 = vmul.f32 1.0, %v4152
    %v4154 = vxor.u32 %v4004, 2147483648
    %v4155 = vmul.f32 %v4154, 1.442695
    %v4156 = vpow.pop %v4155
    %v4157 = vadd.f32 %v4156, 1.0
    %v4158 = vrcp.pop %v4157
    %v4159 = vmul.f32 1.0, %v4158
    %v4160 = vtanh.pop %v4144
    %v4161 = vxor.u32 %v4146, 2147483648
    %v4162 = vmul.f32 %v4161, 1.442695
    %v4163 = vpow.pop %v4162
    %v4164 = vadd.f32 %v4163, 1.0
    %v4165 = vrcp.pop %v4164
    %v4166 = vmul.f32 1.0, %v4165
    %v4167 = vmul.f32 %v4159, %v3858
    %v4168 = vmul.f32 %v4153, %v4160
    %v4169 = vadd.f32 %v4167, %v4168
    %v4170 = vtanh.pop %v4169
    %v4171 = vmul.f32 %v4166, %v4170
    %s4172 = scalar_lea.vmem [#allocation3], 16
    %4173 = vst [vmem:[%s4172] sm:$0xff] %v4171
    %v4174 = vld [vmem:[%s927] sm:$0xff]
    %v4175 = vld [vmem:[%s927 + $0x8] sm:$0xff]
    %4176 = vmatprep.subr.mxu0 %v3124
    %4177 = vmatpush1.msra.mxu0 %v3123
    %4178 = vmatprep.subr.mxu0 %v3128
    %4179 = vmatpush1.msra.mxu0 %v3127
    %4180 = vmatprep.subr.mxu0 %v3132
    %4181 = vmatpush1.msra.mxu0 %v3131
    %4182 = vmatprep.subr.mxu0 %v3136
    %4183 = vmatpush1.msra.mxu0 %v3135
    %4184 = vmatprep.subr.mxu0 %v3140
    %4185 = vmatpush1.msra.mxu0 %v3139
    %4186 = vmatprep.subr.mxu0 %v3144
    %4187 = vmatpush1.msra.mxu0 %v3143
    %4188 = vmatprep.subr.mxu0 %v3148
    %4189 = vmatpush1.msra.mxu0 %v3147
    %4190 = vmatprep.subr.mxu0 %v3152
    %4191 = vmatpush1.msra.mxu0 %v3151
    %4192 = vmatprep.subr.mxu0 %v3156
    %4193 = vmatpush1.msra.mxu0 %v3155
    %4194 = vmatprep.subr.mxu0 %v3160
    %4195 = vmatpush1.msra.mxu0 %v3159
    %4196 = vmatprep.subr.mxu0 %v3164
    %4197 = vmatpush1.msra.mxu0 %v3163
    %4198 = vmatprep.subr.mxu0 %v3168
    %4199 = vmatpush1.msra.mxu0 %v3167
    %4200 = vmatprep.subr.mxu0 %v3172
    %4201 = vmatpush1.msra.mxu0 %v3171
    %4202 = vmatprep.subr.mxu0 %v3176
    %4203 = vmatpush1.msra.mxu0 %v3175
    %4204 = vmatprep.subr.mxu0 %v3180
    %4205 = vmatpush1.msra.mxu0 %v3179
    %4206 = vmatprep.subr.mxu0 %v3184
    %4207 = vmatpush1.msra.mxu0 %v3183
    %4208 = vmatprep.subr.mxu0 %v3188
    %4209 = vmatpush1.msra.mxu0 %v3187
    %4210 = vmatprep.subr.mxu0 %v3192
    %4211 = vmatpush1.msra.mxu0 %v3191
    %4212 = vmatprep.subr.mxu0 %v3196
    %4213 = vmatpush1.msra.mxu0 %v3195
    %4214 = vmatprep.subr.mxu0 %v3200
    %4215 = vmatpush1.msra.mxu0 %v3199
    %4216 = vmatprep.subr.mxu0 %v3204
    %4217 = vmatpush1.msra.mxu0 %v3203
    %4218 = vmatprep.subr.mxu0 %v3208
    %4219 = vmatpush1.msra.mxu0 %v3207
    %4220 = vmatprep.subr.mxu0 %v3212
    %4221 = vmatpush1.msra.mxu0 %v3211
    %4222 = vmatprep.subr.mxu0 %v3216
    %4223 = vmatpush1.msra.mxu0 %v3215
    %4224 = vmatprep.subr.mxu0 %v3220
    %4225 = vmatpush1.msra.mxu0 %v3219
    %4226 = vmatprep.subr.mxu0 %v3224
    %4227 = vmatpush1.msra.mxu0 %v3223
    %4228 = vmatprep.subr.mxu0 %v3228
    %4229 = vmatpush1.msra.mxu0 %v3227
    %4230 = vmatprep.subr.mxu0 %v3232
    %4231 = vmatpush1.msra.mxu0 %v3231
    %4232 = vmatprep.subr.mxu0 %v3236
    %4233 = vmatpush1.msra.mxu0 %v3235
    %4234 = vmatprep.subr.mxu0 %v3240
    %4235 = vmatpush1.msra.mxu0 %v3239
    %4236 = vmatprep.subr.mxu0 %v3244
    %4237 = vmatpush1.msra.mxu0 %v3243
    %4238 = vmatprep.subr.mxu0 %v3248
    %4239 = vmatpush1.msra.mxu0 %v3247
    %4240 = vmatprep.mubr.f32.mxu0 %v4175
    %4241 = vmatmul.mubr.f32.gmra.mrb[0].mxu0 %v4174
    %v4242 = vpop.f32.mrb[0].mxu0
    %v4243 = vadd.f32 %v3512, %v4242
    %v4244 = vpop.f32.mrb[0].mxu0
    %v4245 = vadd.f32 %v3516, %v4244
    %4246 = vdwg.mxu0
    %4247 = vmatprep.subr.mxu0 %v3252
    %4248 = vmatpush1.msra.mxu0 %v3251
    %4249 = vmatprep.subr.mxu0 %v3256
    %4250 = vmatpush1.msra.mxu0 %v3255
    %4251 = vmatprep.subr.mxu0 %v3260
    %4252 = vmatpush1.msra.mxu0 %v3259
    %4253 = vmatprep.subr.mxu0 %v3264
    %4254 = vmatpush1.msra.mxu0 %v3263
    %4255 = vmatprep.subr.mxu0 %v3268
    %4256 = vmatpush1.msra.mxu0 %v3267
    %4257 = vmatprep.subr.mxu0 %v3272
    %4258 = vmatpush1.msra.mxu0 %v3271
    %4259 = vmatprep.subr.mxu0 %v3276
    %4260 = vmatpush1.msra.mxu0 %v3275
    %4261 = vmatprep.subr.mxu0 %v3280
    %4262 = vmatpush1.msra.mxu0 %v3279
    %4263 = vmatprep.subr.mxu0 %v3284
    %4264 = vmatpush1.msra.mxu0 %v3283
    %4265 = vmatprep.subr.mxu0 %v3288
    %4266 = vmatpush1.msra.mxu0 %v3287
    %4267 = vmatprep.subr.mxu0 %v3292
    %4268 = vmatpush1.msra.mxu0 %v3291
    %4269 = vmatprep.subr.mxu0 %v3296
    %4270 = vmatpush1.msra.mxu0 %v3295
    %4271 = vmatprep.subr.mxu0 %v3300
    %4272 = vmatpush1.msra.mxu0 %v3299
    %4273 = vmatprep.subr.mxu0 %v3304
    %4274 = vmatpush1.msra.mxu0 %v3303
    %4275 = vmatprep.subr.mxu0 %v3308
    %4276 = vmatpush1.msra.mxu0 %v3307
    %4277 = vmatprep.subr.mxu0 %v3312
    %4278 = vmatpush1.msra.mxu0 %v3311
    %4279 = vmatprep.subr.mxu0 0.0
    %4280 = vmatpush1.msra.mxu0 0.0
    %4281 = vmatprep.subr.mxu0 0.0
    %4282 = vmatpush1.msra.mxu0 0.0
    %4283 = vmatprep.subr.mxu0 0.0
    %4284 = vmatpush1.msra.mxu0 0.0
    %4285 = vmatprep.subr.mxu0 0.0
    %4286 = vmatpush1.msra.mxu0 0.0
    %4287 = vmatprep.subr.mxu0 0.0
    %4288 = vmatpush1.msra.mxu0 0.0
    %4289 = vmatprep.subr.mxu0 0.0
    %4290 = vmatpush1.msra.mxu0 0.0
    %4291 = vmatprep.subr.mxu0 0.0
    %4292 = vmatpush1.msra.mxu0 0.0
    %4293 = vmatprep.subr.mxu0 0.0
    %4294 = vmatpush1.msra.mxu0 0.0
    %4295 = vmatprep.subr.mxu0 0.0
    %4296 = vmatpush1.msra.mxu0 0.0
    %4297 = vmatprep.subr.mxu0 0.0
    %4298 = vmatpush1.msra.mxu0 0.0
    %4299 = vmatprep.subr.mxu0 0.0
    %4300 = vmatpush1.msra.mxu0 0.0
    %4301 = vmatprep.subr.mxu0 0.0
    %4302 = vmatpush1.msra.mxu0 0.0
    %4303 = vmatprep.subr.mxu0 0.0
    %4304 = vmatpush1.msra.mxu0 0.0
    %4305 = vmatprep.subr.mxu0 0.0
    %4306 = vmatpush1.msra.mxu0 0.0
    %4307 = vmatprep.subr.mxu0 0.0
    %4308 = vmatpush1.msra.mxu0 0.0
    %4309 = vmatprep.subr.mxu0 0.0
    %4310 = vmatpush1.msra.mxu0 0.0
    %4311 = vmatprep.mubr.f32.mxu0 0.0
    %4312 = vmatmul.mubr.f32.gmra.mrb[0].mxu0 %v4171
    %v4313 = vpop.f32.mrb[0].mxu0
    %v4314 = vadd.f32 %v4243, %v4313
    %v4315 = vpop.f32.mrb[0].mxu0
    %v4316 = vadd.f32 %v4245, %v4315
    %4317 = vdwg.mxu0
    %4318 = vmatprep.subr.mxu0 %v3126
    %4319 = vmatpush1.msra.mxu0 %v3125
    %4320 = vmatprep.subr.mxu0 %v3130
    %4321 = vmatpush1.msra.mxu0 %v3129
    %4322 = vmatprep.subr.mxu0 %v3134
    %4323 = vmatpush1.msra.mxu0 %v3133
    %4324 = vmatprep.subr.mxu0 %v3138
    %4325 = vmatpush1.msra.mxu0 %v3137
    %4326 = vmatprep.subr.mxu0 %v3142
    %4327 = vmatpush1.msra.mxu0 %v3141
    %4328 = vmatprep.subr.mxu0 %v3146
    %4329 = vmatpush1.msra.mxu0 %v3145
    %4330 = vmatprep.subr.mxu0 %v3150
    %4331 = vmatpush1.msra.mxu0 %v3149
    %4332 = vmatprep.subr.mxu0 %v3154
    %4333 = vmatpush1.msra.mxu0 %v3153
    %4334 = vmatprep.subr.mxu0 %v3158
    %4335 = vmatpush1.msra.mxu0 %v3157
    %4336 = vmatprep.subr.mxu0 %v3162
    %4337 = vmatpush1.msra.mxu0 %v3161
    %4338 = vmatprep.subr.mxu0 %v3166
    %4339 = vmatpush1.msra.mxu0 %v3165
    %4340 = vmatprep.subr.mxu0 %v3170
    %4341 = vmatpush1.msra.mxu0 %v3169
    %4342 = vmatprep.subr.mxu0 %v3174
    %4343 = vmatpush1.msra.mxu0 %v3173
    %4344 = vmatprep.subr.mxu0 %v3178
    %4345 = vmatpush1.msra.mxu0 %v3177
    %4346 = vmatprep.subr.mxu0 %v3182
    %4347 = vmatpush1.msra.mxu0 %v3181
    %4348 = vmatprep.subr.mxu0 %v3186
    %4349 = vmatpush1.msra.mxu0 %v3185
    %4350 = vmatprep.subr.mxu0 %v3190
    %4351 = vmatpush1.msra.mxu0 %v3189
    %4352 = vmatprep.subr.mxu0 %v3194
    %4353 = vmatpush1.msra.mxu0 %v3193
    %4354 = vmatprep.subr.mxu0 %v3198
    %4355 = vmatpush1.msra.mxu0 %v3197
    %4356 = vmatprep.subr.mxu0 %v3202
    %4357 = vmatpush1.msra.mxu0 %v3201
    %4358 = vmatprep.subr.mxu0 %v3206
    %4359 = vmatpush1.msra.mxu0 %v3205
    %4360 = vmatprep.subr.mxu0 %v3210
    %4361 = vmatpush1.msra.mxu0 %v3209
    %4362 = vmatprep.subr.mxu0 %v3214
    %4363 = vmatpush1.msra.mxu0 %v3213
    %4364 = vmatprep.subr.mxu0 %v3218
    %4365 = vmatpush1.msra.mxu0 %v3217
    %4366 = vmatprep.subr.mxu0 %v3222
    %4367 = vmatpush1.msra.mxu0 %v3221
    %4368 = vmatprep.subr.mxu0 %v3226
    %4369 = vmatpush1.msra.mxu0 %v3225
    %4370 = vmatprep.subr.mxu0 %v3230
    %4371 = vmatpush1.msra.mxu0 %v3229
    %4372 = vmatprep.subr.mxu0 %v3234
    %4373 = vmatpush1.msra.mxu0 %v3233
    %4374 = vmatprep.subr.mxu0 %v3238
    %4375 = vmatpush1.msra.mxu0 %v3237
    %4376 = vmatprep.subr.mxu0 %v3242
    %4377 = vmatpush1.msra.mxu0 %v3241
    %4378 = vmatprep.subr.mxu0 %v3246
    %4379 = vmatpush1.msra.mxu0 %v3245
    %4380 = vmatprep.subr.mxu0 %v3250
    %4381 = vmatpush1.msra.mxu0 %v3249
    %4382 = vmatprep.mubr.f32.mxu0 %v4175
    %4383 = vmatmul.mubr.f32.gmra.mrb[0].mxu0 %v4174
    %v4384 = vpop.f32.mrb[0].mxu0
    %v4385 = vadd.f32 %v3520, %v4384
    %v4386 = vpop.f32.mrb[0].mxu0
    %v4387 = vadd.f32 %v3524, %v4386
    %4388 = vdwg.mxu0
    %4389 = vmatprep.subr.mxu0 %v3254
    %4390 = vmatpush1.msra.mxu0 %v3253
    %4391 = vmatprep.subr.mxu0 %v3258
    %4392 = vmatpush1.msra.mxu0 %v3257
    %4393 = vmatprep.subr.mxu0 %v3262
    %4394 = vmatpush1.msra.mxu0 %v3261
    %4395 = vmatprep.subr.mxu0 %v3266
    %4396 = vmatpush1.msra.mxu0 %v3265
    %4397 = vmatprep.subr.mxu0 %v3270
    %4398 = vmatpush1.msra.mxu0 %v3269
    %4399 = vmatprep.subr.mxu0 %v3274
    %4400 = vmatpush1.msra.mxu0 %v3273
    %4401 = vmatprep.subr.mxu0 %v3278
    %4402 = vmatpush1.msra.mxu0 %v3277
    %4403 = vmatprep.subr.mxu0 %v3282
    %4404 = vmatpush1.msra.mxu0 %v3281
    %4405 = vmatprep.subr.mxu0 %v3286
    %4406 = vmatpush1.msra.mxu0 %v3285
    %4407 = vmatprep.subr.mxu0 %v3290
    %4408 = vmatpush1.msra.mxu0 %v3289
    %4409 = vmatprep.subr.mxu0 %v3294
    %4410 = vmatpush1.msra.mxu0 %v3293
    %4411 = vmatprep.subr.mxu0 %v3298
    %4412 = vmatpush1.msra.mxu0 %v3297
    %4413 = vmatprep.subr.mxu0 %v3302
    %4414 = vmatpush1.msra.mxu0 %v3301
    %4415 = vmatprep.subr.mxu0 %v3306
    %4416 = vmatpush1.msra.mxu0 %v3305
    %4417 = vmatprep.subr.mxu0 %v3310
    %4418 = vmatpush1.msra.mxu0 %v3309
    %4419 = vmatprep.subr.mxu0 %v3314
    %4420 = vmatpush1.msra.mxu0 %v3313
    %4421 = vmatprep.subr.mxu0 0.0
    %4422 = vmatpush1.msra.mxu0 0.0
    %4423 = vmatprep.subr.mxu0 0.0
    %4424 = vmatpush1.msra.mxu0 0.0
    %4425 = vmatprep.subr.mxu0 0.0
    %4426 = vmatpush1.msra.mxu0 0.0
    %4427 = vmatprep.subr.mxu0 0.0
    %4428 = vmatpush1.msra.mxu0 0.0
    %4429 = vmatprep.subr.mxu0 0.0
    %4430 = vmatpush1.msra.mxu0 0.0
    %4431 = vmatprep.subr.mxu0 0.0
    %4432 = vmatpush1.msra.mxu0 0.0
    %4433 = vmatprep.subr.mxu0 0.0
    %4434 = vmatpush1.msra.mxu0 0.0
    %4435 = vmatprep.subr.mxu0 0.0
    %4436 = vmatpush1.msra.mxu0 0.0
    %4437 = vmatprep.subr.mxu0 0.0
    %4438 = vmatpush1.msra.mxu0 0.0
    %4439 = vmatprep.subr.mxu0 0.0
    %4440 = vmatpush1.msra.mxu0 0.0
    %4441 = vmatprep.subr.mxu0 0.0
    %4442 = vmatpush1.msra.mxu0 0.0
    %4443 = vmatprep.subr.mxu0 0.0
    %4444 = vmatpush1.msra.mxu0 0.0
    %4445 = vmatprep.subr.mxu0 0.0
    %4446 = vmatpush1.msra.mxu0 0.0
    %4447 = vmatprep.subr.mxu0 0.0
    %4448 = vmatpush1.msra.mxu0 0.0
    %4449 = vmatprep.subr.mxu0 0.0
    %4450 = vmatpush1.msra.mxu0 0.0
    %4451 = vmatprep.subr.mxu0 0.0
    %4452 = vmatpush1.msra.mxu0 0.0
    %4453 = vmatprep.mubr.f32.mxu0 0.0
    %4454 = vmatmul.mubr.f32.gmra.mrb[0].mxu0 %v4171
    %v4455 = vpop.f32.mrb[0].mxu0
    %v4456 = vadd.f32 %v4385, %v4455
    %v4457 = vpop.f32.mrb[0].mxu0
    %v4458 = vadd.f32 %v4387, %v4457
    %4459 = vdwg.mxu0
    %v4460 = vxor.u32 %v4314, 2147483648
    %v4461 = vmul.f32 %v4460, 1.442695
    %v4462 = vpow.pop %v4461
    %v4463 = vadd.f32 %v4462, 1.0
    %v4464 = vrcp.pop %v4463
    %v4465 = vmul.f32 1.0, %v4464
    %v4466 = vxor.u32 %v4316, 2147483648
    %v4467 = vmul.f32 %v4466, 1.442695
    %v4468 = vpow.pop %v4467
    %v4469 = vadd.f32 %v4468, 1.0
    %v4470 = vrcp.pop %v4469
    %v4471 = vmul.f32 1.0, %v4470
    %v4472 = vtanh.pop %v4456
    %v4473 = vxor.u32 %v4458, 2147483648
    %v4474 = vmul.f32 %v4473, 1.442695
    %v4475 = vpow.pop %v4474
    %v4476 = vadd.f32 %v4475, 1.0
    %v4477 = vrcp.pop %v4476
    %v4478 = vmul.f32 1.0, %v4477
    %v4479 = vmul.f32 %v4471, %v4169
    %v4480 = vmul.f32 %v4465, %v4472
    %v4481 = vadd.f32 %v4479, %v4480
    %v4482 = vtanh.pop %v4481
    %v4483 = vmul.f32 %v4478, %v4482
    %s4484 = scalar_lea.vmem [#allocation3], 32
    %4485 = vst [vmem:[%s4484] sm:$0xff] %v4483
    %v4486 = vld [vmem:[%s1097] sm:$0xff]
    %v4487 = vld [vmem:[%s1097 + $0x8] sm:$0xff]
    %4488 = vmatprep.subr.mxu0 %v3124
    %4489 = vmatpush1.msra.mxu0 %v3123
    %4490 = vmatprep.subr.mxu0 %v3128
    %4491 = vmatpush1.msra.mxu0 %v3127
    %4492 = vmatprep.subr.mxu0 %v3132
    %4493 = vmatpush1.msra.mxu0 %v3131
    %4494 = vmatprep.subr.mxu0 %v3136
    %4495 = vmatpush1.msra.mxu0 %v3135
    %4496 = vmatprep.subr.mxu0 %v3140
    %4497 = vmatpush1.msra.mxu0 %v3139
    %4498 = vmatprep.subr.mxu0 %v3144
    %4499 = vmatpush1.msra.mxu0 %v3143
    %4500 = vmatprep.subr.mxu0 %v3148
    %4501 = vmatpush1.msra.mxu0 %v3147
    %4502 = vmatprep.subr.mxu0 %v3152
    %4503 = vmatpush1.msra.mxu0 %v3151
    %4504 = vmatprep.subr.mxu0 %v3156
    %4505 = vmatpush1.msra.mxu0 %v3155
    %4506 = vmatprep.subr.mxu0 %v3160
    %4507 = vmatpush1.msra.mxu0 %v3159
    %4508 = vmatprep.subr.mxu0 %v3164
    %4509 = vmatpush1.msra.mxu0 %v3163
    %4510 = vmatprep.subr.mxu0 %v3168
    %4511 = vmatpush1.msra.mxu0 %v3167
    %4512 = vmatprep.subr.mxu0 %v3172
    %4513 = vmatpush1.msra.mxu0 %v3171
    %4514 = vmatprep.subr.mxu0 %v3176
    %4515 = vmatpush1.msra.mxu0 %v3175
    %4516 = vmatprep.subr.mxu0 %v3180
    %4517 = vmatpush1.msra.mxu0 %v3179
    %4518 = vmatprep.subr.mxu0 %v3184
    %4519 = vmatpush1.msra.mxu0 %v3183
    %4520 = vmatprep.subr.mxu0 %v3188
    %4521 = vmatpush1.msra.mxu0 %v3187
    %4522 = vmatprep.subr.mxu0 %v3192
    %4523 = vmatpush1.msra.mxu0 %v3191
    %4524 = vmatprep.subr.mxu0 %v3196
    %4525 = vmatpush1.msra.mxu0 %v3195
    %4526 = vmatprep.subr.mxu0 %v3200
    %4527 = vmatpush1.msra.mxu0 %v3199
    %4528 = vmatprep.subr.mxu0 %v3204
    %4529 = vmatpush1.msra.mxu0 %v3203
    %4530 = vmatprep.subr.mxu0 %v3208
    %4531 = vmatpush1.msra.mxu0 %v3207
    %4532 = vmatprep.subr.mxu0 %v3212
    %4533 = vmatpush1.msra.mxu0 %v3211
    %4534 = vmatprep.subr.mxu0 %v3216
    %4535 = vmatpush1.msra.mxu0 %v3215
    %4536 = vmatprep.subr.mxu0 %v3220
    %4537 = vmatpush1.msra.mxu0 %v3219
    %4538 = vmatprep.subr.mxu0 %v3224
    %4539 = vmatpush1.msra.mxu0 %v3223
    %4540 = vmatprep.subr.mxu0 %v3228
    %4541 = vmatpush1.msra.mxu0 %v3227
    %4542 = vmatprep.subr.mxu0 %v3232
    %4543 = vmatpush1.msra.mxu0 %v3231
    %4544 = vmatprep.subr.mxu0 %v3236
    %4545 = vmatpush1.msra.mxu0 %v3235
    %4546 = vmatprep.subr.mxu0 %v3240
    %4547 = vmatpush1.msra.mxu0 %v3239
    %4548 = vmatprep.subr.mxu0 %v3244
    %4549 = vmatpush1.msra.mxu0 %v3243
    %4550 = vmatprep.subr.mxu0 %v3248
    %4551 = vmatpush1.msra.mxu0 %v3247
    %4552 = vmatprep.mubr.f32.mxu0 %v4487
    %4553 = vmatmul.mubr.f32.gmra.mrb[0].mxu0 %v4486
    %v4554 = vpop.f32.mrb[0].mxu0
    %v4555 = vadd.f32 %v3512, %v4554
    %v4556 = vpop.f32.mrb[0].mxu0
    %v4557 = vadd.f32 %v3516, %v4556
    %4558 = vdwg.mxu0
    %4559 = vmatprep.subr.mxu0 %v3252
    %4560 = vmatpush1.msra.mxu0 %v3251
    %4561 = vmatprep.subr.mxu0 %v3256
    %4562 = vmatpush1.msra.mxu0 %v3255
    %4563 = vmatprep.subr.mxu0 %v3260
    %4564 = vmatpush1.msra.mxu0 %v3259
    %4565 = vmatprep.subr.mxu0 %v3264
    %4566 = vmatpush1.msra.mxu0 %v3263
    %4567 = vmatprep.subr.mxu0 %v3268
    %4568 = vmatpush1.msra.mxu0 %v3267
    %4569 = vmatprep.subr.mxu0 %v3272
    %4570 = vmatpush1.msra.mxu0 %v3271
    %4571 = vmatprep.subr.mxu0 %v3276
    %4572 = vmatpush1.msra.mxu0 %v3275
    %4573 = vmatprep.subr.mxu0 %v3280
    %4574 = vmatpush1.msra.mxu0 %v3279
    %4575 = vmatprep.subr.mxu0 %v3284
    %4576 = vmatpush1.msra.mxu0 %v3283
    %4577 = vmatprep.subr.mxu0 %v3288
    %4578 = vmatpush1.msra.mxu0 %v3287
    %4579 = vmatprep.subr.mxu0 %v3292
    %4580 = vmatpush1.msra.mxu0 %v3291
    %4581 = vmatprep.subr.mxu0 %v3296
    %4582 = vmatpush1.msra.mxu0 %v3295
    %4583 = vmatprep.subr.mxu0 %v3300
    %4584 = vmatpush1.msra.mxu0 %v3299
    %4585 = vmatprep.subr.mxu0 %v3304
    %4586 = vmatpush1.msra.mxu0 %v3303
    %4587 = vmatprep.subr.mxu0 %v3308
    %4588 = vmatpush1.msra.mxu0 %v3307
    %4589 = vmatprep.subr.mxu0 %v3312
    %4590 = vmatpush1.msra.mxu0 %v3311
    %4591 = vmatprep.subr.mxu0 0.0
    %4592 = vmatpush1.msra.mxu0 0.0
    %4593 = vmatprep.subr.mxu0 0.0
    %4594 = vmatpush1.msra.mxu0 0.0
    %4595 = vmatprep.subr.mxu0 0.0
    %4596 = vmatpush1.msra.mxu0 0.0
    %4597 = vmatprep.subr.mxu0 0.0
    %4598 = vmatpush1.msra.mxu0 0.0
    %4599 = vmatprep.subr.mxu0 0.0
    %4600 = vmatpush1.msra.mxu0 0.0
    %4601 = vmatprep.subr.mxu0 0.0
    %4602 = vmatpush1.msra.mxu0 0.0
    %4603 = vmatprep.subr.mxu0 0.0
    %4604 = vmatpush1.msra.mxu0 0.0
    %4605 = vmatprep.subr.mxu0 0.0
    %4606 = vmatpush1.msra.mxu0 0.0
    %4607 = vmatprep.subr.mxu0 0.0
    %4608 = vmatpush1.msra.mxu0 0.0
    %4609 = vmatprep.subr.mxu0 0.0
    %4610 = vmatpush1.msra.mxu0 0.0
    %4611 = vmatprep.subr.mxu0 0.0
    %4612 = vmatpush1.msra.mxu0 0.0
    %4613 = vmatprep.subr.mxu0 0.0
    %4614 = vmatpush1.msra.mxu0 0.0
    %4615 = vmatprep.subr.mxu0 0.0
    %4616 = vmatpush1.msra.mxu0 0.0
    %4617 = vmatprep.subr.mxu0 0.0
    %4618 = vmatpush1.msra.mxu0 0.0
    %4619 = vmatprep.subr.mxu0 0.0
    %4620 = vmatpush1.msra.mxu0 0.0
    %4621 = vmatprep.subr.mxu0 0.0
    %4622 = vmatpush1.msra.mxu0 0.0
    %4623 = vmatprep.mubr.f32.mxu0 0.0
    %4624 = vmatmul.mubr.f32.gmra.mrb[0].mxu0 %v4483
    %v4625 = vpop.f32.mrb[0].mxu0
    %v4626 = vadd.f32 %v4555, %v4625
    %v4627 = vpop.f32.mrb[0].mxu0
    %v4628 = vadd.f32 %v4557, %v4627
    %4629 = vdwg.mxu0
    %4630 = vmatprep.subr.mxu0 %v3126
    %4631 = vmatpush1.msra.mxu0 %v3125
    %4632 = vmatprep.subr.mxu0 %v3130
    %4633 = vmatpush1.msra.mxu0 %v3129
    %4634 = vmatprep.subr.mxu0 %v3134
    %4635 = vmatpush1.msra.mxu0 %v3133
    %4636 = vmatprep.subr.mxu0 %v3138
    %4637 = vmatpush1.msra.mxu0 %v3137
    %4638 = vmatprep.subr.mxu0 %v3142
    %4639 = vmatpush1.msra.mxu0 %v3141
    %4640 = vmatprep.subr.mxu0 %v3146
    %4641 = vmatpush1.msra.mxu0 %v3145
    %4642 = vmatprep.subr.mxu0 %v3150
    %4643 = vmatpush1.msra.mxu0 %v3149
    %4644 = vmatprep.subr.mxu0 %v3154
    %4645 = vmatpush1.msra.mxu0 %v3153
    %4646 = vmatprep.subr.mxu0 %v3158
    %4647 = vmatpush1.msra.mxu0 %v3157
    %4648 = vmatprep.subr.mxu0 %v3162
    %4649 = vmatpush1.msra.mxu0 %v3161
    %4650 = vmatprep.subr.mxu0 %v3166
    %4651 = vmatpush1.msra.mxu0 %v3165
    %4652 = vmatprep.subr.mxu0 %v3170
    %4653 = vmatpush1.msra.mxu0 %v3169
    %4654 = vmatprep.subr.mxu0 %v3174
    %4655 = vmatpush1.msra.mxu0 %v3173
    %4656 = vmatprep.subr.mxu0 %v3178
    %4657 = vmatpush1.msra.mxu0 %v3177
    %4658 = vmatprep.subr.mxu0 %v3182
    %4659 = vmatpush1.msra.mxu0 %v3181
    %4660 = vmatprep.subr.mxu0 %v3186
    %4661 = vmatpush1.msra.mxu0 %v3185
    %4662 = vmatprep.subr.mxu0 %v3190
    %4663 = vmatpush1.msra.mxu0 %v3189
    %4664 = vmatprep.subr.mxu0 %v3194
    %4665 = vmatpush1.msra.mxu0 %v3193
    %4666 = vmatprep.subr.mxu0 %v3198
    %4667 = vmatpush1.msra.mxu0 %v3197
    %4668 = vmatprep.subr.mxu0 %v3202
    %4669 = vmatpush1.msra.mxu0 %v3201
    %4670 = vmatprep.subr.mxu0 %v3206
    %4671 = vmatpush1.msra.mxu0 %v3205
    %4672 = vmatprep.subr.mxu0 %v3210
    %4673 = vmatpush1.msra.mxu0 %v3209
    %4674 = vmatprep.subr.mxu0 %v3214
    %4675 = vmatpush1.msra.mxu0 %v3213
    %4676 = vmatprep.subr.mxu0 %v3218
    %4677 = vmatpush1.msra.mxu0 %v3217
    %4678 = vmatprep.subr.mxu0 %v3222
    %4679 = vmatpush1.msra.mxu0 %v3221
    %4680 = vmatprep.subr.mxu0 %v3226
    %4681 = vmatpush1.msra.mxu0 %v3225
    %4682 = vmatprep.subr.mxu0 %v3230
    %4683 = vmatpush1.msra.mxu0 %v3229
    %4684 = vmatprep.subr.mxu0 %v3234
    %4685 = vmatpush1.msra.mxu0 %v3233
    %4686 = vmatprep.subr.mxu0 %v3238
    %4687 = vmatpush1.msra.mxu0 %v3237
    %4688 = vmatprep.subr.mxu0 %v3242
    %4689 = vmatpush1.msra.mxu0 %v3241
    %4690 = vmatprep.subr.mxu0 %v3246
    %4691 = vmatpush1.msra.mxu0 %v3245
    %4692 = vmatprep.subr.mxu0 %v3250
    %4693 = vmatpush1.msra.mxu0 %v3249
    %4694 = vmatprep.mubr.f32.mxu0 %v4487
    %4695 = vmatmul.mubr.f32.gmra.mrb[0].mxu0 %v4486
    %v4696 = vpop.f32.mrb[0].mxu0
    %v4697 = vadd.f32 %v3520, %v4696
    %v4698 = vpop.f32.mrb[0].mxu0
    %v4699 = vadd.f32 %v3524, %v4698
    %4700 = vdwg.mxu0
    %4701 = vmatprep.subr.mxu0 %v3254
    %4702 = vmatpush1.msra.mxu0 %v3253
    %4703 = vmatprep.subr.mxu0 %v3258
    %4704 = vmatpush1.msra.mxu0 %v3257
    %4705 = vmatprep.subr.mxu0 %v3262
    %4706 = vmatpush1.msra.mxu0 %v3261
    %4707 = vmatprep.subr.mxu0 %v3266
    %4708 = vmatpush1.msra.mxu0 %v3265
    %4709 = vmatprep.subr.mxu0 %v3270
    %4710 = vmatpush1.msra.mxu0 %v3269
    %4711 = vmatprep.subr.mxu0 %v3274
    %4712 = vmatpush1.msra.mxu0 %v3273
    %4713 = vmatprep.subr.mxu0 %v3278
    %4714 = vmatpush1.msra.mxu0 %v3277
    %4715 = vmatprep.subr.mxu0 %v3282
    %4716 = vmatpush1.msra.mxu0 %v3281
    %4717 = vmatprep.subr.mxu0 %v3286
    %4718 = vmatpush1.msra.mxu0 %v3285
    %4719 = vmatprep.subr.mxu0 %v3290
    %4720 = vmatpush1.msra.mxu0 %v3289
    %4721 = vmatprep.subr.mxu0 %v3294
    %4722 = vmatpush1.msra.mxu0 %v3293
    %4723 = vmatprep.subr.mxu0 %v3298
    %4724 = vmatpush1.msra.mxu0 %v3297
    %4725 = vmatprep.subr.mxu0 %v3302
    %4726 = vmatpush1.msra.mxu0 %v3301
    %4727 = vmatprep.subr.mxu0 %v3306
    %4728 = vmatpush1.msra.mxu0 %v3305
    %4729 = vmatprep.subr.mxu0 %v3310
    %4730 = vmatpush1.msra.mxu0 %v3309
    %4731 = vmatprep.subr.mxu0 %v3314
    %4732 = vmatpush1.msra.mxu0 %v3313
    %4733 = vmatprep.subr.mxu0 0.0
    %4734 = vmatpush1.msra.mxu0 0.0
    %4735 = vmatprep.subr.mxu0 0.0
    %4736 = vmatpush1.msra.mxu0 0.0
    %4737 = vmatprep.subr.mxu0 0.0
    %4738 = vmatpush1.msra.mxu0 0.0
    %4739 = vmatprep.subr.mxu0 0.0
    %4740 = vmatpush1.msra.mxu0 0.0
    %4741 = vmatprep.subr.mxu0 0.0
    %4742 = vmatpush1.msra.mxu0 0.0
    %4743 = vmatprep.subr.mxu0 0.0
    %4744 = vmatpush1.msra.mxu0 0.0
    %4745 = vmatprep.subr.mxu0 0.0
    %4746 = vmatpush1.msra.mxu0 0.0
    %4747 = vmatprep.subr.mxu0 0.0
    %4748 = vmatpush1.msra.mxu0 0.0
    %4749 = vmatprep.subr.mxu0 0.0
    %4750 = vmatpush1.msra.mxu0 0.0
    %4751 = vmatprep.subr.mxu0 0.0
    %4752 = vmatpush1.msra.mxu0 0.0
    %4753 = vmatprep.subr.mxu0 0.0
    %4754 = vmatpush1.msra.mxu0 0.0
    %4755 = vmatprep.subr.mxu0 0.0
    %4756 = vmatpush1.msra.mxu0 0.0
    %4757 = vmatprep.subr.mxu0 0.0
    %4758 = vmatpush1.msra.mxu0 0.0
    %4759 = vmatprep.subr.mxu0 0.0
    %4760 = vmatpush1.msra.mxu0 0.0
    %4761 = vmatprep.subr.mxu0 0.0
    %4762 = vmatpush1.msra.mxu0 0.0
    %4763 = vmatprep.subr.mxu0 0.0
    %4764 = vmatpush1.msra.mxu0 0.0
    %4765 = vmatprep.mubr.f32.mxu0 0.0
    %4766 = vmatmul.mubr.f32.gmra.mrb[0].mxu0 %v4483
    %v4767 = vpop.f32.mrb[0].mxu0
    %v4768 = vadd.f32 %v4697, %v4767
    %v4769 = vpop.f32.mrb[0].mxu0
    %v4770 = vadd.f32 %v4699, %v4769
    %4771 = vdwg.mxu0
    %v4772 = vxor.u32 %v4626, 2147483648
    %v4773 = vmul.f32 %v4772, 1.442695
    %v4774 = vpow.pop %v4773
    %v4775 = vadd.f32 %v4774, 1.0
    %v4776 = vrcp.pop %v4775
    %v4777 = vmul.f32 1.0, %v4776
    %v4778 = vxor.u32 %v4628, 2147483648
    %v4779 = vmul.f32 %v4778, 1.442695
    %v4780 = vpow.pop %v4779
    %v4781 = vadd.f32 %v4780, 1.0
    %v4782 = vrcp.pop %v4781
    %v4783 = vmul.f32 1.0, %v4782
    %v4784 = vtanh.pop %v4768
    %v4785 = vxor.u32 %v4770, 2147483648
    %v4786 = vmul.f32 %v4785, 1.442695
    %v4787 = vpow.pop %v4786
    %v4788 = vadd.f32 %v4787, 1.0
    %v4789 = vrcp.pop %v4788
    %v4790 = vmul.f32 1.0, %v4789
    %v4791 = vmul.f32 %v4783, %v4481
    %v4792 = vmul.f32 %v4777, %v4784
    %v4793 = vadd.f32 %v4791, %v4792
    %v4794 = vtanh.pop %v4793
    %v4795 = vmul.f32 %v4790, %v4794
    %s4796 = scalar_lea.vmem [#allocation3], 48
    %4797 = vst [vmem:[%s4796] sm:$0xff] %v4795
    %v4798 = vld [vmem:[%s1267] sm:$0xff]
    %v4799 = vld [vmem:[%s1267 + $0x8] sm:$0xff]
    %4800 = vmatprep.subr.mxu0 %v3124
    %4801 = vmatpush1.msra.mxu0 %v3123
    %4802 = vmatprep.subr.mxu0 %v3128
    %4803 = vmatpush1.msra.mxu0 %v3127
    %4804 = vmatprep.subr.mxu0 %v3132
    %4805 = vmatpush1.msra.mxu0 %v3131
    %4806 = vmatprep.subr.mxu0 %v3136
    %4807 = vmatpush1.msra.mxu0 %v3135
    %4808 = vmatprep.subr.mxu0 %v3140
    %4809 = vmatpush1.msra.mxu0 %v3139
    %4810 = vmatprep.subr.mxu0 %v3144
    %4811 = vmatpush1.msra.mxu0 %v3143
    %4812 = vmatprep.subr.mxu0 %v3148
    %4813 = vmatpush1.msra.mxu0 %v3147
    %4814 = vmatprep.subr.mxu0 %v3152
    %4815 = vmatpush1.msra.mxu0 %v3151
    %4816 = vmatprep.subr.mxu0 %v3156
    %4817 = vmatpush1.msra.mxu0 %v3155
    %4818 = vmatprep.subr.mxu0 %v3160
    %4819 = vmatpush1.msra.mxu0 %v3159
    %4820 = vmatprep.subr.mxu0 %v3164
    %4821 = vmatpush1.msra.mxu0 %v3163
    %4822 = vmatprep.subr.mxu0 %v3168
    %4823 = vmatpush1.msra.mxu0 %v3167
    %4824 = vmatprep.subr.mxu0 %v3172
    %4825 = vmatpush1.msra.mxu0 %v3171
    %4826 = vmatprep.subr.mxu0 %v3176
    %4827 = vmatpush1.msra.mxu0 %v3175
    %4828 = vmatprep.subr.mxu0 %v3180
    %4829 = vmatpush1.msra.mxu0 %v3179
    %4830 = vmatprep.subr.mxu0 %v3184
    %4831 = vmatpush1.msra.mxu0 %v3183
    %4832 = vmatprep.subr.mxu0 %v3188
    %4833 = vmatpush1.msra.mxu0 %v3187
    %4834 = vmatprep.subr.mxu0 %v3192
    %4835 = vmatpush1.msra.mxu0 %v3191
    %4836 = vmatprep.subr.mxu0 %v3196
    %4837 = vmatpush1.msra.mxu0 %v3195
    %4838 = vmatprep.subr.mxu0 %v3200
    %4839 = vmatpush1.msra.mxu0 %v3199
    %4840 = vmatprep.subr.mxu0 %v3204
    %4841 = vmatpush1.msra.mxu0 %v3203
    %4842 = vmatprep.subr.mxu0 %v3208
    %4843 = vmatpush1.msra.mxu0 %v3207
    %4844 = vmatprep.subr.mxu0 %v3212
    %4845 = vmatpush1.msra.mxu0 %v3211
    %4846 = vmatprep.subr.mxu0 %v3216
    %4847 = vmatpush1.msra.mxu0 %v3215
    %4848 = vmatprep.subr.mxu0 %v3220
    %4849 = vmatpush1.msra.mxu0 %v3219
    %4850 = vmatprep.subr.mxu0 %v3224
    %4851 = vmatpush1.msra.mxu0 %v3223
    %4852 = vmatprep.subr.mxu0 %v3228
    %4853 = vmatpush1.msra.mxu0 %v3227
    %4854 = vmatprep.subr.mxu0 %v3232
    %4855 = vmatpush1.msra.mxu0 %v3231
    %4856 = vmatprep.subr.mxu0 %v3236
    %4857 = vmatpush1.msra.mxu0 %v3235
    %4858 = vmatprep.subr.mxu0 %v3240
    %4859 = vmatpush1.msra.mxu0 %v3239
    %4860 = vmatprep.subr.mxu0 %v3244
    %4861 = vmatpush1.msra.mxu0 %v3243
    %4862 = vmatprep.subr.mxu0 %v3248
    %4863 = vmatpush1.msra.mxu0 %v3247
    %4864 = vmatprep.mubr.f32.mxu0 %v4799
    %4865 = vmatmul.mubr.f32.gmra.mrb[0].mxu0 %v4798
    %v4866 = vpop.f32.mrb[0].mxu0
    %v4867 = vadd.f32 %v3512, %v4866
    %v4868 = vpop.f32.mrb[0].mxu0
    %v4869 = vadd.f32 %v3516, %v4868
    %4870 = vdwg.mxu0
    %4871 = vmatprep.subr.mxu0 %v3252
    %4872 = vmatpush1.msra.mxu0 %v3251
    %4873 = vmatprep.subr.mxu0 %v3256
    %4874 = vmatpush1.msra.mxu0 %v3255
    %4875 = vmatprep.subr.mxu0 %v3260
    %4876 = vmatpush1.msra.mxu0 %v3259
    %4877 = vmatprep.subr.mxu0 %v3264
    %4878 = vmatpush1.msra.mxu0 %v3263
    %4879 = vmatprep.subr.mxu0 %v3268
    %4880 = vmatpush1.msra.mxu0 %v3267
    %4881 = vmatprep.subr.mxu0 %v3272
    %4882 = vmatpush1.msra.mxu0 %v3271
    %4883 = vmatprep.subr.mxu0 %v3276
    %4884 = vmatpush1.msra.mxu0 %v3275
    %4885 = vmatprep.subr.mxu0 %v3280
    %4886 = vmatpush1.msra.mxu0 %v3279
    %4887 = vmatprep.subr.mxu0 %v3284
    %4888 = vmatpush1.msra.mxu0 %v3283
    %4889 = vmatprep.subr.mxu0 %v3288
    %4890 = vmatpush1.msra.mxu0 %v3287
    %4891 = vmatprep.subr.mxu0 %v3292
    %4892 = vmatpush1.msra.mxu0 %v3291
    %4893 = vmatprep.subr.mxu0 %v3296
    %4894 = vmatpush1.msra.mxu0 %v3295
    %4895 = vmatprep.subr.mxu0 %v3300
    %4896 = vmatpush1.msra.mxu0 %v3299
    %4897 = vmatprep.subr.mxu0 %v3304
    %4898 = vmatpush1.msra.mxu0 %v3303
    %4899 = vmatprep.subr.mxu0 %v3308
    %4900 = vmatpush1.msra.mxu0 %v3307
    %4901 = vmatprep.subr.mxu0 %v3312
    %4902 = vmatpush1.msra.mxu0 %v3311
    %4903 = vmatprep.subr.mxu0 0.0
    %4904 = vmatpush1.msra.mxu0 0.0
    %4905 = vmatprep.subr.mxu0 0.0
    %4906 = vmatpush1.msra.mxu0 0.0
    %4907 = vmatprep.subr.mxu0 0.0
    %4908 = vmatpush1.msra.mxu0 0.0
    %4909 = vmatprep.subr.mxu0 0.0
    %4910 = vmatpush1.msra.mxu0 0.0
    %4911 = vmatprep.subr.mxu0 0.0
    %4912 = vmatpush1.msra.mxu0 0.0
    %4913 = vmatprep.subr.mxu0 0.0
    %4914 = vmatpush1.msra.mxu0 0.0
    %4915 = vmatprep.subr.mxu0 0.0
    %4916 = vmatpush1.msra.mxu0 0.0
    %4917 = vmatprep.subr.mxu0 0.0
    %4918 = vmatpush1.msra.mxu0 0.0
    %4919 = vmatprep.subr.mxu0 0.0
    %4920 = vmatpush1.msra.mxu0 0.0
    %4921 = vmatprep.subr.mxu0 0.0
    %4922 = vmatpush1.msra.mxu0 0.0
    %4923 = vmatprep.subr.mxu0 0.0
    %4924 = vmatpush1.msra.mxu0 0.0
    %4925 = vmatprep.subr.mxu0 0.0
    %4926 = vmatpush1.msra.mxu0 0.0
    %4927 = vmatprep.subr.mxu0 0.0
    %4928 = vmatpush1.msra.mxu0 0.0
    %4929 = vmatprep.subr.mxu0 0.0
    %4930 = vmatpush1.msra.mxu0 0.0
    %4931 = vmatprep.subr.mxu0 0.0
    %4932 = vmatpush1.msra.mxu0 0.0
    %4933 = vmatprep.subr.mxu0 0.0
    %4934 = vmatpush1.msra.mxu0 0.0
    %4935 = vmatprep.mubr.f32.mxu0 0.0
    %4936 = vmatmul.mubr.f32.gmra.mrb[0].mxu0 %v4795
    %v4937 = vpop.f32.mrb[0].mxu0
    %v4938 = vadd.f32 %v4867, %v4937
    %v4939 = vpop.f32.mrb[0].mxu0
    %v4940 = vadd.f32 %v4869, %v4939
    %4941 = vdwg.mxu0
    %4942 = vmatprep.subr.mxu0 %v3126
    %4943 = vmatpush1.msra.mxu0 %v3125
    %4944 = vmatprep.subr.mxu0 %v3130
    %4945 = vmatpush1.msra.mxu0 %v3129
    %4946 = vmatprep.subr.mxu0 %v3134
    %4947 = vmatpush1.msra.mxu0 %v3133
    %4948 = vmatprep.subr.mxu0 %v3138
    %4949 = vmatpush1.msra.mxu0 %v3137
    %4950 = vmatprep.subr.mxu0 %v3142
    %4951 = vmatpush1.msra.mxu0 %v3141
    %4952 = vmatprep.subr.mxu0 %v3146
    %4953 = vmatpush1.msra.mxu0 %v3145
    %4954 = vmatprep.subr.mxu0 %v3150
    %4955 = vmatpush1.msra.mxu0 %v3149
    %4956 = vmatprep.subr.mxu0 %v3154
    %4957 = vmatpush1.msra.mxu0 %v3153
    %4958 = vmatprep.subr.mxu0 %v3158
    %4959 = vmatpush1.msra.mxu0 %v3157
    %4960 = vmatprep.subr.mxu0 %v3162
    %4961 = vmatpush1.msra.mxu0 %v3161
    %4962 = vmatprep.subr.mxu0 %v3166
    %4963 = vmatpush1.msra.mxu0 %v3165
    %4964 = vmatprep.subr.mxu0 %v3170
    %4965 = vmatpush1.msra.mxu0 %v3169
    %4966 = vmatprep.subr.mxu0 %v3174
    %4967 = vmatpush1.msra.mxu0 %v3173
    %4968 = vmatprep.subr.mxu0 %v3178
    %4969 = vmatpush1.msra.mxu0 %v3177
    %4970 = vmatprep.subr.mxu0 %v3182
    %4971 = vmatpush1.msra.mxu0 %v3181
    %4972 = vmatprep.subr.mxu0 %v3186
    %4973 = vmatpush1.msra.mxu0 %v3185
    %4974 = vmatprep.subr.mxu0 %v3190
    %4975 = vmatpush1.msra.mxu0 %v3189
    %4976 = vmatprep.subr.mxu0 %v3194
    %4977 = vmatpush1.msra.mxu0 %v3193
    %4978 = vmatprep.subr.mxu0 %v3198
    %4979 = vmatpush1.msra.mxu0 %v3197
    %4980 = vmatprep.subr.mxu0 %v3202
    %4981 = vmatpush1.msra.mxu0 %v3201
    %4982 = vmatprep.subr.mxu0 %v3206
    %4983 = vmatpush1.msra.mxu0 %v3205
    %4984 = vmatprep.subr.mxu0 %v3210
    %4985 = vmatpush1.msra.mxu0 %v3209
    %4986 = vmatprep.subr.mxu0 %v3214
    %4987 = vmatpush1.msra.mxu0 %v3213
    %4988 = vmatprep.subr.mxu0 %v3218
    %4989 = vmatpush1.msra.mxu0 %v3217
    %4990 = vmatprep.subr.mxu0 %v3222
    %4991 = vmatpush1.msra.mxu0 %v3221
    %4992 = vmatprep.subr.mxu0 %v3226
    %4993 = vmatpush1.msra.mxu0 %v3225
    %4994 = vmatprep.subr.mxu0 %v3230
    %4995 = vmatpush1.msra.mxu0 %v3229
    %4996 = vmatprep.subr.mxu0 %v3234
    %4997 = vmatpush1.msra.mxu0 %v3233
    %4998 = vmatprep.subr.mxu0 %v3238
    %4999 = vmatpush1.msra.mxu0 %v3237
    %5000 = vmatprep.subr.mxu0 %v3242
    %5001 = vmatpush1.msra.mxu0 %v3241
    %5002 = vmatprep.subr.mxu0 %v3246
    %5003 = vmatpush1.msra.mxu0 %v3245
    %5004 = vmatprep.subr.mxu0 %v3250
    %5005 = vmatpush1.msra.mxu0 %v3249
    %5006 = vmatprep.mubr.f32.mxu0 %v4799
    %5007 = vmatmul.mubr.f32.gmra.mrb[0].mxu0 %v4798
    %v5008 = vpop.f32.mrb[0].mxu0
    %v5009 = vadd.f32 %v3520, %v5008
    %v5010 = vpop.f32.mrb[0].mxu0
    %v5011 = vadd.f32 %v3524, %v5010
    %5012 = vdwg.mxu0
    %5013 = vmatprep.subr.mxu0 %v3254
    %5014 = vmatpush1.msra.mxu0 %v3253
    %5015 = vmatprep.subr.mxu0 %v3258
    %5016 = vmatpush1.msra.mxu0 %v3257
    %5017 = vmatprep.subr.mxu0 %v3262
    %5018 = vmatpush1.msra.mxu0 %v3261
    %5019 = vmatprep.subr.mxu0 %v3266
    %5020 = vmatpush1.msra.mxu0 %v3265
    %5021 = vmatprep.subr.mxu0 %v3270
    %5022 = vmatpush1.msra.mxu0 %v3269
    %5023 = vmatprep.subr.mxu0 %v3274
    %5024 = vmatpush1.msra.mxu0 %v3273
    %5025 = vmatprep.subr.mxu0 %v3278
    %5026 = vmatpush1.msra.mxu0 %v3277
    %5027 = vmatprep.subr.mxu0 %v3282
    %5028 = vmatpush1.msra.mxu0 %v3281
    %5029 = vmatprep.subr.mxu0 %v3286
    %5030 = vmatpush1.msra.mxu0 %v3285
    %5031 = vmatprep.subr.mxu0 %v3290
    %5032 = vmatpush1.msra.mxu0 %v3289
    %5033 = vmatprep.subr.mxu0 %v3294
    %5034 = vmatpush1.msra.mxu0 %v3293
    %5035 = vmatprep.subr.mxu0 %v3298
    %5036 = vmatpush1.msra.mxu0 %v3297
    %5037 = vmatprep.subr.mxu0 %v3302
    %5038 = vmatpush1.msra.mxu0 %v3301
    %5039 = vmatprep.subr.mxu0 %v3306
    %5040 = vmatpush1.msra.mxu0 %v3305
    %5041 = vmatprep.subr.mxu0 %v3310
    %5042 = vmatpush1.msra.mxu0 %v3309
    %5043 = vmatprep.subr.mxu0 %v3314
    %5044 = vmatpush1.msra.mxu0 %v3313
    %5045 = vmatprep.subr.mxu0 0.0
    %5046 = vmatpush1.msra.mxu0 0.0
    %5047 = vmatprep.subr.mxu0 0.0
    %5048 = vmatpush1.msra.mxu0 0.0
    %5049 = vmatprep.subr.mxu0 0.0
    %5050 = vmatpush1.msra.mxu0 0.0
    %5051 = vmatprep.subr.mxu0 0.0
    %5052 = vmatpush1.msra.mxu0 0.0
    %5053 = vmatprep.subr.mxu0 0.0
    %5054 = vmatpush1.msra.mxu0 0.0
    %5055 = vmatprep.subr.mxu0 0.0
    %5056 = vmatpush1.msra.mxu0 0.0
    %5057 = vmatprep.subr.mxu0 0.0
    %5058 = vmatpush1.msra.mxu0 0.0
    %5059 = vmatprep.subr.mxu0 0.0
    %5060 = vmatpush1.msra.mxu0 0.0
    %5061 = vmatprep.subr.mxu0 0.0
    %5062 = vmatpush1.msra.mxu0 0.0
    %5063 = vmatprep.subr.mxu0 0.0
    %5064 = vmatpush1.msra.mxu0 0.0
    %5065 = vmatprep.subr.mxu0 0.0
    %5066 = vmatpush1.msra.mxu0 0.0
    %5067 = vmatprep.subr.mxu0 0.0
    %5068 = vmatpush1.msra.mxu0 0.0
    %5069 = vmatprep.subr.mxu0 0.0
    %5070 = vmatpush1.msra.mxu0 0.0
    %5071 = vmatprep.subr.mxu0 0.0
    %5072 = vmatpush1.msra.mxu0 0.0
    %5073 = vmatprep.subr.mxu0 0.0
    %5074 = vmatpush1.msra.mxu0 0.0
    %5075 = vmatprep.subr.mxu0 0.0
    %5076 = vmatpush1.msra.mxu0 0.0
    %5077 = vmatprep.mubr.f32.mxu0 0.0
    %5078 = vmatmul.mubr.f32.gmra.mrb[0].mxu0 %v4795
    %v5079 = vpop.f32.mrb[0].mxu0
    %v5080 = vadd.f32 %v5009, %v5079
    %v5081 = vpop.f32.mrb[0].mxu0
    %v5082 = vadd.f32 %v5011, %v5081
    %5083 = vdwg.mxu0
    %v5084 = vxor.u32 %v4938, 2147483648
    %v5085 = vmul.f32 %v5084, 1.442695
    %v5086 = vpow.pop %v5085
    %v5087 = vadd.f32 %v5086, 1.0
    %v5088 = vrcp.pop %v5087
    %v5089 = vmul.f32 1.0, %v5088
    %v5090 = vxor.u32 %v4940, 2147483648
    %v5091 = vmul.f32 %v5090, 1.442695
    %v5092 = vpow.pop %v5091
    %v5093 = vadd.f32 %v5092, 1.0
    %v5094 = vrcp.pop %v5093
    %v5095 = vmul.f32 1.0, %v5094
    %v5096 = vtanh.pop %v5080
    %v5097 = vxor.u32 %v5082, 2147483648
    %v5098 = vmul.f32 %v5097, 1.442695
    %v5099 = vpow.pop %v5098
    %v5100 = vadd.f32 %v5099, 1.0
    %v5101 = vrcp.pop %v5100
    %v5102 = vmul.f32 1.0, %v5101
    %v5103 = vmul.f32 %v5095, %v4793
    %v5104 = vmul.f32 %v5089, %v5096
    %v5105 = vadd.f32 %v5103, %v5104
    %v5106 = vtanh.pop %v5105
    %v5107 = vmul.f32 %v5102, %v5106
    %s5108 = scalar_lea.vmem [#allocation3], 64
    %5109 = vst [vmem:[%s5108] sm:$0xff] %v5107
    %v5110 = vld [vmem:[%s1437] sm:$0xff]
    %v5111 = vld [vmem:[%s1437 + $0x8] sm:$0xff]
    %5112 = vmatprep.subr.mxu0 %v3124
    %5113 = vmatpush1.msra.mxu0 %v3123
    %5114 = vmatprep.subr.mxu0 %v3128
    %5115 = vmatpush1.msra.mxu0 %v3127
    %5116 = vmatprep.subr.mxu0 %v3132
    %5117 = vmatpush1.msra.mxu0 %v3131
    %5118 = vmatprep.subr.mxu0 %v3136
    %5119 = vmatpush1.msra.mxu0 %v3135
    %5120 = vmatprep.subr.mxu0 %v3140
    %5121 = vmatpush1.msra.mxu0 %v3139
    %5122 = vmatprep.subr.mxu0 %v3144
    %5123 = vmatpush1.msra.mxu0 %v3143
    %5124 = vmatprep.subr.mxu0 %v3148
    %5125 = vmatpush1.msra.mxu0 %v3147
    %5126 = vmatprep.subr.mxu0 %v3152
    %5127 = vmatpush1.msra.mxu0 %v3151
    %5128 = vmatprep.subr.mxu0 %v3156
    %5129 = vmatpush1.msra.mxu0 %v3155
    %5130 = vmatprep.subr.mxu0 %v3160
    %5131 = vmatpush1.msra.mxu0 %v3159
    %5132 = vmatprep.subr.mxu0 %v3164
    %5133 = vmatpush1.msra.mxu0 %v3163
    %5134 = vmatprep.subr.mxu0 %v3168
    %5135 = vmatpush1.msra.mxu0 %v3167
    %5136 = vmatprep.subr.mxu0 %v3172
    %5137 = vmatpush1.msra.mxu0 %v3171
    %5138 = vmatprep.subr.mxu0 %v3176
    %5139 = vmatpush1.msra.mxu0 %v3175
    %5140 = vmatprep.subr.mxu0 %v3180
    %5141 = vmatpush1.msra.mxu0 %v3179
    %5142 = vmatprep.subr.mxu0 %v3184
    %5143 = vmatpush1.msra.mxu0 %v3183
    %5144 = vmatprep.subr.mxu0 %v3188
    %5145 = vmatpush1.msra.mxu0 %v3187
    %5146 = vmatprep.subr.mxu0 %v3192
    %5147 = vmatpush1.msra.mxu0 %v3191
    %5148 = vmatprep.subr.mxu0 %v3196
    %5149 = vmatpush1.msra.mxu0 %v3195
    %5150 = vmatprep.subr.mxu0 %v3200
    %5151 = vmatpush1.msra.mxu0 %v3199
    %5152 = vmatprep.subr.mxu0 %v3204
    %5153 = vmatpush1.msra.mxu0 %v3203
    %5154 = vmatprep.subr.mxu0 %v3208
    %5155 = vmatpush1.msra.mxu0 %v3207
    %5156 = vmatprep.subr.mxu0 %v3212
    %5157 = vmatpush1.msra.mxu0 %v3211
    %5158 = vmatprep.subr.mxu0 %v3216
    %5159 = vmatpush1.msra.mxu0 %v3215
    %5160 = vmatprep.subr.mxu0 %v3220
    %5161 = vmatpush1.msra.mxu0 %v3219
    %5162 = vmatprep.subr.mxu0 %v3224
    %5163 = vmatpush1.msra.mxu0 %v3223
    %5164 = vmatprep.subr.mxu0 %v3228
    %5165 = vmatpush1.msra.mxu0 %v3227
    %5166 = vmatprep.subr.mxu0 %v3232
    %5167 = vmatpush1.msra.mxu0 %v3231
    %5168 = vmatprep.subr.mxu0 %v3236
    %5169 = vmatpush1.msra.mxu0 %v3235
    %5170 = vmatprep.subr.mxu0 %v3240
    %5171 = vmatpush1.msra.mxu0 %v3239
    %5172 = vmatprep.subr.mxu0 %v3244
    %5173 = vmatpush1.msra.mxu0 %v3243
    %5174 = vmatprep.subr.mxu0 %v3248
    %5175 = vmatpush1.msra.mxu0 %v3247
    %5176 = vmatprep.mubr.f32.mxu0 %v5111
    %5177 = vmatmul.mubr.f32.gmra.mrb[0].mxu0 %v5110
    %v5178 = vpop.f32.mrb[0].mxu0
    %v5179 = vadd.f32 %v3512, %v5178
    %v5180 = vpop.f32.mrb[0].mxu0
    %v5181 = vadd.f32 %v3516, %v5180
    %5182 = vdwg.mxu0
    %5183 = vmatprep.subr.mxu0 %v3252
    %5184 = vmatpush1.msra.mxu0 %v3251
    %5185 = vmatprep.subr.mxu0 %v3256
    %5186 = vmatpush1.msra.mxu0 %v3255
    %5187 = vmatprep.subr.mxu0 %v3260
    %5188 = vmatpush1.msra.mxu0 %v3259
    %5189 = vmatprep.subr.mxu0 %v3264
    %5190 = vmatpush1.msra.mxu0 %v3263
    %5191 = vmatprep.subr.mxu0 %v3268
    %5192 = vmatpush1.msra.mxu0 %v3267
    %5193 = vmatprep.subr.mxu0 %v3272
    %5194 = vmatpush1.msra.mxu0 %v3271
    %5195 = vmatprep.subr.mxu0 %v3276
    %5196 = vmatpush1.msra.mxu0 %v3275
    %5197 = vmatprep.subr.mxu0 %v3280
    %5198 = vmatpush1.msra.mxu0 %v3279
    %5199 = vmatprep.subr.mxu0 %v3284
    %5200 = vmatpush1.msra.mxu0 %v3283
    %5201 = vmatprep.subr.mxu0 %v3288
    %5202 = vmatpush1.msra.mxu0 %v3287
    %5203 = vmatprep.subr.mxu0 %v3292
    %5204 = vmatpush1.msra.mxu0 %v3291
    %5205 = vmatprep.subr.mxu0 %v3296
    %5206 = vmatpush1.msra.mxu0 %v3295
    %5207 = vmatprep.subr.mxu0 %v3300
    %5208 = vmatpush1.msra.mxu0 %v3299
    %5209 = vmatprep.subr.mxu0 %v3304
    %5210 = vmatpush1.msra.mxu0 %v3303
    %5211 = vmatprep.subr.mxu0 %v3308
    %5212 = vmatpush1.msra.mxu0 %v3307
    %5213 = vmatprep.subr.mxu0 %v3312
    %5214 = vmatpush1.msra.mxu0 %v3311
    %5215 = vmatprep.subr.mxu0 0.0
    %5216 = vmatpush1.msra.mxu0 0.0
    %5217 = vmatprep.subr.mxu0 0.0
    %5218 = vmatpush1.msra.mxu0 0.0
    %5219 = vmatprep.subr.mxu0 0.0
    %5220 = vmatpush1.msra.mxu0 0.0
    %5221 = vmatprep.subr.mxu0 0.0
    %5222 = vmatpush1.msra.mxu0 0.0
    %5223 = vmatprep.subr.mxu0 0.0
    %5224 = vmatpush1.msra.mxu0 0.0
    %5225 = vmatprep.subr.mxu0 0.0
    %5226 = vmatpush1.msra.mxu0 0.0
    %5227 = vmatprep.subr.mxu0 0.0
    %5228 = vmatpush1.msra.mxu0 0.0
    %5229 = vmatprep.subr.mxu0 0.0
    %5230 = vmatpush1.msra.mxu0 0.0
    %5231 = vmatprep.subr.mxu0 0.0
    %5232 = vmatpush1.msra.mxu0 0.0
    %5233 = vmatprep.subr.mxu0 0.0
    %5234 = vmatpush1.msra.mxu0 0.0
    %5235 = vmatprep.subr.mxu0 0.0
    %5236 = vmatpush1.msra.mxu0 0.0
    %5237 = vmatprep.subr.mxu0 0.0
    %5238 = vmatpush1.msra.mxu0 0.0
    %5239 = vmatprep.subr.mxu0 0.0
    %5240 = vmatpush1.msra.mxu0 0.0
    %5241 = vmatprep.subr.mxu0 0.0
    %5242 = vmatpush1.msra.mxu0 0.0
    %5243 = vmatprep.subr.mxu0 0.0
    %5244 = vmatpush1.msra.mxu0 0.0
    %5245 = vmatprep.subr.mxu0 0.0
    %5246 = vmatpush1.msra.mxu0 0.0
    %5247 = vmatprep.mubr.f32.mxu0 0.0
    %5248 = vmatmul.mubr.f32.gmra.mrb[0].mxu0 %v5107
    %v5249 = vpop.f32.mrb[0].mxu0
    %v5250 = vadd.f32 %v5179, %v5249
    %v5251 = vpop.f32.mrb[0].mxu0
    %v5252 = vadd.f32 %v5181, %v5251
    %5253 = vdwg.mxu0
    %5254 = vmatprep.subr.mxu0 %v3126
    %5255 = vmatpush1.msra.mxu0 %v3125
    %5256 = vmatprep.subr.mxu0 %v3130
    %5257 = vmatpush1.msra.mxu0 %v3129
    %5258 = vmatprep.subr.mxu0 %v3134
    %5259 = vmatpush1.msra.mxu0 %v3133
    %5260 = vmatprep.subr.mxu0 %v3138
    %5261 = vmatpush1.msra.mxu0 %v3137
    %5262 = vmatprep.subr.mxu0 %v3142
    %5263 = vmatpush1.msra.mxu0 %v3141
    %5264 = vmatprep.subr.mxu0 %v3146
    %5265 = vmatpush1.msra.mxu0 %v3145
    %5266 = vmatprep.subr.mxu0 %v3150
    %5267 = vmatpush1.msra.mxu0 %v3149
    %5268 = vmatprep.subr.mxu0 %v3154
    %5269 = vmatpush1.msra.mxu0 %v3153
    %5270 = vmatprep.subr.mxu0 %v3158
    %5271 = vmatpush1.msra.mxu0 %v3157
    %5272 = vmatprep.subr.mxu0 %v3162
    %5273 = vmatpush1.msra.mxu0 %v3161
    %5274 = vmatprep.subr.mxu0 %v3166
    %5275 = vmatpush1.msra.mxu0 %v3165
    %5276 = vmatprep.subr.mxu0 %v3170
    %5277 = vmatpush1.msra.mxu0 %v3169
    %5278 = vmatprep.subr.mxu0 %v3174
    %5279 = vmatpush1.msra.mxu0 %v3173
    %5280 = vmatprep.subr.mxu0 %v3178
    %5281 = vmatpush1.msra.mxu0 %v3177
    %5282 = vmatprep.subr.mxu0 %v3182
    %5283 = vmatpush1.msra.mxu0 %v3181
    %5284 = vmatprep.subr.mxu0 %v3186
    %5285 = vmatpush1.msra.mxu0 %v3185
    %5286 = vmatprep.subr.mxu0 %v3190
    %5287 = vmatpush1.msra.mxu0 %v3189
    %5288 = vmatprep.subr.mxu0 %v3194
    %5289 = vmatpush1.msra.mxu0 %v3193
    %5290 = vmatprep.subr.mxu0 %v3198
    %5291 = vmatpush1.msra.mxu0 %v3197
    %5292 = vmatprep.subr.mxu0 %v3202
    %5293 = vmatpush1.msra.mxu0 %v3201
    %5294 = vmatprep.subr.mxu0 %v3206
    %5295 = vmatpush1.msra.mxu0 %v3205
    %5296 = vmatprep.subr.mxu0 %v3210
    %5297 = vmatpush1.msra.mxu0 %v3209
    %5298 = vmatprep.subr.mxu0 %v3214
    %5299 = vmatpush1.msra.mxu0 %v3213
    %5300 = vmatprep.subr.mxu0 %v3218
    %5301 = vmatpush1.msra.mxu0 %v3217
    %5302 = vmatprep.subr.mxu0 %v3222
    %5303 = vmatpush1.msra.mxu0 %v3221
    %5304 = vmatprep.subr.mxu0 %v3226
    %5305 = vmatpush1.msra.mxu0 %v3225
    %5306 = vmatprep.subr.mxu0 %v3230
    %5307 = vmatpush1.msra.mxu0 %v3229
    %5308 = vmatprep.subr.mxu0 %v3234
    %5309 = vmatpush1.msra.mxu0 %v3233
    %5310 = vmatprep.subr.mxu0 %v3238
    %5311 = vmatpush1.msra.mxu0 %v3237
    %5312 = vmatprep.subr.mxu0 %v3242
    %5313 = vmatpush1.msra.mxu0 %v3241
    %5314 = vmatprep.subr.mxu0 %v3246
    %5315 = vmatpush1.msra.mxu0 %v3245
    %5316 = vmatprep.subr.mxu0 %v3250
    %5317 = vmatpush1.msra.mxu0 %v3249
    %5318 = vmatprep.mubr.f32.mxu0 %v5111
    %5319 = vmatmul.mubr.f32.gmra.mrb[0].mxu0 %v5110
    %v5320 = vpop.f32.mrb[0].mxu0
    %v5321 = vadd.f32 %v3520, %v5320
    %v5322 = vpop.f32.mrb[0].mxu0
    %v5323 = vadd.f32 %v3524, %v5322
    %5324 = vdwg.mxu0
    %5325 = vmatprep.subr.mxu0 %v3254
    %5326 = vmatpush1.msra.mxu0 %v3253
    %5327 = vmatprep.subr.mxu0 %v3258
    %5328 = vmatpush1.msra.mxu0 %v3257
    %5329 = vmatprep.subr.mxu0 %v3262
    %5330 = vmatpush1.msra.mxu0 %v3261
    %5331 = vmatprep.subr.mxu0 %v3266
    %5332 = vmatpush1.msra.mxu0 %v3265
    %5333 = vmatprep.subr.mxu0 %v3270
    %5334 = vmatpush1.msra.mxu0 %v3269
    %5335 = vmatprep.subr.mxu0 %v3274
    %5336 = vmatpush1.msra.mxu0 %v3273
    %5337 = vmatprep.subr.mxu0 %v3278
    %5338 = vmatpush1.msra.mxu0 %v3277
    %5339 = vmatprep.subr.mxu0 %v3282
    %5340 = vmatpush1.msra.mxu0 %v3281
    %5341 = vmatprep.subr.mxu0 %v3286
    %5342 = vmatpush1.msra.mxu0 %v3285
    %5343 = vmatprep.subr.mxu0 %v3290
    %5344 = vmatpush1.msra.mxu0 %v3289
    %5345 = vmatprep.subr.mxu0 %v3294
    %5346 = vmatpush1.msra.mxu0 %v3293
    %5347 = vmatprep.subr.mxu0 %v3298
    %5348 = vmatpush1.msra.mxu0 %v3297
    %5349 = vmatprep.subr.mxu0 %v3302
    %5350 = vmatpush1.msra.mxu0 %v3301
    %5351 = vmatprep.subr.mxu0 %v3306
    %5352 = vmatpush1.msra.mxu0 %v3305
    %5353 = vmatprep.subr.mxu0 %v3310
    %5354 = vmatpush1.msra.mxu0 %v3309
    %5355 = vmatprep.subr.mxu0 %v3314
    %5356 = vmatpush1.msra.mxu0 %v3313
    %5357 = vmatprep.subr.mxu0 0.0
    %5358 = vmatpush1.msra.mxu0 0.0
    %5359 = vmatprep.subr.mxu0 0.0
    %5360 = vmatpush1.msra.mxu0 0.0
    %5361 = vmatprep.subr.mxu0 0.0
    %5362 = vmatpush1.msra.mxu0 0.0
    %5363 = vmatprep.subr.mxu0 0.0
    %5364 = vmatpush1.msra.mxu0 0.0
    %5365 = vmatprep.subr.mxu0 0.0
    %5366 = vmatpush1.msra.mxu0 0.0
    %5367 = vmatprep.subr.mxu0 0.0
    %5368 = vmatpush1.msra.mxu0 0.0
    %5369 = vmatprep.subr.mxu0 0.0
    %5370 = vmatpush1.msra.mxu0 0.0
    %5371 = vmatprep.subr.mxu0 0.0
    %5372 = vmatpush1.msra.mxu0 0.0
    %5373 = vmatprep.subr.mxu0 0.0
    %5374 = vmatpush1.msra.mxu0 0.0
    %5375 = vmatprep.subr.mxu0 0.0
    %5376 = vmatpush1.msra.mxu0 0.0
    %5377 = vmatprep.subr.mxu0 0.0
    %5378 = vmatpush1.msra.mxu0 0.0
    %5379 = vmatprep.subr.mxu0 0.0
    %5380 = vmatpush1.msra.mxu0 0.0
    %5381 = vmatprep.subr.mxu0 0.0
    %5382 = vmatpush1.msra.mxu0 0.0
    %5383 = vmatprep.subr.mxu0 0.0
    %5384 = vmatpush1.msra.mxu0 0.0
    %5385 = vmatprep.subr.mxu0 0.0
    %5386 = vmatpush1.msra.mxu0 0.0
    %5387 = vmatprep.subr.mxu0 0.0
    %5388 = vmatpush1.msra.mxu0 0.0
    %5389 = vmatprep.mubr.f32.mxu0 0.0
    %5390 = vmatmul.mubr.f32.gmra.mrb[0].mxu0 %v5107
    %v5391 = vpop.f32.mrb[0].mxu0
    %v5392 = vadd.f32 %v5321, %v5391
    %v5393 = vpop.f32.mrb[0].mxu0
    %v5394 = vadd.f32 %v5323, %v5393
    %5395 = vdwg.mxu0
    %v5396 = vxor.u32 %v5250, 2147483648
    %v5397 = vmul.f32 %v5396, 1.442695
    %v5398 = vpow.pop %v5397
    %v5399 = vadd.f32 %v5398, 1.0
    %v5400 = vrcp.pop %v5399
    %v5401 = vmul.f32 1.0, %v5400
    %v5402 = vxor.u32 %v5252, 2147483648
    %v5403 = vmul.f32 %v5402, 1.442695
    %v5404 = vpow.pop %v5403
    %v5405 = vadd.f32 %v5404, 1.0
    %v5406 = vrcp.pop %v5405
    %v5407 = vmul.f32 1.0, %v5406
    %v5408 = vtanh.pop %v5392
    %v5409 = vxor.u32 %v5394, 2147483648
    %v5410 = vmul.f32 %v5409, 1.442695
    %v5411 = vpow.pop %v5410
    %v5412 = vadd.f32 %v5411, 1.0
    %v5413 = vrcp.pop %v5412
    %v5414 = vmul.f32 1.0, %v5413
    %v5415 = vmul.f32 %v5407, %v5105
    %v5416 = vmul.f32 %v5401, %v5408
    %v5417 = vadd.f32 %v5415, %v5416
    %v5418 = vtanh.pop %v5417
    %v5419 = vmul.f32 %v5414, %v5418
    %s5420 = scalar_lea.vmem [#allocation3], 80
    %5421 = vst [vmem:[%s5420] sm:$0xff] %v5419
    %v5422 = vld [vmem:[%s1607] sm:$0xff]
    %v5423 = vld [vmem:[%s1607 + $0x8] sm:$0xff]
    %5424 = vmatprep.subr.mxu0 %v3124
    %5425 = vmatpush1.msra.mxu0 %v3123
    %5426 = vmatprep.subr.mxu0 %v3128
    %5427 = vmatpush1.msra.mxu0 %v3127
    %5428 = vmatprep.subr.mxu0 %v3132
    %5429 = vmatpush1.msra.mxu0 %v3131
    %5430 = vmatprep.subr.mxu0 %v3136
    %5431 = vmatpush1.msra.mxu0 %v3135
    %5432 = vmatprep.subr.mxu0 %v3140
    %5433 = vmatpush1.msra.mxu0 %v3139
    %5434 = vmatprep.subr.mxu0 %v3144
    %5435 = vmatpush1.msra.mxu0 %v3143
    %5436 = vmatprep.subr.mxu0 %v3148
    %5437 = vmatpush1.msra.mxu0 %v3147
    %5438 = vmatprep.subr.mxu0 %v3152
    %5439 = vmatpush1.msra.mxu0 %v3151
    %5440 = vmatprep.subr.mxu0 %v3156
    %5441 = vmatpush1.msra.mxu0 %v3155
    %5442 = vmatprep.subr.mxu0 %v3160
    %5443 = vmatpush1.msra.mxu0 %v3159
    %5444 = vmatprep.subr.mxu0 %v3164
    %5445 = vmatpush1.msra.mxu0 %v3163
    %5446 = vmatprep.subr.mxu0 %v3168
    %5447 = vmatpush1.msra.mxu0 %v3167
    %5448 = vmatprep.subr.mxu0 %v3172
    %5449 = vmatpush1.msra.mxu0 %v3171
    %5450 = vmatprep.subr.mxu0 %v3176
    %5451 = vmatpush1.msra.mxu0 %v3175
    %5452 = vmatprep.subr.mxu0 %v3180
    %5453 = vmatpush1.msra.mxu0 %v3179
    %5454 = vmatprep.subr.mxu0 %v3184
    %5455 = vmatpush1.msra.mxu0 %v3183
    %5456 = vmatprep.subr.mxu0 %v3188
    %5457 = vmatpush1.msra.mxu0 %v3187
    %5458 = vmatprep.subr.mxu0 %v3192
    %5459 = vmatpush1.msra.mxu0 %v3191
    %5460 = vmatprep.subr.mxu0 %v3196
    %5461 = vmatpush1.msra.mxu0 %v3195
    %5462 = vmatprep.subr.mxu0 %v3200
    %5463 = vmatpush1.msra.mxu0 %v3199
    %5464 = vmatprep.subr.mxu0 %v3204
    %5465 = vmatpush1.msra.mxu0 %v3203
    %5466 = vmatprep.subr.mxu0 %v3208
    %5467 = vmatpush1.msra.mxu0 %v3207
    %5468 = vmatprep.subr.mxu0 %v3212
    %5469 = vmatpush1.msra.mxu0 %v3211
    %5470 = vmatprep.subr.mxu0 %v3216
    %5471 = vmatpush1.msra.mxu0 %v3215
    %5472 = vmatprep.subr.mxu0 %v3220
    %5473 = vmatpush1.msra.mxu0 %v3219
    %5474 = vmatprep.subr.mxu0 %v3224
    %5475 = vmatpush1.msra.mxu0 %v3223
    %5476 = vmatprep.subr.mxu0 %v3228
    %5477 = vmatpush1.msra.mxu0 %v3227
    %5478 = vmatprep.subr.mxu0 %v3232
    %5479 = vmatpush1.msra.mxu0 %v3231
    %5480 = vmatprep.subr.mxu0 %v3236
    %5481 = vmatpush1.msra.mxu0 %v3235
    %5482 = vmatprep.subr.mxu0 %v3240
    %5483 = vmatpush1.msra.mxu0 %v3239
    %5484 = vmatprep.subr.mxu0 %v3244
    %5485 = vmatpush1.msra.mxu0 %v3243
    %5486 = vmatprep.subr.mxu0 %v3248
    %5487 = vmatpush1.msra.mxu0 %v3247
    %5488 = vmatprep.mubr.f32.mxu0 %v5423
    %5489 = vmatmul.mubr.f32.gmra.mrb[0].mxu0 %v5422
    %v5490 = vpop.f32.mrb[0].mxu0
    %v5491 = vadd.f32 %v3512, %v5490
    %v5492 = vpop.f32.mrb[0].mxu0
    %v5493 = vadd.f32 %v3516, %v5492
    %5494 = vdwg.mxu0
    %5495 = vmatprep.subr.mxu0 %v3252
    %5496 = vmatpush1.msra.mxu0 %v3251
    %5497 = vmatprep.subr.mxu0 %v3256
    %5498 = vmatpush1.msra.mxu0 %v3255
    %5499 = vmatprep.subr.mxu0 %v3260
    %5500 = vmatpush1.msra.mxu0 %v3259
    %5501 = vmatprep.subr.mxu0 %v3264
    %5502 = vmatpush1.msra.mxu0 %v3263
    %5503 = vmatprep.subr.mxu0 %v3268
    %5504 = vmatpush1.msra.mxu0 %v3267
    %5505 = vmatprep.subr.mxu0 %v3272
    %5506 = vmatpush1.msra.mxu0 %v3271
    %5507 = vmatprep.subr.mxu0 %v3276
    %5508 = vmatpush1.msra.mxu0 %v3275
    %5509 = vmatprep.subr.mxu0 %v3280
    %5510 = vmatpush1.msra.mxu0 %v3279
    %5511 = vmatprep.subr.mxu0 %v3284
    %5512 = vmatpush1.msra.mxu0 %v3283
    %5513 = vmatprep.subr.mxu0 %v3288
    %5514 = vmatpush1.msra.mxu0 %v3287
    %5515 = vmatprep.subr.mxu0 %v3292
    %5516 = vmatpush1.msra.mxu0 %v3291
    %5517 = vmatprep.subr.mxu0 %v3296
    %5518 = vmatpush1.msra.mxu0 %v3295
    %5519 = vmatprep.subr.mxu0 %v3300
    %5520 = vmatpush1.msra.mxu0 %v3299
    %5521 = vmatprep.subr.mxu0 %v3304
    %5522 = vmatpush1.msra.mxu0 %v3303
    %5523 = vmatprep.subr.mxu0 %v3308
    %5524 = vmatpush1.msra.mxu0 %v3307
    %5525 = vmatprep.subr.mxu0 %v3312
    %5526 = vmatpush1.msra.mxu0 %v3311
    %5527 = vmatprep.subr.mxu0 0.0
    %5528 = vmatpush1.msra.mxu0 0.0
    %5529 = vmatprep.subr.mxu0 0.0
    %5530 = vmatpush1.msra.mxu0 0.0
    %5531 = vmatprep.subr.mxu0 0.0
    %5532 = vmatpush1.msra.mxu0 0.0
    %5533 = vmatprep.subr.mxu0 0.0
    %5534 = vmatpush1.msra.mxu0 0.0
    %5535 = vmatprep.subr.mxu0 0.0
    %5536 = vmatpush1.msra.mxu0 0.0
    %5537 = vmatprep.subr.mxu0 0.0
    %5538 = vmatpush1.msra.mxu0 0.0
    %5539 = vmatprep.subr.mxu0 0.0
    %5540 = vmatpush1.msra.mxu0 0.0
    %5541 = vmatprep.subr.mxu0 0.0
    %5542 = vmatpush1.msra.mxu0 0.0
    %5543 = vmatprep.subr.mxu0 0.0
    %5544 = vmatpush1.msra.mxu0 0.0
    %5545 = vmatprep.subr.mxu0 0.0
    %5546 = vmatpush1.msra.mxu0 0.0
    %5547 = vmatprep.subr.mxu0 0.0
    %5548 = vmatpush1.msra.mxu0 0.0
    %5549 = vmatprep.subr.mxu0 0.0
    %5550 = vmatpush1.msra.mxu0 0.0
    %5551 = vmatprep.subr.mxu0 0.0
    %5552 = vmatpush1.msra.mxu0 0.0
    %5553 = vmatprep.subr.mxu0 0.0
    %5554 = vmatpush1.msra.mxu0 0.0
    %5555 = vmatprep.subr.mxu0 0.0
    %5556 = vmatpush1.msra.mxu0 0.0
    %5557 = vmatprep.subr.mxu0 0.0
    %5558 = vmatpush1.msra.mxu0 0.0
    %5559 = vmatprep.mubr.f32.mxu0 0.0
    %5560 = vmatmul.mubr.f32.gmra.mrb[0].mxu0 %v5419
    %v5561 = vpop.f32.mrb[0].mxu0
    %v5562 = vadd.f32 %v5491, %v5561
    %v5563 = vpop.f32.mrb[0].mxu0
    %v5564 = vadd.f32 %v5493, %v5563
    %5565 = vdwg.mxu0
    %5566 = vmatprep.subr.mxu0 %v3126
    %5567 = vmatpush1.msra.mxu0 %v3125
    %5568 = vmatprep.subr.mxu0 %v3130
    %5569 = vmatpush1.msra.mxu0 %v3129
    %5570 = vmatprep.subr.mxu0 %v3134
    %5571 = vmatpush1.msra.mxu0 %v3133
    %5572 = vmatprep.subr.mxu0 %v3138
    %5573 = vmatpush1.msra.mxu0 %v3137
    %5574 = vmatprep.subr.mxu0 %v3142
    %5575 = vmatpush1.msra.mxu0 %v3141
    %5576 = vmatprep.subr.mxu0 %v3146
    %5577 = vmatpush1.msra.mxu0 %v3145
    %5578 = vmatprep.subr.mxu0 %v3150
    %5579 = vmatpush1.msra.mxu0 %v3149
    %5580 = vmatprep.subr.mxu0 %v3154
    %5581 = vmatpush1.msra.mxu0 %v3153
    %5582 = vmatprep.subr.mxu0 %v3158
    %5583 = vmatpush1.msra.mxu0 %v3157
    %5584 = vmatprep.subr.mxu0 %v3162
    %5585 = vmatpush1.msra.mxu0 %v3161
    %5586 = vmatprep.subr.mxu0 %v3166
    %5587 = vmatpush1.msra.mxu0 %v3165
    %5588 = vmatprep.subr.mxu0 %v3170
    %5589 = vmatpush1.msra.mxu0 %v3169
    %5590 = vmatprep.subr.mxu0 %v3174
    %5591 = vmatpush1.msra.mxu0 %v3173
    %5592 = vmatprep.subr.mxu0 %v3178
    %5593 = vmatpush1.msra.mxu0 %v3177
    %5594 = vmatprep.subr.mxu0 %v3182
    %5595 = vmatpush1.msra.mxu0 %v3181
    %5596 = vmatprep.subr.mxu0 %v3186
    %5597 = vmatpush1.msra.mxu0 %v3185
    %5598 = vmatprep.subr.mxu0 %v3190
    %5599 = vmatpush1.msra.mxu0 %v3189
    %5600 = vmatprep.subr.mxu0 %v3194
    %5601 = vmatpush1.msra.mxu0 %v3193
    %5602 = vmatprep.subr.mxu0 %v3198
    %5603 = vmatpush1.msra.mxu0 %v3197
    %5604 = vmatprep.subr.mxu0 %v3202
    %5605 = vmatpush1.msra.mxu0 %v3201
    %5606 = vmatprep.subr.mxu0 %v3206
    %5607 = vmatpush1.msra.mxu0 %v3205
    %5608 = vmatprep.subr.mxu0 %v3210
    %5609 = vmatpush1.msra.mxu0 %v3209
    %5610 = vmatprep.subr.mxu0 %v3214
    %5611 = vmatpush1.msra.mxu0 %v3213
    %5612 = vmatprep.subr.mxu0 %v3218
    %5613 = vmatpush1.msra.mxu0 %v3217
    %5614 = vmatprep.subr.mxu0 %v3222
    %5615 = vmatpush1.msra.mxu0 %v3221
    %5616 = vmatprep.subr.mxu0 %v3226
    %5617 = vmatpush1.msra.mxu0 %v3225
    %5618 = vmatprep.subr.mxu0 %v3230
    %5619 = vmatpush1.msra.mxu0 %v3229
    %5620 = vmatprep.subr.mxu0 %v3234
    %5621 = vmatpush1.msra.mxu0 %v3233
    %5622 = vmatprep.subr.mxu0 %v3238
    %5623 = vmatpush1.msra.mxu0 %v3237
    %5624 = vmatprep.subr.mxu0 %v3242
    %5625 = vmatpush1.msra.mxu0 %v3241
    %5626 = vmatprep.subr.mxu0 %v3246
    %5627 = vmatpush1.msra.mxu0 %v3245
    %5628 = vmatprep.subr.mxu0 %v3250
    %5629 = vmatpush1.msra.mxu0 %v3249
    %5630 = vmatprep.mubr.f32.mxu0 %v5423
    %5631 = vmatmul.mubr.f32.gmra.mrb[0].mxu0 %v5422
    %v5632 = vpop.f32.mrb[0].mxu0
    %v5633 = vadd.f32 %v3520, %v5632
    %v5634 = vpop.f32.mrb[0].mxu0
    %v5635 = vadd.f32 %v3524, %v5634
    %5636 = vdwg.mxu0
    %5637 = vmatprep.subr.mxu0 %v3254
    %5638 = vmatpush1.msra.mxu0 %v3253
    %5639 = vmatprep.subr.mxu0 %v3258
    %5640 = vmatpush1.msra.mxu0 %v3257
    %5641 = vmatprep.subr.mxu0 %v3262
    %5642 = vmatpush1.msra.mxu0 %v3261
    %5643 = vmatprep.subr.mxu0 %v3266
    %5644 = vmatpush1.msra.mxu0 %v3265
    %5645 = vmatprep.subr.mxu0 %v3270
    %5646 = vmatpush1.msra.mxu0 %v3269
    %5647 = vmatprep.subr.mxu0 %v3274
    %5648 = vmatpush1.msra.mxu0 %v3273
    %5649 = vmatprep.subr.mxu0 %v3278
    %5650 = vmatpush1.msra.mxu0 %v3277
    %5651 = vmatprep.subr.mxu0 %v3282
    %5652 = vmatpush1.msra.mxu0 %v3281
    %5653 = vmatprep.subr.mxu0 %v3286
    %5654 = vmatpush1.msra.mxu0 %v3285
    %5655 = vmatprep.subr.mxu0 %v3290
    %5656 = vmatpush1.msra.mxu0 %v3289
    %5657 = vmatprep.subr.mxu0 %v3294
    %5658 = vmatpush1.msra.mxu0 %v3293
    %5659 = vmatprep.subr.mxu0 %v3298
    %5660 = vmatpush1.msra.mxu0 %v3297
    %5661 = vmatprep.subr.mxu0 %v3302
    %5662 = vmatpush1.msra.mxu0 %v3301
    %5663 = vmatprep.subr.mxu0 %v3306
    %5664 = vmatpush1.msra.mxu0 %v3305
    %5665 = vmatprep.subr.mxu0 %v3310
    %5666 = vmatpush1.msra.mxu0 %v3309
    %5667 = vmatprep.subr.mxu0 %v3314
    %5668 = vmatpush1.msra.mxu0 %v3313
    %5669 = vmatprep.subr.mxu0 0.0
    %5670 = vmatpush1.msra.mxu0 0.0
    %5671 = vmatprep.subr.mxu0 0.0
    %5672 = vmatpush1.msra.mxu0 0.0
    %5673 = vmatprep.subr.mxu0 0.0
    %5674 = vmatpush1.msra.mxu0 0.0
    %5675 = vmatprep.subr.mxu0 0.0
    %5676 = vmatpush1.msra.mxu0 0.0
    %5677 = vmatprep.subr.mxu0 0.0
    %5678 = vmatpush1.msra.mxu0 0.0
    %5679 = vmatprep.subr.mxu0 0.0
    %5680 = vmatpush1.msra.mxu0 0.0
    %5681 = vmatprep.subr.mxu0 0.0
    %5682 = vmatpush1.msra.mxu0 0.0
    %5683 = vmatprep.subr.mxu0 0.0
    %5684 = vmatpush1.msra.mxu0 0.0
    %5685 = vmatprep.subr.mxu0 0.0
    %5686 = vmatpush1.msra.mxu0 0.0
    %5687 = vmatprep.subr.mxu0 0.0
    %5688 = vmatpush1.msra.mxu0 0.0
    %5689 = vmatprep.subr.mxu0 0.0
    %5690 = vmatpush1.msra.mxu0 0.0
    %5691 = vmatprep.subr.mxu0 0.0
    %5692 = vmatpush1.msra.mxu0 0.0
    %5693 = vmatprep.subr.mxu0 0.0
    %5694 = vmatpush1.msra.mxu0 0.0
    %5695 = vmatprep.subr.mxu0 0.0
    %5696 = vmatpush1.msra.mxu0 0.0
    %5697 = vmatprep.subr.mxu0 0.0
    %5698 = vmatpush1.msra.mxu0 0.0
    %5699 = vmatprep.subr.mxu0 0.0
    %5700 = vmatpush1.msra.mxu0 0.0
    %5701 = vmatprep.mubr.f32.mxu0 0.0
    %5702 = vmatmul.mubr.f32.gmra.mrb[0].mxu0 %v5419
    %v5703 = vpop.f32.mrb[0].mxu0
    %v5704 = vadd.f32 %v5633, %v5703
    %v5705 = vpop.f32.mrb[0].mxu0
    %v5706 = vadd.f32 %v5635, %v5705
    %5707 = vdwg.mxu0
    %v5708 = vxor.u32 %v5562, 2147483648
    %v5709 = vmul.f32 %v5708, 1.442695
    %v5710 = vpow.pop %v5709
    %v5711 = vadd.f32 %v5710, 1.0
    %v5712 = vrcp.pop %v5711
    %v5713 = vmul.f32 1.0, %v5712
    %v5714 = vxor.u32 %v5564, 2147483648
    %v5715 = vmul.f32 %v5714, 1.442695
    %v5716 = vpow.pop %v5715
    %v5717 = vadd.f32 %v5716, 1.0
    %v5718 = vrcp.pop %v5717
    %v5719 = vmul.f32 1.0, %v5718
    %v5720 = vtanh.pop %v5704
    %v5721 = vxor.u32 %v5706, 2147483648
    %v5722 = vmul.f32 %v5721, 1.442695
    %v5723 = vpow.pop %v5722
    %v5724 = vadd.f32 %v5723, 1.0
    %v5725 = vrcp.pop %v5724
    %v5726 = vmul.f32 1.0, %v5725
    %v5727 = vmul.f32 %v5719, %v5417
    %v5728 = vmul.f32 %v5713, %v5720
    %v5729 = vadd.f32 %v5727, %v5728
    %v5730 = vtanh.pop %v5729
    %v5731 = vmul.f32 %v5726, %v5730
    %s5732 = scalar_lea.vmem [#allocation3], 96
    %5733 = vst [vmem:[%s5732] sm:$0xff] %v5731
    %v5734 = vld [vmem:[%s1777] sm:$0xff]
    %v5735 = vld [vmem:[%s1777 + $0x8] sm:$0xff]
    %5736 = vmatprep.subr.mxu0 %v3124
    %5737 = vmatpush1.msra.mxu0 %v3123
    %5738 = vmatprep.subr.mxu0 %v3128
    %5739 = vmatpush1.msra.mxu0 %v3127
    %5740 = vmatprep.subr.mxu0 %v3132
    %5741 = vmatpush1.msra.mxu0 %v3131
    %5742 = vmatprep.subr.mxu0 %v3136
    %5743 = vmatpush1.msra.mxu0 %v3135
    %5744 = vmatprep.subr.mxu0 %v3140
    %5745 = vmatpush1.msra.mxu0 %v3139
    %5746 = vmatprep.subr.mxu0 %v3144
    %5747 = vmatpush1.msra.mxu0 %v3143
    %5748 = vmatprep.subr.mxu0 %v3148
    %5749 = vmatpush1.msra.mxu0 %v3147
    %5750 = vmatprep.subr.mxu0 %v3152
    %5751 = vmatpush1.msra.mxu0 %v3151
    %5752 = vmatprep.subr.mxu0 %v3156
    %5753 = vmatpush1.msra.mxu0 %v3155
    %5754 = vmatprep.subr.mxu0 %v3160
    %5755 = vmatpush1.msra.mxu0 %v3159
    %5756 = vmatprep.subr.mxu0 %v3164
    %5757 = vmatpush1.msra.mxu0 %v3163
    %5758 = vmatprep.subr.mxu0 %v3168
    %5759 = vmatpush1.msra.mxu0 %v3167
    %5760 = vmatprep.subr.mxu0 %v3172
    %5761 = vmatpush1.msra.mxu0 %v3171
    %5762 = vmatprep.subr.mxu0 %v3176
    %5763 = vmatpush1.msra.mxu0 %v3175
    %5764 = vmatprep.subr.mxu0 %v3180
    %5765 = vmatpush1.msra.mxu0 %v3179
    %5766 = vmatprep.subr.mxu0 %v3184
    %5767 = vmatpush1.msra.mxu0 %v3183
    %5768 = vmatprep.subr.mxu0 %v3188
    %5769 = vmatpush1.msra.mxu0 %v3187
    %5770 = vmatprep.subr.mxu0 %v3192
    %5771 = vmatpush1.msra.mxu0 %v3191
    %5772 = vmatprep.subr.mxu0 %v3196
    %5773 = vmatpush1.msra.mxu0 %v3195
    %5774 = vmatprep.subr.mxu0 %v3200
    %5775 = vmatpush1.msra.mxu0 %v3199
    %5776 = vmatprep.subr.mxu0 %v3204
    %5777 = vmatpush1.msra.mxu0 %v3203
    %5778 = vmatprep.subr.mxu0 %v3208
    %5779 = vmatpush1.msra.mxu0 %v3207
    %5780 = vmatprep.subr.mxu0 %v3212
    %5781 = vmatpush1.msra.mxu0 %v3211
    %5782 = vmatprep.subr.mxu0 %v3216
    %5783 = vmatpush1.msra.mxu0 %v3215
    %5784 = vmatprep.subr.mxu0 %v3220
    %5785 = vmatpush1.msra.mxu0 %v3219
    %5786 = vmatprep.subr.mxu0 %v3224
    %5787 = vmatpush1.msra.mxu0 %v3223
    %5788 = vmatprep.subr.mxu0 %v3228
    %5789 = vmatpush1.msra.mxu0 %v3227
    %5790 = vmatprep.subr.mxu0 %v3232
    %5791 = vmatpush1.msra.mxu0 %v3231
    %5792 = vmatprep.subr.mxu0 %v3236
    %5793 = vmatpush1.msra.mxu0 %v3235
    %5794 = vmatprep.subr.mxu0 %v3240
    %5795 = vmatpush1.msra.mxu0 %v3239
    %5796 = vmatprep.subr.mxu0 %v3244
    %5797 = vmatpush1.msra.mxu0 %v3243
    %5798 = vmatprep.subr.mxu0 %v3248
    %5799 = vmatpush1.msra.mxu0 %v3247
    %5800 = vmatprep.mubr.f32.mxu0 %v5735
    %5801 = vmatmul.mubr.f32.gmra.mrb[0].mxu0 %v5734
    %v5802 = vpop.f32.mrb[0].mxu0
    %v5803 = vadd.f32 %v3512, %v5802
    %v5804 = vpop.f32.mrb[0].mxu0
    %v5805 = vadd.f32 %v3516, %v5804
    %5806 = vdwg.mxu0
    %5807 = vmatprep.subr.mxu0 %v3252
    %5808 = vmatpush1.msra.mxu0 %v3251
    %5809 = vmatprep.subr.mxu0 %v3256
    %5810 = vmatpush1.msra.mxu0 %v3255
    %5811 = vmatprep.subr.mxu0 %v3260
    %5812 = vmatpush1.msra.mxu0 %v3259
    %5813 = vmatprep.subr.mxu0 %v3264
    %5814 = vmatpush1.msra.mxu0 %v3263
    %5815 = vmatprep.subr.mxu0 %v3268
    %5816 = vmatpush1.msra.mxu0 %v3267
    %5817 = vmatprep.subr.mxu0 %v3272
    %5818 = vmatpush1.msra.mxu0 %v3271
    %5819 = vmatprep.subr.mxu0 %v3276
    %5820 = vmatpush1.msra.mxu0 %v3275
    %5821 = vmatprep.subr.mxu0 %v3280
    %5822 = vmatpush1.msra.mxu0 %v3279
    %5823 = vmatprep.subr.mxu0 %v3284
    %5824 = vmatpush1.msra.mxu0 %v3283
    %5825 = vmatprep.subr.mxu0 %v3288
    %5826 = vmatpush1.msra.mxu0 %v3287
    %5827 = vmatprep.subr.mxu0 %v3292
    %5828 = vmatpush1.msra.mxu0 %v3291
    %5829 = vmatprep.subr.mxu0 %v3296
    %5830 = vmatpush1.msra.mxu0 %v3295
    %5831 = vmatprep.subr.mxu0 %v3300
    %5832 = vmatpush1.msra.mxu0 %v3299
    %5833 = vmatprep.subr.mxu0 %v3304
    %5834 = vmatpush1.msra.mxu0 %v3303
    %5835 = vmatprep.subr.mxu0 %v3308
    %5836 = vmatpush1.msra.mxu0 %v3307
    %5837 = vmatprep.subr.mxu0 %v3312
    %5838 = vmatpush1.msra.mxu0 %v3311
    %5839 = vmatprep.subr.mxu0 0.0
    %5840 = vmatpush1.msra.mxu0 0.0
    %5841 = vmatprep.subr.mxu0 0.0
    %5842 = vmatpush1.msra.mxu0 0.0
    %5843 = vmatprep.subr.mxu0 0.0
    %5844 = vmatpush1.msra.mxu0 0.0
    %5845 = vmatprep.subr.mxu0 0.0
    %5846 = vmatpush1.msra.mxu0 0.0
    %5847 = vmatprep.subr.mxu0 0.0
    %5848 = vmatpush1.msra.mxu0 0.0
    %5849 = vmatprep.subr.mxu0 0.0
    %5850 = vmatpush1.msra.mxu0 0.0
    %5851 = vmatprep.subr.mxu0 0.0
    %5852 = vmatpush1.msra.mxu0 0.0
    %5853 = vmatprep.subr.mxu0 0.0
    %5854 = vmatpush1.msra.mxu0 0.0
    %5855 = vmatprep.subr.mxu0 0.0
    %5856 = vmatpush1.msra.mxu0 0.0
    %5857 = vmatprep.subr.mxu0 0.0
    %5858 = vmatpush1.msra.mxu0 0.0
    %5859 = vmatprep.subr.mxu0 0.0
    %5860 = vmatpush1.msra.mxu0 0.0
    %5861 = vmatprep.subr.mxu0 0.0
    %5862 = vmatpush1.msra.mxu0 0.0
    %5863 = vmatprep.subr.mxu0 0.0
    %5864 = vmatpush1.msra.mxu0 0.0
    %5865 = vmatprep.subr.mxu0 0.0
    %5866 = vmatpush1.msra.mxu0 0.0
    %5867 = vmatprep.subr.mxu0 0.0
    %5868 = vmatpush1.msra.mxu0 0.0
    %5869 = vmatprep.subr.mxu0 0.0
    %5870 = vmatpush1.msra.mxu0 0.0
    %5871 = vmatprep.mubr.f32.mxu0 0.0
    %5872 = vmatmul.mubr.f32.gmra.mrb[0].mxu0 %v5731
    %v5873 = vpop.f32.mrb[0].mxu0
    %v5874 = vadd.f32 %v5803, %v5873
    %v5875 = vpop.f32.mrb[0].mxu0
    %v5876 = vadd.f32 %v5805, %v5875
    %5877 = vdwg.mxu0
    %5878 = vmatprep.subr.mxu0 %v3126
    %5879 = vmatpush1.msra.mxu0 %v3125
    %5880 = vmatprep.subr.mxu0 %v3130
    %5881 = vmatpush1.msra.mxu0 %v3129
    %5882 = vmatprep.subr.mxu0 %v3134
    %5883 = vmatpush1.msra.mxu0 %v3133
    %5884 = vmatprep.subr.mxu0 %v3138
    %5885 = vmatpush1.msra.mxu0 %v3137
    %5886 = vmatprep.subr.mxu0 %v3142
    %5887 = vmatpush1.msra.mxu0 %v3141
    %5888 = vmatprep.subr.mxu0 %v3146
    %5889 = vmatpush1.msra.mxu0 %v3145
    %5890 = vmatprep.subr.mxu0 %v3150
    %5891 = vmatpush1.msra.mxu0 %v3149
    %5892 = vmatprep.subr.mxu0 %v3154
    %5893 = vmatpush1.msra.mxu0 %v3153
    %5894 = vmatprep.subr.mxu0 %v3158
    %5895 = vmatpush1.msra.mxu0 %v3157
    %5896 = vmatprep.subr.mxu0 %v3162
    %5897 = vmatpush1.msra.mxu0 %v3161
    %5898 = vmatprep.subr.mxu0 %v3166
    %5899 = vmatpush1.msra.mxu0 %v3165
    %5900 = vmatprep.subr.mxu0 %v3170
    %5901 = vmatpush1.msra.mxu0 %v3169
    %5902 = vmatprep.subr.mxu0 %v3174
    %5903 = vmatpush1.msra.mxu0 %v3173
    %5904 = vmatprep.subr.mxu0 %v3178
    %5905 = vmatpush1.msra.mxu0 %v3177
    %5906 = vmatprep.subr.mxu0 %v3182
    %5907 = vmatpush1.msra.mxu0 %v3181
    %5908 = vmatprep.subr.mxu0 %v3186
    %5909 = vmatpush1.msra.mxu0 %v3185
    %5910 = vmatprep.subr.mxu0 %v3190
    %5911 = vmatpush1.msra.mxu0 %v3189
    %5912 = vmatprep.subr.mxu0 %v3194
    %5913 = vmatpush1.msra.mxu0 %v3193
    %5914 = vmatprep.subr.mxu0 %v3198
    %5915 = vmatpush1.msra.mxu0 %v3197
    %5916 = vmatprep.subr.mxu0 %v3202
    %5917 = vmatpush1.msra.mxu0 %v3201
    %5918 = vmatprep.subr.mxu0 %v3206
    %5919 = vmatpush1.msra.mxu0 %v3205
    %5920 = vmatprep.subr.mxu0 %v3210
    %5921 = vmatpush1.msra.mxu0 %v3209
    %5922 = vmatprep.subr.mxu0 %v3214
    %5923 = vmatpush1.msra.mxu0 %v3213
    %5924 = vmatprep.subr.mxu0 %v3218
    %5925 = vmatpush1.msra.mxu0 %v3217
    %5926 = vmatprep.subr.mxu0 %v3222
    %5927 = vmatpush1.msra.mxu0 %v3221
    %5928 = vmatprep.subr.mxu0 %v3226
    %5929 = vmatpush1.msra.mxu0 %v3225
    %5930 = vmatprep.subr.mxu0 %v3230
    %5931 = vmatpush1.msra.mxu0 %v3229
    %5932 = vmatprep.subr.mxu0 %v3234
    %5933 = vmatpush1.msra.mxu0 %v3233
    %5934 = vmatprep.subr.mxu0 %v3238
    %5935 = vmatpush1.msra.mxu0 %v3237
    %5936 = vmatprep.subr.mxu0 %v3242
    %5937 = vmatpush1.msra.mxu0 %v3241
    %5938 = vmatprep.subr.mxu0 %v3246
    %5939 = vmatpush1.msra.mxu0 %v3245
    %5940 = vmatprep.subr.mxu0 %v3250
    %5941 = vmatpush1.msra.mxu0 %v3249
    %5942 = vmatprep.mubr.f32.mxu0 %v5735
    %5943 = vmatmul.mubr.f32.gmra.mrb[0].mxu0 %v5734
    %v5944 = vpop.f32.mrb[0].mxu0
    %v5945 = vadd.f32 %v3520, %v5944
    %v5946 = vpop.f32.mrb[0].mxu0
    %v5947 = vadd.f32 %v3524, %v5946
    %5948 = vdwg.mxu0
    %5949 = vmatprep.subr.mxu0 %v3254
    %5950 = vmatpush1.msra.mxu0 %v3253
    %5951 = vmatprep.subr.mxu0 %v3258
    %5952 = vmatpush1.msra.mxu0 %v3257
    %5953 = vmatprep.subr.mxu0 %v3262
    %5954 = vmatpush1.msra.mxu0 %v3261
    %5955 = vmatprep.subr.mxu0 %v3266
    %5956 = vmatpush1.msra.mxu0 %v3265
    %5957 = vmatprep.subr.mxu0 %v3270
    %5958 = vmatpush1.msra.mxu0 %v3269
    %5959 = vmatprep.subr.mxu0 %v3274
    %5960 = vmatpush1.msra.mxu0 %v3273
    %5961 = vmatprep.subr.mxu0 %v3278
    %5962 = vmatpush1.msra.mxu0 %v3277
    %5963 = vmatprep.subr.mxu0 %v3282
    %5964 = vmatpush1.msra.mxu0 %v3281
    %5965 = vmatprep.subr.mxu0 %v3286
    %5966 = vmatpush1.msra.mxu0 %v3285
    %5967 = vmatprep.subr.mxu0 %v3290
    %5968 = vmatpush1.msra.mxu0 %v3289
    %5969 = vmatprep.subr.mxu0 %v3294
    %5970 = vmatpush1.msra.mxu0 %v3293
    %5971 = vmatprep.subr.mxu0 %v3298
    %5972 = vmatpush1.msra.mxu0 %v3297
    %5973 = vmatprep.subr.mxu0 %v3302
    %5974 = vmatpush1.msra.mxu0 %v3301
    %5975 = vmatprep.subr.mxu0 %v3306
    %5976 = vmatpush1.msra.mxu0 %v3305
    %5977 = vmatprep.subr.mxu0 %v3310
    %5978 = vmatpush1.msra.mxu0 %v3309
    %5979 = vmatprep.subr.mxu0 %v3314
    %5980 = vmatpush1.msra.mxu0 %v3313
    %5981 = vmatprep.subr.mxu0 0.0
    %5982 = vmatpush1.msra.mxu0 0.0
    %5983 = vmatprep.subr.mxu0 0.0
    %5984 = vmatpush1.msra.mxu0 0.0
    %5985 = vmatprep.subr.mxu0 0.0
    %5986 = vmatpush1.msra.mxu0 0.0
    %5987 = vmatprep.subr.mxu0 0.0
    %5988 = vmatpush1.msra.mxu0 0.0
    %5989 = vmatprep.subr.mxu0 0.0
    %5990 = vmatpush1.msra.mxu0 0.0
    %5991 = vmatprep.subr.mxu0 0.0
    %5992 = vmatpush1.msra.mxu0 0.0
    %5993 = vmatprep.subr.mxu0 0.0
    %5994 = vmatpush1.msra.mxu0 0.0
    %5995 = vmatprep.subr.mxu0 0.0
    %5996 = vmatpush1.msra.mxu0 0.0
    %5997 = vmatprep.subr.mxu0 0.0
    %5998 = vmatpush1.msra.mxu0 0.0
    %5999 = vmatprep.subr.mxu0 0.0
    %6000 = vmatpush1.msra.mxu0 0.0
    %6001 = vmatprep.subr.mxu0 0.0
    %6002 = vmatpush1.msra.mxu0 0.0
    %6003 = vmatprep.subr.mxu0 0.0
    %6004 = vmatpush1.msra.mxu0 0.0
    %6005 = vmatprep.subr.mxu0 0.0
    %6006 = vmatpush1.msra.mxu0 0.0
    %6007 = vmatprep.subr.mxu0 0.0
    %6008 = vmatpush1.msra.mxu0 0.0
    %6009 = vmatprep.subr.mxu0 0.0
    %6010 = vmatpush1.msra.mxu0 0.0
    %6011 = vmatprep.subr.mxu0 0.0
    %6012 = vmatpush1.msra.mxu0 0.0
    %6013 = vmatprep.mubr.f32.mxu0 0.0
    %6014 = vmatmul.mubr.f32.gmra.mrb[0].mxu0 %v5731
    %v6015 = vpop.f32.mrb[0].mxu0
    %v6016 = vadd.f32 %v5945, %v6015
    %v6017 = vpop.f32.mrb[0].mxu0
    %v6018 = vadd.f32 %v5947, %v6017
    %6019 = vdwg.mxu0
    %v6020 = vxor.u32 %v5874, 2147483648
    %v6021 = vmul.f32 %v6020, 1.442695
    %v6022 = vpow.pop %v6021
    %v6023 = vadd.f32 %v6022, 1.0
    %v6024 = vrcp.pop %v6023
    %v6025 = vmul.f32 1.0, %v6024
    %v6026 = vxor.u32 %v5876, 2147483648
    %v6027 = vmul.f32 %v6026, 1.442695
    %v6028 = vpow.pop %v6027
    %v6029 = vadd.f32 %v6028, 1.0
    %v6030 = vrcp.pop %v6029
    %v6031 = vmul.f32 1.0, %v6030
    %v6032 = vtanh.pop %v6016
    %v6033 = vxor.u32 %v6018, 2147483648
    %v6034 = vmul.f32 %v6033, 1.442695
    %v6035 = vpow.pop %v6034
    %v6036 = vadd.f32 %v6035, 1.0
    %v6037 = vrcp.pop %v6036
    %v6038 = vmul.f32 1.0, %v6037
    %v6039 = vmul.f32 %v6031, %v5729
    %v6040 = vmul.f32 %v6025, %v6032
    %v6041 = vadd.f32 %v6039, %v6040
    %v6042 = vtanh.pop %v6041
    %v6043 = vmul.f32 %v6038, %v6042
    %s6044 = scalar_lea.vmem [#allocation3], 112
    %6045 = vst [vmem:[%s6044] sm:$0xff] %v6043
    %v6046 = vld [vmem:[%s1777] sm:$0xff]
    %v6047 = vld [vmem:[%s1777 + $0x8] sm:$0xff]
    %6048 = vmatprep.subr.mxu0 %v3316
    %6049 = vmatpush1.msra.mxu0 %v3315
    %6050 = vmatprep.subr.mxu0 %v3320
    %6051 = vmatpush1.msra.mxu0 %v3319
    %6052 = vmatprep.subr.mxu0 %v3324
    %6053 = vmatpush1.msra.mxu0 %v3323
    %6054 = vmatprep.subr.mxu0 %v3328
    %6055 = vmatpush1.msra.mxu0 %v3327
    %6056 = vmatprep.subr.mxu0 %v3332
    %6057 = vmatpush1.msra.mxu0 %v3331
    %6058 = vmatprep.subr.mxu0 %v3336
    %6059 = vmatpush1.msra.mxu0 %v3335
    %6060 = vmatprep.subr.mxu0 %v3340
    %6061 = vmatpush1.msra.mxu0 %v3339
    %6062 = vmatprep.subr.mxu0 %v3344
    %6063 = vmatpush1.msra.mxu0 %v3343
    %6064 = vmatprep.subr.mxu0 %v3348
    %6065 = vmatpush1.msra.mxu0 %v3347
    %6066 = vmatprep.subr.mxu0 %v3352
    %6067 = vmatpush1.msra.mxu0 %v3351
    %6068 = vmatprep.subr.mxu0 %v3356
    %6069 = vmatpush1.msra.mxu0 %v3355
    %6070 = vmatprep.subr.mxu0 %v3360
    %6071 = vmatpush1.msra.mxu0 %v3359
    %6072 = vmatprep.subr.mxu0 %v3364
    %6073 = vmatpush1.msra.mxu0 %v3363
    %6074 = vmatprep.subr.mxu0 %v3368
    %6075 = vmatpush1.msra.mxu0 %v3367
    %6076 = vmatprep.subr.mxu0 %v3372
    %6077 = vmatpush1.msra.mxu0 %v3371
    %6078 = vmatprep.subr.mxu0 %v3376
    %6079 = vmatpush1.msra.mxu0 %v3375
    %6080 = vmatprep.subr.mxu0 %v3380
    %6081 = vmatpush1.msra.mxu0 %v3379
    %6082 = vmatprep.subr.mxu0 %v3384
    %6083 = vmatpush1.msra.mxu0 %v3383
    %6084 = vmatprep.subr.mxu0 %v3388
    %6085 = vmatpush1.msra.mxu0 %v3387
    %6086 = vmatprep.subr.mxu0 %v3392
    %6087 = vmatpush1.msra.mxu0 %v3391
    %6088 = vmatprep.subr.mxu0 %v3396
    %6089 = vmatpush1.msra.mxu0 %v3395
    %6090 = vmatprep.subr.mxu0 %v3400
    %6091 = vmatpush1.msra.mxu0 %v3399
    %6092 = vmatprep.subr.mxu0 %v3404
    %6093 = vmatpush1.msra.mxu0 %v3403
    %6094 = vmatprep.subr.mxu0 %v3408
    %6095 = vmatpush1.msra.mxu0 %v3407
    %6096 = vmatprep.subr.mxu0 %v3412
    %6097 = vmatpush1.msra.mxu0 %v3411
    %6098 = vmatprep.subr.mxu0 %v3416
    %6099 = vmatpush1.msra.mxu0 %v3415
    %6100 = vmatprep.subr.mxu0 %v3420
    %6101 = vmatpush1.msra.mxu0 %v3419
    %6102 = vmatprep.subr.mxu0 %v3424
    %6103 = vmatpush1.msra.mxu0 %v3423
    %6104 = vmatprep.subr.mxu0 %v3428
    %6105 = vmatpush1.msra.mxu0 %v3427
    %6106 = vmatprep.subr.mxu0 %v3432
    %6107 = vmatpush1.msra.mxu0 %v3431
    %6108 = vmatprep.subr.mxu0 %v3436
    %6109 = vmatpush1.msra.mxu0 %v3435
    %6110 = vmatprep.subr.mxu0 %v3440
    %6111 = vmatpush1.msra.mxu0 %v3439
    %6112 = vmatprep.mubr.f32.mxu0 %v6047
    %6113 = vmatmul.mubr.f32.gmra.mrb[0].mxu0 %v6046
    %v6114 = vpop.f32.mrb[0].mxu0
    %v6115 = vadd.f32 %v3534, %v6114
    %v6116 = vpop.f32.mrb[0].mxu0
    %v6117 = vadd.f32 %v3538, %v6116
    %6118 = vdwg.mxu0
    %6119 = vmatprep.subr.mxu0 %v3444
    %6120 = vmatpush1.msra.mxu0 %v3443
    %6121 = vmatprep.subr.mxu0 %v3448
    %6122 = vmatpush1.msra.mxu0 %v3447
    %6123 = vmatprep.subr.mxu0 %v3452
    %6124 = vmatpush1.msra.mxu0 %v3451
    %6125 = vmatprep.subr.mxu0 %v3456
    %6126 = vmatpush1.msra.mxu0 %v3455
    %6127 = vmatprep.subr.mxu0 %v3460
    %6128 = vmatpush1.msra.mxu0 %v3459
    %6129 = vmatprep.subr.mxu0 %v3464
    %6130 = vmatpush1.msra.mxu0 %v3463
    %6131 = vmatprep.subr.mxu0 %v3468
    %6132 = vmatpush1.msra.mxu0 %v3467
    %6133 = vmatprep.subr.mxu0 %v3472
    %6134 = vmatpush1.msra.mxu0 %v3471
    %6135 = vmatprep.subr.mxu0 %v3476
    %6136 = vmatpush1.msra.mxu0 %v3475
    %6137 = vmatprep.subr.mxu0 %v3480
    %6138 = vmatpush1.msra.mxu0 %v3479
    %6139 = vmatprep.subr.mxu0 %v3484
    %6140 = vmatpush1.msra.mxu0 %v3483
    %6141 = vmatprep.subr.mxu0 %v3488
    %6142 = vmatpush1.msra.mxu0 %v3487
    %6143 = vmatprep.subr.mxu0 %v3492
    %6144 = vmatpush1.msra.mxu0 %v3491
    %6145 = vmatprep.subr.mxu0 %v3496
    %6146 = vmatpush1.msra.mxu0 %v3495
    %6147 = vmatprep.subr.mxu0 %v3500
    %6148 = vmatpush1.msra.mxu0 %v3499
    %6149 = vmatprep.subr.mxu0 %v3504
    %6150 = vmatpush1.msra.mxu0 %v3503
    %6151 = vmatprep.subr.mxu0 0.0
    %6152 = vmatpush1.msra.mxu0 0.0
    %6153 = vmatprep.subr.mxu0 0.0
    %6154 = vmatpush1.msra.mxu0 0.0
    %6155 = vmatprep.subr.mxu0 0.0
    %6156 = vmatpush1.msra.mxu0 0.0
    %6157 = vmatprep.subr.mxu0 0.0
    %6158 = vmatpush1.msra.mxu0 0.0
    %6159 = vmatprep.subr.mxu0 0.0
    %6160 = vmatpush1.msra.mxu0 0.0
    %6161 = vmatprep.subr.mxu0 0.0
    %6162 = vmatpush1.msra.mxu0 0.0
    %6163 = vmatprep.subr.mxu0 0.0
    %6164 = vmatpush1.msra.mxu0 0.0
    %6165 = vmatprep.subr.mxu0 0.0
    %6166 = vmatpush1.msra.mxu0 0.0
    %6167 = vmatprep.subr.mxu0 0.0
    %6168 = vmatpush1.msra.mxu0 0.0
    %6169 = vmatprep.subr.mxu0 0.0
    %6170 = vmatpush1.msra.mxu0 0.0
    %6171 = vmatprep.subr.mxu0 0.0
    %6172 = vmatpush1.msra.mxu0 0.0
    %6173 = vmatprep.subr.mxu0 0.0
    %6174 = vmatpush1.msra.mxu0 0.0
    %6175 = vmatprep.subr.mxu0 0.0
    %6176 = vmatpush1.msra.mxu0 0.0
    %6177 = vmatprep.subr.mxu0 0.0
    %6178 = vmatpush1.msra.mxu0 0.0
    %6179 = vmatprep.subr.mxu0 0.0
    %6180 = vmatpush1.msra.mxu0 0.0
    %6181 = vmatprep.subr.mxu0 0.0
    %6182 = vmatpush1.msra.mxu0 0.0
    %6183 = vmatprep.mubr.f32.mxu0 0.0
    %6184 = vmatmul.mubr.f32.gmra.mrb[0].mxu0 0.0
    %v6185 = vpop.f32.mrb[0].mxu0
    %v6186 = vadd.f32 %v6115, %v6185
    %v6187 = vpop.f32.mrb[0].mxu0
    %v6188 = vadd.f32 %v6117, %v6187
    %6189 = vdwg.mxu0
    %6190 = vmatprep.subr.mxu0 %v3318
    %6191 = vmatpush1.msra.mxu0 %v3317
    %6192 = vmatprep.subr.mxu0 %v3322
    %6193 = vmatpush1.msra.mxu0 %v3321
    %6194 = vmatprep.subr.mxu0 %v3326
    %6195 = vmatpush1.msra.mxu0 %v3325
    %6196 = vmatprep.subr.mxu0 %v3330
    %6197 = vmatpush1.msra.mxu0 %v3329
    %6198 = vmatprep.subr.mxu0 %v3334
    %6199 = vmatpush1.msra.mxu0 %v3333
    %6200 = vmatprep.subr.mxu0 %v3338
    %6201 = vmatpush1.msra.mxu0 %v3337
    %6202 = vmatprep.subr.mxu0 %v3342
    %6203 = vmatpush1.msra.mxu0 %v3341
    %6204 = vmatprep.subr.mxu0 %v3346
    %6205 = vmatpush1.msra.mxu0 %v3345
    %6206 = vmatprep.subr.mxu0 %v3350
    %6207 = vmatpush1.msra.mxu0 %v3349
    %6208 = vmatprep.subr.mxu0 %v3354
    %6209 = vmatpush1.msra.mxu0 %v3353
    %6210 = vmatprep.subr.mxu0 %v3358
    %6211 = vmatpush1.msra.mxu0 %v3357
    %6212 = vmatprep.subr.mxu0 %v3362
    %6213 = vmatpush1.msra.mxu0 %v3361
    %6214 = vmatprep.subr.mxu0 %v3366
    %6215 = vmatpush1.msra.mxu0 %v3365
    %6216 = vmatprep.subr.mxu0 %v3370
    %6217 = vmatpush1.msra.mxu0 %v3369
    %6218 = vmatprep.subr.mxu0 %v3374
    %6219 = vmatpush1.msra.mxu0 %v3373
    %6220 = vmatprep.subr.mxu0 %v3378
    %6221 = vmatpush1.msra.mxu0 %v3377
    %6222 = vmatprep.subr.mxu0 %v3382
    %6223 = vmatpush1.msra.mxu0 %v3381
    %6224 = vmatprep.subr.mxu0 %v3386
    %6225 = vmatpush1.msra.mxu0 %v3385
    %6226 = vmatprep.subr.mxu0 %v3390
    %6227 = vmatpush1.msra.mxu0 %v3389
    %6228 = vmatprep.subr.mxu0 %v3394
    %6229 = vmatpush1.msra.mxu0 %v3393
    %6230 = vmatprep.subr.mxu0 %v3398
    %6231 = vmatpush1.msra.mxu0 %v3397
    %6232 = vmatprep.subr.mxu0 %v3402
    %6233 = vmatpush1.msra.mxu0 %v3401
    %6234 = vmatprep.subr.mxu0 %v3406
    %6235 = vmatpush1.msra.mxu0 %v3405
    %6236 = vmatprep.subr.mxu0 %v3410
    %6237 = vmatpush1.msra.mxu0 %v3409
    %6238 = vmatprep.subr.mxu0 %v3414
    %6239 = vmatpush1.msra.mxu0 %v3413
    %6240 = vmatprep.subr.mxu0 %v3418
    %6241 = vmatpush1.msra.mxu0 %v3417
    %6242 = vmatprep.subr.mxu0 %v3422
    %6243 = vmatpush1.msra.mxu0 %v3421
    %6244 = vmatprep.subr.mxu0 %v3426
    %6245 = vmatpush1.msra.mxu0 %v3425
    %6246 = vmatprep.subr.mxu0 %v3430
    %6247 = vmatpush1.msra.mxu0 %v3429
    %6248 = vmatprep.subr.mxu0 %v3434
    %6249 = vmatpush1.msra.mxu0 %v3433
    %6250 = vmatprep.subr.mxu0 %v3438
    %6251 = vmatpush1.msra.mxu0 %v3437
    %6252 = vmatprep.subr.mxu0 %v3442
    %6253 = vmatpush1.msra.mxu0 %v3441
    %6254 = vmatprep.mubr.f32.mxu0 %v6047
    %6255 = vmatmul.mubr.f32.gmra.mrb[0].mxu0 %v6046
    %v6256 = vpop.f32.mrb[0].mxu0
    %v6257 = vadd.f32 %v3542, %v6256
    %v6258 = vpop.f32.mrb[0].mxu0
    %v6259 = vadd.f32 %v3546, %v6258
    %6260 = vdwg.mxu0
    %6261 = vmatprep.subr.mxu0 %v3446
    %6262 = vmatpush1.msra.mxu0 %v3445
    %6263 = vmatprep.subr.mxu0 %v3450
    %6264 = vmatpush1.msra.mxu0 %v3449
    %6265 = vmatprep.subr.mxu0 %v3454
    %6266 = vmatpush1.msra.mxu0 %v3453
    %6267 = vmatprep.subr.mxu0 %v3458
    %6268 = vmatpush1.msra.mxu0 %v3457
    %6269 = vmatprep.subr.mxu0 %v3462
    %6270 = vmatpush1.msra.mxu0 %v3461
    %6271 = vmatprep.subr.mxu0 %v3466
    %6272 = vmatpush1.msra.mxu0 %v3465
    %6273 = vmatprep.subr.mxu0 %v3470
    %6274 = vmatpush1.msra.mxu0 %v3469
    %6275 = vmatprep.subr.mxu0 %v3474
    %6276 = vmatpush1.msra.mxu0 %v3473
    %6277 = vmatprep.subr.mxu0 %v3478
    %6278 = vmatpush1.msra.mxu0 %v3477
    %6279 = vmatprep.subr.mxu0 %v3482
    %6280 = vmatpush1.msra.mxu0 %v3481
    %6281 = vmatprep.subr.mxu0 %v3486
    %6282 = vmatpush1.msra.mxu0 %v3485
    %6283 = vmatprep.subr.mxu0 %v3490
    %6284 = vmatpush1.msra.mxu0 %v3489
    %6285 = vmatprep.subr.mxu0 %v3494
    %6286 = vmatpush1.msra.mxu0 %v3493
    %6287 = vmatprep.subr.mxu0 %v3498
    %6288 = vmatpush1.msra.mxu0 %v3497
    %6289 = vmatprep.subr.mxu0 %v3502
    %6290 = vmatpush1.msra.mxu0 %v3501
    %6291 = vmatprep.subr.mxu0 %v3506
    %6292 = vmatpush1.msra.mxu0 %v3505
    %6293 = vmatprep.subr.mxu0 0.0
    %6294 = vmatpush1.msra.mxu0 0.0
    %6295 = vmatprep.subr.mxu0 0.0
    %6296 = vmatpush1.msra.mxu0 0.0
    %6297 = vmatprep.subr.mxu0 0.0
    %6298 = vmatpush1.msra.mxu0 0.0
    %6299 = vmatprep.subr.mxu0 0.0
    %6300 = vmatpush1.msra.mxu0 0.0
    %6301 = vmatprep.subr.mxu0 0.0
    %6302 = vmatpush1.msra.mxu0 0.0
    %6303 = vmatprep.subr.mxu0 0.0
    %6304 = vmatpush1.msra.mxu0 0.0
    %6305 = vmatprep.subr.mxu0 0.0
    %6306 = vmatpush1.msra.mxu0 0.0
    %6307 = vmatprep.subr.mxu0 0.0
    %6308 = vmatpush1.msra.mxu0 0.0
    %6309 = vmatprep.subr.mxu0 0.0
    %6310 = vmatpush1.msra.mxu0 0.0
    %6311 = vmatprep.subr.mxu0 0.0
    %6312 = vmatpush1.msra.mxu0 0.0
    %6313 = vmatprep.subr.mxu0 0.0
    %6314 = vmatpush1.msra.mxu0 0.0
    %6315 = vmatprep.subr.mxu0 0.0
    %6316 = vmatpush1.msra.mxu0 0.0
    %6317 = vmatprep.subr.mxu0 0.0
    %6318 = vmatpush1.msra.mxu0 0.0
    %6319 = vmatprep.subr.mxu0 0.0
    %6320 = vmatpush1.msra.mxu0 0.0
    %6321 = vmatprep.subr.mxu0 0.0
    %6322 = vmatpush1.msra.mxu0 0.0
    %6323 = vmatprep.subr.mxu0 0.0
    %6324 = vmatpush1.msra.mxu0 0.0
    %6325 = vmatprep.mubr.f32.mxu0 0.0
    %6326 = vmatmul.mubr.f32.gmra.mrb[0].mxu0 0.0
    %v6327 = vpop.f32.mrb[0].mxu0
    %v6328 = vadd.f32 %v6257, %v6327
    %v6329 = vpop.f32.mrb[0].mxu0
    %v6330 = vadd.f32 %v6259, %v6329
    %6331 = vdwg.mxu0
    %v6332 = vxor.u32 %v6186, 2147483648
    %v6333 = vmul.f32 %v6332, 1.442695
    %v6334 = vpow.pop %v6333
    %v6335 = vadd.f32 %v6334, 1.0
    %v6336 = vrcp.pop %v6335
    %v6337 = vmul.f32 1.0, %v6336
    %v6338 = vxor.u32 %v6188, 2147483648
    %v6339 = vmul.f32 %v6338, 1.442695
    %v6340 = vpow.pop %v6339
    %v6341 = vadd.f32 %v6340, 1.0
    %v6342 = vrcp.pop %v6341
    %v6343 = vmul.f32 1.0, %v6342
    %v6344 = vtanh.pop %v6328
    %v6345 = vxor.u32 %v6330, 2147483648
    %v6346 = vmul.f32 %v6345, 1.442695
    %v6347 = vpow.pop %v6346
    %v6348 = vadd.f32 %v6347, 1.0
    %v6349 = vrcp.pop %v6348
    %v6350 = vmul.f32 1.0, %v6349
    %v6351 = vmul.f32 %v6343, 0.0
    %v6352 = vmul.f32 %v6337, %v6344
    %v6353 = vadd.f32 %v6351, %v6352
    %v6354 = vtanh.pop %v6353
    %v6355 = vmul.f32 %v6350, %v6354
    %6356 = vst [vmem:[%s6044 + $0x8] sm:$0xff] %v6355
    %v6357 = vld [vmem:[%s1607] sm:$0xff]
    %v6358 = vld [vmem:[%s1607 + $0x8] sm:$0xff]
    %6359 = vmatprep.subr.mxu0 %v3316
    %6360 = vmatpush1.msra.mxu0 %v3315
    %6361 = vmatprep.subr.mxu0 %v3320
    %6362 = vmatpush1.msra.mxu0 %v3319
    %6363 = vmatprep.subr.mxu0 %v3324
    %6364 = vmatpush1.msra.mxu0 %v3323
    %6365 = vmatprep.subr.mxu0 %v3328
    %6366 = vmatpush1.msra.mxu0 %v3327
    %6367 = vmatprep.subr.mxu0 %v3332
    %6368 = vmatpush1.msra.mxu0 %v3331
    %6369 = vmatprep.subr.mxu0 %v3336
    %6370 = vmatpush1.msra.mxu0 %v3335
    %6371 = vmatprep.subr.mxu0 %v3340
    %6372 = vmatpush1.msra.mxu0 %v3339
    %6373 = vmatprep.subr.mxu0 %v3344
    %6374 = vmatpush1.msra.mxu0 %v3343
    %6375 = vmatprep.subr.mxu0 %v3348
    %6376 = vmatpush1.msra.mxu0 %v3347
    %6377 = vmatprep.subr.mxu0 %v3352
    %6378 = vmatpush1.msra.mxu0 %v3351
    %6379 = vmatprep.subr.mxu0 %v3356
    %6380 = vmatpush1.msra.mxu0 %v3355
    %6381 = vmatprep.subr.mxu0 %v3360
    %6382 = vmatpush1.msra.mxu0 %v3359
    %6383 = vmatprep.subr.mxu0 %v3364
    %6384 = vmatpush1.msra.mxu0 %v3363
    %6385 = vmatprep.subr.mxu0 %v3368
    %6386 = vmatpush1.msra.mxu0 %v3367
    %6387 = vmatprep.subr.mxu0 %v3372
    %6388 = vmatpush1.msra.mxu0 %v3371
    %6389 = vmatprep.subr.mxu0 %v3376
    %6390 = vmatpush1.msra.mxu0 %v3375
    %6391 = vmatprep.subr.mxu0 %v3380
    %6392 = vmatpush1.msra.mxu0 %v3379
    %6393 = vmatprep.subr.mxu0 %v3384
    %6394 = vmatpush1.msra.mxu0 %v3383
    %6395 = vmatprep.subr.mxu0 %v3388
    %6396 = vmatpush1.msra.mxu0 %v3387
    %6397 = vmatprep.subr.mxu0 %v3392
    %6398 = vmatpush1.msra.mxu0 %v3391
    %6399 = vmatprep.subr.mxu0 %v3396
    %6400 = vmatpush1.msra.mxu0 %v3395
    %6401 = vmatprep.subr.mxu0 %v3400
    %6402 = vmatpush1.msra.mxu0 %v3399
    %6403 = vmatprep.subr.mxu0 %v3404
    %6404 = vmatpush1.msra.mxu0 %v3403
    %6405 = vmatprep.subr.mxu0 %v3408
    %6406 = vmatpush1.msra.mxu0 %v3407
    %6407 = vmatprep.subr.mxu0 %v3412
    %6408 = vmatpush1.msra.mxu0 %v3411
    %6409 = vmatprep.subr.mxu0 %v3416
    %6410 = vmatpush1.msra.mxu0 %v3415
    %6411 = vmatprep.subr.mxu0 %v3420
    %6412 = vmatpush1.msra.mxu0 %v3419
    %6413 = vmatprep.subr.mxu0 %v3424
    %6414 = vmatpush1.msra.mxu0 %v3423
    %6415 = vmatprep.subr.mxu0 %v3428
    %6416 = vmatpush1.msra.mxu0 %v3427
    %6417 = vmatprep.subr.mxu0 %v3432
    %6418 = vmatpush1.msra.mxu0 %v3431
    %6419 = vmatprep.subr.mxu0 %v3436
    %6420 = vmatpush1.msra.mxu0 %v3435
    %6421 = vmatprep.subr.mxu0 %v3440
    %6422 = vmatpush1.msra.mxu0 %v3439
    %6423 = vmatprep.mubr.f32.mxu0 %v6358
    %6424 = vmatmul.mubr.f32.gmra.mrb[0].mxu0 %v6357
    %v6425 = vpop.f32.mrb[0].mxu0
    %v6426 = vadd.f32 %v3534, %v6425
    %v6427 = vpop.f32.mrb[0].mxu0
    %v6428 = vadd.f32 %v3538, %v6427
    %6429 = vdwg.mxu0
    %6430 = vmatprep.subr.mxu0 %v3444
    %6431 = vmatpush1.msra.mxu0 %v3443
    %6432 = vmatprep.subr.mxu0 %v3448
    %6433 = vmatpush1.msra.mxu0 %v3447
    %6434 = vmatprep.subr.mxu0 %v3452
    %6435 = vmatpush1.msra.mxu0 %v3451
    %6436 = vmatprep.subr.mxu0 %v3456
    %6437 = vmatpush1.msra.mxu0 %v3455
    %6438 = vmatprep.subr.mxu0 %v3460
    %6439 = vmatpush1.msra.mxu0 %v3459
    %6440 = vmatprep.subr.mxu0 %v3464
    %6441 = vmatpush1.msra.mxu0 %v3463
    %6442 = vmatprep.subr.mxu0 %v3468
    %6443 = vmatpush1.msra.mxu0 %v3467
    %6444 = vmatprep.subr.mxu0 %v3472
    %6445 = vmatpush1.msra.mxu0 %v3471
    %6446 = vmatprep.subr.mxu0 %v3476
    %6447 = vmatpush1.msra.mxu0 %v3475
    %6448 = vmatprep.subr.mxu0 %v3480
    %6449 = vmatpush1.msra.mxu0 %v3479
    %6450 = vmatprep.subr.mxu0 %v3484
    %6451 = vmatpush1.msra.mxu0 %v3483
    %6452 = vmatprep.subr.mxu0 %v3488
    %6453 = vmatpush1.msra.mxu0 %v3487
    %6454 = vmatprep.subr.mxu0 %v3492
    %6455 = vmatpush1.msra.mxu0 %v3491
    %6456 = vmatprep.subr.mxu0 %v3496
    %6457 = vmatpush1.msra.mxu0 %v3495
    %6458 = vmatprep.subr.mxu0 %v3500
    %6459 = vmatpush1.msra.mxu0 %v3499
    %6460 = vmatprep.subr.mxu0 %v3504
    %6461 = vmatpush1.msra.mxu0 %v3503
    %6462 = vmatprep.subr.mxu0 0.0
    %6463 = vmatpush1.msra.mxu0 0.0
    %6464 = vmatprep.subr.mxu0 0.0
    %6465 = vmatpush1.msra.mxu0 0.0
    %6466 = vmatprep.subr.mxu0 0.0
    %6467 = vmatpush1.msra.mxu0 0.0
    %6468 = vmatprep.subr.mxu0 0.0
    %6469 = vmatpush1.msra.mxu0 0.0
    %6470 = vmatprep.subr.mxu0 0.0
    %6471 = vmatpush1.msra.mxu0 0.0
    %6472 = vmatprep.subr.mxu0 0.0
    %6473 = vmatpush1.msra.mxu0 0.0
    %6474 = vmatprep.subr.mxu0 0.0
    %6475 = vmatpush1.msra.mxu0 0.0
    %6476 = vmatprep.subr.mxu0 0.0
    %6477 = vmatpush1.msra.mxu0 0.0
    %6478 = vmatprep.subr.mxu0 0.0
    %6479 = vmatpush1.msra.mxu0 0.0
    %6480 = vmatprep.subr.mxu0 0.0
    %6481 = vmatpush1.msra.mxu0 0.0
    %6482 = vmatprep.subr.mxu0 0.0
    %6483 = vmatpush1.msra.mxu0 0.0
    %6484 = vmatprep.subr.mxu0 0.0
    %6485 = vmatpush1.msra.mxu0 0.0
    %6486 = vmatprep.subr.mxu0 0.0
    %6487 = vmatpush1.msra.mxu0 0.0
    %6488 = vmatprep.subr.mxu0 0.0
    %6489 = vmatpush1.msra.mxu0 0.0
    %6490 = vmatprep.subr.mxu0 0.0
    %6491 = vmatpush1.msra.mxu0 0.0
    %6492 = vmatprep.subr.mxu0 0.0
    %6493 = vmatpush1.msra.mxu0 0.0
    %6494 = vmatprep.mubr.f32.mxu0 0.0
    %6495 = vmatmul.mubr.f32.gmra.mrb[0].mxu0 %v6355
    %v6496 = vpop.f32.mrb[0].mxu0
    %v6497 = vadd.f32 %v6426, %v6496
    %v6498 = vpop.f32.mrb[0].mxu0
    %v6499 = vadd.f32 %v6428, %v6498
    %6500 = vdwg.mxu0
    %6501 = vmatprep.subr.mxu0 %v3318
    %6502 = vmatpush1.msra.mxu0 %v3317
    %6503 = vmatprep.subr.mxu0 %v3322
    %6504 = vmatpush1.msra.mxu0 %v3321
    %6505 = vmatprep.subr.mxu0 %v3326
    %6506 = vmatpush1.msra.mxu0 %v3325
    %6507 = vmatprep.subr.mxu0 %v3330
    %6508 = vmatpush1.msra.mxu0 %v3329
    %6509 = vmatprep.subr.mxu0 %v3334
    %6510 = vmatpush1.msra.mxu0 %v3333
    %6511 = vmatprep.subr.mxu0 %v3338
    %6512 = vmatpush1.msra.mxu0 %v3337
    %6513 = vmatprep.subr.mxu0 %v3342
    %6514 = vmatpush1.msra.mxu0 %v3341
    %6515 = vmatprep.subr.mxu0 %v3346
    %6516 = vmatpush1.msra.mxu0 %v3345
    %6517 = vmatprep.subr.mxu0 %v3350
    %6518 = vmatpush1.msra.mxu0 %v3349
    %6519 = vmatprep.subr.mxu0 %v3354
    %6520 = vmatpush1.msra.mxu0 %v3353
    %6521 = vmatprep.subr.mxu0 %v3358
    %6522 = vmatpush1.msra.mxu0 %v3357
    %6523 = vmatprep.subr.mxu0 %v3362
    %6524 = vmatpush1.msra.mxu0 %v3361
    %6525 = vmatprep.subr.mxu0 %v3366
    %6526 = vmatpush1.msra.mxu0 %v3365
    %6527 = vmatprep.subr.mxu0 %v3370
    %6528 = vmatpush1.msra.mxu0 %v3369
    %6529 = vmatprep.subr.mxu0 %v3374
    %6530 = vmatpush1.msra.mxu0 %v3373
    %6531 = vmatprep.subr.mxu0 %v3378
    %6532 = vmatpush1.msra.mxu0 %v3377
    %6533 = vmatprep.subr.mxu0 %v3382
    %6534 = vmatpush1.msra.mxu0 %v3381
    %6535 = vmatprep.subr.mxu0 %v3386
    %6536 = vmatpush1.msra.mxu0 %v3385
    %6537 = vmatprep.subr.mxu0 %v3390
    %6538 = vmatpush1.msra.mxu0 %v3389
    %6539 = vmatprep.subr.mxu0 %v3394
    %6540 = vmatpush1.msra.mxu0 %v3393
    %6541 = vmatprep.subr.mxu0 %v3398
    %6542 = vmatpush1.msra.mxu0 %v3397
    %6543 = vmatprep.subr.mxu0 %v3402
    %6544 = vmatpush1.msra.mxu0 %v3401
    %6545 = vmatprep.subr.mxu0 %v3406
    %6546 = vmatpush1.msra.mxu0 %v3405
    %6547 = vmatprep.subr.mxu0 %v3410
    %6548 = vmatpush1.msra.mxu0 %v3409
    %6549 = vmatprep.subr.mxu0 %v3414
    %6550 = vmatpush1.msra.mxu0 %v3413
    %6551 = vmatprep.subr.mxu0 %v3418
    %6552 = vmatpush1.msra.mxu0 %v3417
    %6553 = vmatprep.subr.mxu0 %v3422
    %6554 = vmatpush1.msra.mxu0 %v3421
    %6555 = vmatprep.subr.mxu0 %v3426
    %6556 = vmatpush1.msra.mxu0 %v3425
    %6557 = vmatprep.subr.mxu0 %v3430
    %6558 = vmatpush1.msra.mxu0 %v3429
    %6559 = vmatprep.subr.mxu0 %v3434
    %6560 = vmatpush1.msra.mxu0 %v3433
    %6561 = vmatprep.subr.mxu0 %v3438
    %6562 = vmatpush1.msra.mxu0 %v3437
    %6563 = vmatprep.subr.mxu0 %v3442
    %6564 = vmatpush1.msra.mxu0 %v3441
    %6565 = vmatprep.mubr.f32.mxu0 %v6358
    %6566 = vmatmul.mubr.f32.gmra.mrb[0].mxu0 %v6357
    %v6567 = vpop.f32.mrb[0].mxu0
    %v6568 = vadd.f32 %v3542, %v6567
    %v6569 = vpop.f32.mrb[0].mxu0
    %v6570 = vadd.f32 %v3546, %v6569
    %6571 = vdwg.mxu0
    %6572 = vmatprep.subr.mxu0 %v3446
    %6573 = vmatpush1.msra.mxu0 %v3445
    %6574 = vmatprep.subr.mxu0 %v3450
    %6575 = vmatpush1.msra.mxu0 %v3449
    %6576 = vmatprep.subr.mxu0 %v3454
    %6577 = vmatpush1.msra.mxu0 %v3453
    %6578 = vmatprep.subr.mxu0 %v3458
    %6579 = vmatpush1.msra.mxu0 %v3457
    %6580 = vmatprep.subr.mxu0 %v3462
    %6581 = vmatpush1.msra.mxu0 %v3461
    %6582 = vmatprep.subr.mxu0 %v3466
    %6583 = vmatpush1.msra.mxu0 %v3465
    %6584 = vmatprep.subr.mxu0 %v3470
    %6585 = vmatpush1.msra.mxu0 %v3469
    %6586 = vmatprep.subr.mxu0 %v3474
    %6587 = vmatpush1.msra.mxu0 %v3473
    %6588 = vmatprep.subr.mxu0 %v3478
    %6589 = vmatpush1.msra.mxu0 %v3477
    %6590 = vmatprep.subr.mxu0 %v3482
    %6591 = vmatpush1.msra.mxu0 %v3481
    %6592 = vmatprep.subr.mxu0 %v3486
    %6593 = vmatpush1.msra.mxu0 %v3485
    %6594 = vmatprep.subr.mxu0 %v3490
    %6595 = vmatpush1.msra.mxu0 %v3489
    %6596 = vmatprep.subr.mxu0 %v3494
    %6597 = vmatpush1.msra.mxu0 %v3493
    %6598 = vmatprep.subr.mxu0 %v3498
    %6599 = vmatpush1.msra.mxu0 %v3497
    %6600 = vmatprep.subr.mxu0 %v3502
    %6601 = vmatpush1.msra.mxu0 %v3501
    %6602 = vmatprep.subr.mxu0 %v3506
    %6603 = vmatpush1.msra.mxu0 %v3505
    %6604 = vmatprep.subr.mxu0 0.0
    %6605 = vmatpush1.msra.mxu0 0.0
    %6606 = vmatprep.subr.mxu0 0.0
    %6607 = vmatpush1.msra.mxu0 0.0
    %6608 = vmatprep.subr.mxu0 0.0
    %6609 = vmatpush1.msra.mxu0 0.0
    %6610 = vmatprep.subr.mxu0 0.0
    %6611 = vmatpush1.msra.mxu0 0.0
    %6612 = vmatprep.subr.mxu0 0.0
    %6613 = vmatpush1.msra.mxu0 0.0
    %6614 = vmatprep.subr.mxu0 0.0
    %6615 = vmatpush1.msra.mxu0 0.0
    %6616 = vmatprep.subr.mxu0 0.0
    %6617 = vmatpush1.msra.mxu0 0.0
    %6618 = vmatprep.subr.mxu0 0.0
    %6619 = vmatpush1.msra.mxu0 0.0
    %6620 = vmatprep.subr.mxu0 0.0
    %6621 = vmatpush1.msra.mxu0 0.0
    %6622 = vmatprep.subr.mxu0 0.0
    %6623 = vmatpush1.msra.mxu0 0.0
    %6624 = vmatprep.subr.mxu0 0.0
    %6625 = vmatpush1.msra.mxu0 0.0
    %6626 = vmatprep.subr.mxu0 0.0
    %6627 = vmatpush1.msra.mxu0 0.0
    %6628 = vmatprep.subr.mxu0 0.0
    %6629 = vmatpush1.msra.mxu0 0.0
    %6630 = vmatprep.subr.mxu0 0.0
    %6631 = vmatpush1.msra.mxu0 0.0
    %6632 = vmatprep.subr.mxu0 0.0
    %6633 = vmatpush1.msra.mxu0 0.0
    %6634 = vmatprep.subr.mxu0 0.0
    %6635 = vmatpush1.msra.mxu0 0.0
    %6636 = vmatprep.mubr.f32.mxu0 0.0
    %6637 = vmatmul.mubr.f32.gmra.mrb[0].mxu0 %v6355
    %v6638 = vpop.f32.mrb[0].mxu0
    %v6639 = vadd.f32 %v6568, %v6638
    %v6640 = vpop.f32.mrb[0].mxu0
    %v6641 = vadd.f32 %v6570, %v6640
    %6642 = vdwg.mxu0
    %v6643 = vxor.u32 %v6497, 2147483648
    %v6644 = vmul.f32 %v6643, 1.442695
    %v6645 = vpow.pop %v6644
    %v6646 = vadd.f32 %v6645, 1.0
    %v6647 = vrcp.pop %v6646
    %v6648 = vmul.f32 1.0, %v6647
    %v6649 = vxor.u32 %v6499, 2147483648
    %v6650 = vmul.f32 %v6649, 1.442695
    %v6651 = vpow.pop %v6650
    %v6652 = vadd.f32 %v6651, 1.0
    %v6653 = vrcp.pop %v6652
    %v6654 = vmul.f32 1.0, %v6653
    %v6655 = vtanh.pop %v6639
    %v6656 = vxor.u32 %v6641, 2147483648
    %v6657 = vmul.f32 %v6656, 1.442695
    %v6658 = vpow.pop %v6657
    %v6659 = vadd.f32 %v6658, 1.0
    %v6660 = vrcp.pop %v6659
    %v6661 = vmul.f32 1.0, %v6660
    %v6662 = vmul.f32 %v6654, %v6353
    %v6663 = vmul.f32 %v6648, %v6655
    %v6664 = vadd.f32 %v6662, %v6663
    %v6665 = vtanh.pop %v6664
    %v6666 = vmul.f32 %v6661, %v6665
    %6667 = vst [vmem:[%s5732 + $0x8] sm:$0xff] %v6666
    %v6668 = vld [vmem:[%s1437] sm:$0xff]
    %v6669 = vld [vmem:[%s1437 + $0x8] sm:$0xff]
    %6670 = vmatprep.subr.mxu0 %v3316
    %6671 = vmatpush1.msra.mxu0 %v3315
    %6672 = vmatprep.subr.mxu0 %v3320
    %6673 = vmatpush1.msra.mxu0 %v3319
    %6674 = vmatprep.subr.mxu0 %v3324
    %6675 = vmatpush1.msra.mxu0 %v3323
    %6676 = vmatprep.subr.mxu0 %v3328
    %6677 = vmatpush1.msra.mxu0 %v3327
    %6678 = vmatprep.subr.mxu0 %v3332
    %6679 = vmatpush1.msra.mxu0 %v3331
    %6680 = vmatprep.subr.mxu0 %v3336
    %6681 = vmatpush1.msra.mxu0 %v3335
    %6682 = vmatprep.subr.mxu0 %v3340
    %6683 = vmatpush1.msra.mxu0 %v3339
    %6684 = vmatprep.subr.mxu0 %v3344
    %6685 = vmatpush1.msra.mxu0 %v3343
    %6686 = vmatprep.subr.mxu0 %v3348
    %6687 = vmatpush1.msra.mxu0 %v3347
    %6688 = vmatprep.subr.mxu0 %v3352
    %6689 = vmatpush1.msra.mxu0 %v3351
    %6690 = vmatprep.subr.mxu0 %v3356
    %6691 = vmatpush1.msra.mxu0 %v3355
    %6692 = vmatprep.subr.mxu0 %v3360
    %6693 = vmatpush1.msra.mxu0 %v3359
    %6694 = vmatprep.subr.mxu0 %v3364
    %6695 = vmatpush1.msra.mxu0 %v3363
    %6696 = vmatprep.subr.mxu0 %v3368
    %6697 = vmatpush1.msra.mxu0 %v3367
    %6698 = vmatprep.subr.mxu0 %v3372
    %6699 = vmatpush1.msra.mxu0 %v3371
    %6700 = vmatprep.subr.mxu0 %v3376
    %6701 = vmatpush1.msra.mxu0 %v3375
    %6702 = vmatprep.subr.mxu0 %v3380
    %6703 = vmatpush1.msra.mxu0 %v3379
    %6704 = vmatprep.subr.mxu0 %v3384
    %6705 = vmatpush1.msra.mxu0 %v3383
    %6706 = vmatprep.subr.mxu0 %v3388
    %6707 = vmatpush1.msra.mxu0 %v3387
    %6708 = vmatprep.subr.mxu0 %v3392
    %6709 = vmatpush1.msra.mxu0 %v3391
    %6710 = vmatprep.subr.mxu0 %v3396
    %6711 = vmatpush1.msra.mxu0 %v3395
    %6712 = vmatprep.subr.mxu0 %v3400
    %6713 = vmatpush1.msra.mxu0 %v3399
    %6714 = vmatprep.subr.mxu0 %v3404
    %6715 = vmatpush1.msra.mxu0 %v3403
    %6716 = vmatprep.subr.mxu0 %v3408
    %6717 = vmatpush1.msra.mxu0 %v3407
    %6718 = vmatprep.subr.mxu0 %v3412
    %6719 = vmatpush1.msra.mxu0 %v3411
    %6720 = vmatprep.subr.mxu0 %v3416
    %6721 = vmatpush1.msra.mxu0 %v3415
    %6722 = vmatprep.subr.mxu0 %v3420
    %6723 = vmatpush1.msra.mxu0 %v3419
    %6724 = vmatprep.subr.mxu0 %v3424
    %6725 = vmatpush1.msra.mxu0 %v3423
    %6726 = vmatprep.subr.mxu0 %v3428
    %6727 = vmatpush1.msra.mxu0 %v3427
    %6728 = vmatprep.subr.mxu0 %v3432
    %6729 = vmatpush1.msra.mxu0 %v3431
    %6730 = vmatprep.subr.mxu0 %v3436
    %6731 = vmatpush1.msra.mxu0 %v3435
    %6732 = vmatprep.subr.mxu0 %v3440
    %6733 = vmatpush1.msra.mxu0 %v3439
    %6734 = vmatprep.mubr.f32.mxu0 %v6669
    %6735 = vmatmul.mubr.f32.gmra.mrb[0].mxu0 %v6668
    %v6736 = vpop.f32.mrb[0].mxu0
    %v6737 = vadd.f32 %v3534, %v6736
    %v6738 = vpop.f32.mrb[0].mxu0
    %v6739 = vadd.f32 %v3538, %v6738
    %6740 = vdwg.mxu0
    %6741 = vmatprep.subr.mxu0 %v3444
    %6742 = vmatpush1.msra.mxu0 %v3443
    %6743 = vmatprep.subr.mxu0 %v3448
    %6744 = vmatpush1.msra.mxu0 %v3447
    %6745 = vmatprep.subr.mxu0 %v3452
    %6746 = vmatpush1.msra.mxu0 %v3451
    %6747 = vmatprep.subr.mxu0 %v3456
    %6748 = vmatpush1.msra.mxu0 %v3455
    %6749 = vmatprep.subr.mxu0 %v3460
    %6750 = vmatpush1.msra.mxu0 %v3459
    %6751 = vmatprep.subr.mxu0 %v3464
    %6752 = vmatpush1.msra.mxu0 %v3463
    %6753 = vmatprep.subr.mxu0 %v3468
    %6754 = vmatpush1.msra.mxu0 %v3467
    %6755 = vmatprep.subr.mxu0 %v3472
    %6756 = vmatpush1.msra.mxu0 %v3471
    %6757 = vmatprep.subr.mxu0 %v3476
    %6758 = vmatpush1.msra.mxu0 %v3475
    %6759 = vmatprep.subr.mxu0 %v3480
    %6760 = vmatpush1.msra.mxu0 %v3479
    %6761 = vmatprep.subr.mxu0 %v3484
    %6762 = vmatpush1.msra.mxu0 %v3483
    %6763 = vmatprep.subr.mxu0 %v3488
    %6764 = vmatpush1.msra.mxu0 %v3487
    %6765 = vmatprep.subr.mxu0 %v3492
    %6766 = vmatpush1.msra.mxu0 %v3491
    %6767 = vmatprep.subr.mxu0 %v3496
    %6768 = vmatpush1.msra.mxu0 %v3495
    %6769 = vmatprep.subr.mxu0 %v3500
    %6770 = vmatpush1.msra.mxu0 %v3499
    %6771 = vmatprep.subr.mxu0 %v3504
    %6772 = vmatpush1.msra.mxu0 %v3503
    %6773 = vmatprep.subr.mxu0 0.0
    %6774 = vmatpush1.msra.mxu0 0.0
    %6775 = vmatprep.subr.mxu0 0.0
    %6776 = vmatpush1.msra.mxu0 0.0
    %6777 = vmatprep.subr.mxu0 0.0
    %6778 = vmatpush1.msra.mxu0 0.0
    %6779 = vmatprep.subr.mxu0 0.0
    %6780 = vmatpush1.msra.mxu0 0.0
    %6781 = vmatprep.subr.mxu0 0.0
    %6782 = vmatpush1.msra.mxu0 0.0
    %6783 = vmatprep.subr.mxu0 0.0
    %6784 = vmatpush1.msra.mxu0 0.0
    %6785 = vmatprep.subr.mxu0 0.0
    %6786 = vmatpush1.msra.mxu0 0.0
    %6787 = vmatprep.subr.mxu0 0.0
    %6788 = vmatpush1.msra.mxu0 0.0
    %6789 = vmatprep.subr.mxu0 0.0
    %6790 = vmatpush1.msra.mxu0 0.0
    %6791 = vmatprep.subr.mxu0 0.0
    %6792 = vmatpush1.msra.mxu0 0.0
    %6793 = vmatprep.subr.mxu0 0.0
    %6794 = vmatpush1.msra.mxu0 0.0
    %6795 = vmatprep.subr.mxu0 0.0
    %6796 = vmatpush1.msra.mxu0 0.0
    %6797 = vmatprep.subr.mxu0 0.0
    %6798 = vmatpush1.msra.mxu0 0.0
    %6799 = vmatprep.subr.mxu0 0.0
    %6800 = vmatpush1.msra.mxu0 0.0
    %6801 = vmatprep.subr.mxu0 0.0
    %6802 = vmatpush1.msra.mxu0 0.0
    %6803 = vmatprep.subr.mxu0 0.0
    %6804 = vmatpush1.msra.mxu0 0.0
    %6805 = vmatprep.mubr.f32.mxu0 0.0
    %6806 = vmatmul.mubr.f32.gmra.mrb[0].mxu0 %v6666
    %v6807 = vpop.f32.mrb[0].mxu0
    %v6808 = vadd.f32 %v6737, %v6807
    %v6809 = vpop.f32.mrb[0].mxu0
    %v6810 = vadd.f32 %v6739, %v6809
    %6811 = vdwg.mxu0
    %6812 = vmatprep.subr.mxu0 %v3318
    %6813 = vmatpush1.msra.mxu0 %v3317
    %6814 = vmatprep.subr.mxu0 %v3322
    %6815 = vmatpush1.msra.mxu0 %v3321
    %6816 = vmatprep.subr.mxu0 %v3326
    %6817 = vmatpush1.msra.mxu0 %v3325
    %6818 = vmatprep.subr.mxu0 %v3330
    %6819 = vmatpush1.msra.mxu0 %v3329
    %6820 = vmatprep.subr.mxu0 %v3334
    %6821 = vmatpush1.msra.mxu0 %v3333
    %6822 = vmatprep.subr.mxu0 %v3338
    %6823 = vmatpush1.msra.mxu0 %v3337
    %6824 = vmatprep.subr.mxu0 %v3342
    %6825 = vmatpush1.msra.mxu0 %v3341
    %6826 = vmatprep.subr.mxu0 %v3346
    %6827 = vmatpush1.msra.mxu0 %v3345
    %6828 = vmatprep.subr.mxu0 %v3350
    %6829 = vmatpush1.msra.mxu0 %v3349
    %6830 = vmatprep.subr.mxu0 %v3354
    %6831 = vmatpush1.msra.mxu0 %v3353
    %6832 = vmatprep.subr.mxu0 %v3358
    %6833 = vmatpush1.msra.mxu0 %v3357
    %6834 = vmatprep.subr.mxu0 %v3362
    %6835 = vmatpush1.msra.mxu0 %v3361
    %6836 = vmatprep.subr.mxu0 %v3366
    %6837 = vmatpush1.msra.mxu0 %v3365
    %6838 = vmatprep.subr.mxu0 %v3370
    %6839 = vmatpush1.msra.mxu0 %v3369
    %6840 = vmatprep.subr.mxu0 %v3374
    %6841 = vmatpush1.msra.mxu0 %v3373
    %6842 = vmatprep.subr.mxu0 %v3378
    %6843 = vmatpush1.msra.mxu0 %v3377
    %6844 = vmatprep.subr.mxu0 %v3382
    %6845 = vmatpush1.msra.mxu0 %v3381
    %6846 = vmatprep.subr.mxu0 %v3386
    %6847 = vmatpush1.msra.mxu0 %v3385
    %6848 = vmatprep.subr.mxu0 %v3390
    %6849 = vmatpush1.msra.mxu0 %v3389
    %6850 = vmatprep.subr.mxu0 %v3394
    %6851 = vmatpush1.msra.mxu0 %v3393
    %6852 = vmatprep.subr.mxu0 %v3398
    %6853 = vmatpush1.msra.mxu0 %v3397
    %6854 = vmatprep.subr.mxu0 %v3402
    %6855 = vmatpush1.msra.mxu0 %v3401
    %6856 = vmatprep.subr.mxu0 %v3406
    %6857 = vmatpush1.msra.mxu0 %v3405
    %6858 = vmatprep.subr.mxu0 %v3410
    %6859 = vmatpush1.msra.mxu0 %v3409
    %6860 = vmatprep.subr.mxu0 %v3414
    %6861 = vmatpush1.msra.mxu0 %v3413
    %6862 = vmatprep.subr.mxu0 %v3418
    %6863 = vmatpush1.msra.mxu0 %v3417
    %6864 = vmatprep.subr.mxu0 %v3422
    %6865 = vmatpush1.msra.mxu0 %v3421
    %6866 = vmatprep.subr.mxu0 %v3426
    %6867 = vmatpush1.msra.mxu0 %v3425
    %6868 = vmatprep.subr.mxu0 %v3430
    %6869 = vmatpush1.msra.mxu0 %v3429
    %6870 = vmatprep.subr.mxu0 %v3434
    %6871 = vmatpush1.msra.mxu0 %v3433
    %6872 = vmatprep.subr.mxu0 %v3438
    %6873 = vmatpush1.msra.mxu0 %v3437
    %6874 = vmatprep.subr.mxu0 %v3442
    %6875 = vmatpush1.msra.mxu0 %v3441
    %6876 = vmatprep.mubr.f32.mxu0 %v6669
    %6877 = vmatmul.mubr.f32.gmra.mrb[0].mxu0 %v6668
    %v6878 = vpop.f32.mrb[0].mxu0
    %v6879 = vadd.f32 %v3542, %v6878
    %v6880 = vpop.f32.mrb[0].mxu0
    %v6881 = vadd.f32 %v3546, %v6880
    %6882 = vdwg.mxu0
    %6883 = vmatprep.subr.mxu0 %v3446
    %6884 = vmatpush1.msra.mxu0 %v3445
    %6885 = vmatprep.subr.mxu0 %v3450
    %6886 = vmatpush1.msra.mxu0 %v3449
    %6887 = vmatprep.subr.mxu0 %v3454
    %6888 = vmatpush1.msra.mxu0 %v3453
    %6889 = vmatprep.subr.mxu0 %v3458
    %6890 = vmatpush1.msra.mxu0 %v3457
    %6891 = vmatprep.subr.mxu0 %v3462
    %6892 = vmatpush1.msra.mxu0 %v3461
    %6893 = vmatprep.subr.mxu0 %v3466
    %6894 = vmatpush1.msra.mxu0 %v3465
    %6895 = vmatprep.subr.mxu0 %v3470
    %6896 = vmatpush1.msra.mxu0 %v3469
    %6897 = vmatprep.subr.mxu0 %v3474
    %6898 = vmatpush1.msra.mxu0 %v3473
    %6899 = vmatprep.subr.mxu0 %v3478
    %6900 = vmatpush1.msra.mxu0 %v3477
    %6901 = vmatprep.subr.mxu0 %v3482
    %6902 = vmatpush1.msra.mxu0 %v3481
    %6903 = vmatprep.subr.mxu0 %v3486
    %6904 = vmatpush1.msra.mxu0 %v3485
    %6905 = vmatprep.subr.mxu0 %v3490
    %6906 = vmatpush1.msra.mxu0 %v3489
    %6907 = vmatprep.subr.mxu0 %v3494
    %6908 = vmatpush1.msra.mxu0 %v3493
    %6909 = vmatprep.subr.mxu0 %v3498
    %6910 = vmatpush1.msra.mxu0 %v3497
    %6911 = vmatprep.subr.mxu0 %v3502
    %6912 = vmatpush1.msra.mxu0 %v3501
    %6913 = vmatprep.subr.mxu0 %v3506
    %6914 = vmatpush1.msra.mxu0 %v3505
    %6915 = vmatprep.subr.mxu0 0.0
    %6916 = vmatpush1.msra.mxu0 0.0
    %6917 = vmatprep.subr.mxu0 0.0
    %6918 = vmatpush1.msra.mxu0 0.0
    %6919 = vmatprep.subr.mxu0 0.0
    %6920 = vmatpush1.msra.mxu0 0.0
    %6921 = vmatprep.subr.mxu0 0.0
    %6922 = vmatpush1.msra.mxu0 0.0
    %6923 = vmatprep.subr.mxu0 0.0
    %6924 = vmatpush1.msra.mxu0 0.0
    %6925 = vmatprep.subr.mxu0 0.0
    %6926 = vmatpush1.msra.mxu0 0.0
    %6927 = vmatprep.subr.mxu0 0.0
    %6928 = vmatpush1.msra.mxu0 0.0
    %6929 = vmatprep.subr.mxu0 0.0
    %6930 = vmatpush1.msra.mxu0 0.0
    %6931 = vmatprep.subr.mxu0 0.0
    %6932 = vmatpush1.msra.mxu0 0.0
    %6933 = vmatprep.subr.mxu0 0.0
    %6934 = vmatpush1.msra.mxu0 0.0
    %6935 = vmatprep.subr.mxu0 0.0
    %6936 = vmatpush1.msra.mxu0 0.0
    %6937 = vmatprep.subr.mxu0 0.0
    %6938 = vmatpush1.msra.mxu0 0.0
    %6939 = vmatprep.subr.mxu0 0.0
    %6940 = vmatpush1.msra.mxu0 0.0
    %6941 = vmatprep.subr.mxu0 0.0
    %6942 = vmatpush1.msra.mxu0 0.0
    %6943 = vmatprep.subr.mxu0 0.0
    %6944 = vmatpush1.msra.mxu0 0.0
    %6945 = vmatprep.subr.mxu0 0.0
    %6946 = vmatpush1.msra.mxu0 0.0
    %6947 = vmatprep.mubr.f32.mxu0 0.0
    %6948 = vmatmul.mubr.f32.gmra.mrb[0].mxu0 %v6666
    %v6949 = vpop.f32.mrb[0].mxu0
    %v6950 = vadd.f32 %v6879, %v6949
    %v6951 = vpop.f32.mrb[0].mxu0
    %v6952 = vadd.f32 %v6881, %v6951
    %6953 = vdwg.mxu0
    %v6954 = vxor.u32 %v6808, 2147483648
    %v6955 = vmul.f32 %v6954, 1.442695
    %v6956 = vpow.pop %v6955
    %v6957 = vadd.f32 %v6956, 1.0
    %v6958 = vrcp.pop %v6957
    %v6959 = vmul.f32 1.0, %v6958
    %v6960 = vxor.u32 %v6810, 2147483648
    %v6961 = vmul.f32 %v6960, 1.442695
    %v6962 = vpow.pop %v6961
    %v6963 = vadd.f32 %v6962, 1.0
    %v6964 = vrcp.pop %v6963
    %v6965 = vmul.f32 1.0, %v6964
    %v6966 = vtanh.pop %v6950
    %v6967 = vxor.u32 %v6952, 2147483648
    %v6968 = vmul.f32 %v6967, 1.442695
    %v6969 = vpow.pop %v6968
    %v6970 = vadd.f32 %v6969, 1.0
    %v6971 = vrcp.pop %v6970
    %v6972 = vmul.f32 1.0, %v6971
    %v6973 = vmul.f32 %v6965, %v6664
    %v6974 = vmul.f32 %v6959, %v6966
    %v6975 = vadd.f32 %v6973, %v6974
    %v6976 = vtanh.pop %v6975
    %v6977 = vmul.f32 %v6972, %v6976
    %6978 = vst [vmem:[%s5420 + $0x8] sm:$0xff] %v6977
    %v6979 = vld [vmem:[%s1267] sm:$0xff]
    %v6980 = vld [vmem:[%s1267 + $0x8] sm:$0xff]
    %6981 = vmatprep.subr.mxu0 %v3316
    %6982 = vmatpush1.msra.mxu0 %v3315
    %6983 = vmatprep.subr.mxu0 %v3320
    %6984 = vmatpush1.msra.mxu0 %v3319
    %6985 = vmatprep.subr.mxu0 %v3324
    %6986 = vmatpush1.msra.mxu0 %v3323
    %6987 = vmatprep.subr.mxu0 %v3328
    %6988 = vmatpush1.msra.mxu0 %v3327
    %6989 = vmatprep.subr.mxu0 %v3332
    %6990 = vmatpush1.msra.mxu0 %v3331
    %6991 = vmatprep.subr.mxu0 %v3336
    %6992 = vmatpush1.msra.mxu0 %v3335
    %6993 = vmatprep.subr.mxu0 %v3340
    %6994 = vmatpush1.msra.mxu0 %v3339
    %6995 = vmatprep.subr.mxu0 %v3344
    %6996 = vmatpush1.msra.mxu0 %v3343
    %6997 = vmatprep.subr.mxu0 %v3348
    %6998 = vmatpush1.msra.mxu0 %v3347
    %6999 = vmatprep.subr.mxu0 %v3352
    %7000 = vmatpush1.msra.mxu0 %v3351
    %7001 = vmatprep.subr.mxu0 %v3356
    %7002 = vmatpush1.msra.mxu0 %v3355
    %7003 = vmatprep.subr.mxu0 %v3360
    %7004 = vmatpush1.msra.mxu0 %v3359
    %7005 = vmatprep.subr.mxu0 %v3364
    %7006 = vmatpush1.msra.mxu0 %v3363
    %7007 = vmatprep.subr.mxu0 %v3368
    %7008 = vmatpush1.msra.mxu0 %v3367
    %7009 = vmatprep.subr.mxu0 %v3372
    %7010 = vmatpush1.msra.mxu0 %v3371
    %7011 = vmatprep.subr.mxu0 %v3376
    %7012 = vmatpush1.msra.mxu0 %v3375
    %7013 = vmatprep.subr.mxu0 %v3380
    %7014 = vmatpush1.msra.mxu0 %v3379
    %7015 = vmatprep.subr.mxu0 %v3384
    %7016 = vmatpush1.msra.mxu0 %v3383
    %7017 = vmatprep.subr.mxu0 %v3388
    %7018 = vmatpush1.msra.mxu0 %v3387
    %7019 = vmatprep.subr.mxu0 %v3392
    %7020 = vmatpush1.msra.mxu0 %v3391
    %7021 = vmatprep.subr.mxu0 %v3396
    %7022 = vmatpush1.msra.mxu0 %v3395
    %7023 = vmatprep.subr.mxu0 %v3400
    %7024 = vmatpush1.msra.mxu0 %v3399
    %7025 = vmatprep.subr.mxu0 %v3404
    %7026 = vmatpush1.msra.mxu0 %v3403
    %7027 = vmatprep.subr.mxu0 %v3408
    %7028 = vmatpush1.msra.mxu0 %v3407
    %7029 = vmatprep.subr.mxu0 %v3412
    %7030 = vmatpush1.msra.mxu0 %v3411
    %7031 = vmatprep.subr.mxu0 %v3416
    %7032 = vmatpush1.msra.mxu0 %v3415
    %7033 = vmatprep.subr.mxu0 %v3420
    %7034 = vmatpush1.msra.mxu0 %v3419
    %7035 = vmatprep.subr.mxu0 %v3424
    %7036 = vmatpush1.msra.mxu0 %v3423
    %7037 = vmatprep.subr.mxu0 %v3428
    %7038 = vmatpush1.msra.mxu0 %v3427
    %7039 = vmatprep.subr.mxu0 %v3432
    %7040 = vmatpush1.msra.mxu0 %v3431
    %7041 = vmatprep.subr.mxu0 %v3436
    %7042 = vmatpush1.msra.mxu0 %v3435
    %7043 = vmatprep.subr.mxu0 %v3440
    %7044 = vmatpush1.msra.mxu0 %v3439
    %7045 = vmatprep.mubr.f32.mxu0 %v6980
    %7046 = vmatmul.mubr.f32.gmra.mrb[0].mxu0 %v6979
    %v7047 = vpop.f32.mrb[0].mxu0
    %v7048 = vadd.f32 %v3534, %v7047
    %v7049 = vpop.f32.mrb[0].mxu0
    %v7050 = vadd.f32 %v3538, %v7049
    %7051 = vdwg.mxu0
    %7052 = vmatprep.subr.mxu0 %v3444
    %7053 = vmatpush1.msra.mxu0 %v3443
    %7054 = vmatprep.subr.mxu0 %v3448
    %7055 = vmatpush1.msra.mxu0 %v3447
    %7056 = vmatprep.subr.mxu0 %v3452
    %7057 = vmatpush1.msra.mxu0 %v3451
    %7058 = vmatprep.subr.mxu0 %v3456
    %7059 = vmatpush1.msra.mxu0 %v3455
    %7060 = vmatprep.subr.mxu0 %v3460
    %7061 = vmatpush1.msra.mxu0 %v3459
    %7062 = vmatprep.subr.mxu0 %v3464
    %7063 = vmatpush1.msra.mxu0 %v3463
    %7064 = vmatprep.subr.mxu0 %v3468
    %7065 = vmatpush1.msra.mxu0 %v3467
    %7066 = vmatprep.subr.mxu0 %v3472
    %7067 = vmatpush1.msra.mxu0 %v3471
    %7068 = vmatprep.subr.mxu0 %v3476
    %7069 = vmatpush1.msra.mxu0 %v3475
    %7070 = vmatprep.subr.mxu0 %v3480
    %7071 = vmatpush1.msra.mxu0 %v3479
    %7072 = vmatprep.subr.mxu0 %v3484
    %7073 = vmatpush1.msra.mxu0 %v3483
    %7074 = vmatprep.subr.mxu0 %v3488
    %7075 = vmatpush1.msra.mxu0 %v3487
    %7076 = vmatprep.subr.mxu0 %v3492
    %7077 = vmatpush1.msra.mxu0 %v3491
    %7078 = vmatprep.subr.mxu0 %v3496
    %7079 = vmatpush1.msra.mxu0 %v3495
    %7080 = vmatprep.subr.mxu0 %v3500
    %7081 = vmatpush1.msra.mxu0 %v3499
    %7082 = vmatprep.subr.mxu0 %v3504
    %7083 = vmatpush1.msra.mxu0 %v3503
    %7084 = vmatprep.subr.mxu0 0.0
    %7085 = vmatpush1.msra.mxu0 0.0
    %7086 = vmatprep.subr.mxu0 0.0
    %7087 = vmatpush1.msra.mxu0 0.0
    %7088 = vmatprep.subr.mxu0 0.0
    %7089 = vmatpush1.msra.mxu0 0.0
    %7090 = vmatprep.subr.mxu0 0.0
    %7091 = vmatpush1.msra.mxu0 0.0
    %7092 = vmatprep.subr.mxu0 0.0
    %7093 = vmatpush1.msra.mxu0 0.0
    %7094 = vmatprep.subr.mxu0 0.0
    %7095 = vmatpush1.msra.mxu0 0.0
    %7096 = vmatprep.subr.mxu0 0.0
    %7097 = vmatpush1.msra.mxu0 0.0
    %7098 = vmatprep.subr.mxu0 0.0
    %7099 = vmatpush1.msra.mxu0 0.0
    %7100 = vmatprep.subr.mxu0 0.0
    %7101 = vmatpush1.msra.mxu0 0.0
    %7102 = vmatprep.subr.mxu0 0.0
    %7103 = vmatpush1.msra.mxu0 0.0
    %7104 = vmatprep.subr.mxu0 0.0
    %7105 = vmatpush1.msra.mxu0 0.0
    %7106 = vmatprep.subr.mxu0 0.0
    %7107 = vmatpush1.msra.mxu0 0.0
    %7108 = vmatprep.subr.mxu0 0.0
    %7109 = vmatpush1.msra.mxu0 0.0
    %7110 = vmatprep.subr.mxu0 0.0
    %7111 = vmatpush1.msra.mxu0 0.0
    %7112 = vmatprep.subr.mxu0 0.0
    %7113 = vmatpush1.msra.mxu0 0.0
    %7114 = vmatprep.subr.mxu0 0.0
    %7115 = vmatpush1.msra.mxu0 0.0
    %7116 = vmatprep.mubr.f32.mxu0 0.0
    %7117 = vmatmul.mubr.f32.gmra.mrb[0].mxu0 %v6977
    %v7118 = vpop.f32.mrb[0].mxu0
    %v7119 = vadd.f32 %v7048, %v7118
    %v7120 = vpop.f32.mrb[0].mxu0
    %v7121 = vadd.f32 %v7050, %v7120
    %7122 = vdwg.mxu0
    %7123 = vmatprep.subr.mxu0 %v3318
    %7124 = vmatpush1.msra.mxu0 %v3317
    %7125 = vmatprep.subr.mxu0 %v3322
    %7126 = vmatpush1.msra.mxu0 %v3321
    %7127 = vmatprep.subr.mxu0 %v3326
    %7128 = vmatpush1.msra.mxu0 %v3325
    %7129 = vmatprep.subr.mxu0 %v3330
    %7130 = vmatpush1.msra.mxu0 %v3329
    %7131 = vmatprep.subr.mxu0 %v3334
    %7132 = vmatpush1.msra.mxu0 %v3333
    %7133 = vmatprep.subr.mxu0 %v3338
    %7134 = vmatpush1.msra.mxu0 %v3337
    %7135 = vmatprep.subr.mxu0 %v3342
    %7136 = vmatpush1.msra.mxu0 %v3341
    %7137 = vmatprep.subr.mxu0 %v3346
    %7138 = vmatpush1.msra.mxu0 %v3345
    %7139 = vmatprep.subr.mxu0 %v3350
    %7140 = vmatpush1.msra.mxu0 %v3349
    %7141 = vmatprep.subr.mxu0 %v3354
    %7142 = vmatpush1.msra.mxu0 %v3353
    %7143 = vmatprep.subr.mxu0 %v3358
    %7144 = vmatpush1.msra.mxu0 %v3357
    %7145 = vmatprep.subr.mxu0 %v3362
    %7146 = vmatpush1.msra.mxu0 %v3361
    %7147 = vmatprep.subr.mxu0 %v3366
    %7148 = vmatpush1.msra.mxu0 %v3365
    %7149 = vmatprep.subr.mxu0 %v3370
    %7150 = vmatpush1.msra.mxu0 %v3369
    %7151 = vmatprep.subr.mxu0 %v3374
    %7152 = vmatpush1.msra.mxu0 %v3373
    %7153 = vmatprep.subr.mxu0 %v3378
    %7154 = vmatpush1.msra.mxu0 %v3377
    %7155 = vmatprep.subr.mxu0 %v3382
    %7156 = vmatpush1.msra.mxu0 %v3381
    %7157 = vmatprep.subr.mxu0 %v3386
    %7158 = vmatpush1.msra.mxu0 %v3385
    %7159 = vmatprep.subr.mxu0 %v3390
    %7160 = vmatpush1.msra.mxu0 %v3389
    %7161 = vmatprep.subr.mxu0 %v3394
    %7162 = vmatpush1.msra.mxu0 %v3393
    %7163 = vmatprep.subr.mxu0 %v3398
    %7164 = vmatpush1.msra.mxu0 %v3397
    %7165 = vmatprep.subr.mxu0 %v3402
    %7166 = vmatpush1.msra.mxu0 %v3401
    %7167 = vmatprep.subr.mxu0 %v3406
    %7168 = vmatpush1.msra.mxu0 %v3405
    %7169 = vmatprep.subr.mxu0 %v3410
    %7170 = vmatpush1.msra.mxu0 %v3409
    %7171 = vmatprep.subr.mxu0 %v3414
    %7172 = vmatpush1.msra.mxu0 %v3413
    %7173 = vmatprep.subr.mxu0 %v3418
    %7174 = vmatpush1.msra.mxu0 %v3417
    %7175 = vmatprep.subr.mxu0 %v3422
    %7176 = vmatpush1.msra.mxu0 %v3421
    %7177 = vmatprep.subr.mxu0 %v3426
    %7178 = vmatpush1.msra.mxu0 %v3425
    %7179 = vmatprep.subr.mxu0 %v3430
    %7180 = vmatpush1.msra.mxu0 %v3429
    %7181 = vmatprep.subr.mxu0 %v3434
    %7182 = vmatpush1.msra.mxu0 %v3433
    %7183 = vmatprep.subr.mxu0 %v3438
    %7184 = vmatpush1.msra.mxu0 %v3437
    %7185 = vmatprep.subr.mxu0 %v3442
    %7186 = vmatpush1.msra.mxu0 %v3441
    %7187 = vmatprep.mubr.f32.mxu0 %v6980
    %7188 = vmatmul.mubr.f32.gmra.mrb[0].mxu0 %v6979
    %v7189 = vpop.f32.mrb[0].mxu0
    %v7190 = vadd.f32 %v3542, %v7189
    %v7191 = vpop.f32.mrb[0].mxu0
    %v7192 = vadd.f32 %v3546, %v7191
    %7193 = vdwg.mxu0
    %7194 = vmatprep.subr.mxu0 %v3446
    %7195 = vmatpush1.msra.mxu0 %v3445
    %7196 = vmatprep.subr.mxu0 %v3450
    %7197 = vmatpush1.msra.mxu0 %v3449
    %7198 = vmatprep.subr.mxu0 %v3454
    %7199 = vmatpush1.msra.mxu0 %v3453
    %7200 = vmatprep.subr.mxu0 %v3458
    %7201 = vmatpush1.msra.mxu0 %v3457
    %7202 = vmatprep.subr.mxu0 %v3462
    %7203 = vmatpush1.msra.mxu0 %v3461
    %7204 = vmatprep.subr.mxu0 %v3466
    %7205 = vmatpush1.msra.mxu0 %v3465
    %7206 = vmatprep.subr.mxu0 %v3470
    %7207 = vmatpush1.msra.mxu0 %v3469
    %7208 = vmatprep.subr.mxu0 %v3474
    %7209 = vmatpush1.msra.mxu0 %v3473
    %7210 = vmatprep.subr.mxu0 %v3478
    %7211 = vmatpush1.msra.mxu0 %v3477
    %7212 = vmatprep.subr.mxu0 %v3482
    %7213 = vmatpush1.msra.mxu0 %v3481
    %7214 = vmatprep.subr.mxu0 %v3486
    %7215 = vmatpush1.msra.mxu0 %v3485
    %7216 = vmatprep.subr.mxu0 %v3490
    %7217 = vmatpush1.msra.mxu0 %v3489
    %7218 = vmatprep.subr.mxu0 %v3494
    %7219 = vmatpush1.msra.mxu0 %v3493
    %7220 = vmatprep.subr.mxu0 %v3498
    %7221 = vmatpush1.msra.mxu0 %v3497
    %7222 = vmatprep.subr.mxu0 %v3502
    %7223 = vmatpush1.msra.mxu0 %v3501
    %7224 = vmatprep.subr.mxu0 %v3506
    %7225 = vmatpush1.msra.mxu0 %v3505
    %7226 = vmatprep.subr.mxu0 0.0
    %7227 = vmatpush1.msra.mxu0 0.0
    %7228 = vmatprep.subr.mxu0 0.0
    %7229 = vmatpush1.msra.mxu0 0.0
    %7230 = vmatprep.subr.mxu0 0.0
    %7231 = vmatpush1.msra.mxu0 0.0
    %7232 = vmatprep.subr.mxu0 0.0
    %7233 = vmatpush1.msra.mxu0 0.0
    %7234 = vmatprep.subr.mxu0 0.0
    %7235 = vmatpush1.msra.mxu0 0.0
    %7236 = vmatprep.subr.mxu0 0.0
    %7237 = vmatpush1.msra.mxu0 0.0
    %7238 = vmatprep.subr.mxu0 0.0
    %7239 = vmatpush1.msra.mxu0 0.0
    %7240 = vmatprep.subr.mxu0 0.0
    %7241 = vmatpush1.msra.mxu0 0.0
    %7242 = vmatprep.subr.mxu0 0.0
    %7243 = vmatpush1.msra.mxu0 0.0
    %7244 = vmatprep.subr.mxu0 0.0
    %7245 = vmatpush1.msra.mxu0 0.0
    %7246 = vmatprep.subr.mxu0 0.0
    %7247 = vmatpush1.msra.mxu0 0.0
    %7248 = vmatprep.subr.mxu0 0.0
    %7249 = vmatpush1.msra.mxu0 0.0
    %7250 = vmatprep.subr.mxu0 0.0
    %7251 = vmatpush1.msra.mxu0 0.0
    %7252 = vmatprep.subr.mxu0 0.0
    %7253 = vmatpush1.msra.mxu0 0.0
    %7254 = vmatprep.subr.mxu0 0.0
    %7255 = vmatpush1.msra.mxu0 0.0
    %7256 = vmatprep.subr.mxu0 0.0
    %7257 = vmatpush1.msra.mxu0 0.0
    %7258 = vmatprep.mubr.f32.mxu0 0.0
    %7259 = vmatmul.mubr.f32.gmra.mrb[0].mxu0 %v6977
    %v7260 = vpop.f32.mrb[0].mxu0
    %v7261 = vadd.f32 %v7190, %v7260
    %v7262 = vpop.f32.mrb[0].mxu0
    %v7263 = vadd.f32 %v7192, %v7262
    %7264 = vdwg.mxu0
    %v7265 = vxor.u32 %v7119, 2147483648
    %v7266 = vmul.f32 %v7265, 1.442695
    %v7267 = vpow.pop %v7266
    %v7268 = vadd.f32 %v7267, 1.0
    %v7269 = vrcp.pop %v7268
    %v7270 = vmul.f32 1.0, %v7269
    %v7271 = vxor.u32 %v7121, 2147483648
    %v7272 = vmul.f32 %v7271, 1.442695
    %v7273 = vpow.pop %v7272
    %v7274 = vadd.f32 %v7273, 1.0
    %v7275 = vrcp.pop %v7274
    %v7276 = vmul.f32 1.0, %v7275
    %v7277 = vtanh.pop %v7261
    %v7278 = vxor.u32 %v7263, 2147483648
    %v7279 = vmul.f32 %v7278, 1.442695
    %v7280 = vpow.pop %v7279
    %v7281 = vadd.f32 %v7280, 1.0
    %v7282 = vrcp.pop %v7281
    %v7283 = vmul.f32 1.0, %v7282
    %v7284 = vmul.f32 %v7276, %v6975
    %v7285 = vmul.f32 %v7270, %v7277
    %v7286 = vadd.f32 %v7284, %v7285
    %v7287 = vtanh.pop %v7286
    %v7288 = vmul.f32 %v7283, %v7287
    %7289 = vst [vmem:[%s5108 + $0x8] sm:$0xff] %v7288
    %v7290 = vld [vmem:[%s1097] sm:$0xff]
    %v7291 = vld [vmem:[%s1097 + $0x8] sm:$0xff]
    %7292 = vmatprep.subr.mxu0 %v3316
    %7293 = vmatpush1.msra.mxu0 %v3315
    %7294 = vmatprep.subr.mxu0 %v3320
    %7295 = vmatpush1.msra.mxu0 %v3319
    %7296 = vmatprep.subr.mxu0 %v3324
    %7297 = vmatpush1.msra.mxu0 %v3323
    %7298 = vmatprep.subr.mxu0 %v3328
    %7299 = vmatpush1.msra.mxu0 %v3327
    %7300 = vmatprep.subr.mxu0 %v3332
    %7301 = vmatpush1.msra.mxu0 %v3331
    %7302 = vmatprep.subr.mxu0 %v3336
    %7303 = vmatpush1.msra.mxu0 %v3335
    %7304 = vmatprep.subr.mxu0 %v3340
    %7305 = vmatpush1.msra.mxu0 %v3339
    %7306 = vmatprep.subr.mxu0 %v3344
    %7307 = vmatpush1.msra.mxu0 %v3343
    %7308 = vmatprep.subr.mxu0 %v3348
    %7309 = vmatpush1.msra.mxu0 %v3347
    %7310 = vmatprep.subr.mxu0 %v3352
    %7311 = vmatpush1.msra.mxu0 %v3351
    %7312 = vmatprep.subr.mxu0 %v3356
    %7313 = vmatpush1.msra.mxu0 %v3355
    %7314 = vmatprep.subr.mxu0 %v3360
    %7315 = vmatpush1.msra.mxu0 %v3359
    %7316 = vmatprep.subr.mxu0 %v3364
    %7317 = vmatpush1.msra.mxu0 %v3363
    %7318 = vmatprep.subr.mxu0 %v3368
    %7319 = vmatpush1.msra.mxu0 %v3367
    %7320 = vmatprep.subr.mxu0 %v3372
    %7321 = vmatpush1.msra.mxu0 %v3371
    %7322 = vmatprep.subr.mxu0 %v3376
    %7323 = vmatpush1.msra.mxu0 %v3375
    %7324 = vmatprep.subr.mxu0 %v3380
    %7325 = vmatpush1.msra.mxu0 %v3379
    %7326 = vmatprep.subr.mxu0 %v3384
    %7327 = vmatpush1.msra.mxu0 %v3383
    %7328 = vmatprep.subr.mxu0 %v3388
    %7329 = vmatpush1.msra.mxu0 %v3387
    %7330 = vmatprep.subr.mxu0 %v3392
    %7331 = vmatpush1.msra.mxu0 %v3391
    %7332 = vmatprep.subr.mxu0 %v3396
    %7333 = vmatpush1.msra.mxu0 %v3395
    %7334 = vmatprep.subr.mxu0 %v3400
    %7335 = vmatpush1.msra.mxu0 %v3399
    %7336 = vmatprep.subr.mxu0 %v3404
    %7337 = vmatpush1.msra.mxu0 %v3403
    %7338 = vmatprep.subr.mxu0 %v3408
    %7339 = vmatpush1.msra.mxu0 %v3407
    %7340 = vmatprep.subr.mxu0 %v3412
    %7341 = vmatpush1.msra.mxu0 %v3411
    %7342 = vmatprep.subr.mxu0 %v3416
    %7343 = vmatpush1.msra.mxu0 %v3415
    %7344 = vmatprep.subr.mxu0 %v3420
    %7345 = vmatpush1.msra.mxu0 %v3419
    %7346 = vmatprep.subr.mxu0 %v3424
    %7347 = vmatpush1.msra.mxu0 %v3423
    %7348 = vmatprep.subr.mxu0 %v3428
    %7349 = vmatpush1.msra.mxu0 %v3427
    %7350 = vmatprep.subr.mxu0 %v3432
    %7351 = vmatpush1.msra.mxu0 %v3431
    %7352 = vmatprep.subr.mxu0 %v3436
    %7353 = vmatpush1.msra.mxu0 %v3435
    %7354 = vmatprep.subr.mxu0 %v3440
    %7355 = vmatpush1.msra.mxu0 %v3439
    %7356 = vmatprep.mubr.f32.mxu0 %v7291
    %7357 = vmatmul.mubr.f32.gmra.mrb[0].mxu0 %v7290
    %v7358 = vpop.f32.mrb[0].mxu0
    %v7359 = vadd.f32 %v3534, %v7358
    %v7360 = vpop.f32.mrb[0].mxu0
    %v7361 = vadd.f32 %v3538, %v7360
    %7362 = vdwg.mxu0
    %7363 = vmatprep.subr.mxu0 %v3444
    %7364 = vmatpush1.msra.mxu0 %v3443
    %7365 = vmatprep.subr.mxu0 %v3448
    %7366 = vmatpush1.msra.mxu0 %v3447
    %7367 = vmatprep.subr.mxu0 %v3452
    %7368 = vmatpush1.msra.mxu0 %v3451
    %7369 = vmatprep.subr.mxu0 %v3456
    %7370 = vmatpush1.msra.mxu0 %v3455
    %7371 = vmatprep.subr.mxu0 %v3460
    %7372 = vmatpush1.msra.mxu0 %v3459
    %7373 = vmatprep.subr.mxu0 %v3464
    %7374 = vmatpush1.msra.mxu0 %v3463
    %7375 = vmatprep.subr.mxu0 %v3468
    %7376 = vmatpush1.msra.mxu0 %v3467
    %7377 = vmatprep.subr.mxu0 %v3472
    %7378 = vmatpush1.msra.mxu0 %v3471
    %7379 = vmatprep.subr.mxu0 %v3476
    %7380 = vmatpush1.msra.mxu0 %v3475
    %7381 = vmatprep.subr.mxu0 %v3480
    %7382 = vmatpush1.msra.mxu0 %v3479
    %7383 = vmatprep.subr.mxu0 %v3484
    %7384 = vmatpush1.msra.mxu0 %v3483
    %7385 = vmatprep.subr.mxu0 %v3488
    %7386 = vmatpush1.msra.mxu0 %v3487
    %7387 = vmatprep.subr.mxu0 %v3492
    %7388 = vmatpush1.msra.mxu0 %v3491
    %7389 = vmatprep.subr.mxu0 %v3496
    %7390 = vmatpush1.msra.mxu0 %v3495
    %7391 = vmatprep.subr.mxu0 %v3500
    %7392 = vmatpush1.msra.mxu0 %v3499
    %7393 = vmatprep.subr.mxu0 %v3504
    %7394 = vmatpush1.msra.mxu0 %v3503
    %7395 = vmatprep.subr.mxu0 0.0
    %7396 = vmatpush1.msra.mxu0 0.0
    %7397 = vmatprep.subr.mxu0 0.0
    %7398 = vmatpush1.msra.mxu0 0.0
    %7399 = vmatprep.subr.mxu0 0.0
    %7400 = vmatpush1.msra.mxu0 0.0
    %7401 = vmatprep.subr.mxu0 0.0
    %7402 = vmatpush1.msra.mxu0 0.0
    %7403 = vmatprep.subr.mxu0 0.0
    %7404 = vmatpush1.msra.mxu0 0.0
    %7405 = vmatprep.subr.mxu0 0.0
    %7406 = vmatpush1.msra.mxu0 0.0
    %7407 = vmatprep.subr.mxu0 0.0
    %7408 = vmatpush1.msra.mxu0 0.0
    %7409 = vmatprep.subr.mxu0 0.0
    %7410 = vmatpush1.msra.mxu0 0.0
    %7411 = vmatprep.subr.mxu0 0.0
    %7412 = vmatpush1.msra.mxu0 0.0
    %7413 = vmatprep.subr.mxu0 0.0
    %7414 = vmatpush1.msra.mxu0 0.0
    %7415 = vmatprep.subr.mxu0 0.0
    %7416 = vmatpush1.msra.mxu0 0.0
    %7417 = vmatprep.subr.mxu0 0.0
    %7418 = vmatpush1.msra.mxu0 0.0
    %7419 = vmatprep.subr.mxu0 0.0
    %7420 = vmatpush1.msra.mxu0 0.0
    %7421 = vmatprep.subr.mxu0 0.0
    %7422 = vmatpush1.msra.mxu0 0.0
    %7423 = vmatprep.subr.mxu0 0.0
    %7424 = vmatpush1.msra.mxu0 0.0
    %7425 = vmatprep.subr.mxu0 0.0
    %7426 = vmatpush1.msra.mxu0 0.0
    %7427 = vmatprep.mubr.f32.mxu0 0.0
    %7428 = vmatmul.mubr.f32.gmra.mrb[0].mxu0 %v7288
    %v7429 = vpop.f32.mrb[0].mxu0
    %v7430 = vadd.f32 %v7359, %v7429
    %v7431 = vpop.f32.mrb[0].mxu0
    %v7432 = vadd.f32 %v7361, %v7431
    %7433 = vdwg.mxu0
    %7434 = vmatprep.subr.mxu0 %v3318
    %7435 = vmatpush1.msra.mxu0 %v3317
    %7436 = vmatprep.subr.mxu0 %v3322
    %7437 = vmatpush1.msra.mxu0 %v3321
    %7438 = vmatprep.subr.mxu0 %v3326
    %7439 = vmatpush1.msra.mxu0 %v3325
    %7440 = vmatprep.subr.mxu0 %v3330
    %7441 = vmatpush1.msra.mxu0 %v3329
    %7442 = vmatprep.subr.mxu0 %v3334
    %7443 = vmatpush1.msra.mxu0 %v3333
    %7444 = vmatprep.subr.mxu0 %v3338
    %7445 = vmatpush1.msra.mxu0 %v3337
    %7446 = vmatprep.subr.mxu0 %v3342
    %7447 = vmatpush1.msra.mxu0 %v3341
    %7448 = vmatprep.subr.mxu0 %v3346
    %7449 = vmatpush1.msra.mxu0 %v3345
    %7450 = vmatprep.subr.mxu0 %v3350
    %7451 = vmatpush1.msra.mxu0 %v3349
    %7452 = vmatprep.subr.mxu0 %v3354
    %7453 = vmatpush1.msra.mxu0 %v3353
    %7454 = vmatprep.subr.mxu0 %v3358
    %7455 = vmatpush1.msra.mxu0 %v3357
    %7456 = vmatprep.subr.mxu0 %v3362
    %7457 = vmatpush1.msra.mxu0 %v3361
    %7458 = vmatprep.subr.mxu0 %v3366
    %7459 = vmatpush1.msra.mxu0 %v3365
    %7460 = vmatprep.subr.mxu0 %v3370
    %7461 = vmatpush1.msra.mxu0 %v3369
    %7462 = vmatprep.subr.mxu0 %v3374
    %7463 = vmatpush1.msra.mxu0 %v3373
    %7464 = vmatprep.subr.mxu0 %v3378
    %7465 = vmatpush1.msra.mxu0 %v3377
    %7466 = vmatprep.subr.mxu0 %v3382
    %7467 = vmatpush1.msra.mxu0 %v3381
    %7468 = vmatprep.subr.mxu0 %v3386
    %7469 = vmatpush1.msra.mxu0 %v3385
    %7470 = vmatprep.subr.mxu0 %v3390
    %7471 = vmatpush1.msra.mxu0 %v3389
    %7472 = vmatprep.subr.mxu0 %v3394
    %7473 = vmatpush1.msra.mxu0 %v3393
    %7474 = vmatprep.subr.mxu0 %v3398
    %7475 = vmatpush1.msra.mxu0 %v3397
    %7476 = vmatprep.subr.mxu0 %v3402
    %7477 = vmatpush1.msra.mxu0 %v3401
    %7478 = vmatprep.subr.mxu0 %v3406
    %7479 = vmatpush1.msra.mxu0 %v3405
    %7480 = vmatprep.subr.mxu0 %v3410
    %7481 = vmatpush1.msra.mxu0 %v3409
    %7482 = vmatprep.subr.mxu0 %v3414
    %7483 = vmatpush1.msra.mxu0 %v3413
    %7484 = vmatprep.subr.mxu0 %v3418
    %7485 = vmatpush1.msra.mxu0 %v3417
    %7486 = vmatprep.subr.mxu0 %v3422
    %7487 = vmatpush1.msra.mxu0 %v3421
    %7488 = vmatprep.subr.mxu0 %v3426
    %7489 = vmatpush1.msra.mxu0 %v3425
    %7490 = vmatprep.subr.mxu0 %v3430
    %7491 = vmatpush1.msra.mxu0 %v3429
    %7492 = vmatprep.subr.mxu0 %v3434
    %7493 = vmatpush1.msra.mxu0 %v3433
    %7494 = vmatprep.subr.mxu0 %v3438
    %7495 = vmatpush1.msra.mxu0 %v3437
    %7496 = vmatprep.subr.mxu0 %v3442
    %7497 = vmatpush1.msra.mxu0 %v3441
    %7498 = vmatprep.mubr.f32.mxu0 %v7291
    %7499 = vmatmul.mubr.f32.gmra.mrb[0].mxu0 %v7290
    %v7500 = vpop.f32.mrb[0].mxu0
    %v7501 = vadd.f32 %v3542, %v7500
    %v7502 = vpop.f32.mrb[0].mxu0
    %v7503 = vadd.f32 %v3546, %v7502
    %7504 = vdwg.mxu0
    %7505 = vmatprep.subr.mxu0 %v3446
    %7506 = vmatpush1.msra.mxu0 %v3445
    %7507 = vmatprep.subr.mxu0 %v3450
    %7508 = vmatpush1.msra.mxu0 %v3449
    %7509 = vmatprep.subr.mxu0 %v3454
    %7510 = vmatpush1.msra.mxu0 %v3453
    %7511 = vmatprep.subr.mxu0 %v3458
    %7512 = vmatpush1.msra.mxu0 %v3457
    %7513 = vmatprep.subr.mxu0 %v3462
    %7514 = vmatpush1.msra.mxu0 %v3461
    %7515 = vmatprep.subr.mxu0 %v3466
    %7516 = vmatpush1.msra.mxu0 %v3465
    %7517 = vmatprep.subr.mxu0 %v3470
    %7518 = vmatpush1.msra.mxu0 %v3469
    %7519 = vmatprep.subr.mxu0 %v3474
    %7520 = vmatpush1.msra.mxu0 %v3473
    %7521 = vmatprep.subr.mxu0 %v3478
    %7522 = vmatpush1.msra.mxu0 %v3477
    %7523 = vmatprep.subr.mxu0 %v3482
    %7524 = vmatpush1.msra.mxu0 %v3481
    %7525 = vmatprep.subr.mxu0 %v3486
    %7526 = vmatpush1.msra.mxu0 %v3485
    %7527 = vmatprep.subr.mxu0 %v3490
    %7528 = vmatpush1.msra.mxu0 %v3489
    %7529 = vmatprep.subr.mxu0 %v3494
    %7530 = vmatpush1.msra.mxu0 %v3493
    %7531 = vmatprep.subr.mxu0 %v3498
    %7532 = vmatpush1.msra.mxu0 %v3497
    %7533 = vmatprep.subr.mxu0 %v3502
    %7534 = vmatpush1.msra.mxu0 %v3501
    %7535 = vmatprep.subr.mxu0 %v3506
    %7536 = vmatpush1.msra.mxu0 %v3505
    %7537 = vmatprep.subr.mxu0 0.0
    %7538 = vmatpush1.msra.mxu0 0.0
    %7539 = vmatprep.subr.mxu0 0.0
    %7540 = vmatpush1.msra.mxu0 0.0
    %7541 = vmatprep.subr.mxu0 0.0
    %7542 = vmatpush1.msra.mxu0 0.0
    %7543 = vmatprep.subr.mxu0 0.0
    %7544 = vmatpush1.msra.mxu0 0.0
    %7545 = vmatprep.subr.mxu0 0.0
    %7546 = vmatpush1.msra.mxu0 0.0
    %7547 = vmatprep.subr.mxu0 0.0
    %7548 = vmatpush1.msra.mxu0 0.0
    %7549 = vmatprep.subr.mxu0 0.0
    %7550 = vmatpush1.msra.mxu0 0.0
    %7551 = vmatprep.subr.mxu0 0.0
    %7552 = vmatpush1.msra.mxu0 0.0
    %7553 = vmatprep.subr.mxu0 0.0
    %7554 = vmatpush1.msra.mxu0 0.0
    %7555 = vmatprep.subr.mxu0 0.0
    %7556 = vmatpush1.msra.mxu0 0.0
    %7557 = vmatprep.subr.mxu0 0.0
    %7558 = vmatpush1.msra.mxu0 0.0
    %7559 = vmatprep.subr.mxu0 0.0
    %7560 = vmatpush1.msra.mxu0 0.0
    %7561 = vmatprep.subr.mxu0 0.0
    %7562 = vmatpush1.msra.mxu0 0.0
    %7563 = vmatprep.subr.mxu0 0.0
    %7564 = vmatpush1.msra.mxu0 0.0
    %7565 = vmatprep.subr.mxu0 0.0
    %7566 = vmatpush1.msra.mxu0 0.0
    %7567 = vmatprep.subr.mxu0 0.0
    %7568 = vmatpush1.msra.mxu0 0.0
    %7569 = vmatprep.mubr.f32.mxu0 0.0
    %7570 = vmatmul.mubr.f32.gmra.mrb[0].mxu0 %v7288
    %v7571 = vpop.f32.mrb[0].mxu0
    %v7572 = vadd.f32 %v7501, %v7571
    %v7573 = vpop.f32.mrb[0].mxu0
    %v7574 = vadd.f32 %v7503, %v7573
    %7575 = vdwg.mxu0
    %v7576 = vxor.u32 %v7430, 2147483648
    %v7577 = vmul.f32 %v7576, 1.442695
    %v7578 = vpow.pop %v7577
    %v7579 = vadd.f32 %v7578, 1.0
    %v7580 = vrcp.pop %v7579
    %v7581 = vmul.f32 1.0, %v7580
    %v7582 = vxor.u32 %v7432, 2147483648
    %v7583 = vmul.f32 %v7582, 1.442695
    %v7584 = vpow.pop %v7583
    %v7585 = vadd.f32 %v7584, 1.0
    %v7586 = vrcp.pop %v7585
    %v7587 = vmul.f32 1.0, %v7586
    %v7588 = vtanh.pop %v7572
    %v7589 = vxor.u32 %v7574, 2147483648
    %v7590 = vmul.f32 %v7589, 1.442695
    %v7591 = vpow.pop %v7590
    %v7592 = vadd.f32 %v7591, 1.0
    %v7593 = vrcp.pop %v7592
    %v7594 = vmul.f32 1.0, %v7593
    %v7595 = vmul.f32 %v7587, %v7286
    %v7596 = vmul.f32 %v7581, %v7588
    %v7597 = vadd.f32 %v7595, %v7596
    %v7598 = vtanh.pop %v7597
    %v7599 = vmul.f32 %v7594, %v7598
    %7600 = vst [vmem:[%s4796 + $0x8] sm:$0xff] %v7599
    %v7601 = vld [vmem:[%s927] sm:$0xff]
    %v7602 = vld [vmem:[%s927 + $0x8] sm:$0xff]
    %7603 = vmatprep.subr.mxu0 %v3316
    %7604 = vmatpush1.msra.mxu0 %v3315
    %7605 = vmatprep.subr.mxu0 %v3320
    %7606 = vmatpush1.msra.mxu0 %v3319
    %7607 = vmatprep.subr.mxu0 %v3324
    %7608 = vmatpush1.msra.mxu0 %v3323
    %7609 = vmatprep.subr.mxu0 %v3328
    %7610 = vmatpush1.msra.mxu0 %v3327
    %7611 = vmatprep.subr.mxu0 %v3332
    %7612 = vmatpush1.msra.mxu0 %v3331
    %7613 = vmatprep.subr.mxu0 %v3336
    %7614 = vmatpush1.msra.mxu0 %v3335
    %7615 = vmatprep.subr.mxu0 %v3340
    %7616 = vmatpush1.msra.mxu0 %v3339
    %7617 = vmatprep.subr.mxu0 %v3344
    %7618 = vmatpush1.msra.mxu0 %v3343
    %7619 = vmatprep.subr.mxu0 %v3348
    %7620 = vmatpush1.msra.mxu0 %v3347
    %7621 = vmatprep.subr.mxu0 %v3352
    %7622 = vmatpush1.msra.mxu0 %v3351
    %7623 = vmatprep.subr.mxu0 %v3356
    %7624 = vmatpush1.msra.mxu0 %v3355
    %7625 = vmatprep.subr.mxu0 %v3360
    %7626 = vmatpush1.msra.mxu0 %v3359
    %7627 = vmatprep.subr.mxu0 %v3364
    %7628 = vmatpush1.msra.mxu0 %v3363
    %7629 = vmatprep.subr.mxu0 %v3368
    %7630 = vmatpush1.msra.mxu0 %v3367
    %7631 = vmatprep.subr.mxu0 %v3372
    %7632 = vmatpush1.msra.mxu0 %v3371
    %7633 = vmatprep.subr.mxu0 %v3376
    %7634 = vmatpush1.msra.mxu0 %v3375
    %7635 = vmatprep.subr.mxu0 %v3380
    %7636 = vmatpush1.msra.mxu0 %v3379
    %7637 = vmatprep.subr.mxu0 %v3384
    %7638 = vmatpush1.msra.mxu0 %v3383
    %7639 = vmatprep.subr.mxu0 %v3388
    %7640 = vmatpush1.msra.mxu0 %v3387
    %7641 = vmatprep.subr.mxu0 %v3392
    %7642 = vmatpush1.msra.mxu0 %v3391
    %7643 = vmatprep.subr.mxu0 %v3396
    %7644 = vmatpush1.msra.mxu0 %v3395
    %7645 = vmatprep.subr.mxu0 %v3400
    %7646 = vmatpush1.msra.mxu0 %v3399
    %7647 = vmatprep.subr.mxu0 %v3404
    %7648 = vmatpush1.msra.mxu0 %v3403
    %7649 = vmatprep.subr.mxu0 %v3408
    %7650 = vmatpush1.msra.mxu0 %v3407
    %7651 = vmatprep.subr.mxu0 %v3412
    %7652 = vmatpush1.msra.mxu0 %v3411
    %7653 = vmatprep.subr.mxu0 %v3416
    %7654 = vmatpush1.msra.mxu0 %v3415
    %7655 = vmatprep.subr.mxu0 %v3420
    %7656 = vmatpush1.msra.mxu0 %v3419
    %7657 = vmatprep.subr.mxu0 %v3424
    %7658 = vmatpush1.msra.mxu0 %v3423
    %7659 = vmatprep.subr.mxu0 %v3428
    %7660 = vmatpush1.msra.mxu0 %v3427
    %7661 = vmatprep.subr.mxu0 %v3432
    %7662 = vmatpush1.msra.mxu0 %v3431
    %7663 = vmatprep.subr.mxu0 %v3436
    %7664 = vmatpush1.msra.mxu0 %v3435
    %7665 = vmatprep.subr.mxu0 %v3440
    %7666 = vmatpush1.msra.mxu0 %v3439
    %7667 = vmatprep.mubr.f32.mxu0 %v7602
    %7668 = vmatmul.mubr.f32.gmra.mrb[0].mxu0 %v7601
    %v7669 = vpop.f32.mrb[0].mxu0
    %v7670 = vadd.f32 %v3534, %v7669
    %v7671 = vpop.f32.mrb[0].mxu0
    %v7672 = vadd.f32 %v3538, %v7671
    %7673 = vdwg.mxu0
    %7674 = vmatprep.subr.mxu0 %v3444
    %7675 = vmatpush1.msra.mxu0 %v3443
    %7676 = vmatprep.subr.mxu0 %v3448
    %7677 = vmatpush1.msra.mxu0 %v3447
    %7678 = vmatprep.subr.mxu0 %v3452
    %7679 = vmatpush1.msra.mxu0 %v3451
    %7680 = vmatprep.subr.mxu0 %v3456
    %7681 = vmatpush1.msra.mxu0 %v3455
    %7682 = vmatprep.subr.mxu0 %v3460
    %7683 = vmatpush1.msra.mxu0 %v3459
    %7684 = vmatprep.subr.mxu0 %v3464
    %7685 = vmatpush1.msra.mxu0 %v3463
    %7686 = vmatprep.subr.mxu0 %v3468
    %7687 = vmatpush1.msra.mxu0 %v3467
    %7688 = vmatprep.subr.mxu0 %v3472
    %7689 = vmatpush1.msra.mxu0 %v3471
    %7690 = vmatprep.subr.mxu0 %v3476
    %7691 = vmatpush1.msra.mxu0 %v3475
    %7692 = vmatprep.subr.mxu0 %v3480
    %7693 = vmatpush1.msra.mxu0 %v3479
    %7694 = vmatprep.subr.mxu0 %v3484
    %7695 = vmatpush1.msra.mxu0 %v3483
    %7696 = vmatprep.subr.mxu0 %v3488
    %7697 = vmatpush1.msra.mxu0 %v3487
    %7698 = vmatprep.subr.mxu0 %v3492
    %7699 = vmatpush1.msra.mxu0 %v3491
    %7700 = vmatprep.subr.mxu0 %v3496
    %7701 = vmatpush1.msra.mxu0 %v3495
    %7702 = vmatprep.subr.mxu0 %v3500
    %7703 = vmatpush1.msra.mxu0 %v3499
    %7704 = vmatprep.subr.mxu0 %v3504
    %7705 = vmatpush1.msra.mxu0 %v3503
    %7706 = vmatprep.subr.mxu0 0.0
    %7707 = vmatpush1.msra.mxu0 0.0
    %7708 = vmatprep.subr.mxu0 0.0
    %7709 = vmatpush1.msra.mxu0 0.0
    %7710 = vmatprep.subr.mxu0 0.0
    %7711 = vmatpush1.msra.mxu0 0.0
    %7712 = vmatprep.subr.mxu0 0.0
    %7713 = vmatpush1.msra.mxu0 0.0
    %7714 = vmatprep.subr.mxu0 0.0
    %7715 = vmatpush1.msra.mxu0 0.0
    %7716 = vmatprep.subr.mxu0 0.0
    %7717 = vmatpush1.msra.mxu0 0.0
    %7718 = vmatprep.subr.mxu0 0.0
    %7719 = vmatpush1.msra.mxu0 0.0
    %7720 = vmatprep.subr.mxu0 0.0
    %7721 = vmatpush1.msra.mxu0 0.0
    %7722 = vmatprep.subr.mxu0 0.0
    %7723 = vmatpush1.msra.mxu0 0.0
    %7724 = vmatprep.subr.mxu0 0.0
    %7725 = vmatpush1.msra.mxu0 0.0
    %7726 = vmatprep.subr.mxu0 0.0
    %7727 = vmatpush1.msra.mxu0 0.0
    %7728 = vmatprep.subr.mxu0 0.0
    %7729 = vmatpush1.msra.mxu0 0.0
    %7730 = vmatprep.subr.mxu0 0.0
    %7731 = vmatpush1.msra.mxu0 0.0
    %7732 = vmatprep.subr.mxu0 0.0
    %7733 = vmatpush1.msra.mxu0 0.0
    %7734 = vmatprep.subr.mxu0 0.0
    %7735 = vmatpush1.msra.mxu0 0.0
    %7736 = vmatprep.subr.mxu0 0.0
    %7737 = vmatpush1.msra.mxu0 0.0
    %7738 = vmatprep.mubr.f32.mxu0 0.0
    %7739 = vmatmul.mubr.f32.gmra.mrb[0].mxu0 %v7599
    %v7740 = vpop.f32.mrb[0].mxu0
    %v7741 = vadd.f32 %v7670, %v7740
    %v7742 = vpop.f32.mrb[0].mxu0
    %v7743 = vadd.f32 %v7672, %v7742
    %7744 = vdwg.mxu0
    %7745 = vmatprep.subr.mxu0 %v3318
    %7746 = vmatpush1.msra.mxu0 %v3317
    %7747 = vmatprep.subr.mxu0 %v3322
    %7748 = vmatpush1.msra.mxu0 %v3321
    %7749 = vmatprep.subr.mxu0 %v3326
    %7750 = vmatpush1.msra.mxu0 %v3325
    %7751 = vmatprep.subr.mxu0 %v3330
    %7752 = vmatpush1.msra.mxu0 %v3329
    %7753 = vmatprep.subr.mxu0 %v3334
    %7754 = vmatpush1.msra.mxu0 %v3333
    %7755 = vmatprep.subr.mxu0 %v3338
    %7756 = vmatpush1.msra.mxu0 %v3337
    %7757 = vmatprep.subr.mxu0 %v3342
    %7758 = vmatpush1.msra.mxu0 %v3341
    %7759 = vmatprep.subr.mxu0 %v3346
    %7760 = vmatpush1.msra.mxu0 %v3345
    %7761 = vmatprep.subr.mxu0 %v3350
    %7762 = vmatpush1.msra.mxu0 %v3349
    %7763 = vmatprep.subr.mxu0 %v3354
    %7764 = vmatpush1.msra.mxu0 %v3353
    %7765 = vmatprep.subr.mxu0 %v3358
    %7766 = vmatpush1.msra.mxu0 %v3357
    %7767 = vmatprep.subr.mxu0 %v3362
    %7768 = vmatpush1.msra.mxu0 %v3361
    %7769 = vmatprep.subr.mxu0 %v3366
    %7770 = vmatpush1.msra.mxu0 %v3365
    %7771 = vmatprep.subr.mxu0 %v3370
    %7772 = vmatpush1.msra.mxu0 %v3369
    %7773 = vmatprep.subr.mxu0 %v3374
    %7774 = vmatpush1.msra.mxu0 %v3373
    %7775 = vmatprep.subr.mxu0 %v3378
    %7776 = vmatpush1.msra.mxu0 %v3377
    %7777 = vmatprep.subr.mxu0 %v3382
    %7778 = vmatpush1.msra.mxu0 %v3381
    %7779 = vmatprep.subr.mxu0 %v3386
    %7780 = vmatpush1.msra.mxu0 %v3385
    %7781 = vmatprep.subr.mxu0 %v3390
    %7782 = vmatpush1.msra.mxu0 %v3389
    %7783 = vmatprep.subr.mxu0 %v3394
    %7784 = vmatpush1.msra.mxu0 %v3393
    %7785 = vmatprep.subr.mxu0 %v3398
    %7786 = vmatpush1.msra.mxu0 %v3397
    %7787 = vmatprep.subr.mxu0 %v3402
    %7788 = vmatpush1.msra.mxu0 %v3401
    %7789 = vmatprep.subr.mxu0 %v3406
    %7790 = vmatpush1.msra.mxu0 %v3405
    %7791 = vmatprep.subr.mxu0 %v3410
    %7792 = vmatpush1.msra.mxu0 %v3409
    %7793 = vmatprep.subr.mxu0 %v3414
    %7794 = vmatpush1.msra.mxu0 %v3413
    %7795 = vmatprep.subr.mxu0 %v3418
    %7796 = vmatpush1.msra.mxu0 %v3417
    %7797 = vmatprep.subr.mxu0 %v3422
    %7798 = vmatpush1.msra.mxu0 %v3421
    %7799 = vmatprep.subr.mxu0 %v3426
    %7800 = vmatpush1.msra.mxu0 %v3425
    %7801 = vmatprep.subr.mxu0 %v3430
    %7802 = vmatpush1.msra.mxu0 %v3429
    %7803 = vmatprep.subr.mxu0 %v3434
    %7804 = vmatpush1.msra.mxu0 %v3433
    %7805 = vmatprep.subr.mxu0 %v3438
    %7806 = vmatpush1.msra.mxu0 %v3437
    %7807 = vmatprep.subr.mxu0 %v3442
    %7808 = vmatpush1.msra.mxu0 %v3441
    %7809 = vmatprep.mubr.f32.mxu0 %v7602
    %7810 = vmatmul.mubr.f32.gmra.mrb[0].mxu0 %v7601
    %v7811 = vpop.f32.mrb[0].mxu0
    %v7812 = vadd.f32 %v3542, %v7811
    %v7813 = vpop.f32.mrb[0].mxu0
    %v7814 = vadd.f32 %v3546, %v7813
    %7815 = vdwg.mxu0
    %7816 = vmatprep.subr.mxu0 %v3446
    %7817 = vmatpush1.msra.mxu0 %v3445
    %7818 = vmatprep.subr.mxu0 %v3450
    %7819 = vmatpush1.msra.mxu0 %v3449
    %7820 = vmatprep.subr.mxu0 %v3454
    %7821 = vmatpush1.msra.mxu0 %v3453
    %7822 = vmatprep.subr.mxu0 %v3458
    %7823 = vmatpush1.msra.mxu0 %v3457
    %7824 = vmatprep.subr.mxu0 %v3462
    %7825 = vmatpush1.msra.mxu0 %v3461
    %7826 = vmatprep.subr.mxu0 %v3466
    %7827 = vmatpush1.msra.mxu0 %v3465
    %7828 = vmatprep.subr.mxu0 %v3470
    %7829 = vmatpush1.msra.mxu0 %v3469
    %7830 = vmatprep.subr.mxu0 %v3474
    %7831 = vmatpush1.msra.mxu0 %v3473
    %7832 = vmatprep.subr.mxu0 %v3478
    %7833 = vmatpush1.msra.mxu0 %v3477
    %7834 = vmatprep.subr.mxu0 %v3482
    %7835 = vmatpush1.msra.mxu0 %v3481
    %7836 = vmatprep.subr.mxu0 %v3486
    %7837 = vmatpush1.msra.mxu0 %v3485
    %7838 = vmatprep.subr.mxu0 %v3490
    %7839 = vmatpush1.msra.mxu0 %v3489
    %7840 = vmatprep.subr.mxu0 %v3494
    %7841 = vmatpush1.msra.mxu0 %v3493
    %7842 = vmatprep.subr.mxu0 %v3498
    %7843 = vmatpush1.msra.mxu0 %v3497
    %7844 = vmatprep.subr.mxu0 %v3502
    %7845 = vmatpush1.msra.mxu0 %v3501
    %7846 = vmatprep.subr.mxu0 %v3506
    %7847 = vmatpush1.msra.mxu0 %v3505
    %7848 = vmatprep.subr.mxu0 0.0
    %7849 = vmatpush1.msra.mxu0 0.0
    %7850 = vmatprep.subr.mxu0 0.0
    %7851 = vmatpush1.msra.mxu0 0.0
    %7852 = vmatprep.subr.mxu0 0.0
    %7853 = vmatpush1.msra.mxu0 0.0
    %7854 = vmatprep.subr.mxu0 0.0
    %7855 = vmatpush1.msra.mxu0 0.0
    %7856 = vmatprep.subr.mxu0 0.0
    %7857 = vmatpush1.msra.mxu0 0.0
    %7858 = vmatprep.subr.mxu0 0.0
    %7859 = vmatpush1.msra.mxu0 0.0
    %7860 = vmatprep.subr.mxu0 0.0
    %7861 = vmatpush1.msra.mxu0 0.0
    %7862 = vmatprep.subr.mxu0 0.0
    %7863 = vmatpush1.msra.mxu0 0.0
    %7864 = vmatprep.subr.mxu0 0.0
    %7865 = vmatpush1.msra.mxu0 0.0
    %7866 = vmatprep.subr.mxu0 0.0
    %7867 = vmatpush1.msra.mxu0 0.0
    %7868 = vmatprep.subr.mxu0 0.0
    %7869 = vmatpush1.msra.mxu0 0.0
    %7870 = vmatprep.subr.mxu0 0.0
    %7871 = vmatpush1.msra.mxu0 0.0
    %7872 = vmatprep.subr.mxu0 0.0
    %7873 = vmatpush1.msra.mxu0 0.0
    %7874 = vmatprep.subr.mxu0 0.0
    %7875 = vmatpush1.msra.mxu0 0.0
    %7876 = vmatprep.subr.mxu0 0.0
    %7877 = vmatpush1.msra.mxu0 0.0
    %7878 = vmatprep.subr.mxu0 0.0
    %7879 = vmatpush1.msra.mxu0 0.0
    %7880 = vmatprep.mubr.f32.mxu0 0.0
    %7881 = vmatmul.mubr.f32.gmra.mrb[0].mxu0 %v7599
    %v7882 = vpop.f32.mrb[0].mxu0
    %v7883 = vadd.f32 %v7812, %v7882
    %v7884 = vpop.f32.mrb[0].mxu0
    %v7885 = vadd.f32 %v7814, %v7884
    %7886 = vdwg.mxu0
    %v7887 = vxor.u32 %v7741, 2147483648
    %v7888 = vmul.f32 %v7887, 1.442695
    %v7889 = vpow.pop %v7888
    %v7890 = vadd.f32 %v7889, 1.0
    %v7891 = vrcp.pop %v7890
    %v7892 = vmul.f32 1.0, %v7891
    %v7893 = vxor.u32 %v7743, 2147483648
    %v7894 = vmul.f32 %v7893, 1.442695
    %v7895 = vpow.pop %v7894
    %v7896 = vadd.f32 %v7895, 1.0
    %v7897 = vrcp.pop %v7896
    %v7898 = vmul.f32 1.0, %v7897
    %v7899 = vtanh.pop %v7883
    %v7900 = vxor.u32 %v7885, 2147483648
    %v7901 = vmul.f32 %v7900, 1.442695
    %v7902 = vpow.pop %v7901
    %v7903 = vadd.f32 %v7902, 1.0
    %v7904 = vrcp.pop %v7903
    %v7905 = vmul.f32 1.0, %v7904
    %v7906 = vmul.f32 %v7898, %v7597
    %v7907 = vmul.f32 %v7892, %v7899
    %v7908 = vadd.f32 %v7906, %v7907
    %v7909 = vtanh.pop %v7908
    %v7910 = vmul.f32 %v7905, %v7909
    %7911 = vst [vmem:[%s4484 + $0x8] sm:$0xff] %v7910
    %v7912 = vld [vmem:[%s757] sm:$0xff]
    %v7913 = vld [vmem:[%s757 + $0x8] sm:$0xff]
    %7914 = vmatprep.subr.mxu0 %v3316
    %7915 = vmatpush1.msra.mxu0 %v3315
    %7916 = vmatprep.subr.mxu0 %v3320
    %7917 = vmatpush1.msra.mxu0 %v3319
    %7918 = vmatprep.subr.mxu0 %v3324
    %7919 = vmatpush1.msra.mxu0 %v3323
    %7920 = vmatprep.subr.mxu0 %v3328
    %7921 = vmatpush1.msra.mxu0 %v3327
    %7922 = vmatprep.subr.mxu0 %v3332
    %7923 = vmatpush1.msra.mxu0 %v3331
    %7924 = vmatprep.subr.mxu0 %v3336
    %7925 = vmatpush1.msra.mxu0 %v3335
    %7926 = vmatprep.subr.mxu0 %v3340
    %7927 = vmatpush1.msra.mxu0 %v3339
    %7928 = vmatprep.subr.mxu0 %v3344
    %7929 = vmatpush1.msra.mxu0 %v3343
    %7930 = vmatprep.subr.mxu0 %v3348
    %7931 = vmatpush1.msra.mxu0 %v3347
    %7932 = vmatprep.subr.mxu0 %v3352
    %7933 = vmatpush1.msra.mxu0 %v3351
    %7934 = vmatprep.subr.mxu0 %v3356
    %7935 = vmatpush1.msra.mxu0 %v3355
    %7936 = vmatprep.subr.mxu0 %v3360
    %7937 = vmatpush1.msra.mxu0 %v3359
    %7938 = vmatprep.subr.mxu0 %v3364
    %7939 = vmatpush1.msra.mxu0 %v3363
    %7940 = vmatprep.subr.mxu0 %v3368
    %7941 = vmatpush1.msra.mxu0 %v3367
    %7942 = vmatprep.subr.mxu0 %v3372
    %7943 = vmatpush1.msra.mxu0 %v3371
    %7944 = vmatprep.subr.mxu0 %v3376
    %7945 = vmatpush1.msra.mxu0 %v3375
    %7946 = vmatprep.subr.mxu0 %v3380
    %7947 = vmatpush1.msra.mxu0 %v3379
    %7948 = vmatprep.subr.mxu0 %v3384
    %7949 = vmatpush1.msra.mxu0 %v3383
    %7950 = vmatprep.subr.mxu0 %v3388
    %7951 = vmatpush1.msra.mxu0 %v3387
    %7952 = vmatprep.subr.mxu0 %v3392
    %7953 = vmatpush1.msra.mxu0 %v3391
    %7954 = vmatprep.subr.mxu0 %v3396
    %7955 = vmatpush1.msra.mxu0 %v3395
    %7956 = vmatprep.subr.mxu0 %v3400
    %7957 = vmatpush1.msra.mxu0 %v3399
    %7958 = vmatprep.subr.mxu0 %v3404
    %7959 = vmatpush1.msra.mxu0 %v3403
    %7960 = vmatprep.subr.mxu0 %v3408
    %7961 = vmatpush1.msra.mxu0 %v3407
    %7962 = vmatprep.subr.mxu0 %v3412
    %7963 = vmatpush1.msra.mxu0 %v3411
    %7964 = vmatprep.subr.mxu0 %v3416
    %7965 = vmatpush1.msra.mxu0 %v3415
    %7966 = vmatprep.subr.mxu0 %v3420
    %7967 = vmatpush1.msra.mxu0 %v3419
    %7968 = vmatprep.subr.mxu0 %v3424
    %7969 = vmatpush1.msra.mxu0 %v3423
    %7970 = vmatprep.subr.mxu0 %v3428
    %7971 = vmatpush1.msra.mxu0 %v3427
    %7972 = vmatprep.subr.mxu0 %v3432
    %7973 = vmatpush1.msra.mxu0 %v3431
    %7974 = vmatprep.subr.mxu0 %v3436
    %7975 = vmatpush1.msra.mxu0 %v3435
    %7976 = vmatprep.subr.mxu0 %v3440
    %7977 = vmatpush1.msra.mxu0 %v3439
    %7978 = vmatprep.mubr.f32.mxu0 %v7913
    %7979 = vmatmul.mubr.f32.gmra.mrb[0].mxu0 %v7912
    %v7980 = vpop.f32.mrb[0].mxu0
    %v7981 = vadd.f32 %v3534, %v7980
    %v7982 = vpop.f32.mrb[0].mxu0
    %v7983 = vadd.f32 %v3538, %v7982
    %7984 = vdwg.mxu0
    %7985 = vmatprep.subr.mxu0 %v3444
    %7986 = vmatpush1.msra.mxu0 %v3443
    %7987 = vmatprep.subr.mxu0 %v3448
    %7988 = vmatpush1.msra.mxu0 %v3447
    %7989 = vmatprep.subr.mxu0 %v3452
    %7990 = vmatpush1.msra.mxu0 %v3451
    %7991 = vmatprep.subr.mxu0 %v3456
    %7992 = vmatpush1.msra.mxu0 %v3455
    %7993 = vmatprep.subr.mxu0 %v3460
    %7994 = vmatpush1.msra.mxu0 %v3459
    %7995 = vmatprep.subr.mxu0 %v3464
    %7996 = vmatpush1.msra.mxu0 %v3463
    %7997 = vmatprep.subr.mxu0 %v3468
    %7998 = vmatpush1.msra.mxu0 %v3467
    %7999 = vmatprep.subr.mxu0 %v3472
    %8000 = vmatpush1.msra.mxu0 %v3471
    %8001 = vmatprep.subr.mxu0 %v3476
    %8002 = vmatpush1.msra.mxu0 %v3475
    %8003 = vmatprep.subr.mxu0 %v3480
    %8004 = vmatpush1.msra.mxu0 %v3479
    %8005 = vmatprep.subr.mxu0 %v3484
    %8006 = vmatpush1.msra.mxu0 %v3483
    %8007 = vmatprep.subr.mxu0 %v3488
    %8008 = vmatpush1.msra.mxu0 %v3487
    %8009 = vmatprep.subr.mxu0 %v3492
    %8010 = vmatpush1.msra.mxu0 %v3491
    %8011 = vmatprep.subr.mxu0 %v3496
    %8012 = vmatpush1.msra.mxu0 %v3495
    %8013 = vmatprep.subr.mxu0 %v3500
    %8014 = vmatpush1.msra.mxu0 %v3499
    %8015 = vmatprep.subr.mxu0 %v3504
    %8016 = vmatpush1.msra.mxu0 %v3503
    %8017 = vmatprep.subr.mxu0 0.0
    %8018 = vmatpush1.msra.mxu0 0.0
    %8019 = vmatprep.subr.mxu0 0.0
    %8020 = vmatpush1.msra.mxu0 0.0
    %8021 = vmatprep.subr.mxu0 0.0
    %8022 = vmatpush1.msra.mxu0 0.0
    %8023 = vmatprep.subr.mxu0 0.0
    %8024 = vmatpush1.msra.mxu0 0.0
    %8025 = vmatprep.subr.mxu0 0.0
    %8026 = vmatpush1.msra.mxu0 0.0
    %8027 = vmatprep.subr.mxu0 0.0
    %8028 = vmatpush1.msra.mxu0 0.0
    %8029 = vmatprep.subr.mxu0 0.0
    %8030 = vmatpush1.msra.mxu0 0.0
    %8031 = vmatprep.subr.mxu0 0.0
    %8032 = vmatpush1.msra.mxu0 0.0
    %8033 = vmatprep.subr.mxu0 0.0
    %8034 = vmatpush1.msra.mxu0 0.0
    %8035 = vmatprep.subr.mxu0 0.0
    %8036 = vmatpush1.msra.mxu0 0.0
    %8037 = vmatprep.subr.mxu0 0.0
    %8038 = vmatpush1.msra.mxu0 0.0
    %8039 = vmatprep.subr.mxu0 0.0
    %8040 = vmatpush1.msra.mxu0 0.0
    %8041 = vmatprep.subr.mxu0 0.0
    %8042 = vmatpush1.msra.mxu0 0.0
    %8043 = vmatprep.subr.mxu0 0.0
    %8044 = vmatpush1.msra.mxu0 0.0
    %8045 = vmatprep.subr.mxu0 0.0
    %8046 = vmatpush1.msra.mxu0 0.0
    %8047 = vmatprep.subr.mxu0 0.0
    %8048 = vmatpush1.msra.mxu0 0.0
    %8049 = vmatprep.mubr.f32.mxu0 0.0
    %8050 = vmatmul.mubr.f32.gmra.mrb[0].mxu0 %v7910
    %v8051 = vpop.f32.mrb[0].mxu0
    %v8052 = vadd.f32 %v7981, %v8051
    %v8053 = vpop.f32.mrb[0].mxu0
    %v8054 = vadd.f32 %v7983, %v8053
    %8055 = vdwg.mxu0
    %8056 = vmatprep.subr.mxu0 %v3318
    %8057 = vmatpush1.msra.mxu0 %v3317
    %8058 = vmatprep.subr.mxu0 %v3322
    %8059 = vmatpush1.msra.mxu0 %v3321
    %8060 = vmatprep.subr.mxu0 %v3326
    %8061 = vmatpush1.msra.mxu0 %v3325
    %8062 = vmatprep.subr.mxu0 %v3330
    %8063 = vmatpush1.msra.mxu0 %v3329
    %8064 = vmatprep.subr.mxu0 %v3334
    %8065 = vmatpush1.msra.mxu0 %v3333
    %8066 = vmatprep.subr.mxu0 %v3338
    %8067 = vmatpush1.msra.mxu0 %v3337
    %8068 = vmatprep.subr.mxu0 %v3342
    %8069 = vmatpush1.msra.mxu0 %v3341
    %8070 = vmatprep.subr.mxu0 %v3346
    %8071 = vmatpush1.msra.mxu0 %v3345
    %8072 = vmatprep.subr.mxu0 %v3350
    %8073 = vmatpush1.msra.mxu0 %v3349
    %8074 = vmatprep.subr.mxu0 %v3354
    %8075 = vmatpush1.msra.mxu0 %v3353
    %8076 = vmatprep.subr.mxu0 %v3358
    %8077 = vmatpush1.msra.mxu0 %v3357
    %8078 = vmatprep.subr.mxu0 %v3362
    %8079 = vmatpush1.msra.mxu0 %v3361
    %8080 = vmatprep.subr.mxu0 %v3366
    %8081 = vmatpush1.msra.mxu0 %v3365
    %8082 = vmatprep.subr.mxu0 %v3370
    %8083 = vmatpush1.msra.mxu0 %v3369
    %8084 = vmatprep.subr.mxu0 %v3374
    %8085 = vmatpush1.msra.mxu0 %v3373
    %8086 = vmatprep.subr.mxu0 %v3378
    %8087 = vmatpush1.msra.mxu0 %v3377
    %8088 = vmatprep.subr.mxu0 %v3382
    %8089 = vmatpush1.msra.mxu0 %v3381
    %8090 = vmatprep.subr.mxu0 %v3386
    %8091 = vmatpush1.msra.mxu0 %v3385
    %8092 = vmatprep.subr.mxu0 %v3390
    %8093 = vmatpush1.msra.mxu0 %v3389
    %8094 = vmatprep.subr.mxu0 %v3394
    %8095 = vmatpush1.msra.mxu0 %v3393
    %8096 = vmatprep.subr.mxu0 %v3398
    %8097 = vmatpush1.msra.mxu0 %v3397
    %8098 = vmatprep.subr.mxu0 %v3402
    %8099 = vmatpush1.msra.mxu0 %v3401
    %8100 = vmatprep.subr.mxu0 %v3406
    %8101 = vmatpush1.msra.mxu0 %v3405
    %8102 = vmatprep.subr.mxu0 %v3410
    %8103 = vmatpush1.msra.mxu0 %v3409
    %8104 = vmatprep.subr.mxu0 %v3414
    %8105 = vmatpush1.msra.mxu0 %v3413
    %8106 = vmatprep.subr.mxu0 %v3418
    %8107 = vmatpush1.msra.mxu0 %v3417
    %8108 = vmatprep.subr.mxu0 %v3422
    %8109 = vmatpush1.msra.mxu0 %v3421
    %8110 = vmatprep.subr.mxu0 %v3426
    %8111 = vmatpush1.msra.mxu0 %v3425
    %8112 = vmatprep.subr.mxu0 %v3430
    %8113 = vmatpush1.msra.mxu0 %v3429
    %8114 = vmatprep.subr.mxu0 %v3434
    %8115 = vmatpush1.msra.mxu0 %v3433
    %8116 = vmatprep.subr.mxu0 %v3438
    %8117 = vmatpush1.msra.mxu0 %v3437
    %8118 = vmatprep.subr.mxu0 %v3442
    %8119 = vmatpush1.msra.mxu0 %v3441
    %8120 = vmatprep.mubr.f32.mxu0 %v7913
    %8121 = vmatmul.mubr.f32.gmra.mrb[0].mxu0 %v7912
    %v8122 = vpop.f32.mrb[0].mxu0
    %v8123 = vadd.f32 %v3542, %v8122
    %v8124 = vpop.f32.mrb[0].mxu0
    %v8125 = vadd.f32 %v3546, %v8124
    %8126 = vdwg.mxu0
    %8127 = vmatprep.subr.mxu0 %v3446
    %8128 = vmatpush1.msra.mxu0 %v3445
    %8129 = vmatprep.subr.mxu0 %v3450
    %8130 = vmatpush1.msra.mxu0 %v3449
    %8131 = vmatprep.subr.mxu0 %v3454
    %8132 = vmatpush1.msra.mxu0 %v3453
    %8133 = vmatprep.subr.mxu0 %v3458
    %8134 = vmatpush1.msra.mxu0 %v3457
    %8135 = vmatprep.subr.mxu0 %v3462
    %8136 = vmatpush1.msra.mxu0 %v3461
    %8137 = vmatprep.subr.mxu0 %v3466
    %8138 = vmatpush1.msra.mxu0 %v3465
    %8139 = vmatprep.subr.mxu0 %v3470
    %8140 = vmatpush1.msra.mxu0 %v3469
    %8141 = vmatprep.subr.mxu0 %v3474
    %8142 = vmatpush1.msra.mxu0 %v3473
    %8143 = vmatprep.subr.mxu0 %v3478
    %8144 = vmatpush1.msra.mxu0 %v3477
    %8145 = vmatprep.subr.mxu0 %v3482
    %8146 = vmatpush1.msra.mxu0 %v3481
    %8147 = vmatprep.subr.mxu0 %v3486
    %8148 = vmatpush1.msra.mxu0 %v3485
    %8149 = vmatprep.subr.mxu0 %v3490
    %8150 = vmatpush1.msra.mxu0 %v3489
    %8151 = vmatprep.subr.mxu0 %v3494
    %8152 = vmatpush1.msra.mxu0 %v3493
    %8153 = vmatprep.subr.mxu0 %v3498
    %8154 = vmatpush1.msra.mxu0 %v3497
    %8155 = vmatprep.subr.mxu0 %v3502
    %8156 = vmatpush1.msra.mxu0 %v3501
    %8157 = vmatprep.subr.mxu0 %v3506
    %8158 = vmatpush1.msra.mxu0 %v3505
    %8159 = vmatprep.subr.mxu0 0.0
    %8160 = vmatpush1.msra.mxu0 0.0
    %8161 = vmatprep.subr.mxu0 0.0
    %8162 = vmatpush1.msra.mxu0 0.0
    %8163 = vmatprep.subr.mxu0 0.0
    %8164 = vmatpush1.msra.mxu0 0.0
    %8165 = vmatprep.subr.mxu0 0.0
    %8166 = vmatpush1.msra.mxu0 0.0
    %8167 = vmatprep.subr.mxu0 0.0
    %8168 = vmatpush1.msra.mxu0 0.0
    %8169 = vmatprep.subr.mxu0 0.0
    %8170 = vmatpush1.msra.mxu0 0.0
    %8171 = vmatprep.subr.mxu0 0.0
    %8172 = vmatpush1.msra.mxu0 0.0
    %8173 = vmatprep.subr.mxu0 0.0
    %8174 = vmatpush1.msra.mxu0 0.0
    %8175 = vmatprep.subr.mxu0 0.0
    %8176 = vmatpush1.msra.mxu0 0.0
    %8177 = vmatprep.subr.mxu0 0.0
    %8178 = vmatpush1.msra.mxu0 0.0
    %8179 = vmatprep.subr.mxu0 0.0
    %8180 = vmatpush1.msra.mxu0 0.0
    %8181 = vmatprep.subr.mxu0 0.0
    %8182 = vmatpush1.msra.mxu0 0.0
    %8183 = vmatprep.subr.mxu0 0.0
    %8184 = vmatpush1.msra.mxu0 0.0
    %8185 = vmatprep.subr.mxu0 0.0
    %8186 = vmatpush1.msra.mxu0 0.0
    %8187 = vmatprep.subr.mxu0 0.0
    %8188 = vmatpush1.msra.mxu0 0.0
    %8189 = vmatprep.subr.mxu0 0.0
    %8190 = vmatpush1.msra.mxu0 0.0
    %8191 = vmatprep.mubr.f32.mxu0 0.0
    %8192 = vmatmul.mubr.f32.gmra.mrb[0].mxu0 %v7910
    %v8193 = vpop.f32.mrb[0].mxu0
    %v8194 = vadd.f32 %v8123, %v8193
    %v8195 = vpop.f32.mrb[0].mxu0
    %v8196 = vadd.f32 %v8125, %v8195
    %8197 = vdwg.mxu0
    %v8198 = vxor.u32 %v8052, 2147483648
    %v8199 = vmul.f32 %v8198, 1.442695
    %v8200 = vpow.pop %v8199
    %v8201 = vadd.f32 %v8200, 1.0
    %v8202 = vrcp.pop %v8201
    %v8203 = vmul.f32 1.0, %v8202
    %v8204 = vxor.u32 %v8054, 2147483648
    %v8205 = vmul.f32 %v8204, 1.442695
    %v8206 = vpow.pop %v8205
    %v8207 = vadd.f32 %v8206, 1.0
    %v8208 = vrcp.pop %v8207
    %v8209 = vmul.f32 1.0, %v8208
    %v8210 = vtanh.pop %v8194
    %v8211 = vxor.u32 %v8196, 2147483648
    %v8212 = vmul.f32 %v8211, 1.442695
    %v8213 = vpow.pop %v8212
    %v8214 = vadd.f32 %v8213, 1.0
    %v8215 = vrcp.pop %v8214
    %v8216 = vmul.f32 1.0, %v8215
    %v8217 = vmul.f32 %v8209, %v7908
    %v8218 = vmul.f32 %v8203, %v8210
    %v8219 = vadd.f32 %v8217, %v8218
    %v8220 = vtanh.pop %v8219
    %v8221 = vmul.f32 %v8216, %v8220
    %8222 = vst [vmem:[%s4172 + $0x8] sm:$0xff] %v8221
    %v8223 = vld [vmem:[#allocation2] sm:$0xff]
    %v8224 = vld [vmem:[#allocation2 + $0x8] sm:$0xff]
    %8225 = vmatprep.subr.mxu0 %v3316
    %8226 = vmatpush1.msra.mxu0 %v3315
    %8227 = vmatprep.subr.mxu0 %v3320
    %8228 = vmatpush1.msra.mxu0 %v3319
    %8229 = vmatprep.subr.mxu0 %v3324
    %8230 = vmatpush1.msra.mxu0 %v3323
    %8231 = vmatprep.subr.mxu0 %v3328
    %8232 = vmatpush1.msra.mxu0 %v3327
    %8233 = vmatprep.subr.mxu0 %v3332
    %8234 = vmatpush1.msra.mxu0 %v3331
    %8235 = vmatprep.subr.mxu0 %v3336
    %8236 = vmatpush1.msra.mxu0 %v3335
    %8237 = vmatprep.subr.mxu0 %v3340
    %8238 = vmatpush1.msra.mxu0 %v3339
    %8239 = vmatprep.subr.mxu0 %v3344
    %8240 = vmatpush1.msra.mxu0 %v3343
    %8241 = vmatprep.subr.mxu0 %v3348
    %8242 = vmatpush1.msra.mxu0 %v3347
    %8243 = vmatprep.subr.mxu0 %v3352
    %8244 = vmatpush1.msra.mxu0 %v3351
    %8245 = vmatprep.subr.mxu0 %v3356
    %8246 = vmatpush1.msra.mxu0 %v3355
    %8247 = vmatprep.subr.mxu0 %v3360
    %8248 = vmatpush1.msra.mxu0 %v3359
    %8249 = vmatprep.subr.mxu0 %v3364
    %8250 = vmatpush1.msra.mxu0 %v3363
    %8251 = vmatprep.subr.mxu0 %v3368
    %8252 = vmatpush1.msra.mxu0 %v3367
    %8253 = vmatprep.subr.mxu0 %v3372
    %8254 = vmatpush1.msra.mxu0 %v3371
    %8255 = vmatprep.subr.mxu0 %v3376
    %8256 = vmatpush1.msra.mxu0 %v3375
    %8257 = vmatprep.subr.mxu0 %v3380
    %8258 = vmatpush1.msra.mxu0 %v3379
    %8259 = vmatprep.subr.mxu0 %v3384
    %8260 = vmatpush1.msra.mxu0 %v3383
    %8261 = vmatprep.subr.mxu0 %v3388
    %8262 = vmatpush1.msra.mxu0 %v3387
    %8263 = vmatprep.subr.mxu0 %v3392
    %8264 = vmatpush1.msra.mxu0 %v3391
    %8265 = vmatprep.subr.mxu0 %v3396
    %8266 = vmatpush1.msra.mxu0 %v3395
    %8267 = vmatprep.subr.mxu0 %v3400
    %8268 = vmatpush1.msra.mxu0 %v3399
    %8269 = vmatprep.subr.mxu0 %v3404
    %8270 = vmatpush1.msra.mxu0 %v3403
    %8271 = vmatprep.subr.mxu0 %v3408
    %8272 = vmatpush1.msra.mxu0 %v3407
    %8273 = vmatprep.subr.mxu0 %v3412
    %8274 = vmatpush1.msra.mxu0 %v3411
    %8275 = vmatprep.subr.mxu0 %v3416
    %8276 = vmatpush1.msra.mxu0 %v3415
    %8277 = vmatprep.subr.mxu0 %v3420
    %8278 = vmatpush1.msra.mxu0 %v3419
    %8279 = vmatprep.subr.mxu0 %v3424
    %8280 = vmatpush1.msra.mxu0 %v3423
    %8281 = vmatprep.subr.mxu0 %v3428
    %8282 = vmatpush1.msra.mxu0 %v3427
    %8283 = vmatprep.subr.mxu0 %v3432
    %8284 = vmatpush1.msra.mxu0 %v3431
    %8285 = vmatprep.subr.mxu0 %v3436
    %8286 = vmatpush1.msra.mxu0 %v3435
    %8287 = vmatprep.subr.mxu0 %v3440
    %8288 = vmatpush1.msra.mxu0 %v3439
    %8289 = vmatprep.mubr.f32.mxu0 %v8224
    %8290 = vmatmul.mubr.f32.gmra.mrb[0].mxu0 %v8223
    %v8291 = vpop.f32.mrb[0].mxu0
    %v8292 = vadd.f32 %v3534, %v8291
    %v8293 = vpop.f32.mrb[0].mxu0
    %v8294 = vadd.f32 %v3538, %v8293
    %8295 = vdwg.mxu0
    %8296 = vmatprep.subr.mxu0 %v3444
    %8297 = vmatpush1.msra.mxu0 %v3443
    %8298 = vmatprep.subr.mxu0 %v3448
    %8299 = vmatpush1.msra.mxu0 %v3447
    %8300 = vmatprep.subr.mxu0 %v3452
    %8301 = vmatpush1.msra.mxu0 %v3451
    %8302 = vmatprep.subr.mxu0 %v3456
    %8303 = vmatpush1.msra.mxu0 %v3455
    %8304 = vmatprep.subr.mxu0 %v3460
    %8305 = vmatpush1.msra.mxu0 %v3459
    %8306 = vmatprep.subr.mxu0 %v3464
    %8307 = vmatpush1.msra.mxu0 %v3463
    %8308 = vmatprep.subr.mxu0 %v3468
    %8309 = vmatpush1.msra.mxu0 %v3467
    %8310 = vmatprep.subr.mxu0 %v3472
    %8311 = vmatpush1.msra.mxu0 %v3471
    %8312 = vmatprep.subr.mxu0 %v3476
    %8313 = vmatpush1.msra.mxu0 %v3475
    %8314 = vmatprep.subr.mxu0 %v3480
    %8315 = vmatpush1.msra.mxu0 %v3479
    %8316 = vmatprep.subr.mxu0 %v3484
    %8317 = vmatpush1.msra.mxu0 %v3483
    %8318 = vmatprep.subr.mxu0 %v3488
    %8319 = vmatpush1.msra.mxu0 %v3487
    %8320 = vmatprep.subr.mxu0 %v3492
    %8321 = vmatpush1.msra.mxu0 %v3491
    %8322 = vmatprep.subr.mxu0 %v3496
    %8323 = vmatpush1.msra.mxu0 %v3495
    %8324 = vmatprep.subr.mxu0 %v3500
    %8325 = vmatpush1.msra.mxu0 %v3499
    %8326 = vmatprep.subr.mxu0 %v3504
    %8327 = vmatpush1.msra.mxu0 %v3503
    %8328 = vmatprep.subr.mxu0 0.0
    %8329 = vmatpush1.msra.mxu0 0.0
    %8330 = vmatprep.subr.mxu0 0.0
    %8331 = vmatpush1.msra.mxu0 0.0
    %8332 = vmatprep.subr.mxu0 0.0
    %8333 = vmatpush1.msra.mxu0 0.0
    %8334 = vmatprep.subr.mxu0 0.0
    %8335 = vmatpush1.msra.mxu0 0.0
    %8336 = vmatprep.subr.mxu0 0.0
    %8337 = vmatpush1.msra.mxu0 0.0
    %8338 = vmatprep.subr.mxu0 0.0
    %8339 = vmatpush1.msra.mxu0 0.0
    %8340 = vmatprep.subr.mxu0 0.0
    %8341 = vmatpush1.msra.mxu0 0.0
    %8342 = vmatprep.subr.mxu0 0.0
    %8343 = vmatpush1.msra.mxu0 0.0
    %8344 = vmatprep.subr.mxu0 0.0
    %8345 = vmatpush1.msra.mxu0 0.0
    %8346 = vmatprep.subr.mxu0 0.0
    %8347 = vmatpush1.msra.mxu0 0.0
    %8348 = vmatprep.subr.mxu0 0.0
    %8349 = vmatpush1.msra.mxu0 0.0
    %8350 = vmatprep.subr.mxu0 0.0
    %8351 = vmatpush1.msra.mxu0 0.0
    %8352 = vmatprep.subr.mxu0 0.0
    %8353 = vmatpush1.msra.mxu0 0.0
    %8354 = vmatprep.subr.mxu0 0.0
    %8355 = vmatpush1.msra.mxu0 0.0
    %8356 = vmatprep.subr.mxu0 0.0
    %8357 = vmatpush1.msra.mxu0 0.0
    %8358 = vmatprep.subr.mxu0 0.0
    %8359 = vmatpush1.msra.mxu0 0.0
    %8360 = vmatprep.mubr.f32.mxu0 0.0
    %8361 = vmatmul.mubr.f32.gmra.mrb[0].mxu0 %v8221
    %v8362 = vpop.f32.mrb[0].mxu0
    %v8363 = vadd.f32 %v8292, %v8362
    %v8364 = vpop.f32.mrb[0].mxu0
    %v8365 = vadd.f32 %v8294, %v8364
    %8366 = vdwg.mxu0
    %8367 = vmatprep.subr.mxu0 %v3318
    %8368 = vmatpush1.msra.mxu0 %v3317
    %8369 = vmatprep.subr.mxu0 %v3322
    %8370 = vmatpush1.msra.mxu0 %v3321
    %8371 = vmatprep.subr.mxu0 %v3326
    %8372 = vmatpush1.msra.mxu0 %v3325
    %8373 = vmatprep.subr.mxu0 %v3330
    %8374 = vmatpush1.msra.mxu0 %v3329
    %8375 = vmatprep.subr.mxu0 %v3334
    %8376 = vmatpush1.msra.mxu0 %v3333
    %8377 = vmatprep.subr.mxu0 %v3338
    %8378 = vmatpush1.msra.mxu0 %v3337
    %8379 = vmatprep.subr.mxu0 %v3342
    %8380 = vmatpush1.msra.mxu0 %v3341
    %8381 = vmatprep.subr.mxu0 %v3346
    %8382 = vmatpush1.msra.mxu0 %v3345
    %8383 = vmatprep.subr.mxu0 %v3350
    %8384 = vmatpush1.msra.mxu0 %v3349
    %8385 = vmatprep.subr.mxu0 %v3354
    %8386 = vmatpush1.msra.mxu0 %v3353
    %8387 = vmatprep.subr.mxu0 %v3358
    %8388 = vmatpush1.msra.mxu0 %v3357
    %8389 = vmatprep.subr.mxu0 %v3362
    %8390 = vmatpush1.msra.mxu0 %v3361
    %8391 = vmatprep.subr.mxu0 %v3366
    %8392 = vmatpush1.msra.mxu0 %v3365
    %8393 = vmatprep.subr.mxu0 %v3370
    %8394 = vmatpush1.msra.mxu0 %v3369
    %8395 = vmatprep.subr.mxu0 %v3374
    %8396 = vmatpush1.msra.mxu0 %v3373
    %8397 = vmatprep.subr.mxu0 %v3378
    %8398 = vmatpush1.msra.mxu0 %v3377
    %8399 = vmatprep.subr.mxu0 %v3382
    %8400 = vmatpush1.msra.mxu0 %v3381
    %8401 = vmatprep.subr.mxu0 %v3386
    %8402 = vmatpush1.msra.mxu0 %v3385
    %8403 = vmatprep.subr.mxu0 %v3390
    %8404 = vmatpush1.msra.mxu0 %v3389
    %8405 = vmatprep.subr.mxu0 %v3394
    %8406 = vmatpush1.msra.mxu0 %v3393
    %8407 = vmatprep.subr.mxu0 %v3398
    %8408 = vmatpush1.msra.mxu0 %v3397
    %8409 = vmatprep.subr.mxu0 %v3402
    %8410 = vmatpush1.msra.mxu0 %v3401
    %8411 = vmatprep.subr.mxu0 %v3406
    %8412 = vmatpush1.msra.mxu0 %v3405
    %8413 = vmatprep.subr.mxu0 %v3410
    %8414 = vmatpush1.msra.mxu0 %v3409
    %8415 = vmatprep.subr.mxu0 %v3414
    %8416 = vmatpush1.msra.mxu0 %v3413
    %8417 = vmatprep.subr.mxu0 %v3418
    %8418 = vmatpush1.msra.mxu0 %v3417
    %8419 = vmatprep.subr.mxu0 %v3422
    %8420 = vmatpush1.msra.mxu0 %v3421
    %8421 = vmatprep.subr.mxu0 %v3426
    %8422 = vmatpush1.msra.mxu0 %v3425
    %8423 = vmatprep.subr.mxu0 %v3430
    %8424 = vmatpush1.msra.mxu0 %v3429
    %8425 = vmatprep.subr.mxu0 %v3434
    %8426 = vmatpush1.msra.mxu0 %v3433
    %8427 = vmatprep.subr.mxu0 %v3438
    %8428 = vmatpush1.msra.mxu0 %v3437
    %8429 = vmatprep.subr.mxu0 %v3442
    %8430 = vmatpush1.msra.mxu0 %v3441
    %8431 = vmatprep.mubr.f32.mxu0 %v8224
    %8432 = vmatmul.mubr.f32.gmra.mrb[0].mxu0 %v8223
    %v8433 = vpop.f32.mrb[0].mxu0
    %v8434 = vadd.f32 %v3542, %v8433
    %v8435 = vpop.f32.mrb[0].mxu0
    %v8436 = vadd.f32 %v3546, %v8435
    %8437 = vdwg.mxu0
    %8438 = vmatprep.subr.mxu0 %v3446
    %8439 = vmatpush1.msra.mxu0 %v3445
    %8440 = vmatprep.subr.mxu0 %v3450
    %8441 = vmatpush1.msra.mxu0 %v3449
    %8442 = vmatprep.subr.mxu0 %v3454
    %8443 = vmatpush1.msra.mxu0 %v3453
    %8444 = vmatprep.subr.mxu0 %v3458
    %8445 = vmatpush1.msra.mxu0 %v3457
    %8446 = vmatprep.subr.mxu0 %v3462
    %8447 = vmatpush1.msra.mxu0 %v3461
    %8448 = vmatprep.subr.mxu0 %v3466
    %8449 = vmatpush1.msra.mxu0 %v3465
    %8450 = vmatprep.subr.mxu0 %v3470
    %8451 = vmatpush1.msra.mxu0 %v3469
    %8452 = vmatprep.subr.mxu0 %v3474
    %8453 = vmatpush1.msra.mxu0 %v3473
    %8454 = vmatprep.subr.mxu0 %v3478
    %8455 = vmatpush1.msra.mxu0 %v3477
    %8456 = vmatprep.subr.mxu0 %v3482
    %8457 = vmatpush1.msra.mxu0 %v3481
    %8458 = vmatprep.subr.mxu0 %v3486
    %8459 = vmatpush1.msra.mxu0 %v3485
    %8460 = vmatprep.subr.mxu0 %v3490
    %8461 = vmatpush1.msra.mxu0 %v3489
    %8462 = vmatprep.subr.mxu0 %v3494
    %8463 = vmatpush1.msra.mxu0 %v3493
    %8464 = vmatprep.subr.mxu0 %v3498
    %8465 = vmatpush1.msra.mxu0 %v3497
    %8466 = vmatprep.subr.mxu0 %v3502
    %8467 = vmatpush1.msra.mxu0 %v3501
    %8468 = vmatprep.subr.mxu0 %v3506
    %8469 = vmatpush1.msra.mxu0 %v3505
    %8470 = vmatprep.subr.mxu0 0.0
    %8471 = vmatpush1.msra.mxu0 0.0
    %8472 = vmatprep.subr.mxu0 0.0
    %8473 = vmatpush1.msra.mxu0 0.0
    %8474 = vmatprep.subr.mxu0 0.0
    %8475 = vmatpush1.msra.mxu0 0.0
    %8476 = vmatprep.subr.mxu0 0.0
    %8477 = vmatpush1.msra.mxu0 0.0
    %8478 = vmatprep.subr.mxu0 0.0
    %8479 = vmatpush1.msra.mxu0 0.0
    %8480 = vmatprep.subr.mxu0 0.0
    %8481 = vmatpush1.msra.mxu0 0.0
    %8482 = vmatprep.subr.mxu0 0.0
    %8483 = vmatpush1.msra.mxu0 0.0
    %8484 = vmatprep.subr.mxu0 0.0
    %8485 = vmatpush1.msra.mxu0 0.0
    %8486 = vmatprep.subr.mxu0 0.0
    %8487 = vmatpush1.msra.mxu0 0.0
    %8488 = vmatprep.subr.mxu0 0.0
    %8489 = vmatpush1.msra.mxu0 0.0
    %8490 = vmatprep.subr.mxu0 0.0
    %8491 = vmatpush1.msra.mxu0 0.0
    %8492 = vmatprep.subr.mxu0 0.0
    %8493 = vmatpush1.msra.mxu0 0.0
    %8494 = vmatprep.subr.mxu0 0.0
    %8495 = vmatpush1.msra.mxu0 0.0
    %8496 = vmatprep.subr.mxu0 0.0
    %8497 = vmatpush1.msra.mxu0 0.0
    %8498 = vmatprep.subr.mxu0 0.0
    %8499 = vmatpush1.msra.mxu0 0.0
    %8500 = vmatprep.subr.mxu0 0.0
    %8501 = vmatpush1.msra.mxu0 0.0
    %8502 = vmatprep.mubr.f32.mxu0 0.0
    %8503 = vmatmul.mubr.f32.gmra.mrb[0].mxu0 %v8221
    %v8504 = vpop.f32.mrb[0].mxu0
    %v8505 = vadd.f32 %v8434, %v8504
    %v8506 = vpop.f32.mrb[0].mxu0
    %v8507 = vadd.f32 %v8436, %v8506
    %8508 = vdwg.mxu0
    %v8509 = vxor.u32 %v8363, 2147483648
    %v8510 = vmul.f32 %v8509, 1.442695
    %v8511 = vpow.pop %v8510
    %v8512 = vadd.f32 %v8511, 1.0
    %v8513 = vrcp.pop %v8512
    %v8514 = vmul.f32 1.0, %v8513
    %v8515 = vxor.u32 %v8365, 2147483648
    %v8516 = vmul.f32 %v8515, 1.442695
    %v8517 = vpow.pop %v8516
    %v8518 = vadd.f32 %v8517, 1.0
    %v8519 = vrcp.pop %v8518
    %v8520 = vmul.f32 1.0, %v8519
    %v8521 = vtanh.pop %v8505
    %v8522 = vxor.u32 %v8507, 2147483648
    %v8523 = vmul.f32 %v8522, 1.442695
    %v8524 = vpow.pop %v8523
    %v8525 = vadd.f32 %v8524, 1.0
    %v8526 = vrcp.pop %v8525
    %v8527 = vmul.f32 1.0, %v8526
    %v8528 = vmul.f32 %v8520, %v8219
    %v8529 = vmul.f32 %v8514, %v8521
    %v8530 = vadd.f32 %v8528, %v8529
    %v8531 = vtanh.pop %v8530
    %v8532 = vmul.f32 %v8527, %v8531
    %8533 = vst [vmem:[#allocation3 + $0x8] sm:$0xff] %v8532
    %v8534 = vld [vmem:[%s6044] sm:$0xff]
    %v8535 = vld [vmem:[%s6044 + $0x8] sm:$0xff]
    %v8536 = vld [vmem:[#allocation13] sm:$0xff]
    %v8537 = vld [vmem:[#allocation13 + $0x8] sm:$0xff]
    %v8538 = vld [vmem:[#allocation13 + $0x10] sm:$0xff]
    %v8539 = vld [vmem:[#allocation13 + $0x18] sm:$0xff]
    %v8540 = vld [vmem:[#allocation13 + $0x20] sm:$0xff]
    %v8541 = vld [vmem:[#allocation13 + $0x28] sm:$0xff]
    %v8542 = vld [vmem:[#allocation13 + $0x30] sm:$0xff]
    %v8543 = vld [vmem:[#allocation13 + $0x38] sm:$0xff]
    %v8544 = vld [vmem:[#allocation13 + $0x40] sm:$0xff]
    %v8545 = vld [vmem:[#allocation13 + $0x48] sm:$0xff]
    %v8546 = vld [vmem:[#allocation13 + $0x50] sm:$0xff]
    %v8547 = vld [vmem:[#allocation13 + $0x58] sm:$0xff]
    %v8548 = vld [vmem:[#allocation13 + $0x60] sm:$0xff]
    %v8549 = vld [vmem:[#allocation13 + $0x68] sm:$0xff]
    %v8550 = vld [vmem:[#allocation13 + $0x70] sm:$0xff]
    %v8551 = vld [vmem:[#allocation13 + $0x78] sm:$0xff]
    %v8552 = vld [vmem:[#allocation13 + $0x80] sm:$0xff]
    %v8553 = vld [vmem:[#allocation13 + $0x88] sm:$0xff]
    %v8554 = vld [vmem:[#allocation13 + $0x90] sm:$0xff]
    %v8555 = vld [vmem:[#allocation13 + $0x98] sm:$0xff]
    %v8556 = vld [vmem:[#allocation13 + $0xa0] sm:$0xff]
    %v8557 = vld [vmem:[#allocation13 + $0xa8] sm:$0xff]
    %v8558 = vld [vmem:[#allocation13 + $0xb0] sm:$0xff]
    %v8559 = vld [vmem:[#allocation13 + $0xb8] sm:$0xff]
    %v8560 = vld [vmem:[#allocation13 + $0xc0] sm:$0xff]
    %v8561 = vld [vmem:[#allocation13 + $0xc8] sm:$0xff]
    %v8562 = vld [vmem:[#allocation13 + $0xd0] sm:$0xff]
    %v8563 = vld [vmem:[#allocation13 + $0xd8] sm:$0xff]
    %v8564 = vld [vmem:[#allocation13 + $0xe0] sm:$0xff]
    %v8565 = vld [vmem:[#allocation13 + $0xe8] sm:$0xff]
    %v8566 = vld [vmem:[#allocation13 + $0xf0] sm:$0xff]
    %v8567 = vld [vmem:[#allocation13 + $0xf8] sm:$0xff]
    %v8568 = vld [vmem:[%s10] sm:$0x1]
    %v8570 = vlaneseq
    %v8571 = vshrl.u32 %v8570, 7
    %v8572 = vsub.s32 0, %v8571
    %v8573 = vrot.slane %v8568, %v8572
    %8575 = vmatprep.subr.mxu0 0.0
    %8576 = vmatpush1.msra.mxu0 %v8536
    %8577 = vmatprep.subr.mxu0 0.0
    %8578 = vmatpush1.msra.mxu0 %v8537
    %8579 = vmatprep.subr.mxu0 0.0
    %8580 = vmatpush1.msra.mxu0 %v8538
    %8581 = vmatprep.subr.mxu0 0.0
    %8582 = vmatpush1.msra.mxu0 %v8539
    %8583 = vmatprep.subr.mxu0 0.0
    %8584 = vmatpush1.msra.mxu0 %v8540
    %8585 = vmatprep.subr.mxu0 0.0
    %8586 = vmatpush1.msra.mxu0 %v8541
    %8587 = vmatprep.subr.mxu0 0.0
    %8588 = vmatpush1.msra.mxu0 %v8542
    %8589 = vmatprep.subr.mxu0 0.0
    %8590 = vmatpush1.msra.mxu0 %v8543
    %8591 = vmatprep.subr.mxu0 0.0
    %8592 = vmatpush1.msra.mxu0 %v8544
    %8593 = vmatprep.subr.mxu0 0.0
    %8594 = vmatpush1.msra.mxu0 %v8545
    %8595 = vmatprep.subr.mxu0 0.0
    %8596 = vmatpush1.msra.mxu0 %v8546
    %8597 = vmatprep.subr.mxu0 0.0
    %8598 = vmatpush1.msra.mxu0 %v8547
    %8599 = vmatprep.subr.mxu0 0.0
    %8600 = vmatpush1.msra.mxu0 %v8548
    %8601 = vmatprep.subr.mxu0 0.0
    %8602 = vmatpush1.msra.mxu0 %v8549
    %8603 = vmatprep.subr.mxu0 0.0
    %8604 = vmatpush1.msra.mxu0 %v8550
    %8605 = vmatprep.subr.mxu0 0.0
    %8606 = vmatpush1.msra.mxu0 %v8551
    %8607 = vmatprep.subr.mxu0 0.0
    %8608 = vmatpush1.msra.mxu0 %v8552
    %8609 = vmatprep.subr.mxu0 0.0
    %8610 = vmatpush1.msra.mxu0 %v8553
    %8611 = vmatprep.subr.mxu0 0.0
    %8612 = vmatpush1.msra.mxu0 %v8554
    %8613 = vmatprep.subr.mxu0 0.0
    %8614 = vmatpush1.msra.mxu0 %v8555
    %8615 = vmatprep.subr.mxu0 0.0
    %8616 = vmatpush1.msra.mxu0 %v8556
    %8617 = vmatprep.subr.mxu0 0.0
    %8618 = vmatpush1.msra.mxu0 %v8557
    %8619 = vmatprep.subr.mxu0 0.0
    %8620 = vmatpush1.msra.mxu0 %v8558
    %8621 = vmatprep.subr.mxu0 0.0
    %8622 = vmatpush1.msra.mxu0 %v8559
    %8623 = vmatprep.subr.mxu0 0.0
    %8624 = vmatpush1.msra.mxu0 %v8560
    %8625 = vmatprep.subr.mxu0 0.0
    %8626 = vmatpush1.msra.mxu0 %v8561
    %8627 = vmatprep.subr.mxu0 0.0
    %8628 = vmatpush1.msra.mxu0 %v8562
    %8629 = vmatprep.subr.mxu0 0.0
    %8630 = vmatpush1.msra.mxu0 %v8563
    %8631 = vmatprep.subr.mxu0 0.0
    %8632 = vmatpush1.msra.mxu0 %v8564
    %8633 = vmatprep.subr.mxu0 0.0
    %8634 = vmatpush1.msra.mxu0 %v8565
    %8635 = vmatprep.subr.mxu0 0.0
    %8636 = vmatpush1.msra.mxu0 %v8566
    %8637 = vmatprep.subr.mxu0 0.0
    %8638 = vmatpush1.msra.mxu0 %v8567
    %8639 = vmatprep.mubr.f32.mxu0 %v8535
    %8640 = vmatmul.mubr.f32.gmra.mrb[0].mxu0 %v8534
    %v8641 = vpop.f32.mrb[0].mxu0
    %v8642 = vadd.f32 %v8573, %v8641
    %v8643 = vpop.f32.mrb[0].mxu0
    %8644 = vdwg.mxu0
    %v8645 = vxor.u32 %v8642, 2147483648
    %v8646 = vmul.f32 %v8645, 1.442695
    %v8647 = vpow.pop %v8646
    %v8648 = vadd.f32 %v8647, 1.0
    %v8649 = vrcp.pop %v8648
    %v8650 = vmul.f32 1.0, %v8649
    %8651 = vst [vmem:[#allocation15] sm:$0xff] %v8650
    // Predicated region
    $region70: #{tpu_custom_call.1} parent=1 // pred_check
      _
    $region71: #{tpu_custom_call.1} parent=1 // pred_check_branch
      %8653 = sbr.rel (0) target = $region73
    $region72: #{tpu_custom_call.1} parent=1 // pred_region
      %s8655 = ssub.s32 128, 128
      %8656 = vsyncadd [#allocation6], %s8655
      %s8658 = sshll.u32 [#allocation15], 4
      %s8659 = int_to_ptr.vmem [resolvable:$true] %s8658
      %8661 = dma.vmem_to_hbm [thread:$0]  %s8659, 128, %s11, [#allocation6]
    $region73: #{tpu_custom_call.1} parent=1 // pred_fallthru
      _
    // Predicated region
    $region74: #{tpu_custom_call.1} parent=1 // pred_check
      _
    $region75: #{tpu_custom_call.1} parent=1 // pred_check_branch
      %8663 = sbr.rel (0) target = $region77
    $region76: #{tpu_custom_call.1} parent=1 // pred_region
      %8664 = dma.done [#allocation6], 128
    $region77: #{tpu_custom_call.1} parent=1 // pred_fallthru
      _
    %8665 = vsyncpa [#allocation5], 1
    %8666 = vsyncpa [#allocation8], 1
    %8667 = vsyncpa [#allocation11], 1
    %8668 = vsyncpa [#allocation14], 1
    %8669 = vsyncpa [#allocation6], 1

</llo_original>
